<compile_context>
chip_gen: v7x
topology: tpu7x:2x2x1
jax: 0.10.0
libtpu: 0.0.40
codegen_flags: <defaults>
</compile_context>

<pallas_src>
import functools

import jax
import jax.numpy as jnp
from jax import lax
from jax.experimental import pallas as pl
from jax.experimental.pallas import tpu as pltpu


# ---------------------------------------------------------------------------
# Pallas kernel: WB windows of multi-head overlapping cross attention + proj.
# ---------------------------------------------------------------------------
def _ocab_attn_kernel(q_ref, k_ref, v_ref, bias_ref, wp_ref, bp_ref, out_ref, *,
                      num_heads, head_dim):
    WB, nq, C = q_ref.shape

    acc = jnp.zeros((WB, nq, C), jnp.float32)

    # Static unroll over heads (nH is small here).  For large nH, switch to a
    # lax.fori_loop over a head-major (nH, nq, hd) layout to bound live ranges.
    for h in range(num_heads):
        lo = h * head_dim
        hi = lo + head_dim
        qh = q_ref[:, :, lo:hi]          # (WB, nq, hd) bf16, scale pre-folded
        kh = k_ref[:, :, lo:hi]          # (WB, n,  hd) bf16
        vh = v_ref[:, :, lo:hi]          # (WB, n,  hd) bf16

        # q @ k^T, batched over windows; no explicit transpose (MXU takes the
        # RHS transposed via dimension_numbers).
        attn = lax.dot_general(
            qh, kh, (((2,), (2,)), ((0,), (0,))),
            preferred_element_type=jnp.float32)              # (WB, nq, n) f32
        attn = attn + bias_ref[h]                            # (nq, n) bcast

        # numerically-stable softmax in f32; reciprocal on the (idle) EUP.
        m = jnp.max(attn, axis=-1, keepdims=True)
        e = jnp.exp(attn - m)
        s = jnp.sum(e, axis=-1, keepdims=True)
        p = e * pl.reciprocal(s, approx=True)

        oh = lax.dot_general(
            p.astype(vh.dtype), vh, (((2,), (1,)), ((0,), (0,))),
            preferred_element_type=jnp.float32)              # (WB, nq, hd)

        # Accumulate the output projection per head -- no head concatenate.
        acc = acc + lax.dot_general(
            oh.astype(wp_ref.dtype), wp_ref[lo:hi, :],
            (((2,), (0,)), ((), ())),
            preferred_element_type=jnp.float32)              # (WB, nq, C)

    y = acc + bp_ref[...]                                    # (1, C) bias
    # NOTE(perf): a lane-dense (WB, 1, nq*C) store would avoid 32-of-128-lane
    # masked vst's, but requires merging the minor dim in-kernel (reshape whose
    # Mosaic lowering is not guaranteed); keep the known-good 3-D store.
    out_ref[...] = y.astype(out_ref.dtype)


def _choose_windows_per_step(B_, nq, n, C):
    """Windows per grid step: amortize per-step overhead, keep the attention
    temporaries comfortably inside VMEM (v7x has only 64 MiB), and keep >= 2
    grid steps so the 'parallel' axis can split across TensorCores."""
    budget = 4 * 1024 * 1024
    per_win = nq * n * 4 + (nq + 2 * n) * C * 2 + nq * C * 4
    cap = max(1, min(B_, budget // max(per_win, 1)))
    if B_ >= 2:
        cap = max(1, min(cap, B_ // 2))
    for wb in range(cap, 0, -1):
        if B_ % wb == 0:
            return wb
    return 1


def ocab_attention_pallas(q_win, k_win, v_win, bias, wproj, bproj, *,
                          num_heads, out_dtype):
    """q_win: (B_, nq, C); k_win/v_win: (B_, n, C); bias: (nH, nq, n);
    wproj: (C, C) laid out (in, out); bproj: (C,).  Returns (B_, nq, C)."""
    B_, nq, C = q_win.shape
    n = k_win.shape[1]
    head_dim = C // num_heads
    WB = _choose_windows_per_step(B_, nq, n, C)
    grid = (B_ // WB,)

    # bf16 MXU operands (also halves input DMA bytes); softmax/accum stay f32.
    qb = q_win.astype(jnp.bfloat16)
    kb = k_win.astype(jnp.bfloat16)
    vb = v_win.astype(jnp.bfloat16)
    wpb = wproj.astype(jnp.bfloat16)
    biasf = bias.astype(jnp.float32)
    bpf = bproj.reshape(1, C).astype(jnp.float32)

    kernel = functools.partial(_ocab_attn_kernel,
                               num_heads=num_heads, head_dim=head_dim)

    return pl.pallas_call(
        kernel,
        out_shape=jax.ShapeDtypeStruct((B_, nq, C), out_dtype),
        grid_spec=pltpu.PrefetchScalarGridSpec(
            num_scalar_prefetch=0,
            grid=grid,
            in_specs=[
                pl.BlockSpec((WB, nq, C), lambda i: (i, 0, 0)),          # q
                pl.BlockSpec((WB, n, C), lambda i: (i, 0, 0)),           # k
                pl.BlockSpec((WB, n, C), lambda i: (i, 0, 0)),           # v
                pl.BlockSpec((num_heads, nq, n), lambda i: (0, 0, 0)),   # bias (resident)
                pl.BlockSpec((C, C), lambda i: (0, 0)),                  # W_proj
                pl.BlockSpec((1, C), lambda i: (0, 0)),                  # b_proj
            ],
            out_specs=pl.BlockSpec((WB, nq, C), lambda i: (i, 0, 0)),
        ),
        compiler_params=pltpu.CompilerParams(
            dimension_semantics=("parallel",)),
    )(qb, kb, vb, biasf, wpb, bpf)


# ---------------------------------------------------------------------------
# Pure-JAX reference attention core (f32) for validation.
# ---------------------------------------------------------------------------
def ocab_attention_ref(q_win, k_win, v_win, bias, wproj, bproj, *, num_heads):
    B_, nq, C = q_win.shape
    n = k_win.shape[1]
    hd = C // num_heads
    q = q_win.reshape(B_, nq, num_heads, hd).transpose(0, 2, 1, 3)
    k = k_win.reshape(B_, n, num_heads, hd).transpose(0, 2, 1, 3)
    v = v_win.reshape(B_, n, num_heads, hd).transpose(0, 2, 1, 3)
    attn = jnp.einsum('bhqd,bhkd->bhqk', q, k) + bias[None]
    attn = jax.nn.softmax(attn, axis=-1)
    o = jnp.einsum('bhqk,bhkd->bhqd', attn, v)
    o = o.transpose(0, 2, 1, 3).reshape(B_, nq, C)
    return o @ wproj + bproj


# ---------------------------------------------------------------------------
# JAX glue mirroring the PyTorch module (pre/post processing around the kernel)
# ---------------------------------------------------------------------------
def layer_norm(x, w, b, eps=1e-5):
    mu = jnp.mean(x, axis=-1, keepdims=True)
    var = jnp.mean((x - mu) ** 2, axis=-1, keepdims=True)
    return (x - mu) * lax.rsqrt(var + eps) * w + b


def window_partition(x, ws):
    b, h, w, c = x.shape
    x = x.reshape(b, h // ws, ws, w // ws, ws, c)
    return x.transpose(0, 1, 3, 2, 4, 5).reshape(-1, ws, ws, c)


def window_reverse(windows, ws, h, w):
    b = windows.shape[0] // ((h // ws) * (w // ws))
    x = windows.reshape(b, h // ws, w // ws, ws, ws, -1)
    return x.transpose(0, 1, 3, 2, 4, 5).reshape(b, h, w, -1)


def haar_highfreq(x):
    """J=1 'periodization' Haar DWT detail bands: (b, c, 2H, 2W) -> (b, 3c, H, W)."""
    # TODO(synk): band order / sign convention follows standard Haar; the
    # pytorch_wavelets rbio1.1 DWTForward may differ by sign / band order
    # (a difference absorbed by the learned 1x1 conv_down that follows).
    bsz, c, H2, W2 = x.shape
    xb = x.reshape(bsz, c, H2 // 2, 2, W2 // 2, 2)
    a = xb[:, :, :, 0, :, 0]
    b_ = xb[:, :, :, 0, :, 1]
    cc = xb[:, :, :, 1, :, 0]
    d = xb[:, :, :, 1, :, 1]
    lh = (a - b_ + cc - d) * 0.5
    hl = (a + b_ - cc - d) * 0.5
    hh = (a - b_ - cc + d) * 0.5
    return jnp.concatenate([lh, hl, hh], axis=1)


def calculate_rpi_oca(window_size, overlap_win_size):
    """Relative position index for overlapping cross-attention: (ws^2, ows^2)."""
    ws, wse = window_size, overlap_win_size
    co = jnp.stack(jnp.meshgrid(jnp.arange(ws), jnp.arange(ws),
                                indexing='ij')).reshape(2, -1)
    ce = jnp.stack(jnp.meshgrid(jnp.arange(wse), jnp.arange(wse),
                                indexing='ij')).reshape(2, -1)
    rel = (ce[:, None, :] - co[:, :, None]).transpose(1, 2, 0)   # (ws^2, wse^2, 2)
    rel = rel + (ws - 1)                                         # shift to start at 0
    return (rel[:, :, 0] * (ws + wse - 1) + rel[:, :, 1]).astype(jnp.int32)


def _ocab_prologue(x, x_size, rpi, params, *, window_size, overlap_win_size,
                   num_heads, qk_scale=None):
    h, w = x_size
    b, L, c = x.shape
    assert L == h * w
    ws, ows = window_size, overlap_win_size
    hd = c // num_heads
    scale = qk_scale if qk_scale is not None else hd ** (-0.5)

    xn = layer_norm(x, params["norm1_w"], params["norm1_b"])
    xi = xn.reshape(b, h, w, c).transpose(0, 3, 1, 2)            # (b,c,h,w)

    # High-frequency branch: bilinear x2 -> Haar detail bands -> concat -> 1x1.
    x2 = jax.image.resize(xi, (b, c, 2 * h, 2 * w), method='bilinear')
    wave_hf = haar_highfreq(x2)                                  # (b,3c,h,w)
    xc = jnp.concatenate([xi, wave_hf], axis=1)                  # (b,4c,h,w)
    xd = (jnp.einsum('bihw,oi->bohw', xc, params["conv_down_w"])
          + params["conv_down_b"][None, :, None, None])
    xd = xd.transpose(0, 2, 3, 1)                                # (b,h,w,c)

    # Fused QKV on the full map; fold the qk scale into the q columns (free).
    wqkv = params["wqkv"].at[:, :c].multiply(scale)
    bqkv = params["bqkv"].at[:c].multiply(scale)
    qkv = xd.reshape(b, h * w, c) @ wqkv + bqkv                  # (b,hw,3c)
    qkv = qkv.reshape(b, h, w, 3 * c)
    qmap = qkv[..., :c]                                          # (b,h,w,c)
    kv = jnp.concatenate(
        [qkv[..., c:2 * c].transpose(0, 3, 1, 2),
         qkv[..., 2 * c:].transpose(0, 3, 1, 2)], axis=1)        # (b,2c,h,w)

    # q: non-overlapping windows.
    q_win = window_partition(qmap, ws).reshape(-1, ws * ws, c)   # (B_, nq, c)

    # k/v: overlapping windows == nn.Unfold(kernel=ows, stride=ws, pad=(ows-ws)//2).
    pad = (ows - ws) // 2
    kvp = jnp.pad(kv, ((0, 0), (0, 0), (pad, pad), (pad, pad)))
    nh_, nw_ = h // ws, w // ws
    rows = jnp.arange(nh_)[:, None] * ws + jnp.arange(ows)[None, :]
    cols = jnp.arange(nw_)[:, None] * ws + jnp.arange(ows)[None, :]
    patches = kvp[:, :, rows[:, None, :, None], cols[None, :, None, :]]
    kv_win = patches.transpose(0, 2, 3, 4, 5, 1).reshape(
        b * nh_ * nw_, ows * ows, 2 * c)                         # (B_, n, 2c)
    k_win, v_win = kv_win[:, :, :c], kv_win[:, :, c:]

    # Relative-position bias gathered once: (nH, nq, n).
    table = params["relative_position_bias_table"]
    bias = table[rpi.reshape(-1)].reshape(
        ws * ws, ows * ows, num_heads).transpose(2, 0, 1)

    return q_win, k_win, v_win, bias


def _ocab_epilogue(out_win, shortcut, x_size, params, *, window_size):
    h, w = x_size
    b = shortcut.shape[0]
    c = shortcut.shape[-1]
    ws = window_size
    xw = window_reverse(out_win.reshape(-1, ws, ws, c), ws, h, w)
    x = xw.reshape(b, h * w, c) + shortcut                       # proj already fused
    xm = layer_norm(x, params["norm2_w"], params["norm2_b"])
    xm = jax.nn.gelu(xm @ params["fc1_w"] + params["fc1_b"], approximate=False)
    xm = xm @ params["fc2_w"] + params["fc2_b"]
    return x + xm


def ocab_hf_forward(x, x_size, rpi, params, *, window_size, overlap_win_size,
                    num_heads, qk_scale=None, use_pallas=True):
    q_win, k_win, v_win, bias = _ocab_prologue(
        x, x_size, rpi, params, window_size=window_size,
        overlap_win_size=overlap_win_size, num_heads=num_heads,
        qk_scale=qk_scale)
    if use_pallas:
        out_win = ocab_attention_pallas(
            q_win, k_win, v_win, bias, params["wproj"], params["bproj"],
            num_heads=num_heads, out_dtype=x.dtype)
    else:
        out_win = ocab_attention_ref(
            q_win, k_win, v_win, bias, params["wproj"], params["bproj"],
            num_heads=num_heads)
    return _ocab_epilogue(out_win, x, x_size, params, window_size=window_size)


# ---------------------------------------------------------------------------
if __name__ == "__main__":
    dim = 32
    num_heads = 4
    window_size = 8
    overlap_ratio = 0.5
    mlp_ratio = 2
    h = w = 16
    batch = 2
    ows = int(window_size * overlap_ratio) + window_size          # 12

    key = jax.random.PRNGKey(0)
    ks = jax.random.split(key, 12)

    def nrm(k, shape, s):
        return s * jax.random.normal(k, shape, jnp.float32)

    params = {
        "norm1_w": jnp.ones((dim,), jnp.float32),
        "norm1_b": jnp.zeros((dim,), jnp.float32),
        "conv_down_w": nrm(ks[0], (dim, 4 * dim), 0.06),          # (out, in) 1x1 conv
        "conv_down_b": nrm(ks[1], (dim,), 0.02),
        "wqkv": nrm(ks[2], (dim, 3 * dim), 0.15),                 # (in, out)
        "bqkv": nrm(ks[3], (3 * dim,), 0.02),
        "relative_position_bias_table":
            nrm(ks[4], ((window_size + ows - 1) ** 2, num_heads), 0.3),
        "wproj": nrm(ks[5], (dim, dim), 0.15),                    # (in, out)
        "bproj": nrm(ks[6], (dim,), 0.02),
        "norm2_w": jnp.ones((dim,), jnp.float32),
        "norm2_b": jnp.zeros((dim,), jnp.float32),
        "fc1_w": nrm(ks[7], (dim, mlp_ratio * dim), 0.1),
        "fc1_b": nrm(ks[8], (mlp_ratio * dim,), 0.02),
        "fc2_w": nrm(ks[9], (mlp_ratio * dim, dim), 0.1),
        "fc2_b": nrm(ks[10], (dim,), 0.02),
    }

    x = jax.random.normal(ks[11], (batch, h * w, dim), jnp.float32)
    rpi = calculate_rpi_oca(window_size, ows)                     # (64, 144)

    # Full forward: Pallas kernel path vs pure-JAX f32 reference path.
    out = ocab_hf_forward(x, (h, w), rpi, params, window_size=window_size,
                          overlap_win_size=ows, num_heads=num_heads,
                          use_pallas=True)
    out = jax.block_until_ready(out)
    ref = ocab_hf_forward(x, (h, w), rpi, params, window_size=window_size,
                          overlap_win_size=ows, num_heads=num_heads,
                          use_pallas=False)
    assert out.shape == (batch, h * w, dim)
    assert jnp.allclose(out, ref, atol=5e-3, rtol=5e-3), \
        float(jnp.max(jnp.abs(out - ref)))

    # Direct check of the attention core (tighter signal on the kernel itself).
    q_win, k_win, v_win, bias = _ocab_prologue(
        x, (h, w), rpi, params, window_size=window_size,
        overlap_win_size=ows, num_heads=num_heads)
    a_pl = jax.block_until_ready(ocab_attention_pallas(
        q_win, k_win, v_win, bias, params["wproj"], params["bproj"],
        num_heads=num_heads, out_dtype=x.dtype))
    a_rf = ocab_attention_ref(
        q_win, k_win, v_win, bias, params["wproj"], params["bproj"],
        num_heads=num_heads)
    assert jnp.allclose(a_pl, a_rf, atol=5e-3, rtol=5e-3), \
        float(jnp.max(jnp.abs(a_pl - a_rf)))

    print("KERNEL_OK")
</pallas_src>

<mosaic_0001>
module attributes {stable_mosaic.version = 11 : i64} {
  func.func @_ocab_attn_kernel(%arg0: i32, %arg1: memref<4x64x32xbf16, #tpu.memory_space<vmem>>, %arg2: memref<4x144x32xbf16, #tpu.memory_space<vmem>>, %arg3: memref<4x144x32xbf16, #tpu.memory_space<vmem>>, %arg4: memref<4x64x144xf32, #tpu.memory_space<vmem>>, %arg5: memref<32x32xbf16, #tpu.memory_space<vmem>>, %arg6: memref<1x32xf32, #tpu.memory_space<vmem>>, %arg7: memref<4x64x32xf32, #tpu.memory_space<vmem>>) attributes {dimension_semantics = [#tpu.dimension_semantics<parallel>], iteration_bounds = array<i64: 2>, scalar_prefetch = 0 : i64, scratch_operands = 0 : i64, tpu.core_type = #tpu.core_type<tc>, window_params = [{transform_indices = @transform_0, window_bounds = array<i64: 4, 64, 32>}, {transform_indices = @transform_1, window_bounds = array<i64: 4, 144, 32>}, {transform_indices = @transform_2, window_bounds = array<i64: 4, 144, 32>}, {pipeline_mode = #tpu.pipeline_mode<synchronous>, transform_indices = @transform_3, window_bounds = array<i64: 4, 64, 144>}, {pipeline_mode = #tpu.pipeline_mode<synchronous>, transform_indices = @transform_4, window_bounds = array<i64: 32, 32>}, {pipeline_mode = #tpu.pipeline_mode<synchronous>, transform_indices = @transform_5, window_bounds = array<i64: 1, 32>}, {transform_indices = @transform_6, window_bounds = array<i64: 4, 64, 32>}]} {
    %cst = arith.constant 0.000000e+00 : f32
    %0 = vector.broadcast %cst : f32 to vector<4x64x32xf32>
    %c0 = arith.constant 0 : index
    %c0_0 = arith.constant 0 : index
    %c0_1 = arith.constant 0 : index
    %1 = vector.load %arg1[%c0, %c0_0, %c0_1] : memref<4x64x32xbf16, #tpu.memory_space<vmem>>, vector<4x64x8xbf16>
    %c0_2 = arith.constant 0 : index
    %c0_3 = arith.constant 0 : index
    %c0_4 = arith.constant 0 : index
    %2 = vector.load %arg2[%c0_2, %c0_3, %c0_4] : memref<4x144x32xbf16, #tpu.memory_space<vmem>>, vector<4x144x8xbf16>
    %c0_5 = arith.constant 0 : index
    %c0_6 = arith.constant 0 : index
    %c0_7 = arith.constant 0 : index
    %3 = vector.load %arg3[%c0_5, %c0_6, %c0_7] : memref<4x144x32xbf16, #tpu.memory_space<vmem>>, vector<4x144x8xbf16>
    %cst_8 = arith.constant dense<0.000000e+00> : vector<4x64x144xf32>
    %4 = tpu.matmul %1, %2, %cst_8 {dimension_numbers = #tpu.dot_dimension_numbers<[2], [2], [1], [1], [0, 0, 0, 1, 1, 1], [0], [0]>} : vector<4x64x8xbf16>, vector<4x144x8xbf16>, vector<4x64x144xf32> -> vector<4x64x144xf32>
    %c0_9 = arith.constant 0 : index
    %c0_10 = arith.constant 0 : index
    %c0_11 = arith.constant 0 : index
    %5 = vector.load %arg4[%c0_9, %c0_10, %c0_11] : memref<4x64x144xf32, #tpu.memory_space<vmem>>, vector<1x64x144xf32>
    %6 = vector.shape_cast %5 : vector<1x64x144xf32> to vector<64x144xf32>
    %7 = vector.shape_cast %6 : vector<64x144xf32> to vector<1x64x144xf32>
    %8 = vector.broadcast %7 : vector<1x64x144xf32> to vector<4x64x144xf32>
    %9 = arith.addf %4, %8 : vector<4x64x144xf32>
    %cst_12 = arith.constant dense<0xFF800000> : vector<4x64xf32>
    %10 = vector.multi_reduction <maximumf>, %9, %cst_12 [2] : vector<4x64x144xf32> to vector<4x64xf32>
    %11 = vector.shape_cast %10 : vector<4x64xf32> to vector<4x64x1xf32>
    %12 = vector.broadcast %11 : vector<4x64x1xf32> to vector<4x64x144xf32>
    %13 = arith.subf %9, %12 : vector<4x64x144xf32>
    %14 = math.exp %13 : vector<4x64x144xf32>
    %cst_13 = arith.constant dense<0.000000e+00> : vector<4x64xf32>
    %15 = vector.multi_reduction <add>, %14, %cst_13 [2] : vector<4x64x144xf32> to vector<4x64xf32>
    %16 = vector.shape_cast %15 : vector<4x64xf32> to vector<4x64x1xf32>
    %17 = tpu.reciprocal %16 {approx = true} : vector<4x64x1xf32> -> vector<4x64x1xf32>
    %18 = vector.broadcast %17 : vector<4x64x1xf32> to vector<4x64x144xf32>
    %19 = arith.mulf %14, %18 : vector<4x64x144xf32>
    %20 = arith.truncf %19 : vector<4x64x144xf32> to vector<4x64x144xbf16>
    %cst_14 = arith.constant dense<0.000000e+00> : vector<4x64x8xf32>
    %21 = tpu.matmul %20, %3, %cst_14 {dimension_numbers = #tpu.dot_dimension_numbers<[2], [1], [1], [2], [0, 0, 0, 1, 1, 2], [0], [0]>} : vector<4x64x144xbf16>, vector<4x144x8xbf16>, vector<4x64x8xf32> -> vector<4x64x8xf32>
    %22 = arith.truncf %21 : vector<4x64x8xf32> to vector<4x64x8xbf16>
    %c0_15 = arith.constant 0 : index
    %c0_16 = arith.constant 0 : index
    %23 = vector.load %arg5[%c0_15, %c0_16] : memref<32x32xbf16, #tpu.memory_space<vmem>>, vector<8x32xbf16>
    %cst_17 = arith.constant dense<0.000000e+00> : vector<4x64x32xf32>
    %24 = tpu.matmul %22, %23, %cst_17 {dimension_numbers = #tpu.dot_dimension_numbers<[2], [0], [0, 1], [1], [0, 0, 0, 1, 1, 1], [], []>} : vector<4x64x8xbf16>, vector<8x32xbf16>, vector<4x64x32xf32> -> vector<4x64x32xf32>
    %25 = arith.addf %0, %24 : vector<4x64x32xf32>
    %c0_18 = arith.constant 0 : index
    %c0_19 = arith.constant 0 : index
    %c8 = arith.constant 8 : index
    %26 = vector.load %arg1[%c0_18, %c0_19, %c8] : memref<4x64x32xbf16, #tpu.memory_space<vmem>>, vector<4x64x8xbf16>
    %c0_20 = arith.constant 0 : index
    %c0_21 = arith.constant 0 : index
    %c8_22 = arith.constant 8 : index
    %27 = vector.load %arg2[%c0_20, %c0_21, %c8_22] : memref<4x144x32xbf16, #tpu.memory_space<vmem>>, vector<4x144x8xbf16>
    %c0_23 = arith.constant 0 : index
    %c0_24 = arith.constant 0 : index
    %c8_25 = arith.constant 8 : index
    %28 = vector.load %arg3[%c0_23, %c0_24, %c8_25] : memref<4x144x32xbf16, #tpu.memory_space<vmem>>, vector<4x144x8xbf16>
    %cst_26 = arith.constant dense<0.000000e+00> : vector<4x64x144xf32>
    %29 = tpu.matmul %26, %27, %cst_26 {dimension_numbers = #tpu.dot_dimension_numbers<[2], [2], [1], [1], [0, 0, 0, 1, 1, 1], [0], [0]>} : vector<4x64x8xbf16>, vector<4x144x8xbf16>, vector<4x64x144xf32> -> vector<4x64x144xf32>
    %c1 = arith.constant 1 : index
    %c0_27 = arith.constant 0 : index
    %c0_28 = arith.constant 0 : index
    %30 = vector.load %arg4[%c1, %c0_27, %c0_28] : memref<4x64x144xf32, #tpu.memory_space<vmem>>, vector<1x64x144xf32>
    %31 = vector.shape_cast %30 : vector<1x64x144xf32> to vector<64x144xf32>
    %32 = vector.shape_cast %31 : vector<64x144xf32> to vector<1x64x144xf32>
    %33 = vector.broadcast %32 : vector<1x64x144xf32> to vector<4x64x144xf32>
    %34 = arith.addf %29, %33 : vector<4x64x144xf32>
    %cst_29 = arith.constant dense<0xFF800000> : vector<4x64xf32>
    %35 = vector.multi_reduction <maximumf>, %34, %cst_29 [2] : vector<4x64x144xf32> to vector<4x64xf32>
    %36 = vector.shape_cast %35 : vector<4x64xf32> to vector<4x64x1xf32>
    %37 = vector.broadcast %36 : vector<4x64x1xf32> to vector<4x64x144xf32>
    %38 = arith.subf %34, %37 : vector<4x64x144xf32>
    %39 = math.exp %38 : vector<4x64x144xf32>
    %cst_30 = arith.constant dense<0.000000e+00> : vector<4x64xf32>
    %40 = vector.multi_reduction <add>, %39, %cst_30 [2] : vector<4x64x144xf32> to vector<4x64xf32>
    %41 = vector.shape_cast %40 : vector<4x64xf32> to vector<4x64x1xf32>
    %42 = tpu.reciprocal %41 {approx = true} : vector<4x64x1xf32> -> vector<4x64x1xf32>
    %43 = vector.broadcast %42 : vector<4x64x1xf32> to vector<4x64x144xf32>
    %44 = arith.mulf %39, %43 : vector<4x64x144xf32>
    %45 = arith.truncf %44 : vector<4x64x144xf32> to vector<4x64x144xbf16>
    %cst_31 = arith.constant dense<0.000000e+00> : vector<4x64x8xf32>
    %46 = tpu.matmul %45, %28, %cst_31 {dimension_numbers = #tpu.dot_dimension_numbers<[2], [1], [1], [2], [0, 0, 0, 1, 1, 2], [0], [0]>} : vector<4x64x144xbf16>, vector<4x144x8xbf16>, vector<4x64x8xf32> -> vector<4x64x8xf32>
    %47 = arith.truncf %46 : vector<4x64x8xf32> to vector<4x64x8xbf16>
    %c8_32 = arith.constant 8 : index
    %c0_33 = arith.constant 0 : index
    %48 = vector.load %arg5[%c8_32, %c0_33] : memref<32x32xbf16, #tpu.memory_space<vmem>>, vector<8x32xbf16>
    %cst_34 = arith.constant dense<0.000000e+00> : vector<4x64x32xf32>
    %49 = tpu.matmul %47, %48, %cst_34 {dimension_numbers = #tpu.dot_dimension_numbers<[2], [0], [0, 1], [1], [0, 0, 0, 1, 1, 1], [], []>} : vector<4x64x8xbf16>, vector<8x32xbf16>, vector<4x64x32xf32> -> vector<4x64x32xf32>
    %50 = arith.addf %25, %49 : vector<4x64x32xf32>
    %c0_35 = arith.constant 0 : index
    %c0_36 = arith.constant 0 : index
    %c16 = arith.constant 16 : index
    %51 = vector.load %arg1[%c0_35, %c0_36, %c16] : memref<4x64x32xbf16, #tpu.memory_space<vmem>>, vector<4x64x8xbf16>
    %c0_37 = arith.constant 0 : index
    %c0_38 = arith.constant 0 : index
    %c16_39 = arith.constant 16 : index
    %52 = vector.load %arg2[%c0_37, %c0_38, %c16_39] : memref<4x144x32xbf16, #tpu.memory_space<vmem>>, vector<4x144x8xbf16>
    %c0_40 = arith.constant 0 : index
    %c0_41 = arith.constant 0 : index
    %c16_42 = arith.constant 16 : index
    %53 = vector.load %arg3[%c0_40, %c0_41, %c16_42] : memref<4x144x32xbf16, #tpu.memory_space<vmem>>, vector<4x144x8xbf16>
    %cst_43 = arith.constant dense<0.000000e+00> : vector<4x64x144xf32>
    %54 = tpu.matmul %51, %52, %cst_43 {dimension_numbers = #tpu.dot_dimension_numbers<[2], [2], [1], [1], [0, 0, 0, 1, 1, 1], [0], [0]>} : vector<4x64x8xbf16>, vector<4x144x8xbf16>, vector<4x64x144xf32> -> vector<4x64x144xf32>
    %c2 = arith.constant 2 : index
    %c0_44 = arith.constant 0 : index
    %c0_45 = arith.constant 0 : index
    %55 = vector.load %arg4[%c2, %c0_44, %c0_45] : memref<4x64x144xf32, #tpu.memory_space<vmem>>, vector<1x64x144xf32>
    %56 = vector.shape_cast %55 : vector<1x64x144xf32> to vector<64x144xf32>
    %57 = vector.shape_cast %56 : vector<64x144xf32> to vector<1x64x144xf32>
    %58 = vector.broadcast %57 : vector<1x64x144xf32> to vector<4x64x144xf32>
    %59 = arith.addf %54, %58 : vector<4x64x144xf32>
    %cst_46 = arith.constant dense<0xFF800000> : vector<4x64xf32>
    %60 = vector.multi_reduction <maximumf>, %59, %cst_46 [2] : vector<4x64x144xf32> to vector<4x64xf32>
    %61 = vector.shape_cast %60 : vector<4x64xf32> to vector<4x64x1xf32>
    %62 = vector.broadcast %61 : vector<4x64x1xf32> to vector<4x64x144xf32>
    %63 = arith.subf %59, %62 : vector<4x64x144xf32>
    %64 = math.exp %63 : vector<4x64x144xf32>
    %cst_47 = arith.constant dense<0.000000e+00> : vector<4x64xf32>
    %65 = vector.multi_reduction <add>, %64, %cst_47 [2] : vector<4x64x144xf32> to vector<4x64xf32>
    %66 = vector.shape_cast %65 : vector<4x64xf32> to vector<4x64x1xf32>
    %67 = tpu.reciprocal %66 {approx = true} : vector<4x64x1xf32> -> vector<4x64x1xf32>
    %68 = vector.broadcast %67 : vector<4x64x1xf32> to vector<4x64x144xf32>
    %69 = arith.mulf %64, %68 : vector<4x64x144xf32>
    %70 = arith.truncf %69 : vector<4x64x144xf32> to vector<4x64x144xbf16>
    %cst_48 = arith.constant dense<0.000000e+00> : vector<4x64x8xf32>
    %71 = tpu.matmul %70, %53, %cst_48 {dimension_numbers = #tpu.dot_dimension_numbers<[2], [1], [1], [2], [0, 0, 0, 1, 1, 2], [0], [0]>} : vector<4x64x144xbf16>, vector<4x144x8xbf16>, vector<4x64x8xf32> -> vector<4x64x8xf32>
    %72 = arith.truncf %71 : vector<4x64x8xf32> to vector<4x64x8xbf16>
    %c16_49 = arith.constant 16 : index
    %c0_50 = arith.constant 0 : index
    %73 = vector.load %arg5[%c16_49, %c0_50] : memref<32x32xbf16, #tpu.memory_space<vmem>>, vector<8x32xbf16>
    %cst_51 = arith.constant dense<0.000000e+00> : vector<4x64x32xf32>
    %74 = tpu.matmul %72, %73, %cst_51 {dimension_numbers = #tpu.dot_dimension_numbers<[2], [0], [0, 1], [1], [0, 0, 0, 1, 1, 1], [], []>} : vector<4x64x8xbf16>, vector<8x32xbf16>, vector<4x64x32xf32> -> vector<4x64x32xf32>
    %75 = arith.addf %50, %74 : vector<4x64x32xf32>
    %c0_52 = arith.constant 0 : index
    %c0_53 = arith.constant 0 : index
    %c24 = arith.constant 24 : index
    %76 = vector.load %arg1[%c0_52, %c0_53, %c24] : memref<4x64x32xbf16, #tpu.memory_space<vmem>>, vector<4x64x8xbf16>
    %c0_54 = arith.constant 0 : index
    %c0_55 = arith.constant 0 : index
    %c24_56 = arith.constant 24 : index
    %77 = vector.load %arg2[%c0_54, %c0_55, %c24_56] : memref<4x144x32xbf16, #tpu.memory_space<vmem>>, vector<4x144x8xbf16>
    %c0_57 = arith.constant 0 : index
    %c0_58 = arith.constant 0 : index
    %c24_59 = arith.constant 24 : index
    %78 = vector.load %arg3[%c0_57, %c0_58, %c24_59] : memref<4x144x32xbf16, #tpu.memory_space<vmem>>, vector<4x144x8xbf16>
    %cst_60 = arith.constant dense<0.000000e+00> : vector<4x64x144xf32>
    %79 = tpu.matmul %76, %77, %cst_60 {dimension_numbers = #tpu.dot_dimension_numbers<[2], [2], [1], [1], [0, 0, 0, 1, 1, 1], [0], [0]>} : vector<4x64x8xbf16>, vector<4x144x8xbf16>, vector<4x64x144xf32> -> vector<4x64x144xf32>
    %c3 = arith.constant 3 : index
    %c0_61 = arith.constant 0 : index
    %c0_62 = arith.constant 0 : index
    %80 = vector.load %arg4[%c3, %c0_61, %c0_62] : memref<4x64x144xf32, #tpu.memory_space<vmem>>, vector<1x64x144xf32>
    %81 = vector.shape_cast %80 : vector<1x64x144xf32> to vector<64x144xf32>
    %82 = vector.shape_cast %81 : vector<64x144xf32> to vector<1x64x144xf32>
    %83 = vector.broadcast %82 : vector<1x64x144xf32> to vector<4x64x144xf32>
    %84 = arith.addf %79, %83 : vector<4x64x144xf32>
    %cst_63 = arith.constant dense<0xFF800000> : vector<4x64xf32>
    %85 = vector.multi_reduction <maximumf>, %84, %cst_63 [2] : vector<4x64x144xf32> to vector<4x64xf32>
    %86 = vector.shape_cast %85 : vector<4x64xf32> to vector<4x64x1xf32>
    %87 = vector.broadcast %86 : vector<4x64x1xf32> to vector<4x64x144xf32>
    %88 = arith.subf %84, %87 : vector<4x64x144xf32>
    %89 = math.exp %88 : vector<4x64x144xf32>
    %cst_64 = arith.constant dense<0.000000e+00> : vector<4x64xf32>
    %90 = vector.multi_reduction <add>, %89, %cst_64 [2] : vector<4x64x144xf32> to vector<4x64xf32>
    %91 = vector.shape_cast %90 : vector<4x64xf32> to vector<4x64x1xf32>
    %92 = tpu.reciprocal %91 {approx = true} : vector<4x64x1xf32> -> vector<4x64x1xf32>
    %93 = vector.broadcast %92 : vector<4x64x1xf32> to vector<4x64x144xf32>
    %94 = arith.mulf %89, %93 : vector<4x64x144xf32>
    %95 = arith.truncf %94 : vector<4x64x144xf32> to vector<4x64x144xbf16>
    %cst_65 = arith.constant dense<0.000000e+00> : vector<4x64x8xf32>
    %96 = tpu.matmul %95, %78, %cst_65 {dimension_numbers = #tpu.dot_dimension_numbers<[2], [1], [1], [2], [0, 0, 0, 1, 1, 2], [0], [0]>} : vector<4x64x144xbf16>, vector<4x144x8xbf16>, vector<4x64x8xf32> -> vector<4x64x8xf32>
    %97 = arith.truncf %96 : vector<4x64x8xf32> to vector<4x64x8xbf16>
    %c24_66 = arith.constant 24 : index
    %c0_67 = arith.constant 0 : index
    %98 = vector.load %arg5[%c24_66, %c0_67] : memref<32x32xbf16, #tpu.memory_space<vmem>>, vector<8x32xbf16>
    %cst_68 = arith.constant dense<0.000000e+00> : vector<4x64x32xf32>
    %99 = tpu.matmul %97, %98, %cst_68 {dimension_numbers = #tpu.dot_dimension_numbers<[2], [0], [0, 1], [1], [0, 0, 0, 1, 1, 1], [], []>} : vector<4x64x8xbf16>, vector<8x32xbf16>, vector<4x64x32xf32> -> vector<4x64x32xf32>
    %100 = arith.addf %75, %99 : vector<4x64x32xf32>
    %c0_69 = arith.constant 0 : index
    %c0_70 = arith.constant 0 : index
    %101 = vector.load %arg6[%c0_69, %c0_70] : memref<1x32xf32, #tpu.memory_space<vmem>>, vector<1x32xf32>
    %102 = vector.shape_cast %101 : vector<1x32xf32> to vector<1x1x32xf32>
    %103 = vector.broadcast %102 : vector<1x1x32xf32> to vector<4x64x32xf32>
    %104 = arith.addf %100, %103 : vector<4x64x32xf32>
    %c0_71 = arith.constant 0 : index
    %c0_72 = arith.constant 0 : index
    %c0_73 = arith.constant 0 : index
    %105 = vector.load %arg7[%c0_71, %c0_72, %c0_73] : memref<4x64x32xf32, #tpu.memory_space<vmem>>, vector<4x64x32xf32>
    tpu.vector_store %arg7[%c0_71, %c0_72, %c0_73], %104 {strides = array<i32>} : memref<4x64x32xf32, #tpu.memory_space<vmem>>, vector<4x64x32xf32>,
    return
  }
  func.func @transform_0(%arg0: i32) -> (i32, i32, i32) {
    %c0_i32 = arith.constant 0 : i32
    %c0_i32_0 = arith.constant 0 : i32
    %c0_i32_1 = arith.constant 0 : i32
    return %arg0, %c0_i32, %c0_i32_0 : i32, i32, i32
  }
  func.func @transform_1(%arg0: i32) -> (i32, i32, i32) {
    %c0_i32 = arith.constant 0 : i32
    %c0_i32_0 = arith.constant 0 : i32
    %c0_i32_1 = arith.constant 0 : i32
    return %arg0, %c0_i32, %c0_i32_0 : i32, i32, i32
  }
  func.func @transform_2(%arg0: i32) -> (i32, i32, i32) {
    %c0_i32 = arith.constant 0 : i32
    %c0_i32_0 = arith.constant 0 : i32
    %c0_i32_1 = arith.constant 0 : i32
    return %arg0, %c0_i32, %c0_i32_0 : i32, i32, i32
  }
  func.func @transform_3(%arg0: i32) -> (i32, i32, i32) {
    %c0_i32 = arith.constant 0 : i32
    %c0_i32_0 = arith.constant 0 : i32
    %c0_i32_1 = arith.constant 0 : i32
    %c0_i32_2 = arith.constant 0 : i32
    return %c0_i32, %c0_i32_0, %c0_i32_1 : i32, i32, i32
  }
  func.func @transform_4(%arg0: i32) -> (i32, i32) {
    %c0_i32 = arith.constant 0 : i32
    %c0_i32_0 = arith.constant 0 : i32
    %c0_i32_1 = arith.constant 0 : i32
    return %c0_i32, %c0_i32_0 : i32, i32
  }
  func.func @transform_5(%arg0: i32) -> (i32, i32) {
    %c0_i32 = arith.constant 0 : i32
    %c0_i32_0 = arith.constant 0 : i32
    %c0_i32_1 = arith.constant 0 : i32
    return %c0_i32, %c0_i32_0 : i32, i32
  }
  func.func @transform_6(%arg0: i32) -> (i32, i32, i32) {
    %c0_i32 = arith.constant 0 : i32
    %c0_i32_0 = arith.constant 0 : i32
    %c0_i32_1 = arith.constant 0 : i32
    return %arg0, %c0_i32, %c0_i32_0 : i32, i32, i32
  }
}

</mosaic_0001>

<llo_original>
// kernel: tpu_custom_call.1
$region0: #{tpu_custom_call.1}
  #allocation0 [shape = 'u32[]', space=smem, size = 0x4, offset = 0x4, fixed_abs, tag = 'smem constant byte address 0x4 - core index']
  #allocation1 [shape = 'u32[144,128]{1,0:T(1,128)}', space=vmem, size = 0x12000, scoped, tag = 'internal scratch']
  %s0 = inlined_call_operand.vmem [shape: bf16[8,64,32], index: 0, kind: input, shape index: {}]
  %s1 = inlined_call_operand.vmem [shape: bf16[8,144,32], index: 1, kind: input, shape index: {}]
  %s2 = inlined_call_operand.vmem [shape: bf16[8,144,32], index: 2, kind: input, shape index: {}]
  %s3 = inlined_call_operand.vmem [shape: f32[4,64,144], index: 3, kind: input, shape index: {}]
  %s4 = inlined_call_operand.vmem [shape: bf16[32,32], index: 4, kind: input, shape index: {}]
  %s5 = inlined_call_operand.vmem [shape: f32[1,32], index: 5, kind: input, shape index: {}]
  %s6 = inlined_call_operand.vmem [shape: f32[8,64,32], index: 6, kind: output, shape index: {}]
  %s7 = sld [smem:[#allocation0]]
  $region57: #{tpu_custom_call.1} parent=0
    _
  %s9 = ssub.s32 1, %s7
  %s10 = scalar_select 0, %s9, %s7
  loop: start=0, step=1, limit=4
  $region2: #{tpu_custom_call.1} parent=0 // loop_pre_header
    _
  $region3: #{tpu_custom_call.1} parent=0 // loop_header
    %s12 = sphi 0, %s16
    %p13 = scmp.ge.s32.totalorder %s12, 4
    %s22 = sphi 0, %s24
    %s25 = sphi 0, %s22
    %s26 = sphi 0, %s25
    %s42 = sphi 0, %s26
    %s48 = sphi 0, %s50
    %s51 = sphi 0, %s48
    %s52 = sphi 0, %s51
    %s68 = sphi 0, %s52
    %s74 = sphi 0, %s76
    %s77 = sphi 0, %s74
    %s78 = sphi 0, %s77
    %s94 = sphi 0, %s78
    %s98 = sphi 0, %s98
    %s100 = sphi 0, %s98
    %s101 = sphi 0, %s100
    %s115 = sphi 0, %s101
    %s119 = sphi 0, %s119
    %s121 = sphi 0, %s119
    %s122 = sphi 0, %s121
    %s136 = sphi 0, %s122
    %s140 = sphi 0, %s140
    %s142 = sphi 0, %s140
    %s143 = sphi 0, %s142
    %s157 = sphi 0, %s143
    %s163 = sphi 0, %s165
    %s166 = sphi 0, %s163
    %s167 = sphi 0, %s166
    %s183 = sphi 0, %s167
  $region4: #{tpu_custom_call.1} parent=0 // loop_header_branch
    %15 = sbr.rel (%p13) target = $region8
  $region5: #{tpu_custom_call.1} parent=0 // loop_body
    %s17 = ssub.s32 %s12, 1
    %s18 = ssub.s32 %s12, 2
    %s19 = sadd.s32 %s12, 1
    %s20 = ssub.s32 %s12, %s19
    %p21 = scmp.eq.s32.totalorder %s20, 0
    %s23 = sadd.s32 %s22, 1
    %s24 = scalar_select %p21, %s22, %s23
    %p27 = pneg %p21
    %p28 = scmp.eq.s32.totalorder %s12, 1
    %p29 = por %p27, %p28
    %p30 = scmp.ne.s32.totalorder %s22, %s25
    %p31 = scmp.eq.s32.totalorder %s12, 0
    %p32 = por %p30, %p31
    %p33 = scmp.ne.s32.totalorder %s22, %s25
    %p34 = scmp.eq.s32.totalorder %s17, 1
    %p35 = por %p33, %p34
    %p36 = scmp.ne.s32.totalorder %s25, %s26
    %p37 = scmp.eq.s32.totalorder %s17, 0
    %p38 = por %p36, %p37
    %p39 = scmp.ne.s32.totalorder %s25, %s26
    %p40 = scmp.eq.s32.totalorder %s18, 1
    %p41 = por %p39, %p40
    %p43 = scmp.ne.s32.totalorder %s26, %s42
    %p44 = scmp.eq.s32.totalorder %s18, 0
    %p45 = por %p43, %p44
    %s46 = ssub.s32 %s12, %s19
    %p47 = scmp.eq.s32.totalorder %s46, 0
    %s49 = sadd.s32 %s48, 1
    %s50 = scalar_select %p47, %s48, %s49
    %p53 = pneg %p47
    %p54 = scmp.eq.s32.totalorder %s12, 1
    %p55 = por %p53, %p54
    %p56 = scmp.ne.s32.totalorder %s48, %s51
    %p57 = scmp.eq.s32.totalorder %s12, 0
    %p58 = por %p56, %p57
    %p59 = scmp.ne.s32.totalorder %s48, %s51
    %p60 = scmp.eq.s32.totalorder %s17, 1
    %p61 = por %p59, %p60
    %p62 = scmp.ne.s32.totalorder %s51, %s52
    %p63 = scmp.eq.s32.totalorder %s17, 0
    %p64 = por %p62, %p63
    %p65 = scmp.ne.s32.totalorder %s51, %s52
    %p66 = scmp.eq.s32.totalorder %s18, 1
    %p67 = por %p65, %p66
    %p69 = scmp.ne.s32.totalorder %s52, %s68
    %p70 = scmp.eq.s32.totalorder %s18, 0
    %p71 = por %p69, %p70
    %s72 = ssub.s32 %s12, %s19
    %p73 = scmp.eq.s32.totalorder %s72, 0
    %s75 = sadd.s32 %s74, 1
    %s76 = scalar_select %p73, %s74, %s75
    %p79 = pneg %p73
    %p80 = scmp.eq.s32.totalorder %s12, 1
    %p81 = por %p79, %p80
    %p82 = scmp.ne.s32.totalorder %s74, %s77
    %p83 = scmp.eq.s32.totalorder %s12, 0
    %p84 = por %p82, %p83
    %p85 = scmp.ne.s32.totalorder %s74, %s77
    %p86 = scmp.eq.s32.totalorder %s17, 1
    %p87 = por %p85, %p86
    %p88 = scmp.ne.s32.totalorder %s77, %s78
    %p89 = scmp.eq.s32.totalorder %s17, 0
    %p90 = por %p88, %p89
    %p91 = scmp.ne.s32.totalorder %s77, %s78
    %p92 = scmp.eq.s32.totalorder %s18, 1
    %p93 = por %p91, %p92
    %p95 = scmp.ne.s32.totalorder %s78, %s94
    %p96 = scmp.eq.s32.totalorder %s18, 0
    %p97 = por %p95, %p96
    %s99 = sadd.s32 %s98, 1
    %p102 = scmp.eq.s32.totalorder %s12, 1
    %p103 = scmp.ne.s32.totalorder %s98, %s100
    %p104 = scmp.eq.s32.totalorder %s12, 0
    %p105 = por %p103, %p104
    %p106 = scmp.ne.s32.totalorder %s98, %s100
    %p107 = scmp.eq.s32.totalorder %s17, 1
    %p108 = por %p106, %p107
    %p109 = scmp.ne.s32.totalorder %s100, %s101
    %p110 = scmp.eq.s32.totalorder %s17, 0
    %p111 = por %p109, %p110
    %p112 = scmp.ne.s32.totalorder %s100, %s101
    %p113 = scmp.eq.s32.totalorder %s18, 1
    %p114 = por %p112, %p113
    %p116 = scmp.ne.s32.totalorder %s101, %s115
    %p117 = scmp.eq.s32.totalorder %s18, 0
    %p118 = por %p116, %p117
    %s120 = sadd.s32 %s119, 1
    %p123 = scmp.eq.s32.totalorder %s12, 1
    %p124 = scmp.ne.s32.totalorder %s119, %s121
    %p125 = scmp.eq.s32.totalorder %s12, 0
    %p126 = por %p124, %p125
    %p127 = scmp.ne.s32.totalorder %s119, %s121
    %p128 = scmp.eq.s32.totalorder %s17, 1
    %p129 = por %p127, %p128
    %p130 = scmp.ne.s32.totalorder %s121, %s122
    %p131 = scmp.eq.s32.totalorder %s17, 0
    %p132 = por %p130, %p131
    %p133 = scmp.ne.s32.totalorder %s121, %s122
    %p134 = scmp.eq.s32.totalorder %s18, 1
    %p135 = por %p133, %p134
    %p137 = scmp.ne.s32.totalorder %s122, %s136
    %p138 = scmp.eq.s32.totalorder %s18, 0
    %p139 = por %p137, %p138
    %s141 = sadd.s32 %s140, 1
    %p144 = scmp.eq.s32.totalorder %s12, 1
    %p145 = scmp.ne.s32.totalorder %s140, %s142
    %p146 = scmp.eq.s32.totalorder %s12, 0
    %p147 = por %p145, %p146
    %p148 = scmp.ne.s32.totalorder %s140, %s142
    %p149 = scmp.eq.s32.totalorder %s17, 1
    %p150 = por %p148, %p149
    %p151 = scmp.ne.s32.totalorder %s142, %s143
    %p152 = scmp.eq.s32.totalorder %s17, 0
    %p153 = por %p151, %p152
    %p154 = scmp.ne.s32.totalorder %s142, %s143
    %p155 = scmp.eq.s32.totalorder %s18, 1
    %p156 = por %p154, %p155
    %p158 = scmp.ne.s32.totalorder %s143, %s157
    %p159 = scmp.eq.s32.totalorder %s18, 0
    %p160 = por %p158, %p159
    %s161 = ssub.s32 %s12, %s19
    %p162 = scmp.eq.s32.totalorder %s161, 0
    %s164 = sadd.s32 %s163, 1
    %s165 = scalar_select %p162, %s163, %s164
    %p168 = pneg %p162
    %p169 = scmp.eq.s32.totalorder %s12, 1
    %p170 = por %p168, %p169
    %p171 = scmp.ne.s32.totalorder %s163, %s166
    %p172 = scmp.eq.s32.totalorder %s12, 0
    %p173 = por %p171, %p172
    %p174 = scmp.ne.s32.totalorder %s163, %s166
    %p175 = scmp.eq.s32.totalorder %s17, 1
    %p176 = por %p174, %p175
    %p177 = scmp.ne.s32.totalorder %s166, %s167
    %p178 = scmp.eq.s32.totalorder %s17, 0
    %p179 = por %p177, %p178
    %p180 = scmp.ne.s32.totalorder %s166, %s167
    %p181 = scmp.eq.s32.totalorder %s18, 1
    %p182 = por %p180, %p181
    %p184 = scmp.ne.s32.totalorder %s167, %s183
    %p185 = scmp.eq.s32.totalorder %s18, 0
    %p186 = por %p184, %p185
    %p187 = scmp.le.s32.totalorder 1, %s12
    %p188 = scmp.lt.s32.totalorder %s12, 3
    %p189 = pnand %p187, %p188
    %p190 = pneg %p189
    // Predicated region
    $region9: #{tpu_custom_call.1} parent=5 // pred_check
      _
    $region10: #{tpu_custom_call.1} parent=5 // pred_check_branch
      %192 = sbr.rel (%p189) target = $region12
    $region11: #{tpu_custom_call.1} parent=5 // pred_region
      %s193 = ssub.s32 %s12, 1
      // Predicated region
      $region13: #{tpu_custom_call.1} parent=11 // pred_check
        %p194 = pneg %p111
      $region14: #{tpu_custom_call.1} parent=11 // pred_check_branch
        %196 = sbr.rel (%p194) target = $region16
      $region15: #{tpu_custom_call.1} parent=11 // pred_region
        _
      $region16: #{tpu_custom_call.1} parent=11 // pred_fallthru
        _
      // Predicated region
      $region17: #{tpu_custom_call.1} parent=11 // pred_check
        %p197 = pneg %p132
      $region18: #{tpu_custom_call.1} parent=11 // pred_check_branch
        %199 = sbr.rel (%p197) target = $region20
      $region19: #{tpu_custom_call.1} parent=11 // pred_region
        _
      $region20: #{tpu_custom_call.1} parent=11 // pred_fallthru
        _
      // Predicated region
      $region21: #{tpu_custom_call.1} parent=11 // pred_check
        %p200 = pneg %p153
      $region22: #{tpu_custom_call.1} parent=11 // pred_check_branch
        %202 = sbr.rel (%p200) target = $region24
      $region23: #{tpu_custom_call.1} parent=11 // pred_region
        _
      $region24: #{tpu_custom_call.1} parent=11 // pred_fallthru
        _
    $region12: #{tpu_custom_call.1} parent=5 // pred_fallthru
      _
    %p203 = scmp.lt.s32.totalorder %s12, 2
    // Predicated region
    $region25: #{tpu_custom_call.1} parent=5 // pred_check
      %p204 = pneg %p203
    $region26: #{tpu_custom_call.1} parent=5 // pred_check_branch
      %206 = sbr.rel (%p204) target = $region28
    $region27: #{tpu_custom_call.1} parent=5 // pred_region
      // Predicated region
      $region29: #{tpu_custom_call.1} parent=27 // pred_check
        %p207 = pneg %p32
      $region30: #{tpu_custom_call.1} parent=27 // pred_check_branch
        %209 = sbr.rel (%p207) target = $region32
      $region31: #{tpu_custom_call.1} parent=27 // pred_region
        %s210 = smul.u32 4, %s12
        %p211 = scmp.lt.s32.totalorder %s210, 7
        %s212 = scalar_select %p211, %s210, 7
        %s213 = smul.addr %s212, 8
        %s214 = smul.addr %s213, 4
        %s215 = scalar_lea.vmem %s0, %s214
        %s216 = smul.u32 4, %s12
      $region32: #{tpu_custom_call.1} parent=27 // pred_fallthru
        _
      // Predicated region
      $region33: #{tpu_custom_call.1} parent=27 // pred_check
        %p217 = pneg %p58
      $region34: #{tpu_custom_call.1} parent=27 // pred_check_branch
        %219 = sbr.rel (%p217) target = $region36
      $region35: #{tpu_custom_call.1} parent=27 // pred_region
        %s220 = smul.u32 4, %s12
        %p221 = scmp.lt.s32.totalorder %s220, 7
        %s222 = scalar_select %p221, %s220, 7
        %s223 = smul.addr %s222, 18
        %s224 = smul.addr %s223, 4
        %s225 = scalar_lea.vmem %s1, %s224
        %s226 = smul.u32 4, %s12
      $region36: #{tpu_custom_call.1} parent=27 // pred_fallthru
        _
      // Predicated region
      $region37: #{tpu_custom_call.1} parent=27 // pred_check
        %p227 = pneg %p84
      $region38: #{tpu_custom_call.1} parent=27 // pred_check_branch
        %229 = sbr.rel (%p227) target = $region40
      $region39: #{tpu_custom_call.1} parent=27 // pred_region
        %s230 = smul.u32 4, %s12
        %p231 = scmp.lt.s32.totalorder %s230, 7
        %s232 = scalar_select %p231, %s230, 7
        %s233 = smul.addr %s232, 18
        %s234 = smul.addr %s233, 4
        %s235 = scalar_lea.vmem %s2, %s234
        %s236 = smul.u32 4, %s12
      $region40: #{tpu_custom_call.1} parent=27 // pred_fallthru
        _
    $region28: #{tpu_custom_call.1} parent=5 // pred_fallthru
      _
    %p237 = scmp.le.s32.totalorder 1, %s12
    %p238 = scmp.lt.s32.totalorder %s12, 3
    %p239 = pnand %p237, %p238
    %p240 = pneg %p239
    // Predicated region
    $region41: #{tpu_custom_call.1} parent=5 // pred_check
      _
    $region42: #{tpu_custom_call.1} parent=5 // pred_check_branch
      %242 = sbr.rel (%p239) target = $region44
    $region43: #{tpu_custom_call.1} parent=5 // pred_region
      %s243 = ssub.s32 %s12, 1
      %s244 = smul.u32 4, %s17
      %p245 = scmp.lt.s32.totalorder %s244, 7
      %s246 = scalar_select %p245, %s244, 7
      %s247 = smul.addr %s246, 8
      %s248 = smul.addr %s247, 4
      %s249 = scalar_lea.vmem %s0, %s248
      %p250 = pneg %p38
      %p251 = pneg %p35
      %s252 = smul.u32 4, %s17
      %p253 = scmp.lt.s32.totalorder %s252, 7
      %s254 = scalar_select %p253, %s252, 7
      %s255 = smul.addr %s254, 18
      %s256 = smul.addr %s255, 4
      %s257 = scalar_lea.vmem %s1, %s256
      %p258 = pneg %p64
      %p259 = pneg %p61
      %s260 = smul.u32 4, %s17
      %p261 = scmp.lt.s32.totalorder %s260, 7
      %s262 = scalar_select %p261, %s260, 7
      %s263 = smul.addr %s262, 18
      %s264 = smul.addr %s263, 4
      %s265 = scalar_lea.vmem %s2, %s264
      %p266 = pneg %p90
      %p267 = pneg %p87
      %p268 = pneg %p111
      %p269 = pneg %p108
      %p270 = pneg %p132
      %p271 = pneg %p129
      %p272 = pneg %p153
      %p273 = pneg %p150
      %p274 = pneg %p179
      %p275 = pneg %p176
      %s276 = smul.u32 4, %s17
      %p277 = scmp.lt.s32.totalorder %s276, 7
      %s278 = scalar_select %p277, %s276, 7
      %s279 = smul.addr %s278, 8
      %s280 = smul.addr %s279, 8
      %s281 = scalar_lea.vmem %s6, %s280
      %s282 = smul.u32 4, %s17
      %p283 = scmp.lt.s32.totalorder %s282, 7
      %s284 = scalar_select %p283, %s282, 7
      %s285 = smul.addr %s284, 8
      %s286 = smul.addr %s285, 4
      %s287 = scalar_lea.vmem %s0, %s286
      %s288 = smul.u32 4, %s17
      %s289 = smul.u32 4, %s17
      %p290 = scmp.lt.s32.totalorder %s289, 7
      %s291 = scalar_select %p290, %s289, 7
      %s292 = smul.addr %s291, 18
      %s293 = smul.addr %s292, 4
      %s294 = scalar_lea.vmem %s1, %s293
      %s295 = smul.u32 4, %s17
      %s296 = smul.u32 4, %s17
      %p297 = scmp.lt.s32.totalorder %s296, 7
      %s298 = scalar_select %p297, %s296, 7
      %s299 = smul.addr %s298, 18
      %s300 = smul.addr %s299, 4
      %s301 = scalar_lea.vmem %s2, %s300
      %s302 = smul.u32 4, %s17
      %s303 = smul.u32 4, %s17
      %p304 = scmp.lt.s32.totalorder %s303, 7
      %s305 = scalar_select %p304, %s303, 7
      %s306 = smul.addr %s305, 8
      %s307 = smul.addr %s306, 8
      %s308 = scalar_lea.vmem %s6, %s307
      %s309 = smul.u32 4, %s17
      %v311 = vld [vmem:[%s287] sm:$0xf]
      %v312 = vld [vmem:[%s287 + $0x4] sm:$0xf]
      %v313 = vld [vmem:[%s287 + $0x8] sm:$0xf]
      %v314 = vld [vmem:[%s287 + $0xc] sm:$0xf]
      %v315 = vld [vmem:[%s287 + $0x10] sm:$0xf]
      %v316 = vld [vmem:[%s287 + $0x14] sm:$0xf]
      %v317 = vld [vmem:[%s287 + $0x18] sm:$0xf]
      %v318 = vld [vmem:[%s287 + $0x1c] sm:$0xf]
      %v319 = vld [vmem:[%s287 + $0x20] sm:$0xf]
      %v320 = vld [vmem:[%s287 + $0x24] sm:$0xf]
      %v321 = vld [vmem:[%s287 + $0x28] sm:$0xf]
      %v322 = vld [vmem:[%s287 + $0x2c] sm:$0xf]
      %v323 = vld [vmem:[%s287 + $0x30] sm:$0xf]
      %v324 = vld [vmem:[%s287 + $0x34] sm:$0xf]
      %v325 = vld [vmem:[%s287 + $0x38] sm:$0xf]
      %v326 = vld [vmem:[%s287 + $0x3c] sm:$0xf]
      %v327 = vld [vmem:[%s287 + $0x40] sm:$0xf]
      %v328 = vld [vmem:[%s287 + $0x44] sm:$0xf]
      %v329 = vld [vmem:[%s287 + $0x48] sm:$0xf]
      %v330 = vld [vmem:[%s287 + $0x4c] sm:$0xf]
      %v331 = vld [vmem:[%s287 + $0x50] sm:$0xf]
      %v332 = vld [vmem:[%s287 + $0x54] sm:$0xf]
      %v333 = vld [vmem:[%s287 + $0x58] sm:$0xf]
      %v334 = vld [vmem:[%s287 + $0x5c] sm:$0xf]
      %v335 = vld [vmem:[%s287 + $0x60] sm:$0xf]
      %v336 = vld [vmem:[%s287 + $0x64] sm:$0xf]
      %v337 = vld [vmem:[%s287 + $0x68] sm:$0xf]
      %v338 = vld [vmem:[%s287 + $0x6c] sm:$0xf]
      %v339 = vld [vmem:[%s287 + $0x70] sm:$0xf]
      %v340 = vld [vmem:[%s287 + $0x74] sm:$0xf]
      %v341 = vld [vmem:[%s287 + $0x78] sm:$0xf]
      %v342 = vld [vmem:[%s287 + $0x7c] sm:$0xf]
      %v343 = vld [vmem:[%s294] sm:$0xf]
      %v344 = vld [vmem:[%s294 + $0x4] sm:$0xf]
      %v345 = vld [vmem:[%s294 + $0x8] sm:$0xf]
      %v346 = vld [vmem:[%s294 + $0xc] sm:$0xf]
      %v347 = vld [vmem:[%s294 + $0x10] sm:$0xf]
      %v348 = vld [vmem:[%s294 + $0x14] sm:$0xf]
      %v349 = vld [vmem:[%s294 + $0x18] sm:$0xf]
      %v350 = vld [vmem:[%s294 + $0x1c] sm:$0xf]
      %v351 = vld [vmem:[%s294 + $0x20] sm:$0xf]
      %v352 = vld [vmem:[%s294 + $0x24] sm:$0xf]
      %v353 = vld [vmem:[%s294 + $0x28] sm:$0xf]
      %v354 = vld [vmem:[%s294 + $0x2c] sm:$0xf]
      %v355 = vld [vmem:[%s294 + $0x30] sm:$0xf]
      %v356 = vld [vmem:[%s294 + $0x34] sm:$0xf]
      %v357 = vld [vmem:[%s294 + $0x38] sm:$0xf]
      %v358 = vld [vmem:[%s294 + $0x3c] sm:$0xf]
      %v359 = vld [vmem:[%s294 + $0x40] sm:$0xf]
      %v360 = vld [vmem:[%s294 + $0x44] sm:$0xf]
      %v361 = vld [vmem:[%s294 + $0x48] sm:$0xf]
      %v362 = vld [vmem:[%s294 + $0x4c] sm:$0xf]
      %v363 = vld [vmem:[%s294 + $0x50] sm:$0xf]
      %v364 = vld [vmem:[%s294 + $0x54] sm:$0xf]
      %v365 = vld [vmem:[%s294 + $0x58] sm:$0xf]
      %v366 = vld [vmem:[%s294 + $0x5c] sm:$0xf]
      %v367 = vld [vmem:[%s294 + $0x60] sm:$0xf]
      %v368 = vld [vmem:[%s294 + $0x64] sm:$0xf]
      %v369 = vld [vmem:[%s294 + $0x68] sm:$0xf]
      %v370 = vld [vmem:[%s294 + $0x6c] sm:$0xf]
      %v371 = vld [vmem:[%s294 + $0x70] sm:$0xf]
      %v372 = vld [vmem:[%s294 + $0x74] sm:$0xf]
      %v373 = vld [vmem:[%s294 + $0x78] sm:$0xf]
      %v374 = vld [vmem:[%s294 + $0x7c] sm:$0xf]
      %v375 = vld [vmem:[%s294 + $0x80] sm:$0xf]
      %v376 = vld [vmem:[%s294 + $0x84] sm:$0xf]
      %v377 = vld [vmem:[%s294 + $0x88] sm:$0xf]
      %v378 = vld [vmem:[%s294 + $0x8c] sm:$0xf]
      %v379 = vld [vmem:[%s294 + $0x90] sm:$0xf]
      %v380 = vld [vmem:[%s294 + $0x94] sm:$0xf]
      %v381 = vld [vmem:[%s294 + $0x98] sm:$0xf]
      %v382 = vld [vmem:[%s294 + $0x9c] sm:$0xf]
      %v383 = vld [vmem:[%s294 + $0xa0] sm:$0xf]
      %v384 = vld [vmem:[%s294 + $0xa4] sm:$0xf]
      %v385 = vld [vmem:[%s294 + $0xa8] sm:$0xf]
      %v386 = vld [vmem:[%s294 + $0xac] sm:$0xf]
      %v387 = vld [vmem:[%s294 + $0xb0] sm:$0xf]
      %v388 = vld [vmem:[%s294 + $0xb4] sm:$0xf]
      %v389 = vld [vmem:[%s294 + $0xb8] sm:$0xf]
      %v390 = vld [vmem:[%s294 + $0xbc] sm:$0xf]
      %v391 = vld [vmem:[%s294 + $0xc0] sm:$0xf]
      %v392 = vld [vmem:[%s294 + $0xc4] sm:$0xf]
      %v393 = vld [vmem:[%s294 + $0xc8] sm:$0xf]
      %v394 = vld [vmem:[%s294 + $0xcc] sm:$0xf]
      %v395 = vld [vmem:[%s294 + $0xd0] sm:$0xf]
      %v396 = vld [vmem:[%s294 + $0xd4] sm:$0xf]
      %v397 = vld [vmem:[%s294 + $0xd8] sm:$0xf]
      %v398 = vld [vmem:[%s294 + $0xdc] sm:$0xf]
      %v399 = vld [vmem:[%s294 + $0xe0] sm:$0xf]
      %v400 = vld [vmem:[%s294 + $0xe4] sm:$0xf]
      %v401 = vld [vmem:[%s294 + $0xe8] sm:$0xf]
      %v402 = vld [vmem:[%s294 + $0xec] sm:$0xf]
      %v403 = vld [vmem:[%s294 + $0xf0] sm:$0xf]
      %v404 = vld [vmem:[%s294 + $0xf4] sm:$0xf]
      %v405 = vld [vmem:[%s294 + $0xf8] sm:$0xf]
      %v406 = vld [vmem:[%s294 + $0xfc] sm:$0xf]
      %v407 = vld [vmem:[%s294 + $0x100] sm:$0xf]
      %v408 = vld [vmem:[%s294 + $0x104] sm:$0xf]
      %v409 = vld [vmem:[%s294 + $0x108] sm:$0xf]
      %v410 = vld [vmem:[%s294 + $0x10c] sm:$0xf]
      %v411 = vld [vmem:[%s294 + $0x110] sm:$0xf]
      %v412 = vld [vmem:[%s294 + $0x114] sm:$0xf]
      %v413 = vld [vmem:[%s294 + $0x118] sm:$0xf]
      %v414 = vld [vmem:[%s294 + $0x11c] sm:$0xf]
      %v415 = vld [vmem:[%s301] sm:$0xf]
      %v416 = vld [vmem:[%s301 + $0x4] sm:$0xf]
      %v417 = vld [vmem:[%s301 + $0x8] sm:$0xf]
      %v418 = vld [vmem:[%s301 + $0xc] sm:$0xf]
      %v419 = vld [vmem:[%s301 + $0x10] sm:$0xf]
      %v420 = vld [vmem:[%s301 + $0x14] sm:$0xf]
      %v421 = vld [vmem:[%s301 + $0x18] sm:$0xf]
      %v422 = vld [vmem:[%s301 + $0x1c] sm:$0xf]
      %v423 = vld [vmem:[%s301 + $0x20] sm:$0xf]
      %v424 = vld [vmem:[%s301 + $0x24] sm:$0xf]
      %v425 = vld [vmem:[%s301 + $0x28] sm:$0xf]
      %v426 = vld [vmem:[%s301 + $0x2c] sm:$0xf]
      %v427 = vld [vmem:[%s301 + $0x30] sm:$0xf]
      %v428 = vld [vmem:[%s301 + $0x34] sm:$0xf]
      %v429 = vld [vmem:[%s301 + $0x38] sm:$0xf]
      %v430 = vld [vmem:[%s301 + $0x3c] sm:$0xf]
      %v431 = vld [vmem:[%s301 + $0x40] sm:$0xf]
      %v432 = vld [vmem:[%s301 + $0x44] sm:$0xf]
      %v433 = vld [vmem:[%s301 + $0x48] sm:$0xf]
      %v434 = vld [vmem:[%s301 + $0x4c] sm:$0xf]
      %v435 = vld [vmem:[%s301 + $0x50] sm:$0xf]
      %v436 = vld [vmem:[%s301 + $0x54] sm:$0xf]
      %v437 = vld [vmem:[%s301 + $0x58] sm:$0xf]
      %v438 = vld [vmem:[%s301 + $0x5c] sm:$0xf]
      %v439 = vld [vmem:[%s301 + $0x60] sm:$0xf]
      %v440 = vld [vmem:[%s301 + $0x64] sm:$0xf]
      %v441 = vld [vmem:[%s301 + $0x68] sm:$0xf]
      %v442 = vld [vmem:[%s301 + $0x6c] sm:$0xf]
      %v443 = vld [vmem:[%s301 + $0x70] sm:$0xf]
      %v444 = vld [vmem:[%s301 + $0x74] sm:$0xf]
      %v445 = vld [vmem:[%s301 + $0x78] sm:$0xf]
      %v446 = vld [vmem:[%s301 + $0x7c] sm:$0xf]
      %v447 = vld [vmem:[%s301 + $0x80] sm:$0xf]
      %v448 = vld [vmem:[%s301 + $0x84] sm:$0xf]
      %v449 = vld [vmem:[%s301 + $0x88] sm:$0xf]
      %v450 = vld [vmem:[%s301 + $0x8c] sm:$0xf]
      %v451 = vld [vmem:[%s301 + $0x90] sm:$0xf]
      %v452 = vld [vmem:[%s301 + $0x94] sm:$0xf]
      %v453 = vld [vmem:[%s301 + $0x98] sm:$0xf]
      %v454 = vld [vmem:[%s301 + $0x9c] sm:$0xf]
      %v455 = vld [vmem:[%s301 + $0xa0] sm:$0xf]
      %v456 = vld [vmem:[%s301 + $0xa4] sm:$0xf]
      %v457 = vld [vmem:[%s301 + $0xa8] sm:$0xf]
      %v458 = vld [vmem:[%s301 + $0xac] sm:$0xf]
      %v459 = vld [vmem:[%s301 + $0xb0] sm:$0xf]
      %v460 = vld [vmem:[%s301 + $0xb4] sm:$0xf]
      %v461 = vld [vmem:[%s301 + $0xb8] sm:$0xf]
      %v462 = vld [vmem:[%s301 + $0xbc] sm:$0xf]
      %v463 = vld [vmem:[%s301 + $0xc0] sm:$0xf]
      %v464 = vld [vmem:[%s301 + $0xc4] sm:$0xf]
      %v465 = vld [vmem:[%s301 + $0xc8] sm:$0xf]
      %v466 = vld [vmem:[%s301 + $0xcc] sm:$0xf]
      %v467 = vld [vmem:[%s301 + $0xd0] sm:$0xf]
      %v468 = vld [vmem:[%s301 + $0xd4] sm:$0xf]
      %v469 = vld [vmem:[%s301 + $0xd8] sm:$0xf]
      %v470 = vld [vmem:[%s301 + $0xdc] sm:$0xf]
      %v471 = vld [vmem:[%s301 + $0xe0] sm:$0xf]
      %v472 = vld [vmem:[%s301 + $0xe4] sm:$0xf]
      %v473 = vld [vmem:[%s301 + $0xe8] sm:$0xf]
      %v474 = vld [vmem:[%s301 + $0xec] sm:$0xf]
      %v475 = vld [vmem:[%s301 + $0xf0] sm:$0xf]
      %v476 = vld [vmem:[%s301 + $0xf4] sm:$0xf]
      %v477 = vld [vmem:[%s301 + $0xf8] sm:$0xf]
      %v478 = vld [vmem:[%s301 + $0xfc] sm:$0xf]
      %v479 = vld [vmem:[%s301 + $0x100] sm:$0xf]
      %v480 = vld [vmem:[%s301 + $0x104] sm:$0xf]
      %v481 = vld [vmem:[%s301 + $0x108] sm:$0xf]
      %v482 = vld [vmem:[%s301 + $0x10c] sm:$0xf]
      %v483 = vld [vmem:[%s301 + $0x110] sm:$0xf]
      %v484 = vld [vmem:[%s301 + $0x114] sm:$0xf]
      %v485 = vld [vmem:[%s301 + $0x118] sm:$0xf]
      %v486 = vld [vmem:[%s301 + $0x11c] sm:$0xf]
      %v487 = vld [vmem:[%s3] sm:$0xff]
      %v488 = vld [vmem:[%s3 + $0x8] sm:$0xff]
      %v489 = vld [vmem:[%s3 + $0x10] sm:$0xff]
      %v490 = vld [vmem:[%s3 + $0x18] sm:$0xff]
      %v491 = vld [vmem:[%s3 + $0x20] sm:$0xff]
      %v492 = vld [vmem:[%s3 + $0x28] sm:$0xff]
      %v493 = vld [vmem:[%s3 + $0x30] sm:$0xff]
      %v494 = vld [vmem:[%s3 + $0x38] sm:$0xff]
      %v495 = vld [vmem:[%s3 + $0x40] sm:$0xff]
      %v496 = vld [vmem:[%s3 + $0x48] sm:$0xff]
      %v497 = vld [vmem:[%s3 + $0x50] sm:$0xff]
      %v498 = vld [vmem:[%s3 + $0x58] sm:$0xff]
      %v499 = vld [vmem:[%s3 + $0x60] sm:$0xff]
      %v500 = vld [vmem:[%s3 + $0x68] sm:$0xff]
      %v501 = vld [vmem:[%s3 + $0x70] sm:$0xff]
      %v502 = vld [vmem:[%s3 + $0x78] sm:$0xff]
      %v511 = vunpack.c.l.b16 %v311
      %v512 = vunpack.c.l.b16 %v312
      %v513 = vunpack.c.l.b16 %v313
      %v514 = vunpack.c.l.b16 %v314
      %v515 = vunpack.c.l.b16 %v315
      %v516 = vunpack.c.l.b16 %v316
      %v517 = vunpack.c.l.b16 %v317
      %v518 = vunpack.c.l.b16 %v318
      %v519 = vpack.c.b16 %v512, %v511
      %v520 = vpack.c.b16 %v514, %v513
      %v521 = vpack.c.b16 %v516, %v515
      %v522 = vpack.c.b16 %v518, %v517
      %v541 = vunpack.c.l.b16 %v343
      %v542 = vunpack.c.l.b16 %v344
      %v543 = vunpack.c.l.b16 %v345
      %v544 = vunpack.c.l.b16 %v346
      %v545 = vunpack.c.l.b16 %v347
      %v546 = vunpack.c.l.b16 %v348
      %v547 = vunpack.c.l.b16 %v349
      %v548 = vunpack.c.l.b16 %v350
      %v549 = vunpack.c.l.b16 %v351
      %v550 = vunpack.c.l.b16 %v352
      %v551 = vunpack.c.l.b16 %v353
      %v552 = vunpack.c.l.b16 %v354
      %v553 = vunpack.c.l.b16 %v355
      %v554 = vunpack.c.l.b16 %v356
      %v555 = vunpack.c.l.b16 %v357
      %v556 = vunpack.c.l.b16 %v358
      %v557 = vunpack.c.l.b16 %v359
      %v558 = vunpack.c.l.b16 %v360
      %v559 = vpack.c.b16 %v542, %v541
      %v560 = vpack.c.b16 %v544, %v543
      %v561 = vpack.c.b16 %v546, %v545
      %v562 = vpack.c.b16 %v548, %v547
      %v563 = vpack.c.b16 %v550, %v549
      %v564 = vpack.c.b16 %v552, %v551
      %v565 = vpack.c.b16 %v554, %v553
      %v566 = vpack.c.b16 %v556, %v555
      %v567 = vpack.c.b16 %v558, %v557
      %vm568 = vcmask 64512
      %v570 = vsel %vm568, %v519, 0
      %v573 = vsel %vm568, %v520, 0
      %v576 = vsel %vm568, %v521, 0
      %v579 = vsel %vm568, %v522, 0
      %v582 = vsel %vm568, %v559, 0
      %v585 = vsel %vm568, %v560, 0
      %v588 = vsel %vm568, %v561, 0
      %v591 = vsel %vm568, %v562, 0
      %v594 = vsel %vm568, %v563, 0
      %v597 = vsel %vm568, %v564, 0
      %v600 = vsel %vm568, %v565, 0
      %v603 = vsel %vm568, %v566, 0
      %v606 = vsel %vm568, %v567, 0
      %608 = vmatprep.subr.bf16.mxu0 0
      %609 = vmatpush1.bf16.xpose.msra.mxu0 %v582
      %610 = vmatprep.subr.bf16.mxu0 0
      %611 = vmatpush1.bf16.xpose.msra.mxu0 %v585
      %612 = vmatprep.subr.bf16.mxu0 0
      %613 = vmatpush1.bf16.xpose.msra.mxu0 %v588
      %614 = vmatprep.subr.bf16.mxu0 0
      %615 = vmatpush1.bf16.xpose.msra.mxu0 %v591
      %616 = vmatprep.subr.bf16.mxu0 0
      %617 = vmatpush1.bf16.xpose.msra.mxu0 %v594
      %618 = vmatprep.subr.bf16.mxu0 0
      %619 = vmatpush1.bf16.xpose.msra.mxu0 %v597
      %620 = vmatprep.subr.bf16.mxu0 0
      %621 = vmatpush1.bf16.xpose.msra.mxu0 %v600
      %622 = vmatprep.subr.bf16.mxu0 0
      %623 = vmatpush1.bf16.xpose.msra.mxu0 %v603
      %624 = vmatprep.subr.bf16.mxu0 0
      %625 = vmatpush1.bf16.xpose.msra.mxu0 %v606
      %626 = vmatprep.subr.bf16.mxu0 0
      %627 = vmatpush1.bf16.xpose.msra.mxu0 0
      %628 = vmatprep.subr.bf16.mxu0 0
      %629 = vmatpush1.bf16.xpose.msra.mxu0 0
      %630 = vmatprep.subr.bf16.mxu0 0
      %631 = vmatpush1.bf16.xpose.msra.mxu0 0
      %632 = vmatprep.subr.bf16.mxu0 0
      %633 = vmatpush1.bf16.xpose.msra.mxu0 0
      %634 = vmatprep.subr.bf16.mxu0 0
      %635 = vmatpush1.bf16.xpose.msra.mxu0 0
      %636 = vmatprep.subr.bf16.mxu0 0
      %637 = vmatpush1.bf16.xpose.msra.mxu0 0
      %638 = vmatprep.subr.bf16.mxu0 0
      %639 = vmatpush1.bf16.xpose.msra.mxu0 0
      %640 = vmatprep.mubr.bf16.mxu0 0
      %641 = vmatmul.mubr.bf16.gmra.mrb[0].mxu0 %v570
      %v642 = vpop.f32.mrb[0].mxu0
      %v643 = vadd.f32 %v487, %v642
      %v644 = vpop.f32.mrb[0].mxu0
      %v645 = vadd.f32 %v488, %v644
      %v646 = vpop.f32.mrb[0].mxu0
      %v647 = vadd.f32 %v489, %v646
      %v648 = vpop.f32.mrb[0].mxu0
      %v649 = vadd.f32 %v490, %v648
      %650 = vmatprep.mubr.bf16.mxu0 0
      %651 = vmatmul.mubr.bf16.gmra.mrb[0].mxu0 %v573
      %v652 = vpop.f32.mrb[0].mxu0
      %v653 = vadd.f32 %v491, %v652
      %v654 = vpop.f32.mrb[0].mxu0
      %v655 = vadd.f32 %v492, %v654
      %v656 = vpop.f32.mrb[0].mxu0
      %v657 = vadd.f32 %v493, %v656
      %v658 = vpop.f32.mrb[0].mxu0
      %v659 = vadd.f32 %v494, %v658
      %660 = vmatprep.mubr.bf16.mxu0 0
      %661 = vmatmul.mubr.bf16.gmra.mrb[0].mxu0 %v576
      %v662 = vpop.f32.mrb[0].mxu0
      %v663 = vadd.f32 %v495, %v662
      %v664 = vpop.f32.mrb[0].mxu0
      %v665 = vadd.f32 %v496, %v664
      %v666 = vpop.f32.mrb[0].mxu0
      %v667 = vadd.f32 %v497, %v666
      %v668 = vpop.f32.mrb[0].mxu0
      %v669 = vadd.f32 %v498, %v668
      %670 = vmatprep.mubr.bf16.mxu0 0
      %671 = vmatmul.mubr.bf16.gmra.mrb[0].mxu0 %v579
      %v672 = vpop.f32.mrb[0].mxu0
      %v673 = vadd.f32 %v499, %v672
      %v674 = vpop.f32.mrb[0].mxu0
      %v675 = vadd.f32 %v500, %v674
      %v676 = vpop.f32.mrb[0].mxu0
      %v677 = vadd.f32 %v501, %v676
      %v678 = vpop.f32.mrb[0].mxu0
      %v679 = vadd.f32 %v502, %v678
      %680 = vdwg.mxu0
      %v689 = vunpack.c.l.b16 %v319
      %v690 = vunpack.c.l.b16 %v320
      %v691 = vunpack.c.l.b16 %v321
      %v692 = vunpack.c.l.b16 %v322
      %v693 = vunpack.c.l.b16 %v323
      %v694 = vunpack.c.l.b16 %v324
      %v695 = vunpack.c.l.b16 %v325
      %v696 = vunpack.c.l.b16 %v326
      %v697 = vpack.c.b16 %v690, %v689
      %v698 = vpack.c.b16 %v692, %v691
      %v699 = vpack.c.b16 %v694, %v693
      %v700 = vpack.c.b16 %v696, %v695
      %v719 = vunpack.c.l.b16 %v361
      %v720 = vunpack.c.l.b16 %v362
      %v721 = vunpack.c.l.b16 %v363
      %v722 = vunpack.c.l.b16 %v364
      %v723 = vunpack.c.l.b16 %v365
      %v724 = vunpack.c.l.b16 %v366
      %v725 = vunpack.c.l.b16 %v367
      %v726 = vunpack.c.l.b16 %v368
      %v727 = vunpack.c.l.b16 %v369
      %v728 = vunpack.c.l.b16 %v370
      %v729 = vunpack.c.l.b16 %v371
      %v730 = vunpack.c.l.b16 %v372
      %v731 = vunpack.c.l.b16 %v373
      %v732 = vunpack.c.l.b16 %v374
      %v733 = vunpack.c.l.b16 %v375
      %v734 = vunpack.c.l.b16 %v376
      %v735 = vunpack.c.l.b16 %v377
      %v736 = vunpack.c.l.b16 %v378
      %v737 = vpack.c.b16 %v720, %v719
      %v738 = vpack.c.b16 %v722, %v721
      %v739 = vpack.c.b16 %v724, %v723
      %v740 = vpack.c.b16 %v726, %v725
      %v741 = vpack.c.b16 %v728, %v727
      %v742 = vpack.c.b16 %v730, %v729
      %v743 = vpack.c.b16 %v732, %v731
      %v744 = vpack.c.b16 %v734, %v733
      %v745 = vpack.c.b16 %v736, %v735
      %v747 = vsel %vm568, %v697, 0
      %v750 = vsel %vm568, %v698, 0
      %v753 = vsel %vm568, %v699, 0
      %v756 = vsel %vm568, %v700, 0
      %v759 = vsel %vm568, %v737, 0
      %v762 = vsel %vm568, %v738, 0
      %v765 = vsel %vm568, %v739, 0
      %v768 = vsel %vm568, %v740, 0
      %v771 = vsel %vm568, %v741, 0
      %v774 = vsel %vm568, %v742, 0
      %v777 = vsel %vm568, %v743, 0
      %v780 = vsel %vm568, %v744, 0
      %v783 = vsel %vm568, %v745, 0
      %785 = vmatprep.subr.bf16.mxu0 0
      %786 = vmatpush1.bf16.xpose.msra.mxu0 %v759
      %787 = vmatprep.subr.bf16.mxu0 0
      %788 = vmatpush1.bf16.xpose.msra.mxu0 %v762
      %789 = vmatprep.subr.bf16.mxu0 0
      %790 = vmatpush1.bf16.xpose.msra.mxu0 %v765
      %791 = vmatprep.subr.bf16.mxu0 0
      %792 = vmatpush1.bf16.xpose.msra.mxu0 %v768
      %793 = vmatprep.subr.bf16.mxu0 0
      %794 = vmatpush1.bf16.xpose.msra.mxu0 %v771
      %795 = vmatprep.subr.bf16.mxu0 0
      %796 = vmatpush1.bf16.xpose.msra.mxu0 %v774
      %797 = vmatprep.subr.bf16.mxu0 0
      %798 = vmatpush1.bf16.xpose.msra.mxu0 %v777
      %799 = vmatprep.subr.bf16.mxu0 0
      %800 = vmatpush1.bf16.xpose.msra.mxu0 %v780
      %801 = vmatprep.subr.bf16.mxu0 0
      %802 = vmatpush1.bf16.xpose.msra.mxu0 %v783
      %803 = vmatprep.subr.bf16.mxu0 0
      %804 = vmatpush1.bf16.xpose.msra.mxu0 0
      %805 = vmatprep.subr.bf16.mxu0 0
      %806 = vmatpush1.bf16.xpose.msra.mxu0 0
      %807 = vmatprep.subr.bf16.mxu0 0
      %808 = vmatpush1.bf16.xpose.msra.mxu0 0
      %809 = vmatprep.subr.bf16.mxu0 0
      %810 = vmatpush1.bf16.xpose.msra.mxu0 0
      %811 = vmatprep.subr.bf16.mxu0 0
      %812 = vmatpush1.bf16.xpose.msra.mxu0 0
      %813 = vmatprep.subr.bf16.mxu0 0
      %814 = vmatpush1.bf16.xpose.msra.mxu0 0
      %815 = vmatprep.subr.bf16.mxu0 0
      %816 = vmatpush1.bf16.xpose.msra.mxu0 0
      %817 = vmatprep.mubr.bf16.mxu0 0
      %818 = vmatmul.mubr.bf16.gmra.mrb[0].mxu0 %v747
      %v819 = vpop.f32.mrb[0].mxu0
      %v820 = vadd.f32 %v487, %v819
      %v821 = vpop.f32.mrb[0].mxu0
      %v822 = vadd.f32 %v488, %v821
      %v823 = vpop.f32.mrb[0].mxu0
      %v824 = vadd.f32 %v489, %v823
      %v825 = vpop.f32.mrb[0].mxu0
      %v826 = vadd.f32 %v490, %v825
      %827 = vmatprep.mubr.bf16.mxu0 0
      %828 = vmatmul.mubr.bf16.gmra.mrb[0].mxu0 %v750
      %v829 = vpop.f32.mrb[0].mxu0
      %v830 = vadd.f32 %v491, %v829
      %v831 = vpop.f32.mrb[0].mxu0
      %v832 = vadd.f32 %v492, %v831
      %v833 = vpop.f32.mrb[0].mxu0
      %v834 = vadd.f32 %v493, %v833
      %v835 = vpop.f32.mrb[0].mxu0
      %v836 = vadd.f32 %v494, %v835
      %837 = vmatprep.mubr.bf16.mxu0 0
      %838 = vmatmul.mubr.bf16.gmra.mrb[0].mxu0 %v753
      %v839 = vpop.f32.mrb[0].mxu0
      %v840 = vadd.f32 %v495, %v839
      %v841 = vpop.f32.mrb[0].mxu0
      %v842 = vadd.f32 %v496, %v841
      %v843 = vpop.f32.mrb[0].mxu0
      %v844 = vadd.f32 %v497, %v843
      %v845 = vpop.f32.mrb[0].mxu0
      %v846 = vadd.f32 %v498, %v845
      %847 = vmatprep.mubr.bf16.mxu0 0
      %848 = vmatmul.mubr.bf16.gmra.mrb[0].mxu0 %v756
      %v849 = vpop.f32.mrb[0].mxu0
      %v850 = vadd.f32 %v499, %v849
      %v851 = vpop.f32.mrb[0].mxu0
      %v852 = vadd.f32 %v500, %v851
      %v853 = vpop.f32.mrb[0].mxu0
      %v854 = vadd.f32 %v501, %v853
      %v855 = vpop.f32.mrb[0].mxu0
      %v856 = vadd.f32 %v502, %v855
      %857 = vdwg.mxu0
      %v866 = vunpack.c.l.b16 %v327
      %v867 = vunpack.c.l.b16 %v328
      %v868 = vunpack.c.l.b16 %v329
      %v869 = vunpack.c.l.b16 %v330
      %v870 = vunpack.c.l.b16 %v331
      %v871 = vunpack.c.l.b16 %v332
      %v872 = vunpack.c.l.b16 %v333
      %v873 = vunpack.c.l.b16 %v334
      %v874 = vpack.c.b16 %v867, %v866
      %v875 = vpack.c.b16 %v869, %v868
      %v876 = vpack.c.b16 %v871, %v870
      %v877 = vpack.c.b16 %v873, %v872
      %v896 = vunpack.c.l.b16 %v379
      %v897 = vunpack.c.l.b16 %v380
      %v898 = vunpack.c.l.b16 %v381
      %v899 = vunpack.c.l.b16 %v382
      %v900 = vunpack.c.l.b16 %v383
      %v901 = vunpack.c.l.b16 %v384
      %v902 = vunpack.c.l.b16 %v385
      %v903 = vunpack.c.l.b16 %v386
      %v904 = vunpack.c.l.b16 %v387
      %v905 = vunpack.c.l.b16 %v388
      %v906 = vunpack.c.l.b16 %v389
      %v907 = vunpack.c.l.b16 %v390
      %v908 = vunpack.c.l.b16 %v391
      %v909 = vunpack.c.l.b16 %v392
      %v910 = vunpack.c.l.b16 %v393
      %v911 = vunpack.c.l.b16 %v394
      %v912 = vunpack.c.l.b16 %v395
      %v913 = vunpack.c.l.b16 %v396
      %v914 = vpack.c.b16 %v897, %v896
      %v915 = vpack.c.b16 %v899, %v898
      %v916 = vpack.c.b16 %v901, %v900
      %v917 = vpack.c.b16 %v903, %v902
      %v918 = vpack.c.b16 %v905, %v904
      %v919 = vpack.c.b16 %v907, %v906
      %v920 = vpack.c.b16 %v909, %v908
      %v921 = vpack.c.b16 %v911, %v910
      %v922 = vpack.c.b16 %v913, %v912
      %v924 = vsel %vm568, %v874, 0
      %v927 = vsel %vm568, %v875, 0
      %v930 = vsel %vm568, %v876, 0
      %v933 = vsel %vm568, %v877, 0
      %v936 = vsel %vm568, %v914, 0
      %v939 = vsel %vm568, %v915, 0
      %v942 = vsel %vm568, %v916, 0
      %v945 = vsel %vm568, %v917, 0
      %v948 = vsel %vm568, %v918, 0
      %v951 = vsel %vm568, %v919, 0
      %v954 = vsel %vm568, %v920, 0
      %v957 = vsel %vm568, %v921, 0
      %v960 = vsel %vm568, %v922, 0
      %962 = vmatprep.subr.bf16.mxu0 0
      %963 = vmatpush1.bf16.xpose.msra.mxu0 %v936
      %964 = vmatprep.subr.bf16.mxu0 0
      %965 = vmatpush1.bf16.xpose.msra.mxu0 %v939
      %966 = vmatprep.subr.bf16.mxu0 0
      %967 = vmatpush1.bf16.xpose.msra.mxu0 %v942
      %968 = vmatprep.subr.bf16.mxu0 0
      %969 = vmatpush1.bf16.xpose.msra.mxu0 %v945
      %970 = vmatprep.subr.bf16.mxu0 0
      %971 = vmatpush1.bf16.xpose.msra.mxu0 %v948
      %972 = vmatprep.subr.bf16.mxu0 0
      %973 = vmatpush1.bf16.xpose.msra.mxu0 %v951
      %974 = vmatprep.subr.bf16.mxu0 0
      %975 = vmatpush1.bf16.xpose.msra.mxu0 %v954
      %976 = vmatprep.subr.bf16.mxu0 0
      %977 = vmatpush1.bf16.xpose.msra.mxu0 %v957
      %978 = vmatprep.subr.bf16.mxu0 0
      %979 = vmatpush1.bf16.xpose.msra.mxu0 %v960
      %980 = vmatprep.subr.bf16.mxu0 0
      %981 = vmatpush1.bf16.xpose.msra.mxu0 0
      %982 = vmatprep.subr.bf16.mxu0 0
      %983 = vmatpush1.bf16.xpose.msra.mxu0 0
      %984 = vmatprep.subr.bf16.mxu0 0
      %985 = vmatpush1.bf16.xpose.msra.mxu0 0
      %986 = vmatprep.subr.bf16.mxu0 0
      %987 = vmatpush1.bf16.xpose.msra.mxu0 0
      %988 = vmatprep.subr.bf16.mxu0 0
      %989 = vmatpush1.bf16.xpose.msra.mxu0 0
      %990 = vmatprep.subr.bf16.mxu0 0
      %991 = vmatpush1.bf16.xpose.msra.mxu0 0
      %992 = vmatprep.subr.bf16.mxu0 0
      %993 = vmatpush1.bf16.xpose.msra.mxu0 0
      %994 = vmatprep.mubr.bf16.mxu0 0
      %995 = vmatmul.mubr.bf16.gmra.mrb[0].mxu0 %v924
      %v996 = vpop.f32.mrb[0].mxu0
      %v997 = vadd.f32 %v487, %v996
      %v998 = vpop.f32.mrb[0].mxu0
      %v999 = vadd.f32 %v488, %v998
      %v1000 = vpop.f32.mrb[0].mxu0
      %v1001 = vadd.f32 %v489, %v1000
      %v1002 = vpop.f32.mrb[0].mxu0
      %v1003 = vadd.f32 %v490, %v1002
      %1004 = vmatprep.mubr.bf16.mxu0 0
      %1005 = vmatmul.mubr.bf16.gmra.mrb[0].mxu0 %v927
      %v1006 = vpop.f32.mrb[0].mxu0
      %v1007 = vadd.f32 %v491, %v1006
      %v1008 = vpop.f32.mrb[0].mxu0
      %v1009 = vadd.f32 %v492, %v1008
      %v1010 = vpop.f32.mrb[0].mxu0
      %v1011 = vadd.f32 %v493, %v1010
      %v1012 = vpop.f32.mrb[0].mxu0
      %v1013 = vadd.f32 %v494, %v1012
      %1014 = vmatprep.mubr.bf16.mxu0 0
      %1015 = vmatmul.mubr.bf16.gmra.mrb[0].mxu0 %v930
      %v1016 = vpop.f32.mrb[0].mxu0
      %v1017 = vadd.f32 %v495, %v1016
      %v1018 = vpop.f32.mrb[0].mxu0
      %v1019 = vadd.f32 %v496, %v1018
      %v1020 = vpop.f32.mrb[0].mxu0
      %v1021 = vadd.f32 %v497, %v1020
      %v1022 = vpop.f32.mrb[0].mxu0
      %v1023 = vadd.f32 %v498, %v1022
      %1024 = vmatprep.mubr.bf16.mxu0 0
      %1025 = vmatmul.mubr.bf16.gmra.mrb[0].mxu0 %v933
      %v1026 = vpop.f32.mrb[0].mxu0
      %v1027 = vadd.f32 %v499, %v1026
      %v1028 = vpop.f32.mrb[0].mxu0
      %v1029 = vadd.f32 %v500, %v1028
      %v1030 = vpop.f32.mrb[0].mxu0
      %v1031 = vadd.f32 %v501, %v1030
      %v1032 = vpop.f32.mrb[0].mxu0
      %v1033 = vadd.f32 %v502, %v1032
      %1034 = vdwg.mxu0
      %v1043 = vunpack.c.l.b16 %v335
      %v1044 = vunpack.c.l.b16 %v336
      %v1045 = vunpack.c.l.b16 %v337
      %v1046 = vunpack.c.l.b16 %v338
      %v1047 = vunpack.c.l.b16 %v339
      %v1048 = vunpack.c.l.b16 %v340
      %v1049 = vunpack.c.l.b16 %v341
      %v1050 = vunpack.c.l.b16 %v342
      %v1051 = vpack.c.b16 %v1044, %v1043
      %v1052 = vpack.c.b16 %v1046, %v1045
      %v1053 = vpack.c.b16 %v1048, %v1047
      %v1054 = vpack.c.b16 %v1050, %v1049
      %v1073 = vunpack.c.l.b16 %v397
      %v1074 = vunpack.c.l.b16 %v398
      %v1075 = vunpack.c.l.b16 %v399
      %v1076 = vunpack.c.l.b16 %v400
      %v1077 = vunpack.c.l.b16 %v401
      %v1078 = vunpack.c.l.b16 %v402
      %v1079 = vunpack.c.l.b16 %v403
      %v1080 = vunpack.c.l.b16 %v404
      %v1081 = vunpack.c.l.b16 %v405
      %v1082 = vunpack.c.l.b16 %v406
      %v1083 = vunpack.c.l.b16 %v407
      %v1084 = vunpack.c.l.b16 %v408
      %v1085 = vunpack.c.l.b16 %v409
      %v1086 = vunpack.c.l.b16 %v410
      %v1087 = vunpack.c.l.b16 %v411
      %v1088 = vunpack.c.l.b16 %v412
      %v1089 = vunpack.c.l.b16 %v413
      %v1090 = vunpack.c.l.b16 %v414
      %v1091 = vpack.c.b16 %v1074, %v1073
      %v1092 = vpack.c.b16 %v1076, %v1075
      %v1093 = vpack.c.b16 %v1078, %v1077
      %v1094 = vpack.c.b16 %v1080, %v1079
      %v1095 = vpack.c.b16 %v1082, %v1081
      %v1096 = vpack.c.b16 %v1084, %v1083
      %v1097 = vpack.c.b16 %v1086, %v1085
      %v1098 = vpack.c.b16 %v1088, %v1087
      %v1099 = vpack.c.b16 %v1090, %v1089
      %v1101 = vsel %vm568, %v1051, 0
      %v1104 = vsel %vm568, %v1052, 0
      %v1107 = vsel %vm568, %v1053, 0
      %v1110 = vsel %vm568, %v1054, 0
      %v1113 = vsel %vm568, %v1091, 0
      %v1116 = vsel %vm568, %v1092, 0
      %v1119 = vsel %vm568, %v1093, 0
      %v1122 = vsel %vm568, %v1094, 0
      %v1125 = vsel %vm568, %v1095, 0
      %v1128 = vsel %vm568, %v1096, 0
      %v1131 = vsel %vm568, %v1097, 0
      %v1134 = vsel %vm568, %v1098, 0
      %v1137 = vsel %vm568, %v1099, 0
      %1139 = vmatprep.subr.bf16.mxu0 0
      %1140 = vmatpush1.bf16.xpose.msra.mxu0 %v1113
      %1141 = vmatprep.subr.bf16.mxu0 0
      %1142 = vmatpush1.bf16.xpose.msra.mxu0 %v1116
      %1143 = vmatprep.subr.bf16.mxu0 0
      %1144 = vmatpush1.bf16.xpose.msra.mxu0 %v1119
      %1145 = vmatprep.subr.bf16.mxu0 0
      %1146 = vmatpush1.bf16.xpose.msra.mxu0 %v1122
      %1147 = vmatprep.subr.bf16.mxu0 0
      %1148 = vmatpush1.bf16.xpose.msra.mxu0 %v1125
      %1149 = vmatprep.subr.bf16.mxu0 0
      %1150 = vmatpush1.bf16.xpose.msra.mxu0 %v1128
      %1151 = vmatprep.subr.bf16.mxu0 0
      %1152 = vmatpush1.bf16.xpose.msra.mxu0 %v1131
      %1153 = vmatprep.subr.bf16.mxu0 0
      %1154 = vmatpush1.bf16.xpose.msra.mxu0 %v1134
      %1155 = vmatprep.subr.bf16.mxu0 0
      %1156 = vmatpush1.bf16.xpose.msra.mxu0 %v1137
      %1157 = vmatprep.subr.bf16.mxu0 0
      %1158 = vmatpush1.bf16.xpose.msra.mxu0 0
      %1159 = vmatprep.subr.bf16.mxu0 0
      %1160 = vmatpush1.bf16.xpose.msra.mxu0 0
      %1161 = vmatprep.subr.bf16.mxu0 0
      %1162 = vmatpush1.bf16.xpose.msra.mxu0 0
      %1163 = vmatprep.subr.bf16.mxu0 0
      %1164 = vmatpush1.bf16.xpose.msra.mxu0 0
      %1165 = vmatprep.subr.bf16.mxu0 0
      %1166 = vmatpush1.bf16.xpose.msra.mxu0 0
      %1167 = vmatprep.subr.bf16.mxu0 0
      %1168 = vmatpush1.bf16.xpose.msra.mxu0 0
      %1169 = vmatprep.subr.bf16.mxu0 0
      %1170 = vmatpush1.bf16.xpose.msra.mxu0 0
      %1171 = vmatprep.mubr.bf16.mxu0 0
      %1172 = vmatmul.mubr.bf16.gmra.mrb[0].mxu0 %v1101
      %v1173 = vpop.f32.mrb[0].mxu0
      %v1174 = vadd.f32 %v487, %v1173
      %v1175 = vpop.f32.mrb[0].mxu0
      %v1176 = vadd.f32 %v488, %v1175
      %v1177 = vpop.f32.mrb[0].mxu0
      %v1178 = vadd.f32 %v489, %v1177
      %v1179 = vpop.f32.mrb[0].mxu0
      %v1180 = vadd.f32 %v490, %v1179
      %1181 = vmatprep.mubr.bf16.mxu0 0
      %1182 = vmatmul.mubr.bf16.gmra.mrb[0].mxu0 %v1104
      %v1183 = vpop.f32.mrb[0].mxu0
      %v1184 = vadd.f32 %v491, %v1183
      %v1185 = vpop.f32.mrb[0].mxu0
      %v1186 = vadd.f32 %v492, %v1185
      %v1187 = vpop.f32.mrb[0].mxu0
      %v1188 = vadd.f32 %v493, %v1187
      %v1189 = vpop.f32.mrb[0].mxu0
      %v1190 = vadd.f32 %v494, %v1189
      %1191 = vmatprep.mubr.bf16.mxu0 0
      %1192 = vmatmul.mubr.bf16.gmra.mrb[0].mxu0 %v1107
      %v1193 = vpop.f32.mrb[0].mxu0
      %v1194 = vadd.f32 %v495, %v1193
      %v1195 = vpop.f32.mrb[0].mxu0
      %v1196 = vadd.f32 %v496, %v1195
      %v1197 = vpop.f32.mrb[0].mxu0
      %v1198 = vadd.f32 %v497, %v1197
      %v1199 = vpop.f32.mrb[0].mxu0
      %v1200 = vadd.f32 %v498, %v1199
      %1201 = vmatprep.mubr.bf16.mxu0 0
      %1202 = vmatmul.mubr.bf16.gmra.mrb[0].mxu0 %v1110
      %v1203 = vpop.f32.mrb[0].mxu0
      %v1204 = vadd.f32 %v499, %v1203
      %v1205 = vpop.f32.mrb[0].mxu0
      %v1206 = vadd.f32 %v500, %v1205
      %v1207 = vpop.f32.mrb[0].mxu0
      %v1208 = vadd.f32 %v501, %v1207
      %v1209 = vpop.f32.mrb[0].mxu0
      %v1210 = vadd.f32 %v502, %v1209
      %1211 = vdwg.mxu0
      %vm1212 = vcmask 130048
      %v1213 = vsel %vm1212, %v645, -inf
      %v1214 = vmax.f32 %v643, %v1213
      %1215 = vmax.xlane.f32.xlu0 %v1214
      %v1216 = vpop.xlane.xlu0 %1215
      %v1217 = vsel %vm1212, %v649, -inf
      %v1218 = vmax.f32 %v647, %v1217
      %1219 = vmax.xlane.f32.xlu0 %v1218
      %v1220 = vpop.xlane.xlu0 %1219
      %v1221 = vsel %vm1212, %v655, -inf
      %v1222 = vmax.f32 %v653, %v1221
      %1223 = vmax.xlane.f32.xlu0 %v1222
      %v1224 = vpop.xlane.xlu0 %1223
      %v1225 = vsel %vm1212, %v659, -inf
      %v1226 = vmax.f32 %v657, %v1225
      %1227 = vmax.xlane.f32.xlu0 %v1226
      %v1228 = vpop.xlane.xlu0 %1227
      %v1229 = vsel %vm1212, %v665, -inf
      %v1230 = vmax.f32 %v663, %v1229
      %1231 = vmax.xlane.f32.xlu0 %v1230
      %v1232 = vpop.xlane.xlu0 %1231
      %v1233 = vsel %vm1212, %v669, -inf
      %v1234 = vmax.f32 %v667, %v1233
      %1235 = vmax.xlane.f32.xlu0 %v1234
      %v1236 = vpop.xlane.xlu0 %1235
      %v1237 = vsel %vm1212, %v675, -inf
      %v1238 = vmax.f32 %v673, %v1237
      %1239 = vmax.xlane.f32.xlu0 %v1238
      %v1240 = vpop.xlane.xlu0 %1239
      %v1241 = vsel %vm1212, %v679, -inf
      %v1242 = vmax.f32 %v677, %v1241
      %1243 = vmax.xlane.f32.xlu0 %v1242
      %v1244 = vpop.xlane.xlu0 %1243
      %v1245 = vsel %vm1212, %v822, -inf
      %v1246 = vmax.f32 %v820, %v1245
      %1247 = vmax.xlane.f32.xlu0 %v1246
      %v1248 = vpop.xlane.xlu0 %1247
      %v1249 = vsel %vm1212, %v826, -inf
      %v1250 = vmax.f32 %v824, %v1249
      %1251 = vmax.xlane.f32.xlu0 %v1250
      %v1252 = vpop.xlane.xlu0 %1251
      %v1253 = vsel %vm1212, %v832, -inf
      %v1254 = vmax.f32 %v830, %v1253
      %1255 = vmax.xlane.f32.xlu0 %v1254
      %v1256 = vpop.xlane.xlu0 %1255
      %v1257 = vsel %vm1212, %v836, -inf
      %v1258 = vmax.f32 %v834, %v1257
      %1259 = vmax.xlane.f32.xlu0 %v1258
      %v1260 = vpop.xlane.xlu0 %1259
      %v1261 = vsel %vm1212, %v842, -inf
      %v1262 = vmax.f32 %v840, %v1261
      %1263 = vmax.xlane.f32.xlu0 %v1262
      %v1264 = vpop.xlane.xlu0 %1263
      %v1265 = vsel %vm1212, %v846, -inf
      %v1266 = vmax.f32 %v844, %v1265
      %1267 = vmax.xlane.f32.xlu0 %v1266
      %v1268 = vpop.xlane.xlu0 %1267
      %v1269 = vsel %vm1212, %v852, -inf
      %v1270 = vmax.f32 %v850, %v1269
      %1271 = vmax.xlane.f32.xlu0 %v1270
      %v1272 = vpop.xlane.xlu0 %1271
      %v1273 = vsel %vm1212, %v856, -inf
      %v1274 = vmax.f32 %v854, %v1273
      %1275 = vmax.xlane.f32.xlu0 %v1274
      %v1276 = vpop.xlane.xlu0 %1275
      %v1277 = vsel %vm1212, %v999, -inf
      %v1278 = vmax.f32 %v997, %v1277
      %1279 = vmax.xlane.f32.xlu0 %v1278
      %v1280 = vpop.xlane.xlu0 %1279
      %v1281 = vsel %vm1212, %v1003, -inf
      %v1282 = vmax.f32 %v1001, %v1281
      %1283 = vmax.xlane.f32.xlu0 %v1282
      %v1284 = vpop.xlane.xlu0 %1283
      %v1285 = vsel %vm1212, %v1009, -inf
      %v1286 = vmax.f32 %v1007, %v1285
      %1287 = vmax.xlane.f32.xlu0 %v1286
      %v1288 = vpop.xlane.xlu0 %1287
      %v1289 = vsel %vm1212, %v1013, -inf
      %v1290 = vmax.f32 %v1011, %v1289
      %1291 = vmax.xlane.f32.xlu0 %v1290
      %v1292 = vpop.xlane.xlu0 %1291
      %v1293 = vsel %vm1212, %v1019, -inf
      %v1294 = vmax.f32 %v1017, %v1293
      %1295 = vmax.xlane.f32.xlu0 %v1294
      %v1296 = vpop.xlane.xlu0 %1295
      %v1297 = vsel %vm1212, %v1023, -inf
      %v1298 = vmax.f32 %v1021, %v1297
      %1299 = vmax.xlane.f32.xlu0 %v1298
      %v1300 = vpop.xlane.xlu0 %1299
      %v1301 = vsel %vm1212, %v1029, -inf
      %v1302 = vmax.f32 %v1027, %v1301
      %1303 = vmax.xlane.f32.xlu0 %v1302
      %v1304 = vpop.xlane.xlu0 %1303
      %v1305 = vsel %vm1212, %v1033, -inf
      %v1306 = vmax.f32 %v1031, %v1305
      %1307 = vmax.xlane.f32.xlu0 %v1306
      %v1308 = vpop.xlane.xlu0 %1307
      %v1309 = vsel %vm1212, %v1176, -inf
      %v1310 = vmax.f32 %v1174, %v1309
      %1311 = vmax.xlane.f32.xlu0 %v1310
      %v1312 = vpop.xlane.xlu0 %1311
      %v1313 = vsel %vm1212, %v1180, -inf
      %v1314 = vmax.f32 %v1178, %v1313
      %1315 = vmax.xlane.f32.xlu0 %v1314
      %v1316 = vpop.xlane.xlu0 %1315
      %v1317 = vsel %vm1212, %v1186, -inf
      %v1318 = vmax.f32 %v1184, %v1317
      %1319 = vmax.xlane.f32.xlu0 %v1318
      %v1320 = vpop.xlane.xlu0 %1319
      %v1321 = vsel %vm1212, %v1190, -inf
      %v1322 = vmax.f32 %v1188, %v1321
      %1323 = vmax.xlane.f32.xlu0 %v1322
      %v1324 = vpop.xlane.xlu0 %1323
      %v1325 = vsel %vm1212, %v1196, -inf
      %v1326 = vmax.f32 %v1194, %v1325
      %1327 = vmax.xlane.f32.xlu0 %v1326
      %v1328 = vpop.xlane.xlu0 %1327
      %v1329 = vsel %vm1212, %v1200, -inf
      %v1330 = vmax.f32 %v1198, %v1329
      %1331 = vmax.xlane.f32.xlu0 %v1330
      %v1332 = vpop.xlane.xlu0 %1331
      %v1333 = vsel %vm1212, %v1206, -inf
      %v1334 = vmax.f32 %v1204, %v1333
      %1335 = vmax.xlane.f32.xlu0 %v1334
      %v1336 = vpop.xlane.xlu0 %1335
      %v1337 = vsel %vm1212, %v1210, -inf
      %v1338 = vmax.f32 %v1208, %v1337
      %1339 = vmax.xlane.f32.xlu0 %v1338
      %v1340 = vpop.xlane.xlu0 %1339
      %v1341 = vsub.f32 %v643, %v1216
      %v1342 = vsub.f32 %v645, %v1216
      %v1343 = vsub.f32 %v647, %v1220
      %v1344 = vsub.f32 %v649, %v1220
      %v1345 = vsub.f32 %v653, %v1224
      %v1346 = vsub.f32 %v655, %v1224
      %v1347 = vsub.f32 %v657, %v1228
      %v1348 = vsub.f32 %v659, %v1228
      %v1349 = vsub.f32 %v663, %v1232
      %v1350 = vsub.f32 %v665, %v1232
      %v1351 = vsub.f32 %v667, %v1236
      %v1352 = vsub.f32 %v669, %v1236
      %v1353 = vsub.f32 %v673, %v1240
      %v1354 = vsub.f32 %v675, %v1240
      %v1355 = vsub.f32 %v677, %v1244
      %v1356 = vsub.f32 %v679, %v1244
      %v1357 = vsub.f32 %v820, %v1248
      %v1358 = vsub.f32 %v822, %v1248
      %v1359 = vsub.f32 %v824, %v1252
      %v1360 = vsub.f32 %v826, %v1252
      %v1361 = vsub.f32 %v830, %v1256
      %v1362 = vsub.f32 %v832, %v1256
      %v1363 = vsub.f32 %v834, %v1260
      %v1364 = vsub.f32 %v836, %v1260
      %v1365 = vsub.f32 %v840, %v1264
      %v1366 = vsub.f32 %v842, %v1264
      %v1367 = vsub.f32 %v844, %v1268
      %v1368 = vsub.f32 %v846, %v1268
      %v1369 = vsub.f32 %v850, %v1272
      %v1370 = vsub.f32 %v852, %v1272
      %v1371 = vsub.f32 %v854, %v1276
      %v1372 = vsub.f32 %v856, %v1276
      %v1373 = vsub.f32 %v997, %v1280
      %v1374 = vsub.f32 %v999, %v1280
      %v1375 = vsub.f32 %v1001, %v1284
      %v1376 = vsub.f32 %v1003, %v1284
      %v1377 = vsub.f32 %v1007, %v1288
      %v1378 = vsub.f32 %v1009, %v1288
      %v1379 = vsub.f32 %v1011, %v1292
      %v1380 = vsub.f32 %v1013, %v1292
      %v1381 = vsub.f32 %v1017, %v1296
      %v1382 = vsub.f32 %v1019, %v1296
      %v1383 = vsub.f32 %v1021, %v1300
      %v1384 = vsub.f32 %v1023, %v1300
      %v1385 = vsub.f32 %v1027, %v1304
      %v1386 = vsub.f32 %v1029, %v1304
      %v1387 = vsub.f32 %v1031, %v1308
      %v1388 = vsub.f32 %v1033, %v1308
      %v1389 = vsub.f32 %v1174, %v1312
      %v1390 = vsub.f32 %v1176, %v1312
      %v1391 = vsub.f32 %v1178, %v1316
      %v1392 = vsub.f32 %v1180, %v1316
      %v1393 = vsub.f32 %v1184, %v1320
      %v1394 = vsub.f32 %v1186, %v1320
      %v1395 = vsub.f32 %v1188, %v1324
      %v1396 = vsub.f32 %v1190, %v1324
      %v1397 = vsub.f32 %v1194, %v1328
      %v1398 = vsub.f32 %v1196, %v1328
      %v1399 = vsub.f32 %v1198, %v1332
      %v1400 = vsub.f32 %v1200, %v1332
      %v1401 = vsub.f32 %v1204, %v1336
      %v1402 = vsub.f32 %v1206, %v1336
      %v1403 = vsub.f32 %v1208, %v1340
      %v1404 = vsub.f32 %v1210, %v1340
      %v1405 = vmul.f32 %v1341, 1.442695
      %v1406 = vpow.pop %v1405
      %v1407 = vmul.f32 %v1342, 1.442695
      %v1408 = vpow.pop %v1407
      %v1409 = vmul.f32 %v1343, 1.442695
      %v1410 = vpow.pop %v1409
      %v1411 = vmul.f32 %v1344, 1.442695
      %v1412 = vpow.pop %v1411
      %v1413 = vmul.f32 %v1345, 1.442695
      %v1414 = vpow.pop %v1413
      %v1415 = vmul.f32 %v1346, 1.442695
      %v1416 = vpow.pop %v1415
      %v1417 = vmul.f32 %v1347, 1.442695
      %v1418 = vpow.pop %v1417
      %v1419 = vmul.f32 %v1348, 1.442695
      %v1420 = vpow.pop %v1419
      %v1421 = vmul.f32 %v1349, 1.442695
      %v1422 = vpow.pop %v1421
      %v1423 = vmul.f32 %v1350, 1.442695
      %v1424 = vpow.pop %v1423
      %v1425 = vmul.f32 %v1351, 1.442695
      %v1426 = vpow.pop %v1425
      %v1427 = vmul.f32 %v1352, 1.442695
      %v1428 = vpow.pop %v1427
      %v1429 = vmul.f32 %v1353, 1.442695
      %v1430 = vpow.pop %v1429
      %v1431 = vmul.f32 %v1354, 1.442695
      %v1432 = vpow.pop %v1431
      %v1433 = vmul.f32 %v1355, 1.442695
      %v1434 = vpow.pop %v1433
      %v1435 = vmul.f32 %v1356, 1.442695
      %v1436 = vpow.pop %v1435
      %v1437 = vmul.f32 %v1357, 1.442695
      %v1438 = vpow.pop %v1437
      %v1439 = vmul.f32 %v1358, 1.442695
      %v1440 = vpow.pop %v1439
      %v1441 = vmul.f32 %v1359, 1.442695
      %v1442 = vpow.pop %v1441
      %v1443 = vmul.f32 %v1360, 1.442695
      %v1444 = vpow.pop %v1443
      %v1445 = vmul.f32 %v1361, 1.442695
      %v1446 = vpow.pop %v1445
      %v1447 = vmul.f32 %v1362, 1.442695
      %v1448 = vpow.pop %v1447
      %v1449 = vmul.f32 %v1363, 1.442695
      %v1450 = vpow.pop %v1449
      %v1451 = vmul.f32 %v1364, 1.442695
      %v1452 = vpow.pop %v1451
      %v1453 = vmul.f32 %v1365, 1.442695
      %v1454 = vpow.pop %v1453
      %v1455 = vmul.f32 %v1366, 1.442695
      %v1456 = vpow.pop %v1455
      %v1457 = vmul.f32 %v1367, 1.442695
      %v1458 = vpow.pop %v1457
      %v1459 = vmul.f32 %v1368, 1.442695
      %v1460 = vpow.pop %v1459
      %v1461 = vmul.f32 %v1369, 1.442695
      %v1462 = vpow.pop %v1461
      %v1463 = vmul.f32 %v1370, 1.442695
      %v1464 = vpow.pop %v1463
      %v1465 = vmul.f32 %v1371, 1.442695
      %v1466 = vpow.pop %v1465
      %v1467 = vmul.f32 %v1372, 1.442695
      %v1468 = vpow.pop %v1467
      %v1469 = vmul.f32 %v1373, 1.442695
      %v1470 = vpow.pop %v1469
      %v1471 = vmul.f32 %v1374, 1.442695
      %v1472 = vpow.pop %v1471
      %v1473 = vmul.f32 %v1375, 1.442695
      %v1474 = vpow.pop %v1473
      %v1475 = vmul.f32 %v1376, 1.442695
      %v1476 = vpow.pop %v1475
      %v1477 = vmul.f32 %v1377, 1.442695
      %v1478 = vpow.pop %v1477
      %v1479 = vmul.f32 %v1378, 1.442695
      %v1480 = vpow.pop %v1479
      %v1481 = vmul.f32 %v1379, 1.442695
      %v1482 = vpow.pop %v1481
      %v1483 = vmul.f32 %v1380, 1.442695
      %v1484 = vpow.pop %v1483
      %v1485 = vmul.f32 %v1381, 1.442695
      %v1486 = vpow.pop %v1485
      %v1487 = vmul.f32 %v1382, 1.442695
      %v1488 = vpow.pop %v1487
      %v1489 = vmul.f32 %v1383, 1.442695
      %v1490 = vpow.pop %v1489
      %v1491 = vmul.f32 %v1384, 1.442695
      %v1492 = vpow.pop %v1491
      %v1493 = vmul.f32 %v1385, 1.442695
      %v1494 = vpow.pop %v1493
      %v1495 = vmul.f32 %v1386, 1.442695
      %v1496 = vpow.pop %v1495
      %v1497 = vmul.f32 %v1387, 1.442695
      %v1498 = vpow.pop %v1497
      %v1499 = vmul.f32 %v1388, 1.442695
      %v1500 = vpow.pop %v1499
      %v1501 = vmul.f32 %v1389, 1.442695
      %v1502 = vpow.pop %v1501
      %v1503 = vmul.f32 %v1390, 1.442695
      %v1504 = vpow.pop %v1503
      %v1505 = vmul.f32 %v1391, 1.442695
      %v1506 = vpow.pop %v1505
      %v1507 = vmul.f32 %v1392, 1.442695
      %v1508 = vpow.pop %v1507
      %v1509 = vmul.f32 %v1393, 1.442695
      %v1510 = vpow.pop %v1509
      %v1511 = vmul.f32 %v1394, 1.442695
      %v1512 = vpow.pop %v1511
      %v1513 = vmul.f32 %v1395, 1.442695
      %v1514 = vpow.pop %v1513
      %v1515 = vmul.f32 %v1396, 1.442695
      %v1516 = vpow.pop %v1515
      %v1517 = vmul.f32 %v1397, 1.442695
      %v1518 = vpow.pop %v1517
      %v1519 = vmul.f32 %v1398, 1.442695
      %v1520 = vpow.pop %v1519
      %v1521 = vmul.f32 %v1399, 1.442695
      %v1522 = vpow.pop %v1521
      %v1523 = vmul.f32 %v1400, 1.442695
      %v1524 = vpow.pop %v1523
      %v1525 = vmul.f32 %v1401, 1.442695
      %v1526 = vpow.pop %v1525
      %v1527 = vmul.f32 %v1402, 1.442695
      %v1528 = vpow.pop %v1527
      %v1529 = vmul.f32 %v1403, 1.442695
      %v1530 = vpow.pop %v1529
      %v1531 = vmul.f32 %v1404, 1.442695
      %v1532 = vpow.pop %v1531
      %v1533 = vsel %vm1212, %v1408, 0.0
      %v1534 = vadd.f32 %v1406, %v1533
      %1535 = vadd.xlane.f32.xlu0 %v1534
      %v1536 = vpop.xlane.xlu0 %1535
      %v1537 = vsel %vm1212, %v1412, 0.0
      %v1538 = vadd.f32 %v1410, %v1537
      %1539 = vadd.xlane.f32.xlu0 %v1538
      %v1540 = vpop.xlane.xlu0 %1539
      %v1541 = vsel %vm1212, %v1416, 0.0
      %v1542 = vadd.f32 %v1414, %v1541
      %1543 = vadd.xlane.f32.xlu0 %v1542
      %v1544 = vpop.xlane.xlu0 %1543
      %v1545 = vsel %vm1212, %v1420, 0.0
      %v1546 = vadd.f32 %v1418, %v1545
      %1547 = vadd.xlane.f32.xlu0 %v1546
      %v1548 = vpop.xlane.xlu0 %1547
      %v1549 = vsel %vm1212, %v1424, 0.0
      %v1550 = vadd.f32 %v1422, %v1549
      %1551 = vadd.xlane.f32.xlu0 %v1550
      %v1552 = vpop.xlane.xlu0 %1551
      %v1553 = vsel %vm1212, %v1428, 0.0
      %v1554 = vadd.f32 %v1426, %v1553
      %1555 = vadd.xlane.f32.xlu0 %v1554
      %v1556 = vpop.xlane.xlu0 %1555
      %v1557 = vsel %vm1212, %v1432, 0.0
      %v1558 = vadd.f32 %v1430, %v1557
      %1559 = vadd.xlane.f32.xlu0 %v1558
      %v1560 = vpop.xlane.xlu0 %1559
      %v1561 = vsel %vm1212, %v1436, 0.0
      %v1562 = vadd.f32 %v1434, %v1561
      %1563 = vadd.xlane.f32.xlu0 %v1562
      %v1564 = vpop.xlane.xlu0 %1563
      %v1565 = vsel %vm1212, %v1440, 0.0
      %v1566 = vadd.f32 %v1438, %v1565
      %1567 = vadd.xlane.f32.xlu0 %v1566
      %v1568 = vpop.xlane.xlu0 %1567
      %v1569 = vsel %vm1212, %v1444, 0.0
      %v1570 = vadd.f32 %v1442, %v1569
      %1571 = vadd.xlane.f32.xlu0 %v1570
      %v1572 = vpop.xlane.xlu0 %1571
      %v1573 = vsel %vm1212, %v1448, 0.0
      %v1574 = vadd.f32 %v1446, %v1573
      %1575 = vadd.xlane.f32.xlu0 %v1574
      %v1576 = vpop.xlane.xlu0 %1575
      %v1577 = vsel %vm1212, %v1452, 0.0
      %v1578 = vadd.f32 %v1450, %v1577
      %1579 = vadd.xlane.f32.xlu0 %v1578
      %v1580 = vpop.xlane.xlu0 %1579
      %v1581 = vsel %vm1212, %v1456, 0.0
      %v1582 = vadd.f32 %v1454, %v1581
      %1583 = vadd.xlane.f32.xlu0 %v1582
      %v1584 = vpop.xlane.xlu0 %1583
      %v1585 = vsel %vm1212, %v1460, 0.0
      %v1586 = vadd.f32 %v1458, %v1585
      %1587 = vadd.xlane.f32.xlu0 %v1586
      %v1588 = vpop.xlane.xlu0 %1587
      %v1589 = vsel %vm1212, %v1464, 0.0
      %v1590 = vadd.f32 %v1462, %v1589
      %1591 = vadd.xlane.f32.xlu0 %v1590
      %v1592 = vpop.xlane.xlu0 %1591
      %v1593 = vsel %vm1212, %v1468, 0.0
      %v1594 = vadd.f32 %v1466, %v1593
      %1595 = vadd.xlane.f32.xlu0 %v1594
      %v1596 = vpop.xlane.xlu0 %1595
      %v1597 = vsel %vm1212, %v1472, 0.0
      %v1598 = vadd.f32 %v1470, %v1597
      %1599 = vadd.xlane.f32.xlu0 %v1598
      %v1600 = vpop.xlane.xlu0 %1599
      %v1601 = vsel %vm1212, %v1476, 0.0
      %v1602 = vadd.f32 %v1474, %v1601
      %1603 = vadd.xlane.f32.xlu0 %v1602
      %v1604 = vpop.xlane.xlu0 %1603
      %v1605 = vsel %vm1212, %v1480, 0.0
      %v1606 = vadd.f32 %v1478, %v1605
      %1607 = vadd.xlane.f32.xlu0 %v1606
      %v1608 = vpop.xlane.xlu0 %1607
      %v1609 = vsel %vm1212, %v1484, 0.0
      %v1610 = vadd.f32 %v1482, %v1609
      %1611 = vadd.xlane.f32.xlu0 %v1610
      %v1612 = vpop.xlane.xlu0 %1611
      %v1613 = vsel %vm1212, %v1488, 0.0
      %v1614 = vadd.f32 %v1486, %v1613
      %1615 = vadd.xlane.f32.xlu0 %v1614
      %v1616 = vpop.xlane.xlu0 %1615
      %v1617 = vsel %vm1212, %v1492, 0.0
      %v1618 = vadd.f32 %v1490, %v1617
      %1619 = vadd.xlane.f32.xlu0 %v1618
      %v1620 = vpop.xlane.xlu0 %1619
      %v1621 = vsel %vm1212, %v1496, 0.0
      %v1622 = vadd.f32 %v1494, %v1621
      %1623 = vadd.xlane.f32.xlu0 %v1622
      %v1624 = vpop.xlane.xlu0 %1623
      %v1625 = vsel %vm1212, %v1500, 0.0
      %v1626 = vadd.f32 %v1498, %v1625
      %1627 = vadd.xlane.f32.xlu0 %v1626
      %v1628 = vpop.xlane.xlu0 %1627
      %v1629 = vsel %vm1212, %v1504, 0.0
      %v1630 = vadd.f32 %v1502, %v1629
      %1631 = vadd.xlane.f32.xlu0 %v1630
      %v1632 = vpop.xlane.xlu0 %1631
      %v1633 = vsel %vm1212, %v1508, 0.0
      %v1634 = vadd.f32 %v1506, %v1633
      %1635 = vadd.xlane.f32.xlu0 %v1634
      %v1636 = vpop.xlane.xlu0 %1635
      %v1637 = vsel %vm1212, %v1512, 0.0
      %v1638 = vadd.f32 %v1510, %v1637
      %1639 = vadd.xlane.f32.xlu0 %v1638
      %v1640 = vpop.xlane.xlu0 %1639
      %v1641 = vsel %vm1212, %v1516, 0.0
      %v1642 = vadd.f32 %v1514, %v1641
      %1643 = vadd.xlane.f32.xlu0 %v1642
      %v1644 = vpop.xlane.xlu0 %1643
      %v1645 = vsel %vm1212, %v1520, 0.0
      %v1646 = vadd.f32 %v1518, %v1645
      %1647 = vadd.xlane.f32.xlu0 %v1646
      %v1648 = vpop.xlane.xlu0 %1647
      %v1649 = vsel %vm1212, %v1524, 0.0
      %v1650 = vadd.f32 %v1522, %v1649
      %1651 = vadd.xlane.f32.xlu0 %v1650
      %v1652 = vpop.xlane.xlu0 %1651
      %v1653 = vsel %vm1212, %v1528, 0.0
      %v1654 = vadd.f32 %v1526, %v1653
      %1655 = vadd.xlane.f32.xlu0 %v1654
      %v1656 = vpop.xlane.xlu0 %1655
      %v1657 = vsel %vm1212, %v1532, 0.0
      %v1658 = vadd.f32 %v1530, %v1657
      %1659 = vadd.xlane.f32.xlu0 %v1658
      %v1660 = vpop.xlane.xlu0 %1659
      %v1661 = vrcp.pop %v1536
      %v1662 = vrcp.pop %v1540
      %v1663 = vrcp.pop %v1544
      %v1664 = vrcp.pop %v1548
      %v1665 = vrcp.pop %v1552
      %v1666 = vrcp.pop %v1556
      %v1667 = vrcp.pop %v1560
      %v1668 = vrcp.pop %v1564
      %v1669 = vrcp.pop %v1568
      %v1670 = vrcp.pop %v1572
      %v1671 = vrcp.pop %v1576
      %v1672 = vrcp.pop %v1580
      %v1673 = vrcp.pop %v1584
      %v1674 = vrcp.pop %v1588
      %v1675 = vrcp.pop %v1592
      %v1676 = vrcp.pop %v1596
      %v1677 = vrcp.pop %v1600
      %v1678 = vrcp.pop %v1604
      %v1679 = vrcp.pop %v1608
      %v1680 = vrcp.pop %v1612
      %v1681 = vrcp.pop %v1616
      %v1682 = vrcp.pop %v1620
      %v1683 = vrcp.pop %v1624
      %v1684 = vrcp.pop %v1628
      %v1685 = vrcp.pop %v1632
      %v1686 = vrcp.pop %v1636
      %v1687 = vrcp.pop %v1640
      %v1688 = vrcp.pop %v1644
      %v1689 = vrcp.pop %v1648
      %v1690 = vrcp.pop %v1652
      %v1691 = vrcp.pop %v1656
      %v1692 = vrcp.pop %v1660
      %v1693 = vmul.f32 %v1406, %v1661
      %v1694 = vmul.f32 %v1408, %v1661
      %v1695 = vmul.f32 %v1410, %v1662
      %v1696 = vmul.f32 %v1412, %v1662
      %v1697 = vmul.f32 %v1414, %v1663
      %v1698 = vmul.f32 %v1416, %v1663
      %v1699 = vmul.f32 %v1418, %v1664
      %v1700 = vmul.f32 %v1420, %v1664
      %v1701 = vmul.f32 %v1422, %v1665
      %v1702 = vmul.f32 %v1424, %v1665
      %v1703 = vmul.f32 %v1426, %v1666
      %v1704 = vmul.f32 %v1428, %v1666
      %v1705 = vmul.f32 %v1430, %v1667
      %v1706 = vmul.f32 %v1432, %v1667
      %v1707 = vmul.f32 %v1434, %v1668
      %v1708 = vmul.f32 %v1436, %v1668
      %v1709 = vmul.f32 %v1438, %v1669
      %v1710 = vmul.f32 %v1440, %v1669
      %v1711 = vmul.f32 %v1442, %v1670
      %v1712 = vmul.f32 %v1444, %v1670
      %v1713 = vmul.f32 %v1446, %v1671
      %v1714 = vmul.f32 %v1448, %v1671
      %v1715 = vmul.f32 %v1450, %v1672
      %v1716 = vmul.f32 %v1452, %v1672
      %v1717 = vmul.f32 %v1454, %v1673
      %v1718 = vmul.f32 %v1456, %v1673
      %v1719 = vmul.f32 %v1458, %v1674
      %v1720 = vmul.f32 %v1460, %v1674
      %v1721 = vmul.f32 %v1462, %v1675
      %v1722 = vmul.f32 %v1464, %v1675
      %v1723 = vmul.f32 %v1466, %v1676
      %v1724 = vmul.f32 %v1468, %v1676
      %v1725 = vmul.f32 %v1470, %v1677
      %v1726 = vmul.f32 %v1472, %v1677
      %v1727 = vmul.f32 %v1474, %v1678
      %v1728 = vmul.f32 %v1476, %v1678
      %v1729 = vmul.f32 %v1478, %v1679
      %v1730 = vmul.f32 %v1480, %v1679
      %v1731 = vmul.f32 %v1482, %v1680
      %v1732 = vmul.f32 %v1484, %v1680
      %v1733 = vmul.f32 %v1486, %v1681
      %v1734 = vmul.f32 %v1488, %v1681
      %v1735 = vmul.f32 %v1490, %v1682
      %v1736 = vmul.f32 %v1492, %v1682
      %v1737 = vmul.f32 %v1494, %v1683
      %v1738 = vmul.f32 %v1496, %v1683
      %v1739 = vmul.f32 %v1498, %v1684
      %v1740 = vmul.f32 %v1500, %v1684
      %v1741 = vmul.f32 %v1502, %v1685
      %v1742 = vmul.f32 %v1504, %v1685
      %v1743 = vmul.f32 %v1506, %v1686
      %v1744 = vmul.f32 %v1508, %v1686
      %v1745 = vmul.f32 %v1510, %v1687
      %v1746 = vmul.f32 %v1512, %v1687
      %v1747 = vmul.f32 %v1514, %v1688
      %v1748 = vmul.f32 %v1516, %v1688
      %v1749 = vmul.f32 %v1518, %v1689
      %v1750 = vmul.f32 %v1520, %v1689
      %v1751 = vmul.f32 %v1522, %v1690
      %v1752 = vmul.f32 %v1524, %v1690
      %v1753 = vmul.f32 %v1526, %v1691
      %v1754 = vmul.f32 %v1528, %v1691
      %v1755 = vmul.f32 %v1530, %v1692
      %v1756 = vmul.f32 %v1532, %v1692
      %v1757 = vpack.c.bf16 %v1695, %v1693
      %v1758 = vpack.c.bf16 %v1696, %v1694
      %v1759 = vpack.c.bf16 %v1699, %v1697
      %v1760 = vpack.c.bf16 %v1700, %v1698
      %v1761 = vpack.c.bf16 %v1703, %v1701
      %v1762 = vpack.c.bf16 %v1704, %v1702
      %v1763 = vpack.c.bf16 %v1707, %v1705
      %v1764 = vpack.c.bf16 %v1708, %v1706
      %v1765 = vpack.c.bf16 %v1711, %v1709
      %v1766 = vpack.c.bf16 %v1712, %v1710
      %v1767 = vpack.c.bf16 %v1715, %v1713
      %v1768 = vpack.c.bf16 %v1716, %v1714
      %v1769 = vpack.c.bf16 %v1719, %v1717
      %v1770 = vpack.c.bf16 %v1720, %v1718
      %v1771 = vpack.c.bf16 %v1723, %v1721
      %v1772 = vpack.c.bf16 %v1724, %v1722
      %v1773 = vpack.c.bf16 %v1727, %v1725
      %v1774 = vpack.c.bf16 %v1728, %v1726
      %v1775 = vpack.c.bf16 %v1731, %v1729
      %v1776 = vpack.c.bf16 %v1732, %v1730
      %v1777 = vpack.c.bf16 %v1735, %v1733
      %v1778 = vpack.c.bf16 %v1736, %v1734
      %v1779 = vpack.c.bf16 %v1739, %v1737
      %v1780 = vpack.c.bf16 %v1740, %v1738
      %v1781 = vpack.c.bf16 %v1743, %v1741
      %v1782 = vpack.c.bf16 %v1744, %v1742
      %v1783 = vpack.c.bf16 %v1747, %v1745
      %v1784 = vpack.c.bf16 %v1748, %v1746
      %v1785 = vpack.c.bf16 %v1751, %v1749
      %v1786 = vpack.c.bf16 %v1752, %v1750
      %v1787 = vpack.c.bf16 %v1755, %v1753
      %v1788 = vpack.c.bf16 %v1756, %v1754
      %v1807 = vunpack.c.l.b16 %v415
      %v1808 = vunpack.c.l.b16 %v416
      %v1809 = vunpack.c.l.b16 %v417
      %v1810 = vunpack.c.l.b16 %v418
      %v1811 = vunpack.c.l.b16 %v419
      %v1812 = vunpack.c.l.b16 %v420
      %v1813 = vunpack.c.l.b16 %v421
      %v1814 = vunpack.c.l.b16 %v422
      %v1815 = vunpack.c.l.b16 %v423
      %v1816 = vunpack.c.l.b16 %v424
      %v1817 = vunpack.c.l.b16 %v425
      %v1818 = vunpack.c.l.b16 %v426
      %v1819 = vunpack.c.l.b16 %v427
      %v1820 = vunpack.c.l.b16 %v428
      %v1821 = vunpack.c.l.b16 %v429
      %v1822 = vunpack.c.l.b16 %v430
      %v1823 = vunpack.c.l.b16 %v431
      %v1824 = vunpack.c.l.b16 %v432
      %v1825 = vpack.c.b16 %v1808, %v1807
      %v1826 = vpack.c.b16 %v1810, %v1809
      %v1827 = vpack.c.b16 %v1812, %v1811
      %v1828 = vpack.c.b16 %v1814, %v1813
      %v1829 = vpack.c.b16 %v1816, %v1815
      %v1830 = vpack.c.b16 %v1818, %v1817
      %v1831 = vpack.c.b16 %v1820, %v1819
      %v1832 = vpack.c.b16 %v1822, %v1821
      %v1833 = vpack.c.b16 %v1824, %v1823
      %v1844 = vsel %vm1212, %v1758, 0
      %v1847 = vsel %vm1212, %v1760, 0
      %v1850 = vsel %vm1212, %v1762, 0
      %v1853 = vsel %vm1212, %v1764, 0
      %1855 = vmatprep.subr.bf16.mxu0 0
      %1856 = vmatpush1.bf16.msra.mxu0 %v1825
      %1857 = vmatprep.subr.bf16.mxu0 0
      %1858 = vmatpush1.bf16.msra.mxu0 %v1826
      %1859 = vmatprep.subr.bf16.mxu0 0
      %1860 = vmatpush1.bf16.msra.mxu0 %v1827
      %1861 = vmatprep.subr.bf16.mxu0 0
      %1862 = vmatpush1.bf16.msra.mxu0 %v1828
      %1863 = vmatprep.subr.bf16.mxu0 0
      %1864 = vmatpush1.bf16.msra.mxu0 %v1829
      %1865 = vmatprep.subr.bf16.mxu0 0
      %1866 = vmatpush1.bf16.msra.mxu0 %v1830
      %1867 = vmatprep.subr.bf16.mxu0 0
      %1868 = vmatpush1.bf16.msra.mxu0 %v1831
      %1869 = vmatprep.subr.bf16.mxu0 0
      %1870 = vmatpush1.bf16.msra.mxu0 %v1832
      %1871 = vmatprep.subr.bf16.mxu0 0
      %1872 = vmatpush1.bf16.msra.mxu0 %v1833
      %1873 = vmatprep.subr.bf16.mxu0 0
      %1874 = vmatpush1.bf16.msra.mxu0 0
      %1875 = vmatprep.subr.bf16.mxu0 0
      %1876 = vmatpush1.bf16.msra.mxu0 0
      %1877 = vmatprep.subr.bf16.mxu0 0
      %1878 = vmatpush1.bf16.msra.mxu0 0
      %1879 = vmatprep.subr.bf16.mxu0 0
      %1880 = vmatpush1.bf16.msra.mxu0 0
      %1881 = vmatprep.subr.bf16.mxu0 0
      %1882 = vmatpush1.bf16.msra.mxu0 0
      %1883 = vmatprep.subr.bf16.mxu0 0
      %1884 = vmatpush1.bf16.msra.mxu0 0
      %1885 = vmatprep.subr.bf16.mxu0 0
      %1886 = vmatpush1.bf16.msra.mxu0 0
      %1887 = vmatprep.mubr.bf16.mxu0 %v1844
      %1888 = vmatmul.mubr.bf16.gmra.mrb[0].mxu0 %v1757
      %v1889 = vpop.f32.mrb[0].mxu0
      %v1890 = vadd.f32 0.0, %v1889
      %v1891 = vpop.f32.mrb[0].mxu0
      %v1892 = vpop.f32.mrb[0].mxu0
      %v1893 = vadd.f32 0.0, %v1892
      %v1894 = vpop.f32.mrb[0].mxu0
      %1895 = vmatprep.mubr.bf16.mxu0 %v1847
      %1896 = vmatmul.mubr.bf16.gmra.mrb[0].mxu0 %v1759
      %v1897 = vpop.f32.mrb[0].mxu0
      %v1898 = vadd.f32 0.0, %v1897
      %v1899 = vpop.f32.mrb[0].mxu0
      %v1900 = vpop.f32.mrb[0].mxu0
      %v1901 = vadd.f32 0.0, %v1900
      %v1902 = vpop.f32.mrb[0].mxu0
      %1903 = vmatprep.mubr.bf16.mxu0 %v1850
      %1904 = vmatmul.mubr.bf16.gmra.mrb[0].mxu0 %v1761
      %v1905 = vpop.f32.mrb[0].mxu0
      %v1906 = vadd.f32 0.0, %v1905
      %v1907 = vpop.f32.mrb[0].mxu0
      %v1908 = vpop.f32.mrb[0].mxu0
      %v1909 = vadd.f32 0.0, %v1908
      %v1910 = vpop.f32.mrb[0].mxu0
      %1911 = vmatprep.mubr.bf16.mxu0 %v1853
      %1912 = vmatmul.mubr.bf16.gmra.mrb[0].mxu0 %v1763
      %v1913 = vpop.f32.mrb[0].mxu0
      %v1914 = vadd.f32 0.0, %v1913
      %v1915 = vpop.f32.mrb[0].mxu0
      %v1916 = vpop.f32.mrb[0].mxu0
      %v1917 = vadd.f32 0.0, %v1916
      %v1918 = vpop.f32.mrb[0].mxu0
      %1919 = vdwg.mxu0
      %v1938 = vunpack.c.l.b16 %v433
      %v1939 = vunpack.c.l.b16 %v434
      %v1940 = vunpack.c.l.b16 %v435
      %v1941 = vunpack.c.l.b16 %v436
      %v1942 = vunpack.c.l.b16 %v437
      %v1943 = vunpack.c.l.b16 %v438
      %v1944 = vunpack.c.l.b16 %v439
      %v1945 = vunpack.c.l.b16 %v440
      %v1946 = vunpack.c.l.b16 %v441
      %v1947 = vunpack.c.l.b16 %v442
      %v1948 = vunpack.c.l.b16 %v443
      %v1949 = vunpack.c.l.b16 %v444
      %v1950 = vunpack.c.l.b16 %v445
      %v1951 = vunpack.c.l.b16 %v446
      %v1952 = vunpack.c.l.b16 %v447
      %v1953 = vunpack.c.l.b16 %v448
      %v1954 = vunpack.c.l.b16 %v449
      %v1955 = vunpack.c.l.b16 %v450
      %v1956 = vpack.c.b16 %v1939, %v1938
      %v1957 = vpack.c.b16 %v1941, %v1940
      %v1958 = vpack.c.b16 %v1943, %v1942
      %v1959 = vpack.c.b16 %v1945, %v1944
      %v1960 = vpack.c.b16 %v1947, %v1946
      %v1961 = vpack.c.b16 %v1949, %v1948
      %v1962 = vpack.c.b16 %v1951, %v1950
      %v1963 = vpack.c.b16 %v1953, %v1952
      %v1964 = vpack.c.b16 %v1955, %v1954
      %v1975 = vsel %vm1212, %v1766, 0
      %v1978 = vsel %vm1212, %v1768, 0
      %v1981 = vsel %vm1212, %v1770, 0
      %v1984 = vsel %vm1212, %v1772, 0
      %1986 = vmatprep.subr.bf16.mxu0 0
      %1987 = vmatpush1.bf16.msra.mxu0 %v1956
      %1988 = vmatprep.subr.bf16.mxu0 0
      %1989 = vmatpush1.bf16.msra.mxu0 %v1957
      %1990 = vmatprep.subr.bf16.mxu0 0
      %1991 = vmatpush1.bf16.msra.mxu0 %v1958
      %1992 = vmatprep.subr.bf16.mxu0 0
      %1993 = vmatpush1.bf16.msra.mxu0 %v1959
      %1994 = vmatprep.subr.bf16.mxu0 0
      %1995 = vmatpush1.bf16.msra.mxu0 %v1960
      %1996 = vmatprep.subr.bf16.mxu0 0
      %1997 = vmatpush1.bf16.msra.mxu0 %v1961
      %1998 = vmatprep.subr.bf16.mxu0 0
      %1999 = vmatpush1.bf16.msra.mxu0 %v1962
      %2000 = vmatprep.subr.bf16.mxu0 0
      %2001 = vmatpush1.bf16.msra.mxu0 %v1963
      %2002 = vmatprep.subr.bf16.mxu0 0
      %2003 = vmatpush1.bf16.msra.mxu0 %v1964
      %2004 = vmatprep.subr.bf16.mxu0 0
      %2005 = vmatpush1.bf16.msra.mxu0 0
      %2006 = vmatprep.subr.bf16.mxu0 0
      %2007 = vmatpush1.bf16.msra.mxu0 0
      %2008 = vmatprep.subr.bf16.mxu0 0
      %2009 = vmatpush1.bf16.msra.mxu0 0
      %2010 = vmatprep.subr.bf16.mxu0 0
      %2011 = vmatpush1.bf16.msra.mxu0 0
      %2012 = vmatprep.subr.bf16.mxu0 0
      %2013 = vmatpush1.bf16.msra.mxu0 0
      %2014 = vmatprep.subr.bf16.mxu0 0
      %2015 = vmatpush1.bf16.msra.mxu0 0
      %2016 = vmatprep.subr.bf16.mxu0 0
      %2017 = vmatpush1.bf16.msra.mxu0 0
      %2018 = vmatprep.mubr.bf16.mxu0 %v1975
      %2019 = vmatmul.mubr.bf16.gmra.mrb[0].mxu0 %v1765
      %v2020 = vpop.f32.mrb[0].mxu0
      %v2021 = vadd.f32 0.0, %v2020
      %v2022 = vpop.f32.mrb[0].mxu0
      %v2023 = vpop.f32.mrb[0].mxu0
      %v2024 = vadd.f32 0.0, %v2023
      %v2025 = vpop.f32.mrb[0].mxu0
      %2026 = vmatprep.mubr.bf16.mxu0 %v1978
      %2027 = vmatmul.mubr.bf16.gmra.mrb[0].mxu0 %v1767
      %v2028 = vpop.f32.mrb[0].mxu0
      %v2029 = vadd.f32 0.0, %v2028
      %v2030 = vpop.f32.mrb[0].mxu0
      %v2031 = vpop.f32.mrb[0].mxu0
      %v2032 = vadd.f32 0.0, %v2031
      %v2033 = vpop.f32.mrb[0].mxu0
      %2034 = vmatprep.mubr.bf16.mxu0 %v1981
      %2035 = vmatmul.mubr.bf16.gmra.mrb[0].mxu0 %v1769
      %v2036 = vpop.f32.mrb[0].mxu0
      %v2037 = vadd.f32 0.0, %v2036
      %v2038 = vpop.f32.mrb[0].mxu0
      %v2039 = vpop.f32.mrb[0].mxu0
      %v2040 = vadd.f32 0.0, %v2039
      %v2041 = vpop.f32.mrb[0].mxu0
      %2042 = vmatprep.mubr.bf16.mxu0 %v1984
      %2043 = vmatmul.mubr.bf16.gmra.mrb[0].mxu0 %v1771
      %v2044 = vpop.f32.mrb[0].mxu0
      %v2045 = vadd.f32 0.0, %v2044
      %v2046 = vpop.f32.mrb[0].mxu0
      %v2047 = vpop.f32.mrb[0].mxu0
      %v2048 = vadd.f32 0.0, %v2047
      %v2049 = vpop.f32.mrb[0].mxu0
      %2050 = vdwg.mxu0
      %v2069 = vunpack.c.l.b16 %v451
      %v2070 = vunpack.c.l.b16 %v452
      %v2071 = vunpack.c.l.b16 %v453
      %v2072 = vunpack.c.l.b16 %v454
      %v2073 = vunpack.c.l.b16 %v455
      %v2074 = vunpack.c.l.b16 %v456
      %v2075 = vunpack.c.l.b16 %v457
      %v2076 = vunpack.c.l.b16 %v458
      %v2077 = vunpack.c.l.b16 %v459
      %v2078 = vunpack.c.l.b16 %v460
      %v2079 = vunpack.c.l.b16 %v461
      %v2080 = vunpack.c.l.b16 %v462
      %v2081 = vunpack.c.l.b16 %v463
      %v2082 = vunpack.c.l.b16 %v464
      %v2083 = vunpack.c.l.b16 %v465
      %v2084 = vunpack.c.l.b16 %v466
      %v2085 = vunpack.c.l.b16 %v467
      %v2086 = vunpack.c.l.b16 %v468
      %v2087 = vpack.c.b16 %v2070, %v2069
      %v2088 = vpack.c.b16 %v2072, %v2071
      %v2089 = vpack.c.b16 %v2074, %v2073
      %v2090 = vpack.c.b16 %v2076, %v2075
      %v2091 = vpack.c.b16 %v2078, %v2077
      %v2092 = vpack.c.b16 %v2080, %v2079
      %v2093 = vpack.c.b16 %v2082, %v2081
      %v2094 = vpack.c.b16 %v2084, %v2083
      %v2095 = vpack.c.b16 %v2086, %v2085
      %v2106 = vsel %vm1212, %v1774, 0
      %v2109 = vsel %vm1212, %v1776, 0
      %v2112 = vsel %vm1212, %v1778, 0
      %v2115 = vsel %vm1212, %v1780, 0
      %2117 = vmatprep.subr.bf16.mxu0 0
      %2118 = vmatpush1.bf16.msra.mxu0 %v2087
      %2119 = vmatprep.subr.bf16.mxu0 0
      %2120 = vmatpush1.bf16.msra.mxu0 %v2088
      %2121 = vmatprep.subr.bf16.mxu0 0
      %2122 = vmatpush1.bf16.msra.mxu0 %v2089
      %2123 = vmatprep.subr.bf16.mxu0 0
      %2124 = vmatpush1.bf16.msra.mxu0 %v2090
      %2125 = vmatprep.subr.bf16.mxu0 0
      %2126 = vmatpush1.bf16.msra.mxu0 %v2091
      %2127 = vmatprep.subr.bf16.mxu0 0
      %2128 = vmatpush1.bf16.msra.mxu0 %v2092
      %2129 = vmatprep.subr.bf16.mxu0 0
      %2130 = vmatpush1.bf16.msra.mxu0 %v2093
      %2131 = vmatprep.subr.bf16.mxu0 0
      %2132 = vmatpush1.bf16.msra.mxu0 %v2094
      %2133 = vmatprep.subr.bf16.mxu0 0
      %2134 = vmatpush1.bf16.msra.mxu0 %v2095
      %2135 = vmatprep.subr.bf16.mxu0 0
      %2136 = vmatpush1.bf16.msra.mxu0 0
      %2137 = vmatprep.subr.bf16.mxu0 0
      %2138 = vmatpush1.bf16.msra.mxu0 0
      %2139 = vmatprep.subr.bf16.mxu0 0
      %2140 = vmatpush1.bf16.msra.mxu0 0
      %2141 = vmatprep.subr.bf16.mxu0 0
      %2142 = vmatpush1.bf16.msra.mxu0 0
      %2143 = vmatprep.subr.bf16.mxu0 0
      %2144 = vmatpush1.bf16.msra.mxu0 0
      %2145 = vmatprep.subr.bf16.mxu0 0
      %2146 = vmatpush1.bf16.msra.mxu0 0
      %2147 = vmatprep.subr.bf16.mxu0 0
      %2148 = vmatpush1.bf16.msra.mxu0 0
      %2149 = vmatprep.mubr.bf16.mxu0 %v2106
      %2150 = vmatmul.mubr.bf16.gmra.mrb[0].mxu0 %v1773
      %v2151 = vpop.f32.mrb[0].mxu0
      %v2152 = vadd.f32 0.0, %v2151
      %v2153 = vpop.f32.mrb[0].mxu0
      %v2154 = vpop.f32.mrb[0].mxu0
      %v2155 = vadd.f32 0.0, %v2154
      %v2156 = vpop.f32.mrb[0].mxu0
      %2157 = vmatprep.mubr.bf16.mxu0 %v2109
      %2158 = vmatmul.mubr.bf16.gmra.mrb[0].mxu0 %v1775
      %v2159 = vpop.f32.mrb[0].mxu0
      %v2160 = vadd.f32 0.0, %v2159
      %v2161 = vpop.f32.mrb[0].mxu0
      %v2162 = vpop.f32.mrb[0].mxu0
      %v2163 = vadd.f32 0.0, %v2162
      %v2164 = vpop.f32.mrb[0].mxu0
      %2165 = vmatprep.mubr.bf16.mxu0 %v2112
      %2166 = vmatmul.mubr.bf16.gmra.mrb[0].mxu0 %v1777
      %v2167 = vpop.f32.mrb[0].mxu0
      %v2168 = vadd.f32 0.0, %v2167
      %v2169 = vpop.f32.mrb[0].mxu0
      %v2170 = vpop.f32.mrb[0].mxu0
      %v2171 = vadd.f32 0.0, %v2170
      %v2172 = vpop.f32.mrb[0].mxu0
      %2173 = vmatprep.mubr.bf16.mxu0 %v2115
      %2174 = vmatmul.mubr.bf16.gmra.mrb[0].mxu0 %v1779
      %v2175 = vpop.f32.mrb[0].mxu0
      %v2176 = vadd.f32 0.0, %v2175
      %v2177 = vpop.f32.mrb[0].mxu0
      %v2178 = vpop.f32.mrb[0].mxu0
      %v2179 = vadd.f32 0.0, %v2178
      %v2180 = vpop.f32.mrb[0].mxu0
      %2181 = vdwg.mxu0
      %v2200 = vunpack.c.l.b16 %v469
      %v2201 = vunpack.c.l.b16 %v470
      %v2202 = vunpack.c.l.b16 %v471
      %v2203 = vunpack.c.l.b16 %v472
      %v2204 = vunpack.c.l.b16 %v473
      %v2205 = vunpack.c.l.b16 %v474
      %v2206 = vunpack.c.l.b16 %v475
      %v2207 = vunpack.c.l.b16 %v476
      %v2208 = vunpack.c.l.b16 %v477
      %v2209 = vunpack.c.l.b16 %v478
      %v2210 = vunpack.c.l.b16 %v479
      %v2211 = vunpack.c.l.b16 %v480
      %v2212 = vunpack.c.l.b16 %v481
      %v2213 = vunpack.c.l.b16 %v482
      %v2214 = vunpack.c.l.b16 %v483
      %v2215 = vunpack.c.l.b16 %v484
      %v2216 = vunpack.c.l.b16 %v485
      %v2217 = vunpack.c.l.b16 %v486
      %v2218 = vpack.c.b16 %v2201, %v2200
      %v2219 = vpack.c.b16 %v2203, %v2202
      %v2220 = vpack.c.b16 %v2205, %v2204
      %v2221 = vpack.c.b16 %v2207, %v2206
      %v2222 = vpack.c.b16 %v2209, %v2208
      %v2223 = vpack.c.b16 %v2211, %v2210
      %v2224 = vpack.c.b16 %v2213, %v2212
      %v2225 = vpack.c.b16 %v2215, %v2214
      %v2226 = vpack.c.b16 %v2217, %v2216
      %v2237 = vsel %vm1212, %v1782, 0
      %v2240 = vsel %vm1212, %v1784, 0
      %v2243 = vsel %vm1212, %v1786, 0
      %v2246 = vsel %vm1212, %v1788, 0
      %2248 = vmatprep.subr.bf16.mxu0 0
      %2249 = vmatpush1.bf16.msra.mxu0 %v2218
      %2250 = vmatprep.subr.bf16.mxu0 0
      %2251 = vmatpush1.bf16.msra.mxu0 %v2219
      %2252 = vmatprep.subr.bf16.mxu0 0
      %2253 = vmatpush1.bf16.msra.mxu0 %v2220
      %2254 = vmatprep.subr.bf16.mxu0 0
      %2255 = vmatpush1.bf16.msra.mxu0 %v2221
      %2256 = vmatprep.subr.bf16.mxu0 0
      %2257 = vmatpush1.bf16.msra.mxu0 %v2222
      %2258 = vmatprep.subr.bf16.mxu0 0
      %2259 = vmatpush1.bf16.msra.mxu0 %v2223
      %2260 = vmatprep.subr.bf16.mxu0 0
      %2261 = vmatpush1.bf16.msra.mxu0 %v2224
      %2262 = vmatprep.subr.bf16.mxu0 0
      %2263 = vmatpush1.bf16.msra.mxu0 %v2225
      %2264 = vmatprep.subr.bf16.mxu0 0
      %2265 = vmatpush1.bf16.msra.mxu0 %v2226
      %2266 = vmatprep.subr.bf16.mxu0 0
      %2267 = vmatpush1.bf16.msra.mxu0 0
      %2268 = vmatprep.subr.bf16.mxu0 0
      %2269 = vmatpush1.bf16.msra.mxu0 0
      %2270 = vmatprep.subr.bf16.mxu0 0
      %2271 = vmatpush1.bf16.msra.mxu0 0
      %2272 = vmatprep.subr.bf16.mxu0 0
      %2273 = vmatpush1.bf16.msra.mxu0 0
      %2274 = vmatprep.subr.bf16.mxu0 0
      %2275 = vmatpush1.bf16.msra.mxu0 0
      %2276 = vmatprep.subr.bf16.mxu0 0
      %2277 = vmatpush1.bf16.msra.mxu0 0
      %2278 = vmatprep.subr.bf16.mxu0 0
      %2279 = vmatpush1.bf16.msra.mxu0 0
      %2280 = vmatprep.mubr.bf16.mxu0 %v2237
      %2281 = vmatmul.mubr.bf16.gmra.mrb[0].mxu0 %v1781
      %v2282 = vpop.f32.mrb[0].mxu0
      %v2283 = vadd.f32 0.0, %v2282
      %v2284 = vpop.f32.mrb[0].mxu0
      %v2285 = vpop.f32.mrb[0].mxu0
      %v2286 = vadd.f32 0.0, %v2285
      %v2287 = vpop.f32.mrb[0].mxu0
      %2288 = vmatprep.mubr.bf16.mxu0 %v2240
      %2289 = vmatmul.mubr.bf16.gmra.mrb[0].mxu0 %v1783
      %v2290 = vpop.f32.mrb[0].mxu0
      %v2291 = vadd.f32 0.0, %v2290
      %v2292 = vpop.f32.mrb[0].mxu0
      %v2293 = vpop.f32.mrb[0].mxu0
      %v2294 = vadd.f32 0.0, %v2293
      %v2295 = vpop.f32.mrb[0].mxu0
      %2296 = vmatprep.mubr.bf16.mxu0 %v2243
      %2297 = vmatmul.mubr.bf16.gmra.mrb[0].mxu0 %v1785
      %v2298 = vpop.f32.mrb[0].mxu0
      %v2299 = vadd.f32 0.0, %v2298
      %v2300 = vpop.f32.mrb[0].mxu0
      %v2301 = vpop.f32.mrb[0].mxu0
      %v2302 = vadd.f32 0.0, %v2301
      %v2303 = vpop.f32.mrb[0].mxu0
      %2304 = vmatprep.mubr.bf16.mxu0 %v2246
      %2305 = vmatmul.mubr.bf16.gmra.mrb[0].mxu0 %v1787
      %v2306 = vpop.f32.mrb[0].mxu0
      %v2307 = vadd.f32 0.0, %v2306
      %v2308 = vpop.f32.mrb[0].mxu0
      %v2309 = vpop.f32.mrb[0].mxu0
      %v2310 = vadd.f32 0.0, %v2309
      %v2311 = vpop.f32.mrb[0].mxu0
      %2312 = vdwg.mxu0
      %v2313 = vpack.c.bf16 %v1893, %v1890
      %v2314 = vpack.c.bf16 %v1901, %v1898
      %v2315 = vpack.c.bf16 %v1909, %v1906
      %v2316 = vpack.c.bf16 %v1917, %v1914
      %v2317 = vpack.c.bf16 %v2024, %v2021
      %v2318 = vpack.c.bf16 %v2032, %v2029
      %v2319 = vpack.c.bf16 %v2040, %v2037
      %v2320 = vpack.c.bf16 %v2048, %v2045
      %v2321 = vpack.c.bf16 %v2155, %v2152
      %v2322 = vpack.c.bf16 %v2163, %v2160
      %v2323 = vpack.c.bf16 %v2171, %v2168
      %v2324 = vpack.c.bf16 %v2179, %v2176
      %v2325 = vpack.c.bf16 %v2286, %v2283
      %v2326 = vpack.c.bf16 %v2294, %v2291
      %v2327 = vpack.c.bf16 %v2302, %v2299
      %v2328 = vpack.c.bf16 %v2310, %v2307
      %v2329 = vld [vmem:[%s4] sm:$0xf]
      %s2330 = scalar_lea.vmem %s3, 128
      %v2331 = vld [vmem:[%s2330] sm:$0xff]
      %v2332 = vld [vmem:[%s2330 + $0x8] sm:$0xff]
      %v2333 = vld [vmem:[%s2330 + $0x10] sm:$0xff]
      %v2334 = vld [vmem:[%s2330 + $0x18] sm:$0xff]
      %v2335 = vld [vmem:[%s2330 + $0x20] sm:$0xff]
      %v2336 = vld [vmem:[%s2330 + $0x28] sm:$0xff]
      %v2337 = vld [vmem:[%s2330 + $0x30] sm:$0xff]
      %v2338 = vld [vmem:[%s2330 + $0x38] sm:$0xff]
      %v2339 = vld [vmem:[%s2330 + $0x40] sm:$0xff]
      %v2340 = vld [vmem:[%s2330 + $0x48] sm:$0xff]
      %v2341 = vld [vmem:[%s2330 + $0x50] sm:$0xff]
      %v2342 = vld [vmem:[%s2330 + $0x58] sm:$0xff]
      %v2343 = vld [vmem:[%s2330 + $0x60] sm:$0xff]
      %v2344 = vld [vmem:[%s2330 + $0x68] sm:$0xff]
      %v2345 = vld [vmem:[%s2330 + $0x70] sm:$0xff]
      %v2346 = vld [vmem:[%s2330 + $0x78] sm:$0xff]
      %2347 = vrot.lane.b32.xlu0 %v519, 120
      %v2348 = vpop.permute.xlu0 %2347
      %2349 = vrot.lane.b32.xlu0 %v520, 120
      %v2350 = vpop.permute.xlu0 %2349
      %2351 = vrot.lane.b32.xlu0 %v521, 120
      %v2352 = vpop.permute.xlu0 %2351
      %2353 = vrot.lane.b32.xlu0 %v522, 120
      %v2354 = vpop.permute.xlu0 %2353
      %2355 = vrot.lane.b32.xlu0 %v559, 120
      %v2356 = vpop.permute.xlu0 %2355
      %2357 = vrot.lane.b32.xlu0 %v560, 120
      %v2358 = vpop.permute.xlu0 %2357
      %2359 = vrot.lane.b32.xlu0 %v561, 120
      %v2360 = vpop.permute.xlu0 %2359
      %2361 = vrot.lane.b32.xlu0 %v562, 120
      %v2362 = vpop.permute.xlu0 %2361
      %2363 = vrot.lane.b32.xlu0 %v563, 120
      %v2364 = vpop.permute.xlu0 %2363
      %2365 = vrot.lane.b32.xlu0 %v564, 120
      %v2366 = vpop.permute.xlu0 %2365
      %2367 = vrot.lane.b32.xlu0 %v565, 120
      %v2368 = vpop.permute.xlu0 %2367
      %2369 = vrot.lane.b32.xlu0 %v566, 120
      %v2370 = vpop.permute.xlu0 %2369
      %2371 = vrot.lane.b32.xlu0 %v567, 120
      %v2372 = vpop.permute.xlu0 %2371
      %v2374 = vsel %vm568, %v2348, 0
      %v2377 = vsel %vm568, %v2350, 0
      %v2380 = vsel %vm568, %v2352, 0
      %v2383 = vsel %vm568, %v2354, 0
      %v2386 = vsel %vm568, %v2356, 0
      %v2389 = vsel %vm568, %v2358, 0
      %v2392 = vsel %vm568, %v2360, 0
      %v2395 = vsel %vm568, %v2362, 0
      %v2398 = vsel %vm568, %v2364, 0
      %v2401 = vsel %vm568, %v2366, 0
      %v2404 = vsel %vm568, %v2368, 0
      %v2407 = vsel %vm568, %v2370, 0
      %v2410 = vsel %vm568, %v2372, 0
      %2412 = vmatprep.subr.bf16.mxu0 0
      %2413 = vmatpush1.bf16.xpose.msra.mxu0 %v2386
      %2414 = vmatprep.subr.bf16.mxu0 0
      %2415 = vmatpush1.bf16.xpose.msra.mxu0 %v2389
      %2416 = vmatprep.subr.bf16.mxu0 0
      %2417 = vmatpush1.bf16.xpose.msra.mxu0 %v2392
      %2418 = vmatprep.subr.bf16.mxu0 0
      %2419 = vmatpush1.bf16.xpose.msra.mxu0 %v2395
      %2420 = vmatprep.subr.bf16.mxu0 0
      %2421 = vmatpush1.bf16.xpose.msra.mxu0 %v2398
      %2422 = vmatprep.subr.bf16.mxu0 0
      %2423 = vmatpush1.bf16.xpose.msra.mxu0 %v2401
      %2424 = vmatprep.subr.bf16.mxu0 0
      %2425 = vmatpush1.bf16.xpose.msra.mxu0 %v2404
      %2426 = vmatprep.subr.bf16.mxu0 0
      %2427 = vmatpush1.bf16.xpose.msra.mxu0 %v2407
      %2428 = vmatprep.subr.bf16.mxu0 0
      %2429 = vmatpush1.bf16.xpose.msra.mxu0 %v2410
      %2430 = vmatprep.subr.bf16.mxu0 0
      %2431 = vmatpush1.bf16.xpose.msra.mxu0 0
      %2432 = vmatprep.subr.bf16.mxu0 0
      %2433 = vmatpush1.bf16.xpose.msra.mxu0 0
      %2434 = vmatprep.subr.bf16.mxu0 0
      %2435 = vmatpush1.bf16.xpose.msra.mxu0 0
      %2436 = vmatprep.subr.bf16.mxu0 0
      %2437 = vmatpush1.bf16.xpose.msra.mxu0 0
      %2438 = vmatprep.subr.bf16.mxu0 0
      %2439 = vmatpush1.bf16.xpose.msra.mxu0 0
      %2440 = vmatprep.subr.bf16.mxu0 0
      %2441 = vmatpush1.bf16.xpose.msra.mxu0 0
      %2442 = vmatprep.subr.bf16.mxu0 0
      %2443 = vmatpush1.bf16.xpose.msra.mxu0 0
      %2444 = vmatprep.mubr.bf16.mxu0 0
      %2445 = vmatmul.mubr.bf16.gmra.mrb[0].mxu0 %v2374
      %v2446 = vpop.f32.mrb[0].mxu0
      %v2447 = vadd.f32 %v2331, %v2446
      %v2448 = vpop.f32.mrb[0].mxu0
      %v2449 = vadd.f32 %v2332, %v2448
      %v2450 = vpop.f32.mrb[0].mxu0
      %v2451 = vadd.f32 %v2333, %v2450
      %v2452 = vpop.f32.mrb[0].mxu0
      %v2453 = vadd.f32 %v2334, %v2452
      %2454 = vmatprep.mubr.bf16.mxu0 0
      %2455 = vmatmul.mubr.bf16.gmra.mrb[0].mxu0 %v2377
      %v2456 = vpop.f32.mrb[0].mxu0
      %v2457 = vadd.f32 %v2335, %v2456
      %v2458 = vpop.f32.mrb[0].mxu0
      %v2459 = vadd.f32 %v2336, %v2458
      %v2460 = vpop.f32.mrb[0].mxu0
      %v2461 = vadd.f32 %v2337, %v2460
      %v2462 = vpop.f32.mrb[0].mxu0
      %v2463 = vadd.f32 %v2338, %v2462
      %2464 = vmatprep.mubr.bf16.mxu0 0
      %2465 = vmatmul.mubr.bf16.gmra.mrb[0].mxu0 %v2380
      %v2466 = vpop.f32.mrb[0].mxu0
      %v2467 = vadd.f32 %v2339, %v2466
      %v2468 = vpop.f32.mrb[0].mxu0
      %v2469 = vadd.f32 %v2340, %v2468
      %v2470 = vpop.f32.mrb[0].mxu0
      %v2471 = vadd.f32 %v2341, %v2470
      %v2472 = vpop.f32.mrb[0].mxu0
      %v2473 = vadd.f32 %v2342, %v2472
      %2474 = vmatprep.mubr.bf16.mxu0 0
      %2475 = vmatmul.mubr.bf16.gmra.mrb[0].mxu0 %v2383
      %v2476 = vpop.f32.mrb[0].mxu0
      %v2477 = vadd.f32 %v2343, %v2476
      %v2478 = vpop.f32.mrb[0].mxu0
      %v2479 = vadd.f32 %v2344, %v2478
      %v2480 = vpop.f32.mrb[0].mxu0
      %v2481 = vadd.f32 %v2345, %v2480
      %v2482 = vpop.f32.mrb[0].mxu0
      %v2483 = vadd.f32 %v2346, %v2482
      %2484 = vdwg.mxu0
      %2485 = vrot.lane.b32.xlu0 %v697, 120
      %v2486 = vpop.permute.xlu0 %2485
      %2487 = vrot.lane.b32.xlu0 %v698, 120
      %v2488 = vpop.permute.xlu0 %2487
      %2489 = vrot.lane.b32.xlu0 %v699, 120
      %v2490 = vpop.permute.xlu0 %2489
      %2491 = vrot.lane.b32.xlu0 %v700, 120
      %v2492 = vpop.permute.xlu0 %2491
      %2493 = vrot.lane.b32.xlu0 %v737, 120
      %v2494 = vpop.permute.xlu0 %2493
      %2495 = vrot.lane.b32.xlu0 %v738, 120
      %v2496 = vpop.permute.xlu0 %2495
      %2497 = vrot.lane.b32.xlu0 %v739, 120
      %v2498 = vpop.permute.xlu0 %2497
      %2499 = vrot.lane.b32.xlu0 %v740, 120
      %v2500 = vpop.permute.xlu0 %2499
      %2501 = vrot.lane.b32.xlu0 %v741, 120
      %v2502 = vpop.permute.xlu0 %2501
      %2503 = vrot.lane.b32.xlu0 %v742, 120
      %v2504 = vpop.permute.xlu0 %2503
      %2505 = vrot.lane.b32.xlu0 %v743, 120
      %v2506 = vpop.permute.xlu0 %2505
      %2507 = vrot.lane.b32.xlu0 %v744, 120
      %v2508 = vpop.permute.xlu0 %2507
      %2509 = vrot.lane.b32.xlu0 %v745, 120
      %v2510 = vpop.permute.xlu0 %2509
      %v2512 = vsel %vm568, %v2486, 0
      %v2515 = vsel %vm568, %v2488, 0
      %v2518 = vsel %vm568, %v2490, 0
      %v2521 = vsel %vm568, %v2492, 0
      %v2524 = vsel %vm568, %v2494, 0
      %v2527 = vsel %vm568, %v2496, 0
      %v2530 = vsel %vm568, %v2498, 0
      %v2533 = vsel %vm568, %v2500, 0
      %v2536 = vsel %vm568, %v2502, 0
      %v2539 = vsel %vm568, %v2504, 0
      %v2542 = vsel %vm568, %v2506, 0
      %v2545 = vsel %vm568, %v2508, 0
      %v2548 = vsel %vm568, %v2510, 0
      %2550 = vmatprep.subr.bf16.mxu0 0
      %2551 = vmatpush1.bf16.xpose.msra.mxu0 %v2524
      %2552 = vmatprep.subr.bf16.mxu0 0
      %2553 = vmatpush1.bf16.xpose.msra.mxu0 %v2527
      %2554 = vmatprep.subr.bf16.mxu0 0
      %2555 = vmatpush1.bf16.xpose.msra.mxu0 %v2530
      %2556 = vmatprep.subr.bf16.mxu0 0
      %2557 = vmatpush1.bf16.xpose.msra.mxu0 %v2533
      %2558 = vmatprep.subr.bf16.mxu0 0
      %2559 = vmatpush1.bf16.xpose.msra.mxu0 %v2536
      %2560 = vmatprep.subr.bf16.mxu0 0
      %2561 = vmatpush1.bf16.xpose.msra.mxu0 %v2539
      %2562 = vmatprep.subr.bf16.mxu0 0
      %2563 = vmatpush1.bf16.xpose.msra.mxu0 %v2542
      %2564 = vmatprep.subr.bf16.mxu0 0
      %2565 = vmatpush1.bf16.xpose.msra.mxu0 %v2545
      %2566 = vmatprep.subr.bf16.mxu0 0
      %2567 = vmatpush1.bf16.xpose.msra.mxu0 %v2548
      %2568 = vmatprep.subr.bf16.mxu0 0
      %2569 = vmatpush1.bf16.xpose.msra.mxu0 0
      %2570 = vmatprep.subr.bf16.mxu0 0
      %2571 = vmatpush1.bf16.xpose.msra.mxu0 0
      %2572 = vmatprep.subr.bf16.mxu0 0
      %2573 = vmatpush1.bf16.xpose.msra.mxu0 0
      %2574 = vmatprep.subr.bf16.mxu0 0
      %2575 = vmatpush1.bf16.xpose.msra.mxu0 0
      %2576 = vmatprep.subr.bf16.mxu0 0
      %2577 = vmatpush1.bf16.xpose.msra.mxu0 0
      %2578 = vmatprep.subr.bf16.mxu0 0
      %2579 = vmatpush1.bf16.xpose.msra.mxu0 0
      %2580 = vmatprep.subr.bf16.mxu0 0
      %2581 = vmatpush1.bf16.xpose.msra.mxu0 0
      %2582 = vmatprep.mubr.bf16.mxu0 0
      %2583 = vmatmul.mubr.bf16.gmra.mrb[0].mxu0 %v2512
      %v2584 = vpop.f32.mrb[0].mxu0
      %v2585 = vadd.f32 %v2331, %v2584
      %v2586 = vpop.f32.mrb[0].mxu0
      %v2587 = vadd.f32 %v2332, %v2586
      %v2588 = vpop.f32.mrb[0].mxu0
      %v2589 = vadd.f32 %v2333, %v2588
      %v2590 = vpop.f32.mrb[0].mxu0
      %v2591 = vadd.f32 %v2334, %v2590
      %2592 = vmatprep.mubr.bf16.mxu0 0
      %2593 = vmatmul.mubr.bf16.gmra.mrb[0].mxu0 %v2515
      %v2594 = vpop.f32.mrb[0].mxu0
      %v2595 = vadd.f32 %v2335, %v2594
      %v2596 = vpop.f32.mrb[0].mxu0
      %v2597 = vadd.f32 %v2336, %v2596
      %v2598 = vpop.f32.mrb[0].mxu0
      %v2599 = vadd.f32 %v2337, %v2598
      %v2600 = vpop.f32.mrb[0].mxu0
      %v2601 = vadd.f32 %v2338, %v2600
      %2602 = vmatprep.mubr.bf16.mxu0 0
      %2603 = vmatmul.mubr.bf16.gmra.mrb[0].mxu0 %v2518
      %v2604 = vpop.f32.mrb[0].mxu0
      %v2605 = vadd.f32 %v2339, %v2604
      %v2606 = vpop.f32.mrb[0].mxu0
      %v2607 = vadd.f32 %v2340, %v2606
      %v2608 = vpop.f32.mrb[0].mxu0
      %v2609 = vadd.f32 %v2341, %v2608
      %v2610 = vpop.f32.mrb[0].mxu0
      %v2611 = vadd.f32 %v2342, %v2610
      %2612 = vmatprep.mubr.bf16.mxu0 0
      %2613 = vmatmul.mubr.bf16.gmra.mrb[0].mxu0 %v2521
      %v2614 = vpop.f32.mrb[0].mxu0
      %v2615 = vadd.f32 %v2343, %v2614
      %v2616 = vpop.f32.mrb[0].mxu0
      %v2617 = vadd.f32 %v2344, %v2616
      %v2618 = vpop.f32.mrb[0].mxu0
      %v2619 = vadd.f32 %v2345, %v2618
      %v2620 = vpop.f32.mrb[0].mxu0
      %v2621 = vadd.f32 %v2346, %v2620
      %2622 = vdwg.mxu0
      %2623 = vrot.lane.b32.xlu0 %v874, 120
      %v2624 = vpop.permute.xlu0 %2623
      %2625 = vrot.lane.b32.xlu0 %v875, 120
      %v2626 = vpop.permute.xlu0 %2625
      %2627 = vrot.lane.b32.xlu0 %v876, 120
      %v2628 = vpop.permute.xlu0 %2627
      %2629 = vrot.lane.b32.xlu0 %v877, 120
      %v2630 = vpop.permute.xlu0 %2629
      %2631 = vrot.lane.b32.xlu0 %v914, 120
      %v2632 = vpop.permute.xlu0 %2631
      %2633 = vrot.lane.b32.xlu0 %v915, 120
      %v2634 = vpop.permute.xlu0 %2633
      %2635 = vrot.lane.b32.xlu0 %v916, 120
      %v2636 = vpop.permute.xlu0 %2635
      %2637 = vrot.lane.b32.xlu0 %v917, 120
      %v2638 = vpop.permute.xlu0 %2637
      %2639 = vrot.lane.b32.xlu0 %v918, 120
      %v2640 = vpop.permute.xlu0 %2639
      %2641 = vrot.lane.b32.xlu0 %v919, 120
      %v2642 = vpop.permute.xlu0 %2641
      %2643 = vrot.lane.b32.xlu0 %v920, 120
      %v2644 = vpop.permute.xlu0 %2643
      %2645 = vrot.lane.b32.xlu0 %v921, 120
      %v2646 = vpop.permute.xlu0 %2645
      %2647 = vrot.lane.b32.xlu0 %v922, 120
      %v2648 = vpop.permute.xlu0 %2647
      %v2650 = vsel %vm568, %v2624, 0
      %v2653 = vsel %vm568, %v2626, 0
      %v2656 = vsel %vm568, %v2628, 0
      %v2659 = vsel %vm568, %v2630, 0
      %v2662 = vsel %vm568, %v2632, 0
      %v2665 = vsel %vm568, %v2634, 0
      %v2668 = vsel %vm568, %v2636, 0
      %v2671 = vsel %vm568, %v2638, 0
      %v2674 = vsel %vm568, %v2640, 0
      %v2677 = vsel %vm568, %v2642, 0
      %v2680 = vsel %vm568, %v2644, 0
      %v2683 = vsel %vm568, %v2646, 0
      %v2686 = vsel %vm568, %v2648, 0
      %2688 = vmatprep.subr.bf16.mxu0 0
      %2689 = vmatpush1.bf16.xpose.msra.mxu0 %v2662
      %2690 = vmatprep.subr.bf16.mxu0 0
      %2691 = vmatpush1.bf16.xpose.msra.mxu0 %v2665
      %2692 = vmatprep.subr.bf16.mxu0 0
      %2693 = vmatpush1.bf16.xpose.msra.mxu0 %v2668
      %2694 = vmatprep.subr.bf16.mxu0 0
      %2695 = vmatpush1.bf16.xpose.msra.mxu0 %v2671
      %2696 = vmatprep.subr.bf16.mxu0 0
      %2697 = vmatpush1.bf16.xpose.msra.mxu0 %v2674
      %2698 = vmatprep.subr.bf16.mxu0 0
      %2699 = vmatpush1.bf16.xpose.msra.mxu0 %v2677
      %2700 = vmatprep.subr.bf16.mxu0 0
      %2701 = vmatpush1.bf16.xpose.msra.mxu0 %v2680
      %2702 = vmatprep.subr.bf16.mxu0 0
      %2703 = vmatpush1.bf16.xpose.msra.mxu0 %v2683
      %2704 = vmatprep.subr.bf16.mxu0 0
      %2705 = vmatpush1.bf16.xpose.msra.mxu0 %v2686
      %2706 = vmatprep.subr.bf16.mxu0 0
      %2707 = vmatpush1.bf16.xpose.msra.mxu0 0
      %2708 = vmatprep.subr.bf16.mxu0 0
      %2709 = vmatpush1.bf16.xpose.msra.mxu0 0
      %2710 = vmatprep.subr.bf16.mxu0 0
      %2711 = vmatpush1.bf16.xpose.msra.mxu0 0
      %2712 = vmatprep.subr.bf16.mxu0 0
      %2713 = vmatpush1.bf16.xpose.msra.mxu0 0
      %2714 = vmatprep.subr.bf16.mxu0 0
      %2715 = vmatpush1.bf16.xpose.msra.mxu0 0
      %2716 = vmatprep.subr.bf16.mxu0 0
      %2717 = vmatpush1.bf16.xpose.msra.mxu0 0
      %2718 = vmatprep.subr.bf16.mxu0 0
      %2719 = vmatpush1.bf16.xpose.msra.mxu0 0
      %2720 = vmatprep.mubr.bf16.mxu0 0
      %2721 = vmatmul.mubr.bf16.gmra.mrb[0].mxu0 %v2650
      %v2722 = vpop.f32.mrb[0].mxu0
      %v2723 = vadd.f32 %v2331, %v2722
      %v2724 = vpop.f32.mrb[0].mxu0
      %v2725 = vadd.f32 %v2332, %v2724
      %v2726 = vpop.f32.mrb[0].mxu0
      %v2727 = vadd.f32 %v2333, %v2726
      %v2728 = vpop.f32.mrb[0].mxu0
      %v2729 = vadd.f32 %v2334, %v2728
      %2730 = vmatprep.mubr.bf16.mxu0 0
      %2731 = vmatmul.mubr.bf16.gmra.mrb[0].mxu0 %v2653
      %v2732 = vpop.f32.mrb[0].mxu0
      %v2733 = vadd.f32 %v2335, %v2732
      %v2734 = vpop.f32.mrb[0].mxu0
      %v2735 = vadd.f32 %v2336, %v2734
      %v2736 = vpop.f32.mrb[0].mxu0
      %v2737 = vadd.f32 %v2337, %v2736
      %v2738 = vpop.f32.mrb[0].mxu0
      %v2739 = vadd.f32 %v2338, %v2738
      %2740 = vmatprep.mubr.bf16.mxu0 0
      %2741 = vmatmul.mubr.bf16.gmra.mrb[0].mxu0 %v2656
      %v2742 = vpop.f32.mrb[0].mxu0
      %v2743 = vadd.f32 %v2339, %v2742
      %v2744 = vpop.f32.mrb[0].mxu0
      %v2745 = vadd.f32 %v2340, %v2744
      %v2746 = vpop.f32.mrb[0].mxu0
      %v2747 = vadd.f32 %v2341, %v2746
      %v2748 = vpop.f32.mrb[0].mxu0
      %v2749 = vadd.f32 %v2342, %v2748
      %2750 = vmatprep.mubr.bf16.mxu0 0
      %2751 = vmatmul.mubr.bf16.gmra.mrb[0].mxu0 %v2659
      %v2752 = vpop.f32.mrb[0].mxu0
      %v2753 = vadd.f32 %v2343, %v2752
      %v2754 = vpop.f32.mrb[0].mxu0
      %v2755 = vadd.f32 %v2344, %v2754
      %v2756 = vpop.f32.mrb[0].mxu0
      %v2757 = vadd.f32 %v2345, %v2756
      %v2758 = vpop.f32.mrb[0].mxu0
      %v2759 = vadd.f32 %v2346, %v2758
      %2760 = vdwg.mxu0
      %2761 = vrot.lane.b32.xlu0 %v1051, 120
      %v2762 = vpop.permute.xlu0 %2761
      %2763 = vrot.lane.b32.xlu0 %v1052, 120
      %v2764 = vpop.permute.xlu0 %2763
      %2765 = vrot.lane.b32.xlu0 %v1053, 120
      %v2766 = vpop.permute.xlu0 %2765
      %2767 = vrot.lane.b32.xlu0 %v1054, 120
      %v2768 = vpop.permute.xlu0 %2767
      %2769 = vrot.lane.b32.xlu0 %v1091, 120
      %v2770 = vpop.permute.xlu0 %2769
      %2771 = vrot.lane.b32.xlu0 %v1092, 120
      %v2772 = vpop.permute.xlu0 %2771
      %2773 = vrot.lane.b32.xlu0 %v1093, 120
      %v2774 = vpop.permute.xlu0 %2773
      %2775 = vrot.lane.b32.xlu0 %v1094, 120
      %v2776 = vpop.permute.xlu0 %2775
      %2777 = vrot.lane.b32.xlu0 %v1095, 120
      %v2778 = vpop.permute.xlu0 %2777
      %2779 = vrot.lane.b32.xlu0 %v1096, 120
      %v2780 = vpop.permute.xlu0 %2779
      %2781 = vrot.lane.b32.xlu0 %v1097, 120
      %v2782 = vpop.permute.xlu0 %2781
      %2783 = vrot.lane.b32.xlu0 %v1098, 120
      %v2784 = vpop.permute.xlu0 %2783
      %2785 = vrot.lane.b32.xlu0 %v1099, 120
      %v2786 = vpop.permute.xlu0 %2785
      %v2788 = vsel %vm568, %v2762, 0
      %v2791 = vsel %vm568, %v2764, 0
      %v2794 = vsel %vm568, %v2766, 0
      %v2797 = vsel %vm568, %v2768, 0
      %v2800 = vsel %vm568, %v2770, 0
      %v2803 = vsel %vm568, %v2772, 0
      %v2806 = vsel %vm568, %v2774, 0
      %v2809 = vsel %vm568, %v2776, 0
      %v2812 = vsel %vm568, %v2778, 0
      %v2815 = vsel %vm568, %v2780, 0
      %v2818 = vsel %vm568, %v2782, 0
      %v2821 = vsel %vm568, %v2784, 0
      %v2824 = vsel %vm568, %v2786, 0
      %2826 = vmatprep.subr.bf16.mxu0 0
      %2827 = vmatpush1.bf16.xpose.msra.mxu0 %v2800
      %2828 = vmatprep.subr.bf16.mxu0 0
      %2829 = vmatpush1.bf16.xpose.msra.mxu0 %v2803
      %2830 = vmatprep.subr.bf16.mxu0 0
      %2831 = vmatpush1.bf16.xpose.msra.mxu0 %v2806
      %2832 = vmatprep.subr.bf16.mxu0 0
      %2833 = vmatpush1.bf16.xpose.msra.mxu0 %v2809
      %2834 = vmatprep.subr.bf16.mxu0 0
      %2835 = vmatpush1.bf16.xpose.msra.mxu0 %v2812
      %2836 = vmatprep.subr.bf16.mxu0 0
      %2837 = vmatpush1.bf16.xpose.msra.mxu0 %v2815
      %2838 = vmatprep.subr.bf16.mxu0 0
      %2839 = vmatpush1.bf16.xpose.msra.mxu0 %v2818
      %2840 = vmatprep.subr.bf16.mxu0 0
      %2841 = vmatpush1.bf16.xpose.msra.mxu0 %v2821
      %2842 = vmatprep.subr.bf16.mxu0 0
      %2843 = vmatpush1.bf16.xpose.msra.mxu0 %v2824
      %2844 = vmatprep.subr.bf16.mxu0 0
      %2845 = vmatpush1.bf16.xpose.msra.mxu0 0
      %2846 = vmatprep.subr.bf16.mxu0 0
      %2847 = vmatpush1.bf16.xpose.msra.mxu0 0
      %2848 = vmatprep.subr.bf16.mxu0 0
      %2849 = vmatpush1.bf16.xpose.msra.mxu0 0
      %2850 = vmatprep.subr.bf16.mxu0 0
      %2851 = vmatpush1.bf16.xpose.msra.mxu0 0
      %2852 = vmatprep.subr.bf16.mxu0 0
      %2853 = vmatpush1.bf16.xpose.msra.mxu0 0
      %2854 = vmatprep.subr.bf16.mxu0 0
      %2855 = vmatpush1.bf16.xpose.msra.mxu0 0
      %2856 = vmatprep.subr.bf16.mxu0 0
      %2857 = vmatpush1.bf16.xpose.msra.mxu0 0
      %2858 = vmatprep.mubr.bf16.mxu0 0
      %2859 = vmatmul.mubr.bf16.gmra.mrb[0].mxu0 %v2788
      %v2860 = vpop.f32.mrb[0].mxu0
      %v2861 = vadd.f32 %v2331, %v2860
      %v2862 = vpop.f32.mrb[0].mxu0
      %v2863 = vadd.f32 %v2332, %v2862
      %v2864 = vpop.f32.mrb[0].mxu0
      %v2865 = vadd.f32 %v2333, %v2864
      %v2866 = vpop.f32.mrb[0].mxu0
      %v2867 = vadd.f32 %v2334, %v2866
      %2868 = vmatprep.mubr.bf16.mxu0 0
      %2869 = vmatmul.mubr.bf16.gmra.mrb[0].mxu0 %v2791
      %v2870 = vpop.f32.mrb[0].mxu0
      %v2871 = vadd.f32 %v2335, %v2870
      %v2872 = vpop.f32.mrb[0].mxu0
      %v2873 = vadd.f32 %v2336, %v2872
      %v2874 = vpop.f32.mrb[0].mxu0
      %v2875 = vadd.f32 %v2337, %v2874
      %v2876 = vpop.f32.mrb[0].mxu0
      %v2877 = vadd.f32 %v2338, %v2876
      %2878 = vmatprep.mubr.bf16.mxu0 0
      %2879 = vmatmul.mubr.bf16.gmra.mrb[0].mxu0 %v2794
      %v2880 = vpop.f32.mrb[0].mxu0
      %v2881 = vadd.f32 %v2339, %v2880
      %v2882 = vpop.f32.mrb[0].mxu0
      %v2883 = vadd.f32 %v2340, %v2882
      %v2884 = vpop.f32.mrb[0].mxu0
      %v2885 = vadd.f32 %v2341, %v2884
      %v2886 = vpop.f32.mrb[0].mxu0
      %v2887 = vadd.f32 %v2342, %v2886
      %2888 = vmatprep.mubr.bf16.mxu0 0
      %2889 = vmatmul.mubr.bf16.gmra.mrb[0].mxu0 %v2797
      %v2890 = vpop.f32.mrb[0].mxu0
      %v2891 = vadd.f32 %v2343, %v2890
      %v2892 = vpop.f32.mrb[0].mxu0
      %v2893 = vadd.f32 %v2344, %v2892
      %v2894 = vpop.f32.mrb[0].mxu0
      %v2895 = vadd.f32 %v2345, %v2894
      %v2896 = vpop.f32.mrb[0].mxu0
      %v2897 = vadd.f32 %v2346, %v2896
      %2898 = vdwg.mxu0
      %v2899 = vsel %vm1212, %v2449, -inf
      %v2900 = vmax.f32 %v2447, %v2899
      %2901 = vmax.xlane.f32.xlu0 %v2900
      %v2902 = vpop.xlane.xlu0 %2901
      %v2903 = vsel %vm1212, %v2453, -inf
      %v2904 = vmax.f32 %v2451, %v2903
      %2905 = vmax.xlane.f32.xlu0 %v2904
      %v2906 = vpop.xlane.xlu0 %2905
      %v2907 = vsel %vm1212, %v2459, -inf
      %v2908 = vmax.f32 %v2457, %v2907
      %2909 = vmax.xlane.f32.xlu0 %v2908
      %v2910 = vpop.xlane.xlu0 %2909
      %v2911 = vsel %vm1212, %v2463, -inf
      %v2912 = vmax.f32 %v2461, %v2911
      %2913 = vmax.xlane.f32.xlu0 %v2912
      %v2914 = vpop.xlane.xlu0 %2913
      %v2915 = vsel %vm1212, %v2469, -inf
      %v2916 = vmax.f32 %v2467, %v2915
      %2917 = vmax.xlane.f32.xlu0 %v2916
      %v2918 = vpop.xlane.xlu0 %2917
      %v2919 = vsel %vm1212, %v2473, -inf
      %v2920 = vmax.f32 %v2471, %v2919
      %2921 = vmax.xlane.f32.xlu0 %v2920
      %v2922 = vpop.xlane.xlu0 %2921
      %v2923 = vsel %vm1212, %v2479, -inf
      %v2924 = vmax.f32 %v2477, %v2923
      %2925 = vmax.xlane.f32.xlu0 %v2924
      %v2926 = vpop.xlane.xlu0 %2925
      %v2927 = vsel %vm1212, %v2483, -inf
      %v2928 = vmax.f32 %v2481, %v2927
      %2929 = vmax.xlane.f32.xlu0 %v2928
      %v2930 = vpop.xlane.xlu0 %2929
      %v2931 = vsel %vm1212, %v2587, -inf
      %v2932 = vmax.f32 %v2585, %v2931
      %2933 = vmax.xlane.f32.xlu0 %v2932
      %v2934 = vpop.xlane.xlu0 %2933
      %v2935 = vsel %vm1212, %v2591, -inf
      %v2936 = vmax.f32 %v2589, %v2935
      %2937 = vmax.xlane.f32.xlu0 %v2936
      %v2938 = vpop.xlane.xlu0 %2937
      %v2939 = vsel %vm1212, %v2597, -inf
      %v2940 = vmax.f32 %v2595, %v2939
      %2941 = vmax.xlane.f32.xlu0 %v2940
      %v2942 = vpop.xlane.xlu0 %2941
      %v2943 = vsel %vm1212, %v2601, -inf
      %v2944 = vmax.f32 %v2599, %v2943
      %2945 = vmax.xlane.f32.xlu0 %v2944
      %v2946 = vpop.xlane.xlu0 %2945
      %v2947 = vsel %vm1212, %v2607, -inf
      %v2948 = vmax.f32 %v2605, %v2947
      %2949 = vmax.xlane.f32.xlu0 %v2948
      %v2950 = vpop.xlane.xlu0 %2949
      %v2951 = vsel %vm1212, %v2611, -inf
      %v2952 = vmax.f32 %v2609, %v2951
      %2953 = vmax.xlane.f32.xlu0 %v2952
      %v2954 = vpop.xlane.xlu0 %2953
      %v2955 = vsel %vm1212, %v2617, -inf
      %v2956 = vmax.f32 %v2615, %v2955
      %2957 = vmax.xlane.f32.xlu0 %v2956
      %v2958 = vpop.xlane.xlu0 %2957
      %v2959 = vsel %vm1212, %v2621, -inf
      %v2960 = vmax.f32 %v2619, %v2959
      %2961 = vmax.xlane.f32.xlu0 %v2960
      %v2962 = vpop.xlane.xlu0 %2961
      %v2963 = vsel %vm1212, %v2725, -inf
      %v2964 = vmax.f32 %v2723, %v2963
      %2965 = vmax.xlane.f32.xlu0 %v2964
      %v2966 = vpop.xlane.xlu0 %2965
      %v2967 = vsel %vm1212, %v2729, -inf
      %v2968 = vmax.f32 %v2727, %v2967
      %2969 = vmax.xlane.f32.xlu0 %v2968
      %v2970 = vpop.xlane.xlu0 %2969
      %v2971 = vsel %vm1212, %v2735, -inf
      %v2972 = vmax.f32 %v2733, %v2971
      %2973 = vmax.xlane.f32.xlu0 %v2972
      %v2974 = vpop.xlane.xlu0 %2973
      %v2975 = vsel %vm1212, %v2739, -inf
      %v2976 = vmax.f32 %v2737, %v2975
      %2977 = vmax.xlane.f32.xlu0 %v2976
      %v2978 = vpop.xlane.xlu0 %2977
      %v2979 = vsel %vm1212, %v2745, -inf
      %v2980 = vmax.f32 %v2743, %v2979
      %2981 = vmax.xlane.f32.xlu0 %v2980
      %v2982 = vpop.xlane.xlu0 %2981
      %v2983 = vsel %vm1212, %v2749, -inf
      %v2984 = vmax.f32 %v2747, %v2983
      %2985 = vmax.xlane.f32.xlu0 %v2984
      %v2986 = vpop.xlane.xlu0 %2985
      %v2987 = vsel %vm1212, %v2755, -inf
      %v2988 = vmax.f32 %v2753, %v2987
      %2989 = vmax.xlane.f32.xlu0 %v2988
      %v2990 = vpop.xlane.xlu0 %2989
      %v2991 = vsel %vm1212, %v2759, -inf
      %v2992 = vmax.f32 %v2757, %v2991
      %2993 = vmax.xlane.f32.xlu0 %v2992
      %v2994 = vpop.xlane.xlu0 %2993
      %v2995 = vsel %vm1212, %v2863, -inf
      %v2996 = vmax.f32 %v2861, %v2995
      %2997 = vmax.xlane.f32.xlu0 %v2996
      %v2998 = vpop.xlane.xlu0 %2997
      %v2999 = vsel %vm1212, %v2867, -inf
      %v3000 = vmax.f32 %v2865, %v2999
      %3001 = vmax.xlane.f32.xlu0 %v3000
      %v3002 = vpop.xlane.xlu0 %3001
      %v3003 = vsel %vm1212, %v2873, -inf
      %v3004 = vmax.f32 %v2871, %v3003
      %3005 = vmax.xlane.f32.xlu0 %v3004
      %v3006 = vpop.xlane.xlu0 %3005
      %v3007 = vsel %vm1212, %v2877, -inf
      %v3008 = vmax.f32 %v2875, %v3007
      %3009 = vmax.xlane.f32.xlu0 %v3008
      %v3010 = vpop.xlane.xlu0 %3009
      %v3011 = vsel %vm1212, %v2883, -inf
      %v3012 = vmax.f32 %v2881, %v3011
      %3013 = vmax.xlane.f32.xlu0 %v3012
      %v3014 = vpop.xlane.xlu0 %3013
      %v3015 = vsel %vm1212, %v2887, -inf
      %v3016 = vmax.f32 %v2885, %v3015
      %3017 = vmax.xlane.f32.xlu0 %v3016
      %v3018 = vpop.xlane.xlu0 %3017
      %v3019 = vsel %vm1212, %v2893, -inf
      %v3020 = vmax.f32 %v2891, %v3019
      %3021 = vmax.xlane.f32.xlu0 %v3020
      %v3022 = vpop.xlane.xlu0 %3021
      %v3023 = vsel %vm1212, %v2897, -inf
      %v3024 = vmax.f32 %v2895, %v3023
      %3025 = vmax.xlane.f32.xlu0 %v3024
      %v3026 = vpop.xlane.xlu0 %3025
      %v3027 = vsub.f32 %v2447, %v2902
      %v3028 = vsub.f32 %v2449, %v2902
      %v3029 = vsub.f32 %v2451, %v2906
      %v3030 = vsub.f32 %v2453, %v2906
      %v3031 = vsub.f32 %v2457, %v2910
      %v3032 = vsub.f32 %v2459, %v2910
      %v3033 = vsub.f32 %v2461, %v2914
      %v3034 = vsub.f32 %v2463, %v2914
      %v3035 = vsub.f32 %v2467, %v2918
      %v3036 = vsub.f32 %v2469, %v2918
      %v3037 = vsub.f32 %v2471, %v2922
      %v3038 = vsub.f32 %v2473, %v2922
      %v3039 = vsub.f32 %v2477, %v2926
      %v3040 = vsub.f32 %v2479, %v2926
      %v3041 = vsub.f32 %v2481, %v2930
      %v3042 = vsub.f32 %v2483, %v2930
      %v3043 = vsub.f32 %v2585, %v2934
      %v3044 = vsub.f32 %v2587, %v2934
      %v3045 = vsub.f32 %v2589, %v2938
      %v3046 = vsub.f32 %v2591, %v2938
      %v3047 = vsub.f32 %v2595, %v2942
      %v3048 = vsub.f32 %v2597, %v2942
      %v3049 = vsub.f32 %v2599, %v2946
      %v3050 = vsub.f32 %v2601, %v2946
      %v3051 = vsub.f32 %v2605, %v2950
      %v3052 = vsub.f32 %v2607, %v2950
      %v3053 = vsub.f32 %v2609, %v2954
      %v3054 = vsub.f32 %v2611, %v2954
      %v3055 = vsub.f32 %v2615, %v2958
      %v3056 = vsub.f32 %v2617, %v2958
      %v3057 = vsub.f32 %v2619, %v2962
      %v3058 = vsub.f32 %v2621, %v2962
      %v3059 = vsub.f32 %v2723, %v2966
      %v3060 = vsub.f32 %v2725, %v2966
      %v3061 = vsub.f32 %v2727, %v2970
      %v3062 = vsub.f32 %v2729, %v2970
      %v3063 = vsub.f32 %v2733, %v2974
      %v3064 = vsub.f32 %v2735, %v2974
      %v3065 = vsub.f32 %v2737, %v2978
      %v3066 = vsub.f32 %v2739, %v2978
      %v3067 = vsub.f32 %v2743, %v2982
      %v3068 = vsub.f32 %v2745, %v2982
      %v3069 = vsub.f32 %v2747, %v2986
      %v3070 = vsub.f32 %v2749, %v2986
      %v3071 = vsub.f32 %v2753, %v2990
      %v3072 = vsub.f32 %v2755, %v2990
      %v3073 = vsub.f32 %v2757, %v2994
      %v3074 = vsub.f32 %v2759, %v2994
      %v3075 = vsub.f32 %v2861, %v2998
      %v3076 = vsub.f32 %v2863, %v2998
      %v3077 = vsub.f32 %v2865, %v3002
      %v3078 = vsub.f32 %v2867, %v3002
      %v3079 = vsub.f32 %v2871, %v3006
      %v3080 = vsub.f32 %v2873, %v3006
      %v3081 = vsub.f32 %v2875, %v3010
      %v3082 = vsub.f32 %v2877, %v3010
      %v3083 = vsub.f32 %v2881, %v3014
      %v3084 = vsub.f32 %v2883, %v3014
      %v3085 = vsub.f32 %v2885, %v3018
      %v3086 = vsub.f32 %v2887, %v3018
      %v3087 = vsub.f32 %v2891, %v3022
      %v3088 = vsub.f32 %v2893, %v3022
      %v3089 = vsub.f32 %v2895, %v3026
      %v3090 = vsub.f32 %v2897, %v3026
      %v3091 = vmul.f32 %v3027, 1.442695
      %v3092 = vpow.pop %v3091
      %v3093 = vmul.f32 %v3028, 1.442695
      %v3094 = vpow.pop %v3093
      %v3095 = vmul.f32 %v3029, 1.442695
      %v3096 = vpow.pop %v3095
      %v3097 = vmul.f32 %v3030, 1.442695
      %v3098 = vpow.pop %v3097
      %v3099 = vmul.f32 %v3031, 1.442695
      %v3100 = vpow.pop %v3099
      %v3101 = vmul.f32 %v3032, 1.442695
      %v3102 = vpow.pop %v3101
      %v3103 = vmul.f32 %v3033, 1.442695
      %v3104 = vpow.pop %v3103
      %v3105 = vmul.f32 %v3034, 1.442695
      %v3106 = vpow.pop %v3105
      %v3107 = vmul.f32 %v3035, 1.442695
      %v3108 = vpow.pop %v3107
      %v3109 = vmul.f32 %v3036, 1.442695
      %v3110 = vpow.pop %v3109
      %v3111 = vmul.f32 %v3037, 1.442695
      %v3112 = vpow.pop %v3111
      %v3113 = vmul.f32 %v3038, 1.442695
      %v3114 = vpow.pop %v3113
      %v3115 = vmul.f32 %v3039, 1.442695
      %v3116 = vpow.pop %v3115
      %v3117 = vmul.f32 %v3040, 1.442695
      %v3118 = vpow.pop %v3117
      %v3119 = vmul.f32 %v3041, 1.442695
      %v3120 = vpow.pop %v3119
      %v3121 = vmul.f32 %v3042, 1.442695
      %v3122 = vpow.pop %v3121
      %v3123 = vmul.f32 %v3043, 1.442695
      %v3124 = vpow.pop %v3123
      %v3125 = vmul.f32 %v3044, 1.442695
      %v3126 = vpow.pop %v3125
      %v3127 = vmul.f32 %v3045, 1.442695
      %v3128 = vpow.pop %v3127
      %v3129 = vmul.f32 %v3046, 1.442695
      %v3130 = vpow.pop %v3129
      %v3131 = vmul.f32 %v3047, 1.442695
      %v3132 = vpow.pop %v3131
      %v3133 = vmul.f32 %v3048, 1.442695
      %v3134 = vpow.pop %v3133
      %v3135 = vmul.f32 %v3049, 1.442695
      %v3136 = vpow.pop %v3135
      %v3137 = vmul.f32 %v3050, 1.442695
      %v3138 = vpow.pop %v3137
      %v3139 = vmul.f32 %v3051, 1.442695
      %v3140 = vpow.pop %v3139
      %v3141 = vmul.f32 %v3052, 1.442695
      %v3142 = vpow.pop %v3141
      %v3143 = vmul.f32 %v3053, 1.442695
      %v3144 = vpow.pop %v3143
      %v3145 = vmul.f32 %v3054, 1.442695
      %v3146 = vpow.pop %v3145
      %v3147 = vmul.f32 %v3055, 1.442695
      %v3148 = vpow.pop %v3147
      %v3149 = vmul.f32 %v3056, 1.442695
      %v3150 = vpow.pop %v3149
      %v3151 = vmul.f32 %v3057, 1.442695
      %v3152 = vpow.pop %v3151
      %v3153 = vmul.f32 %v3058, 1.442695
      %v3154 = vpow.pop %v3153
      %v3155 = vmul.f32 %v3059, 1.442695
      %v3156 = vpow.pop %v3155
      %v3157 = vmul.f32 %v3060, 1.442695
      %v3158 = vpow.pop %v3157
      %v3159 = vmul.f32 %v3061, 1.442695
      %v3160 = vpow.pop %v3159
      %v3161 = vmul.f32 %v3062, 1.442695
      %v3162 = vpow.pop %v3161
      %v3163 = vmul.f32 %v3063, 1.442695
      %v3164 = vpow.pop %v3163
      %v3165 = vmul.f32 %v3064, 1.442695
      %v3166 = vpow.pop %v3165
      %v3167 = vmul.f32 %v3065, 1.442695
      %v3168 = vpow.pop %v3167
      %v3169 = vmul.f32 %v3066, 1.442695
      %v3170 = vpow.pop %v3169
      %v3171 = vmul.f32 %v3067, 1.442695
      %v3172 = vpow.pop %v3171
      %v3173 = vmul.f32 %v3068, 1.442695
      %v3174 = vpow.pop %v3173
      %v3175 = vmul.f32 %v3069, 1.442695
      %v3176 = vpow.pop %v3175
      %v3177 = vmul.f32 %v3070, 1.442695
      %v3178 = vpow.pop %v3177
      %v3179 = vmul.f32 %v3071, 1.442695
      %v3180 = vpow.pop %v3179
      %v3181 = vmul.f32 %v3072, 1.442695
      %v3182 = vpow.pop %v3181
      %v3183 = vmul.f32 %v3073, 1.442695
      %v3184 = vpow.pop %v3183
      %v3185 = vmul.f32 %v3074, 1.442695
      %v3186 = vpow.pop %v3185
      %v3187 = vmul.f32 %v3075, 1.442695
      %v3188 = vpow.pop %v3187
      %v3189 = vmul.f32 %v3076, 1.442695
      %v3190 = vpow.pop %v3189
      %v3191 = vmul.f32 %v3077, 1.442695
      %v3192 = vpow.pop %v3191
      %v3193 = vmul.f32 %v3078, 1.442695
      %v3194 = vpow.pop %v3193
      %v3195 = vmul.f32 %v3079, 1.442695
      %v3196 = vpow.pop %v3195
      %v3197 = vmul.f32 %v3080, 1.442695
      %v3198 = vpow.pop %v3197
      %v3199 = vmul.f32 %v3081, 1.442695
      %v3200 = vpow.pop %v3199
      %v3201 = vmul.f32 %v3082, 1.442695
      %v3202 = vpow.pop %v3201
      %v3203 = vmul.f32 %v3083, 1.442695
      %v3204 = vpow.pop %v3203
      %v3205 = vmul.f32 %v3084, 1.442695
      %v3206 = vpow.pop %v3205
      %v3207 = vmul.f32 %v3085, 1.442695
      %v3208 = vpow.pop %v3207
      %v3209 = vmul.f32 %v3086, 1.442695
      %v3210 = vpow.pop %v3209
      %v3211 = vmul.f32 %v3087, 1.442695
      %v3212 = vpow.pop %v3211
      %v3213 = vmul.f32 %v3088, 1.442695
      %v3214 = vpow.pop %v3213
      %v3215 = vmul.f32 %v3089, 1.442695
      %v3216 = vpow.pop %v3215
      %v3217 = vmul.f32 %v3090, 1.442695
      %v3218 = vpow.pop %v3217
      %v3219 = vsel %vm1212, %v3094, 0.0
      %v3220 = vadd.f32 %v3092, %v3219
      %3221 = vadd.xlane.f32.xlu0 %v3220
      %v3222 = vpop.xlane.xlu0 %3221
      %v3223 = vsel %vm1212, %v3098, 0.0
      %v3224 = vadd.f32 %v3096, %v3223
      %3225 = vadd.xlane.f32.xlu0 %v3224
      %v3226 = vpop.xlane.xlu0 %3225
      %v3227 = vsel %vm1212, %v3102, 0.0
      %v3228 = vadd.f32 %v3100, %v3227
      %3229 = vadd.xlane.f32.xlu0 %v3228
      %v3230 = vpop.xlane.xlu0 %3229
      %v3231 = vsel %vm1212, %v3106, 0.0
      %v3232 = vadd.f32 %v3104, %v3231
      %3233 = vadd.xlane.f32.xlu0 %v3232
      %v3234 = vpop.xlane.xlu0 %3233
      %v3235 = vsel %vm1212, %v3110, 0.0
      %v3236 = vadd.f32 %v3108, %v3235
      %3237 = vadd.xlane.f32.xlu0 %v3236
      %v3238 = vpop.xlane.xlu0 %3237
      %v3239 = vsel %vm1212, %v3114, 0.0
      %v3240 = vadd.f32 %v3112, %v3239
      %3241 = vadd.xlane.f32.xlu0 %v3240
      %v3242 = vpop.xlane.xlu0 %3241
      %v3243 = vsel %vm1212, %v3118, 0.0
      %v3244 = vadd.f32 %v3116, %v3243
      %3245 = vadd.xlane.f32.xlu0 %v3244
      %v3246 = vpop.xlane.xlu0 %3245
      %v3247 = vsel %vm1212, %v3122, 0.0
      %v3248 = vadd.f32 %v3120, %v3247
      %3249 = vadd.xlane.f32.xlu0 %v3248
      %v3250 = vpop.xlane.xlu0 %3249
      %v3251 = vsel %vm1212, %v3126, 0.0
      %v3252 = vadd.f32 %v3124, %v3251
      %3253 = vadd.xlane.f32.xlu0 %v3252
      %v3254 = vpop.xlane.xlu0 %3253
      %v3255 = vsel %vm1212, %v3130, 0.0
      %v3256 = vadd.f32 %v3128, %v3255
      %3257 = vadd.xlane.f32.xlu0 %v3256
      %v3258 = vpop.xlane.xlu0 %3257
      %v3259 = vsel %vm1212, %v3134, 0.0
      %v3260 = vadd.f32 %v3132, %v3259
      %3261 = vadd.xlane.f32.xlu0 %v3260
      %v3262 = vpop.xlane.xlu0 %3261
      %v3263 = vsel %vm1212, %v3138, 0.0
      %v3264 = vadd.f32 %v3136, %v3263
      %3265 = vadd.xlane.f32.xlu0 %v3264
      %v3266 = vpop.xlane.xlu0 %3265
      %v3267 = vsel %vm1212, %v3142, 0.0
      %v3268 = vadd.f32 %v3140, %v3267
      %3269 = vadd.xlane.f32.xlu0 %v3268
      %v3270 = vpop.xlane.xlu0 %3269
      %v3271 = vsel %vm1212, %v3146, 0.0
      %v3272 = vadd.f32 %v3144, %v3271
      %3273 = vadd.xlane.f32.xlu0 %v3272
      %v3274 = vpop.xlane.xlu0 %3273
      %v3275 = vsel %vm1212, %v3150, 0.0
      %v3276 = vadd.f32 %v3148, %v3275
      %3277 = vadd.xlane.f32.xlu0 %v3276
      %v3278 = vpop.xlane.xlu0 %3277
      %v3279 = vsel %vm1212, %v3154, 0.0
      %v3280 = vadd.f32 %v3152, %v3279
      %3281 = vadd.xlane.f32.xlu0 %v3280
      %v3282 = vpop.xlane.xlu0 %3281
      %v3283 = vsel %vm1212, %v3158, 0.0
      %v3284 = vadd.f32 %v3156, %v3283
      %3285 = vadd.xlane.f32.xlu0 %v3284
      %v3286 = vpop.xlane.xlu0 %3285
      %v3287 = vsel %vm1212, %v3162, 0.0
      %v3288 = vadd.f32 %v3160, %v3287
      %3289 = vadd.xlane.f32.xlu0 %v3288
      %v3290 = vpop.xlane.xlu0 %3289
      %v3291 = vsel %vm1212, %v3166, 0.0
      %v3292 = vadd.f32 %v3164, %v3291
      %3293 = vadd.xlane.f32.xlu0 %v3292
      %v3294 = vpop.xlane.xlu0 %3293
      %v3295 = vsel %vm1212, %v3170, 0.0
      %v3296 = vadd.f32 %v3168, %v3295
      %3297 = vadd.xlane.f32.xlu0 %v3296
      %v3298 = vpop.xlane.xlu0 %3297
      %v3299 = vsel %vm1212, %v3174, 0.0
      %v3300 = vadd.f32 %v3172, %v3299
      %3301 = vadd.xlane.f32.xlu0 %v3300
      %v3302 = vpop.xlane.xlu0 %3301
      %v3303 = vsel %vm1212, %v3178, 0.0
      %v3304 = vadd.f32 %v3176, %v3303
      %3305 = vadd.xlane.f32.xlu0 %v3304
      %v3306 = vpop.xlane.xlu0 %3305
      %v3307 = vsel %vm1212, %v3182, 0.0
      %v3308 = vadd.f32 %v3180, %v3307
      %3309 = vadd.xlane.f32.xlu0 %v3308
      %v3310 = vpop.xlane.xlu0 %3309
      %v3311 = vsel %vm1212, %v3186, 0.0
      %v3312 = vadd.f32 %v3184, %v3311
      %3313 = vadd.xlane.f32.xlu0 %v3312
      %v3314 = vpop.xlane.xlu0 %3313
      %v3315 = vsel %vm1212, %v3190, 0.0
      %v3316 = vadd.f32 %v3188, %v3315
      %3317 = vadd.xlane.f32.xlu0 %v3316
      %v3318 = vpop.xlane.xlu0 %3317
      %v3319 = vsel %vm1212, %v3194, 0.0
      %v3320 = vadd.f32 %v3192, %v3319
      %3321 = vadd.xlane.f32.xlu0 %v3320
      %v3322 = vpop.xlane.xlu0 %3321
      %v3323 = vsel %vm1212, %v3198, 0.0
      %v3324 = vadd.f32 %v3196, %v3323
      %3325 = vadd.xlane.f32.xlu0 %v3324
      %v3326 = vpop.xlane.xlu0 %3325
      %v3327 = vsel %vm1212, %v3202, 0.0
      %v3328 = vadd.f32 %v3200, %v3327
      %3329 = vadd.xlane.f32.xlu0 %v3328
      %v3330 = vpop.xlane.xlu0 %3329
      %v3331 = vsel %vm1212, %v3206, 0.0
      %v3332 = vadd.f32 %v3204, %v3331
      %3333 = vadd.xlane.f32.xlu0 %v3332
      %v3334 = vpop.xlane.xlu0 %3333
      %v3335 = vsel %vm1212, %v3210, 0.0
      %v3336 = vadd.f32 %v3208, %v3335
      %3337 = vadd.xlane.f32.xlu0 %v3336
      %v3338 = vpop.xlane.xlu0 %3337
      %v3339 = vsel %vm1212, %v3214, 0.0
      %v3340 = vadd.f32 %v3212, %v3339
      %3341 = vadd.xlane.f32.xlu0 %v3340
      %v3342 = vpop.xlane.xlu0 %3341
      %v3343 = vsel %vm1212, %v3218, 0.0
      %v3344 = vadd.f32 %v3216, %v3343
      %3345 = vadd.xlane.f32.xlu0 %v3344
      %v3346 = vpop.xlane.xlu0 %3345
      %v3347 = vrcp.pop %v3222
      %v3348 = vrcp.pop %v3226
      %v3349 = vrcp.pop %v3230
      %v3350 = vrcp.pop %v3234
      %v3351 = vrcp.pop %v3238
      %v3352 = vrcp.pop %v3242
      %v3353 = vrcp.pop %v3246
      %v3354 = vrcp.pop %v3250
      %v3355 = vrcp.pop %v3254
      %v3356 = vrcp.pop %v3258
      %v3357 = vrcp.pop %v3262
      %v3358 = vrcp.pop %v3266
      %v3359 = vrcp.pop %v3270
      %v3360 = vrcp.pop %v3274
      %v3361 = vrcp.pop %v3278
      %v3362 = vrcp.pop %v3282
      %v3363 = vrcp.pop %v3286
      %v3364 = vrcp.pop %v3290
      %v3365 = vrcp.pop %v3294
      %v3366 = vrcp.pop %v3298
      %v3367 = vrcp.pop %v3302
      %v3368 = vrcp.pop %v3306
      %v3369 = vrcp.pop %v3310
      %v3370 = vrcp.pop %v3314
      %v3371 = vrcp.pop %v3318
      %v3372 = vrcp.pop %v3322
      %v3373 = vrcp.pop %v3326
      %v3374 = vrcp.pop %v3330
      %v3375 = vrcp.pop %v3334
      %v3376 = vrcp.pop %v3338
      %v3377 = vrcp.pop %v3342
      %v3378 = vrcp.pop %v3346
      %v3379 = vmul.f32 %v3092, %v3347
      %v3380 = vmul.f32 %v3094, %v3347
      %v3381 = vmul.f32 %v3096, %v3348
      %v3382 = vmul.f32 %v3098, %v3348
      %v3383 = vmul.f32 %v3100, %v3349
      %v3384 = vmul.f32 %v3102, %v3349
      %v3385 = vmul.f32 %v3104, %v3350
      %v3386 = vmul.f32 %v3106, %v3350
      %v3387 = vmul.f32 %v3108, %v3351
      %v3388 = vmul.f32 %v3110, %v3351
      %v3389 = vmul.f32 %v3112, %v3352
      %v3390 = vmul.f32 %v3114, %v3352
      %v3391 = vmul.f32 %v3116, %v3353
      %v3392 = vmul.f32 %v3118, %v3353
      %v3393 = vmul.f32 %v3120, %v3354
      %v3394 = vmul.f32 %v3122, %v3354
      %v3395 = vmul.f32 %v3124, %v3355
      %v3396 = vmul.f32 %v3126, %v3355
      %v3397 = vmul.f32 %v3128, %v3356
      %v3398 = vmul.f32 %v3130, %v3356
      %v3399 = vmul.f32 %v3132, %v3357
      %v3400 = vmul.f32 %v3134, %v3357
      %v3401 = vmul.f32 %v3136, %v3358
      %v3402 = vmul.f32 %v3138, %v3358
      %v3403 = vmul.f32 %v3140, %v3359
      %v3404 = vmul.f32 %v3142, %v3359
      %v3405 = vmul.f32 %v3144, %v3360
      %v3406 = vmul.f32 %v3146, %v3360
      %v3407 = vmul.f32 %v3148, %v3361
      %v3408 = vmul.f32 %v3150, %v3361
      %v3409 = vmul.f32 %v3152, %v3362
      %v3410 = vmul.f32 %v3154, %v3362
      %v3411 = vmul.f32 %v3156, %v3363
      %v3412 = vmul.f32 %v3158, %v3363
      %v3413 = vmul.f32 %v3160, %v3364
      %v3414 = vmul.f32 %v3162, %v3364
      %v3415 = vmul.f32 %v3164, %v3365
      %v3416 = vmul.f32 %v3166, %v3365
      %v3417 = vmul.f32 %v3168, %v3366
      %v3418 = vmul.f32 %v3170, %v3366
      %v3419 = vmul.f32 %v3172, %v3367
      %v3420 = vmul.f32 %v3174, %v3367
      %v3421 = vmul.f32 %v3176, %v3368
      %v3422 = vmul.f32 %v3178, %v3368
      %v3423 = vmul.f32 %v3180, %v3369
      %v3424 = vmul.f32 %v3182, %v3369
      %v3425 = vmul.f32 %v3184, %v3370
      %v3426 = vmul.f32 %v3186, %v3370
      %v3427 = vmul.f32 %v3188, %v3371
      %v3428 = vmul.f32 %v3190, %v3371
      %v3429 = vmul.f32 %v3192, %v3372
      %v3430 = vmul.f32 %v3194, %v3372
      %v3431 = vmul.f32 %v3196, %v3373
      %v3432 = vmul.f32 %v3198, %v3373
      %v3433 = vmul.f32 %v3200, %v3374
      %v3434 = vmul.f32 %v3202, %v3374
      %v3435 = vmul.f32 %v3204, %v3375
      %v3436 = vmul.f32 %v3206, %v3375
      %v3437 = vmul.f32 %v3208, %v3376
      %v3438 = vmul.f32 %v3210, %v3376
      %v3439 = vmul.f32 %v3212, %v3377
      %v3440 = vmul.f32 %v3214, %v3377
      %v3441 = vmul.f32 %v3216, %v3378
      %v3442 = vmul.f32 %v3218, %v3378
      %v3443 = vpack.c.bf16 %v3381, %v3379
      %v3444 = vpack.c.bf16 %v3382, %v3380
      %v3445 = vpack.c.bf16 %v3385, %v3383
      %v3446 = vpack.c.bf16 %v3386, %v3384
      %v3447 = vpack.c.bf16 %v3389, %v3387
      %v3448 = vpack.c.bf16 %v3390, %v3388
      %v3449 = vpack.c.bf16 %v3393, %v3391
      %v3450 = vpack.c.bf16 %v3394, %v3392
      %v3451 = vpack.c.bf16 %v3397, %v3395
      %v3452 = vpack.c.bf16 %v3398, %v3396
      %v3453 = vpack.c.bf16 %v3401, %v3399
      %v3454 = vpack.c.bf16 %v3402, %v3400
      %v3455 = vpack.c.bf16 %v3405, %v3403
      %v3456 = vpack.c.bf16 %v3406, %v3404
      %v3457 = vpack.c.bf16 %v3409, %v3407
      %v3458 = vpack.c.bf16 %v3410, %v3408
      %v3459 = vpack.c.bf16 %v3413, %v3411
      %v3460 = vpack.c.bf16 %v3414, %v3412
      %v3461 = vpack.c.bf16 %v3417, %v3415
      %v3462 = vpack.c.bf16 %v3418, %v3416
      %v3463 = vpack.c.bf16 %v3421, %v3419
      %v3464 = vpack.c.bf16 %v3422, %v3420
      %v3465 = vpack.c.bf16 %v3425, %v3423
      %v3466 = vpack.c.bf16 %v3426, %v3424
      %v3467 = vpack.c.bf16 %v3429, %v3427
      %v3468 = vpack.c.bf16 %v3430, %v3428
      %v3469 = vpack.c.bf16 %v3433, %v3431
      %v3470 = vpack.c.bf16 %v3434, %v3432
      %v3471 = vpack.c.bf16 %v3437, %v3435
      %v3472 = vpack.c.bf16 %v3438, %v3436
      %v3473 = vpack.c.bf16 %v3441, %v3439
      %v3474 = vpack.c.bf16 %v3442, %v3440
      %3475 = vrot.lane.b32.xlu0 %v1825, 120
      %v3476 = vpop.permute.xlu0 %3475
      %3477 = vrot.lane.b32.xlu0 %v1826, 120
      %v3478 = vpop.permute.xlu0 %3477
      %3479 = vrot.lane.b32.xlu0 %v1827, 120
      %v3480 = vpop.permute.xlu0 %3479
      %3481 = vrot.lane.b32.xlu0 %v1828, 120
      %v3482 = vpop.permute.xlu0 %3481
      %3483 = vrot.lane.b32.xlu0 %v1829, 120
      %v3484 = vpop.permute.xlu0 %3483
      %3485 = vrot.lane.b32.xlu0 %v1830, 120
      %v3486 = vpop.permute.xlu0 %3485
      %3487 = vrot.lane.b32.xlu0 %v1831, 120
      %v3488 = vpop.permute.xlu0 %3487
      %3489 = vrot.lane.b32.xlu0 %v1832, 120
      %v3490 = vpop.permute.xlu0 %3489
      %3491 = vrot.lane.b32.xlu0 %v1833, 120
      %v3492 = vpop.permute.xlu0 %3491
      %v3503 = vsel %vm1212, %v3444, 0
      %v3506 = vsel %vm1212, %v3446, 0
      %v3509 = vsel %vm1212, %v3448, 0
      %v3512 = vsel %vm1212, %v3450, 0
      %3514 = vmatprep.subr.bf16.mxu0 0
      %3515 = vmatpush1.bf16.msra.mxu0 %v3476
      %3516 = vmatprep.subr.bf16.mxu0 0
      %3517 = vmatpush1.bf16.msra.mxu0 %v3478
      %3518 = vmatprep.subr.bf16.mxu0 0
      %3519 = vmatpush1.bf16.msra.mxu0 %v3480
      %3520 = vmatprep.subr.bf16.mxu0 0
      %3521 = vmatpush1.bf16.msra.mxu0 %v3482
      %3522 = vmatprep.subr.bf16.mxu0 0
      %3523 = vmatpush1.bf16.msra.mxu0 %v3484
      %3524 = vmatprep.subr.bf16.mxu0 0
      %3525 = vmatpush1.bf16.msra.mxu0 %v3486
      %3526 = vmatprep.subr.bf16.mxu0 0
      %3527 = vmatpush1.bf16.msra.mxu0 %v3488
      %3528 = vmatprep.subr.bf16.mxu0 0
      %3529 = vmatpush1.bf16.msra.mxu0 %v3490
      %3530 = vmatprep.subr.bf16.mxu0 0
      %3531 = vmatpush1.bf16.msra.mxu0 %v3492
      %3532 = vmatprep.subr.bf16.mxu0 0
      %3533 = vmatpush1.bf16.msra.mxu0 0
      %3534 = vmatprep.subr.bf16.mxu0 0
      %3535 = vmatpush1.bf16.msra.mxu0 0
      %3536 = vmatprep.subr.bf16.mxu0 0
      %3537 = vmatpush1.bf16.msra.mxu0 0
      %3538 = vmatprep.subr.bf16.mxu0 0
      %3539 = vmatpush1.bf16.msra.mxu0 0
      %3540 = vmatprep.subr.bf16.mxu0 0
      %3541 = vmatpush1.bf16.msra.mxu0 0
      %3542 = vmatprep.subr.bf16.mxu0 0
      %3543 = vmatpush1.bf16.msra.mxu0 0
      %3544 = vmatprep.subr.bf16.mxu0 0
      %3545 = vmatpush1.bf16.msra.mxu0 0
      %3546 = vmatprep.mubr.bf16.mxu0 %v3503
      %3547 = vmatmul.mubr.bf16.gmra.mrb[0].mxu0 %v3443
      %v3548 = vpop.f32.mrb[0].mxu0
      %v3549 = vadd.f32 0.0, %v3548
      %v3550 = vpop.f32.mrb[0].mxu0
      %v3551 = vpop.f32.mrb[0].mxu0
      %v3552 = vadd.f32 0.0, %v3551
      %v3553 = vpop.f32.mrb[0].mxu0
      %3554 = vmatprep.mubr.bf16.mxu0 %v3506
      %3555 = vmatmul.mubr.bf16.gmra.mrb[0].mxu0 %v3445
      %v3556 = vpop.f32.mrb[0].mxu0
      %v3557 = vadd.f32 0.0, %v3556
      %v3558 = vpop.f32.mrb[0].mxu0
      %v3559 = vpop.f32.mrb[0].mxu0
      %v3560 = vadd.f32 0.0, %v3559
      %v3561 = vpop.f32.mrb[0].mxu0
      %3562 = vmatprep.mubr.bf16.mxu0 %v3509
      %3563 = vmatmul.mubr.bf16.gmra.mrb[0].mxu0 %v3447
      %v3564 = vpop.f32.mrb[0].mxu0
      %v3565 = vadd.f32 0.0, %v3564
      %v3566 = vpop.f32.mrb[0].mxu0
      %v3567 = vpop.f32.mrb[0].mxu0
      %v3568 = vadd.f32 0.0, %v3567
      %v3569 = vpop.f32.mrb[0].mxu0
      %3570 = vmatprep.mubr.bf16.mxu0 %v3512
      %3571 = vmatmul.mubr.bf16.gmra.mrb[0].mxu0 %v3449
      %v3572 = vpop.f32.mrb[0].mxu0
      %v3573 = vadd.f32 0.0, %v3572
      %v3574 = vpop.f32.mrb[0].mxu0
      %v3575 = vpop.f32.mrb[0].mxu0
      %v3576 = vadd.f32 0.0, %v3575
      %v3577 = vpop.f32.mrb[0].mxu0
      %3578 = vdwg.mxu0
      %3579 = vrot.lane.b32.xlu0 %v1956, 120
      %v3580 = vpop.permute.xlu0 %3579
      %3581 = vrot.lane.b32.xlu0 %v1957, 120
      %v3582 = vpop.permute.xlu0 %3581
      %3583 = vrot.lane.b32.xlu0 %v1958, 120
      %v3584 = vpop.permute.xlu0 %3583
      %3585 = vrot.lane.b32.xlu0 %v1959, 120
      %v3586 = vpop.permute.xlu0 %3585
      %3587 = vrot.lane.b32.xlu0 %v1960, 120
      %v3588 = vpop.permute.xlu0 %3587
      %3589 = vrot.lane.b32.xlu0 %v1961, 120
      %v3590 = vpop.permute.xlu0 %3589
      %3591 = vrot.lane.b32.xlu0 %v1962, 120
      %v3592 = vpop.permute.xlu0 %3591
      %3593 = vrot.lane.b32.xlu0 %v1963, 120
      %v3594 = vpop.permute.xlu0 %3593
      %3595 = vrot.lane.b32.xlu0 %v1964, 120
      %v3596 = vpop.permute.xlu0 %3595
      %v3607 = vsel %vm1212, %v3452, 0
      %v3610 = vsel %vm1212, %v3454, 0
      %v3613 = vsel %vm1212, %v3456, 0
      %v3616 = vsel %vm1212, %v3458, 0
      %3618 = vmatprep.subr.bf16.mxu0 0
      %3619 = vmatpush1.bf16.msra.mxu0 %v3580
      %3620 = vmatprep.subr.bf16.mxu0 0
      %3621 = vmatpush1.bf16.msra.mxu0 %v3582
      %3622 = vmatprep.subr.bf16.mxu0 0
      %3623 = vmatpush1.bf16.msra.mxu0 %v3584
      %3624 = vmatprep.subr.bf16.mxu0 0
      %3625 = vmatpush1.bf16.msra.mxu0 %v3586
      %3626 = vmatprep.subr.bf16.mxu0 0
      %3627 = vmatpush1.bf16.msra.mxu0 %v3588
      %3628 = vmatprep.subr.bf16.mxu0 0
      %3629 = vmatpush1.bf16.msra.mxu0 %v3590
      %3630 = vmatprep.subr.bf16.mxu0 0
      %3631 = vmatpush1.bf16.msra.mxu0 %v3592
      %3632 = vmatprep.subr.bf16.mxu0 0
      %3633 = vmatpush1.bf16.msra.mxu0 %v3594
      %3634 = vmatprep.subr.bf16.mxu0 0
      %3635 = vmatpush1.bf16.msra.mxu0 %v3596
      %3636 = vmatprep.subr.bf16.mxu0 0
      %3637 = vmatpush1.bf16.msra.mxu0 0
      %3638 = vmatprep.subr.bf16.mxu0 0
      %3639 = vmatpush1.bf16.msra.mxu0 0
      %3640 = vmatprep.subr.bf16.mxu0 0
      %3641 = vmatpush1.bf16.msra.mxu0 0
      %3642 = vmatprep.subr.bf16.mxu0 0
      %3643 = vmatpush1.bf16.msra.mxu0 0
      %3644 = vmatprep.subr.bf16.mxu0 0
      %3645 = vmatpush1.bf16.msra.mxu0 0
      %3646 = vmatprep.subr.bf16.mxu0 0
      %3647 = vmatpush1.bf16.msra.mxu0 0
      %3648 = vmatprep.subr.bf16.mxu0 0
      %3649 = vmatpush1.bf16.msra.mxu0 0
      %3650 = vmatprep.mubr.bf16.mxu0 %v3607
      %3651 = vmatmul.mubr.bf16.gmra.mrb[0].mxu0 %v3451
      %v3652 = vpop.f32.mrb[0].mxu0
      %v3653 = vadd.f32 0.0, %v3652
      %v3654 = vpop.f32.mrb[0].mxu0
      %v3655 = vpop.f32.mrb[0].mxu0
      %v3656 = vadd.f32 0.0, %v3655
      %v3657 = vpop.f32.mrb[0].mxu0
      %3658 = vmatprep.mubr.bf16.mxu0 %v3610
      %3659 = vmatmul.mubr.bf16.gmra.mrb[0].mxu0 %v3453
      %v3660 = vpop.f32.mrb[0].mxu0
      %v3661 = vadd.f32 0.0, %v3660
      %v3662 = vpop.f32.mrb[0].mxu0
      %v3663 = vpop.f32.mrb[0].mxu0
      %v3664 = vadd.f32 0.0, %v3663
      %v3665 = vpop.f32.mrb[0].mxu0
      %3666 = vmatprep.mubr.bf16.mxu0 %v3613
      %3667 = vmatmul.mubr.bf16.gmra.mrb[0].mxu0 %v3455
      %v3668 = vpop.f32.mrb[0].mxu0
      %v3669 = vadd.f32 0.0, %v3668
      %v3670 = vpop.f32.mrb[0].mxu0
      %v3671 = vpop.f32.mrb[0].mxu0
      %v3672 = vadd.f32 0.0, %v3671
      %v3673 = vpop.f32.mrb[0].mxu0
      %3674 = vmatprep.mubr.bf16.mxu0 %v3616
      %3675 = vmatmul.mubr.bf16.gmra.mrb[0].mxu0 %v3457
      %v3676 = vpop.f32.mrb[0].mxu0
      %v3677 = vadd.f32 0.0, %v3676
      %v3678 = vpop.f32.mrb[0].mxu0
      %v3679 = vpop.f32.mrb[0].mxu0
      %v3680 = vadd.f32 0.0, %v3679
      %v3681 = vpop.f32.mrb[0].mxu0
      %3682 = vdwg.mxu0
      %3683 = vrot.lane.b32.xlu0 %v2087, 120
      %v3684 = vpop.permute.xlu0 %3683
      %3685 = vrot.lane.b32.xlu0 %v2088, 120
      %v3686 = vpop.permute.xlu0 %3685
      %3687 = vrot.lane.b32.xlu0 %v2089, 120
      %v3688 = vpop.permute.xlu0 %3687
      %3689 = vrot.lane.b32.xlu0 %v2090, 120
      %v3690 = vpop.permute.xlu0 %3689
      %3691 = vrot.lane.b32.xlu0 %v2091, 120
      %v3692 = vpop.permute.xlu0 %3691
      %3693 = vrot.lane.b32.xlu0 %v2092, 120
      %v3694 = vpop.permute.xlu0 %3693
      %3695 = vrot.lane.b32.xlu0 %v2093, 120
      %v3696 = vpop.permute.xlu0 %3695
      %3697 = vrot.lane.b32.xlu0 %v2094, 120
      %v3698 = vpop.permute.xlu0 %3697
      %3699 = vrot.lane.b32.xlu0 %v2095, 120
      %v3700 = vpop.permute.xlu0 %3699
      %v3711 = vsel %vm1212, %v3460, 0
      %v3714 = vsel %vm1212, %v3462, 0
      %v3717 = vsel %vm1212, %v3464, 0
      %v3720 = vsel %vm1212, %v3466, 0
      %3722 = vmatprep.subr.bf16.mxu0 0
      %3723 = vmatpush1.bf16.msra.mxu0 %v3684
      %3724 = vmatprep.subr.bf16.mxu0 0
      %3725 = vmatpush1.bf16.msra.mxu0 %v3686
      %3726 = vmatprep.subr.bf16.mxu0 0
      %3727 = vmatpush1.bf16.msra.mxu0 %v3688
      %3728 = vmatprep.subr.bf16.mxu0 0
      %3729 = vmatpush1.bf16.msra.mxu0 %v3690
      %3730 = vmatprep.subr.bf16.mxu0 0
      %3731 = vmatpush1.bf16.msra.mxu0 %v3692
      %3732 = vmatprep.subr.bf16.mxu0 0
      %3733 = vmatpush1.bf16.msra.mxu0 %v3694
      %3734 = vmatprep.subr.bf16.mxu0 0
      %3735 = vmatpush1.bf16.msra.mxu0 %v3696
      %3736 = vmatprep.subr.bf16.mxu0 0
      %3737 = vmatpush1.bf16.msra.mxu0 %v3698
      %3738 = vmatprep.subr.bf16.mxu0 0
      %3739 = vmatpush1.bf16.msra.mxu0 %v3700
      %3740 = vmatprep.subr.bf16.mxu0 0
      %3741 = vmatpush1.bf16.msra.mxu0 0
      %3742 = vmatprep.subr.bf16.mxu0 0
      %3743 = vmatpush1.bf16.msra.mxu0 0
      %3744 = vmatprep.subr.bf16.mxu0 0
      %3745 = vmatpush1.bf16.msra.mxu0 0
      %3746 = vmatprep.subr.bf16.mxu0 0
      %3747 = vmatpush1.bf16.msra.mxu0 0
      %3748 = vmatprep.subr.bf16.mxu0 0
      %3749 = vmatpush1.bf16.msra.mxu0 0
      %3750 = vmatprep.subr.bf16.mxu0 0
      %3751 = vmatpush1.bf16.msra.mxu0 0
      %3752 = vmatprep.subr.bf16.mxu0 0
      %3753 = vmatpush1.bf16.msra.mxu0 0
      %3754 = vmatprep.mubr.bf16.mxu0 %v3711
      %3755 = vmatmul.mubr.bf16.gmra.mrb[0].mxu0 %v3459
      %v3756 = vpop.f32.mrb[0].mxu0
      %v3757 = vadd.f32 0.0, %v3756
      %v3758 = vpop.f32.mrb[0].mxu0
      %v3759 = vpop.f32.mrb[0].mxu0
      %v3760 = vadd.f32 0.0, %v3759
      %v3761 = vpop.f32.mrb[0].mxu0
      %3762 = vmatprep.mubr.bf16.mxu0 %v3714
      %3763 = vmatmul.mubr.bf16.gmra.mrb[0].mxu0 %v3461
      %v3764 = vpop.f32.mrb[0].mxu0
      %v3765 = vadd.f32 0.0, %v3764
      %v3766 = vpop.f32.mrb[0].mxu0
      %v3767 = vpop.f32.mrb[0].mxu0
      %v3768 = vadd.f32 0.0, %v3767
      %v3769 = vpop.f32.mrb[0].mxu0
      %3770 = vmatprep.mubr.bf16.mxu0 %v3717
      %3771 = vmatmul.mubr.bf16.gmra.mrb[0].mxu0 %v3463
      %v3772 = vpop.f32.mrb[0].mxu0
      %v3773 = vadd.f32 0.0, %v3772
      %v3774 = vpop.f32.mrb[0].mxu0
      %v3775 = vpop.f32.mrb[0].mxu0
      %v3776 = vadd.f32 0.0, %v3775
      %v3777 = vpop.f32.mrb[0].mxu0
      %3778 = vmatprep.mubr.bf16.mxu0 %v3720
      %3779 = vmatmul.mubr.bf16.gmra.mrb[0].mxu0 %v3465
      %v3780 = vpop.f32.mrb[0].mxu0
      %v3781 = vadd.f32 0.0, %v3780
      %v3782 = vpop.f32.mrb[0].mxu0
      %v3783 = vpop.f32.mrb[0].mxu0
      %v3784 = vadd.f32 0.0, %v3783
      %v3785 = vpop.f32.mrb[0].mxu0
      %3786 = vdwg.mxu0
      %3787 = vrot.lane.b32.xlu0 %v2218, 120
      %v3788 = vpop.permute.xlu0 %3787
      %3789 = vrot.lane.b32.xlu0 %v2219, 120
      %v3790 = vpop.permute.xlu0 %3789
      %3791 = vrot.lane.b32.xlu0 %v2220, 120
      %v3792 = vpop.permute.xlu0 %3791
      %3793 = vrot.lane.b32.xlu0 %v2221, 120
      %v3794 = vpop.permute.xlu0 %3793
      %3795 = vrot.lane.b32.xlu0 %v2222, 120
      %v3796 = vpop.permute.xlu0 %3795
      %3797 = vrot.lane.b32.xlu0 %v2223, 120
      %v3798 = vpop.permute.xlu0 %3797
      %3799 = vrot.lane.b32.xlu0 %v2224, 120
      %v3800 = vpop.permute.xlu0 %3799
      %3801 = vrot.lane.b32.xlu0 %v2225, 120
      %v3802 = vpop.permute.xlu0 %3801
      %3803 = vrot.lane.b32.xlu0 %v2226, 120
      %v3804 = vpop.permute.xlu0 %3803
      %v3815 = vsel %vm1212, %v3468, 0
      %v3818 = vsel %vm1212, %v3470, 0
      %v3821 = vsel %vm1212, %v3472, 0
      %v3824 = vsel %vm1212, %v3474, 0
      %3826 = vmatprep.subr.bf16.mxu0 0
      %3827 = vmatpush1.bf16.msra.mxu0 %v3788
      %3828 = vmatprep.subr.bf16.mxu0 0
      %3829 = vmatpush1.bf16.msra.mxu0 %v3790
      %3830 = vmatprep.subr.bf16.mxu0 0
      %3831 = vmatpush1.bf16.msra.mxu0 %v3792
      %3832 = vmatprep.subr.bf16.mxu0 0
      %3833 = vmatpush1.bf16.msra.mxu0 %v3794
      %3834 = vmatprep.subr.bf16.mxu0 0
      %3835 = vmatpush1.bf16.msra.mxu0 %v3796
      %3836 = vmatprep.subr.bf16.mxu0 0
      %3837 = vmatpush1.bf16.msra.mxu0 %v3798
      %3838 = vmatprep.subr.bf16.mxu0 0
      %3839 = vmatpush1.bf16.msra.mxu0 %v3800
      %3840 = vmatprep.subr.bf16.mxu0 0
      %3841 = vmatpush1.bf16.msra.mxu0 %v3802
      %3842 = vmatprep.subr.bf16.mxu0 0
      %3843 = vmatpush1.bf16.msra.mxu0 %v3804
      %3844 = vmatprep.subr.bf16.mxu0 0
      %3845 = vmatpush1.bf16.msra.mxu0 0
      %3846 = vmatprep.subr.bf16.mxu0 0
      %3847 = vmatpush1.bf16.msra.mxu0 0
      %3848 = vmatprep.subr.bf16.mxu0 0
      %3849 = vmatpush1.bf16.msra.mxu0 0
      %3850 = vmatprep.subr.bf16.mxu0 0
      %3851 = vmatpush1.bf16.msra.mxu0 0
      %3852 = vmatprep.subr.bf16.mxu0 0
      %3853 = vmatpush1.bf16.msra.mxu0 0
      %3854 = vmatprep.subr.bf16.mxu0 0
      %3855 = vmatpush1.bf16.msra.mxu0 0
      %3856 = vmatprep.subr.bf16.mxu0 0
      %3857 = vmatpush1.bf16.msra.mxu0 0
      %3858 = vmatprep.mubr.bf16.mxu0 %v3815
      %3859 = vmatmul.mubr.bf16.gmra.mrb[0].mxu0 %v3467
      %v3860 = vpop.f32.mrb[0].mxu0
      %v3861 = vadd.f32 0.0, %v3860
      %v3862 = vpop.f32.mrb[0].mxu0
      %v3863 = vpop.f32.mrb[0].mxu0
      %v3864 = vadd.f32 0.0, %v3863
      %v3865 = vpop.f32.mrb[0].mxu0
      %3866 = vmatprep.mubr.bf16.mxu0 %v3818
      %3867 = vmatmul.mubr.bf16.gmra.mrb[0].mxu0 %v3469
      %v3868 = vpop.f32.mrb[0].mxu0
      %v3869 = vadd.f32 0.0, %v3868
      %v3870 = vpop.f32.mrb[0].mxu0
      %v3871 = vpop.f32.mrb[0].mxu0
      %v3872 = vadd.f32 0.0, %v3871
      %v3873 = vpop.f32.mrb[0].mxu0
      %3874 = vmatprep.mubr.bf16.mxu0 %v3821
      %3875 = vmatmul.mubr.bf16.gmra.mrb[0].mxu0 %v3471
      %v3876 = vpop.f32.mrb[0].mxu0
      %v3877 = vadd.f32 0.0, %v3876
      %v3878 = vpop.f32.mrb[0].mxu0
      %v3879 = vpop.f32.mrb[0].mxu0
      %v3880 = vadd.f32 0.0, %v3879
      %v3881 = vpop.f32.mrb[0].mxu0
      %3882 = vmatprep.mubr.bf16.mxu0 %v3824
      %3883 = vmatmul.mubr.bf16.gmra.mrb[0].mxu0 %v3473
      %v3884 = vpop.f32.mrb[0].mxu0
      %v3885 = vadd.f32 0.0, %v3884
      %v3886 = vpop.f32.mrb[0].mxu0
      %v3887 = vpop.f32.mrb[0].mxu0
      %v3888 = vadd.f32 0.0, %v3887
      %v3889 = vpop.f32.mrb[0].mxu0
      %3890 = vdwg.mxu0
      %v3891 = vpack.c.bf16 %v3552, %v3549
      %v3892 = vpack.c.bf16 %v3560, %v3557
      %v3893 = vpack.c.bf16 %v3568, %v3565
      %v3894 = vpack.c.bf16 %v3576, %v3573
      %v3895 = vpack.c.bf16 %v3656, %v3653
      %v3896 = vpack.c.bf16 %v3664, %v3661
      %v3897 = vpack.c.bf16 %v3672, %v3669
      %v3898 = vpack.c.bf16 %v3680, %v3677
      %v3899 = vpack.c.bf16 %v3760, %v3757
      %v3900 = vpack.c.bf16 %v3768, %v3765
      %v3901 = vpack.c.bf16 %v3776, %v3773
      %v3902 = vpack.c.bf16 %v3784, %v3781
      %v3903 = vpack.c.bf16 %v3864, %v3861
      %v3904 = vpack.c.bf16 %v3872, %v3869
      %v3905 = vpack.c.bf16 %v3880, %v3877
      %v3906 = vpack.c.bf16 %v3888, %v3885
      %v3907 = vld [vmem:[%s4 + $0x4] sm:$0xf]
      %v3909 = vsel %vm568, %v3891, 0
      %v3912 = vsel %vm568, %v3892, 0
      %v3915 = vsel %vm568, %v3893, 0
      %v3918 = vsel %vm568, %v3894, 0
      %v3921 = vsel %vm568, %v3895, 0
      %v3924 = vsel %vm568, %v3896, 0
      %v3927 = vsel %vm568, %v3897, 0
      %v3930 = vsel %vm568, %v3898, 0
      %v3933 = vsel %vm568, %v3899, 0
      %v3936 = vsel %vm568, %v3900, 0
      %v3939 = vsel %vm568, %v3901, 0
      %v3942 = vsel %vm568, %v3902, 0
      %v3945 = vsel %vm568, %v3903, 0
      %v3948 = vsel %vm568, %v3904, 0
      %v3951 = vsel %vm568, %v3905, 0
      %v3954 = vsel %vm568, %v3906, 0
      %vm3956 = vcmask 1043456
      %v3958 = vsel %vm3956, %v3907, 0
      %3960 = vmatprep.subr.bf16.mxu0 0
      %3961 = vmatpush1.bf16.msra.mxu0 %v3958
      %3962 = vmatprep.subr.bf16.mxu0 0
      %3963 = vmatpush1.bf16.msra.mxu0 0
      %3964 = vmatprep.subr.bf16.mxu0 0
      %3965 = vmatpush1.bf16.msra.mxu0 0
      %3966 = vmatprep.subr.bf16.mxu0 0
      %3967 = vmatpush1.bf16.msra.mxu0 0
      %3968 = vmatprep.subr.bf16.mxu0 0
      %3969 = vmatpush1.bf16.msra.mxu0 0
      %3970 = vmatprep.subr.bf16.mxu0 0
      %3971 = vmatpush1.bf16.msra.mxu0 0
      %3972 = vmatprep.subr.bf16.mxu0 0
      %3973 = vmatpush1.bf16.msra.mxu0 0
      %3974 = vmatprep.subr.bf16.mxu0 0
      %3975 = vmatpush1.bf16.msra.mxu0 0
      %3976 = vmatprep.subr.bf16.mxu0 0
      %3977 = vmatpush1.bf16.msra.mxu0 0
      %3978 = vmatprep.subr.bf16.mxu0 0
      %3979 = vmatpush1.bf16.msra.mxu0 0
      %3980 = vmatprep.subr.bf16.mxu0 0
      %3981 = vmatpush1.bf16.msra.mxu0 0
      %3982 = vmatprep.subr.bf16.mxu0 0
      %3983 = vmatpush1.bf16.msra.mxu0 0
      %3984 = vmatprep.subr.bf16.mxu0 0
      %3985 = vmatpush1.bf16.msra.mxu0 0
      %3986 = vmatprep.subr.bf16.mxu0 0
      %3987 = vmatpush1.bf16.msra.mxu0 0
      %3988 = vmatprep.subr.bf16.mxu0 0
      %3989 = vmatpush1.bf16.msra.mxu0 0
      %3990 = vmatprep.subr.bf16.mxu0 0
      %3991 = vmatpush1.bf16.msra.mxu0 0
      %3992 = vmatprep.mubr.bf16.mxu0 0
      %3993 = vmatmul.mubr.bf16.gmra.mrb[0].mxu0 %v3909
      %v3994 = vpop.f32.mrb[0].mxu0
      %v3995 = vadd.f32 0.0, %v3994
      %v3996 = vpop.f32.mrb[0].mxu0
      %v3997 = vpop.f32.mrb[0].mxu0
      %v3998 = vadd.f32 0.0, %v3997
      %v3999 = vpop.f32.mrb[0].mxu0
      %4000 = vmatprep.mubr.bf16.mxu0 0
      %4001 = vmatmul.mubr.bf16.gmra.mrb[0].mxu0 %v3912
      %v4002 = vpop.f32.mrb[0].mxu0
      %v4003 = vadd.f32 0.0, %v4002
      %v4004 = vpop.f32.mrb[0].mxu0
      %v4005 = vpop.f32.mrb[0].mxu0
      %v4006 = vadd.f32 0.0, %v4005
      %v4007 = vpop.f32.mrb[0].mxu0
      %4008 = vmatprep.mubr.bf16.mxu0 0
      %4009 = vmatmul.mubr.bf16.gmra.mrb[0].mxu0 %v3915
      %v4010 = vpop.f32.mrb[0].mxu0
      %v4011 = vadd.f32 0.0, %v4010
      %v4012 = vpop.f32.mrb[0].mxu0
      %v4013 = vpop.f32.mrb[0].mxu0
      %v4014 = vadd.f32 0.0, %v4013
      %v4015 = vpop.f32.mrb[0].mxu0
      %4016 = vmatprep.mubr.bf16.mxu0 0
      %4017 = vmatmul.mubr.bf16.gmra.mrb[0].mxu0 %v3918
      %v4018 = vpop.f32.mrb[0].mxu0
      %v4019 = vadd.f32 0.0, %v4018
      %v4020 = vpop.f32.mrb[0].mxu0
      %v4021 = vpop.f32.mrb[0].mxu0
      %v4022 = vadd.f32 0.0, %v4021
      %v4023 = vpop.f32.mrb[0].mxu0
      %4024 = vmatprep.mubr.bf16.mxu0 0
      %4025 = vmatmul.mubr.bf16.gmra.mrb[0].mxu0 %v3921
      %v4026 = vpop.f32.mrb[0].mxu0
      %v4027 = vadd.f32 0.0, %v4026
      %v4028 = vpop.f32.mrb[0].mxu0
      %v4029 = vpop.f32.mrb[0].mxu0
      %v4030 = vadd.f32 0.0, %v4029
      %v4031 = vpop.f32.mrb[0].mxu0
      %4032 = vmatprep.mubr.bf16.mxu0 0
      %4033 = vmatmul.mubr.bf16.gmra.mrb[0].mxu0 %v3924
      %v4034 = vpop.f32.mrb[0].mxu0
      %v4035 = vadd.f32 0.0, %v4034
      %v4036 = vpop.f32.mrb[0].mxu0
      %v4037 = vpop.f32.mrb[0].mxu0
      %v4038 = vadd.f32 0.0, %v4037
      %v4039 = vpop.f32.mrb[0].mxu0
      %4040 = vmatprep.mubr.bf16.mxu0 0
      %4041 = vmatmul.mubr.bf16.gmra.mrb[0].mxu0 %v3927
      %v4042 = vpop.f32.mrb[0].mxu0
      %v4043 = vadd.f32 0.0, %v4042
      %v4044 = vpop.f32.mrb[0].mxu0
      %v4045 = vpop.f32.mrb[0].mxu0
      %v4046 = vadd.f32 0.0, %v4045
      %v4047 = vpop.f32.mrb[0].mxu0
      %4048 = vmatprep.mubr.bf16.mxu0 0
      %4049 = vmatmul.mubr.bf16.gmra.mrb[0].mxu0 %v3930
      %v4050 = vpop.f32.mrb[0].mxu0
      %v4051 = vadd.f32 0.0, %v4050
      %v4052 = vpop.f32.mrb[0].mxu0
      %v4053 = vpop.f32.mrb[0].mxu0
      %v4054 = vadd.f32 0.0, %v4053
      %v4055 = vpop.f32.mrb[0].mxu0
      %4056 = vmatprep.mubr.bf16.mxu0 0
      %4057 = vmatmul.mubr.bf16.gmra.mrb[0].mxu0 %v3933
      %v4058 = vpop.f32.mrb[0].mxu0
      %v4059 = vadd.f32 0.0, %v4058
      %v4060 = vpop.f32.mrb[0].mxu0
      %v4061 = vpop.f32.mrb[0].mxu0
      %v4062 = vadd.f32 0.0, %v4061
      %v4063 = vpop.f32.mrb[0].mxu0
      %4064 = vmatprep.mubr.bf16.mxu0 0
      %4065 = vmatmul.mubr.bf16.gmra.mrb[0].mxu0 %v3936
      %v4066 = vpop.f32.mrb[0].mxu0
      %v4067 = vadd.f32 0.0, %v4066
      %v4068 = vpop.f32.mrb[0].mxu0
      %v4069 = vpop.f32.mrb[0].mxu0
      %v4070 = vadd.f32 0.0, %v4069
      %v4071 = vpop.f32.mrb[0].mxu0
      %4072 = vmatprep.mubr.bf16.mxu0 0
      %4073 = vmatmul.mubr.bf16.gmra.mrb[0].mxu0 %v3939
      %v4074 = vpop.f32.mrb[0].mxu0
      %v4075 = vadd.f32 0.0, %v4074
      %v4076 = vpop.f32.mrb[0].mxu0
      %v4077 = vpop.f32.mrb[0].mxu0
      %v4078 = vadd.f32 0.0, %v4077
      %v4079 = vpop.f32.mrb[0].mxu0
      %4080 = vmatprep.mubr.bf16.mxu0 0
      %4081 = vmatmul.mubr.bf16.gmra.mrb[0].mxu0 %v3942
      %v4082 = vpop.f32.mrb[0].mxu0
      %v4083 = vadd.f32 0.0, %v4082
      %v4084 = vpop.f32.mrb[0].mxu0
      %v4085 = vpop.f32.mrb[0].mxu0
      %v4086 = vadd.f32 0.0, %v4085
      %v4087 = vpop.f32.mrb[0].mxu0
      %4088 = vmatprep.mubr.bf16.mxu0 0
      %4089 = vmatmul.mubr.bf16.gmra.mrb[0].mxu0 %v3945
      %v4090 = vpop.f32.mrb[0].mxu0
      %v4091 = vadd.f32 0.0, %v4090
      %v4092 = vpop.f32.mrb[0].mxu0
      %v4093 = vpop.f32.mrb[0].mxu0
      %v4094 = vadd.f32 0.0, %v4093
      %v4095 = vpop.f32.mrb[0].mxu0
      %4096 = vmatprep.mubr.bf16.mxu0 0
      %4097 = vmatmul.mubr.bf16.gmra.mrb[0].mxu0 %v3948
      %v4098 = vpop.f32.mrb[0].mxu0
      %v4099 = vadd.f32 0.0, %v4098
      %v4100 = vpop.f32.mrb[0].mxu0
      %v4101 = vpop.f32.mrb[0].mxu0
      %v4102 = vadd.f32 0.0, %v4101
      %v4103 = vpop.f32.mrb[0].mxu0
      %4104 = vmatprep.mubr.bf16.mxu0 0
      %4105 = vmatmul.mubr.bf16.gmra.mrb[0].mxu0 %v3951
      %v4106 = vpop.f32.mrb[0].mxu0
      %v4107 = vadd.f32 0.0, %v4106
      %v4108 = vpop.f32.mrb[0].mxu0
      %v4109 = vpop.f32.mrb[0].mxu0
      %v4110 = vadd.f32 0.0, %v4109
      %v4111 = vpop.f32.mrb[0].mxu0
      %4112 = vmatprep.mubr.bf16.mxu0 0
      %4113 = vmatmul.mubr.bf16.gmra.mrb[0].mxu0 %v3954
      %v4114 = vpop.f32.mrb[0].mxu0
      %v4115 = vadd.f32 0.0, %v4114
      %v4116 = vpop.f32.mrb[0].mxu0
      %v4117 = vpop.f32.mrb[0].mxu0
      %v4118 = vadd.f32 0.0, %v4117
      %v4119 = vpop.f32.mrb[0].mxu0
      %4120 = vdwg.mxu0
      %v4122 = vsel %vm568, %v2313, 0
      %v4125 = vsel %vm568, %v2314, 0
      %v4128 = vsel %vm568, %v2315, 0
      %v4131 = vsel %vm568, %v2316, 0
      %v4134 = vsel %vm568, %v2317, 0
      %v4137 = vsel %vm568, %v2318, 0
      %v4140 = vsel %vm568, %v2319, 0
      %v4143 = vsel %vm568, %v2320, 0
      %v4146 = vsel %vm568, %v2321, 0
      %v4149 = vsel %vm568, %v2322, 0
      %v4152 = vsel %vm568, %v2323, 0
      %v4155 = vsel %vm568, %v2324, 0
      %v4158 = vsel %vm568, %v2325, 0
      %v4161 = vsel %vm568, %v2326, 0
      %v4164 = vsel %vm568, %v2327, 0
      %v4167 = vsel %vm568, %v2328, 0
      %v4170 = vsel %vm3956, %v2329, 0
      %4172 = vmatprep.subr.bf16.mxu0 0
      %4173 = vmatpush1.bf16.msra.mxu0 %v4170
      %4174 = vmatprep.subr.bf16.mxu0 0
      %4175 = vmatpush1.bf16.msra.mxu0 0
      %4176 = vmatprep.subr.bf16.mxu0 0
      %4177 = vmatpush1.bf16.msra.mxu0 0
      %4178 = vmatprep.subr.bf16.mxu0 0
      %4179 = vmatpush1.bf16.msra.mxu0 0
      %4180 = vmatprep.subr.bf16.mxu0 0
      %4181 = vmatpush1.bf16.msra.mxu0 0
      %4182 = vmatprep.subr.bf16.mxu0 0
      %4183 = vmatpush1.bf16.msra.mxu0 0
      %4184 = vmatprep.subr.bf16.mxu0 0
      %4185 = vmatpush1.bf16.msra.mxu0 0
      %4186 = vmatprep.subr.bf16.mxu0 0
      %4187 = vmatpush1.bf16.msra.mxu0 0
      %4188 = vmatprep.subr.bf16.mxu0 0
      %4189 = vmatpush1.bf16.msra.mxu0 0
      %4190 = vmatprep.subr.bf16.mxu0 0
      %4191 = vmatpush1.bf16.msra.mxu0 0
      %4192 = vmatprep.subr.bf16.mxu0 0
      %4193 = vmatpush1.bf16.msra.mxu0 0
      %4194 = vmatprep.subr.bf16.mxu0 0
      %4195 = vmatpush1.bf16.msra.mxu0 0
      %4196 = vmatprep.subr.bf16.mxu0 0
      %4197 = vmatpush1.bf16.msra.mxu0 0
      %4198 = vmatprep.subr.bf16.mxu0 0
      %4199 = vmatpush1.bf16.msra.mxu0 0
      %4200 = vmatprep.subr.bf16.mxu0 0
      %4201 = vmatpush1.bf16.msra.mxu0 0
      %4202 = vmatprep.subr.bf16.mxu0 0
      %4203 = vmatpush1.bf16.msra.mxu0 0
      %4204 = vmatprep.mubr.bf16.mxu0 0
      %4205 = vmatmul.mubr.bf16.gmra.mrb[0].mxu0 %v4122
      %v4206 = vpop.f32.mrb[0].mxu0
      %v4207 = vadd.f32 %v3995, %v4206
      %v4208 = vpop.f32.mrb[0].mxu0
      %v4209 = vpop.f32.mrb[0].mxu0
      %v4210 = vadd.f32 %v3998, %v4209
      %v4211 = vpop.f32.mrb[0].mxu0
      %4212 = vmatprep.mubr.bf16.mxu0 0
      %4213 = vmatmul.mubr.bf16.gmra.mrb[0].mxu0 %v4125
      %v4214 = vpop.f32.mrb[0].mxu0
      %v4215 = vadd.f32 %v4003, %v4214
      %v4216 = vpop.f32.mrb[0].mxu0
      %v4217 = vpop.f32.mrb[0].mxu0
      %v4218 = vadd.f32 %v4006, %v4217
      %v4219 = vpop.f32.mrb[0].mxu0
      %4220 = vmatprep.mubr.bf16.mxu0 0
      %4221 = vmatmul.mubr.bf16.gmra.mrb[0].mxu0 %v4128
      %v4222 = vpop.f32.mrb[0].mxu0
      %v4223 = vadd.f32 %v4011, %v4222
      %v4224 = vpop.f32.mrb[0].mxu0
      %v4225 = vpop.f32.mrb[0].mxu0
      %v4226 = vadd.f32 %v4014, %v4225
      %v4227 = vpop.f32.mrb[0].mxu0
      %4228 = vmatprep.mubr.bf16.mxu0 0
      %4229 = vmatmul.mubr.bf16.gmra.mrb[0].mxu0 %v4131
      %v4230 = vpop.f32.mrb[0].mxu0
      %v4231 = vadd.f32 %v4019, %v4230
      %v4232 = vpop.f32.mrb[0].mxu0
      %v4233 = vpop.f32.mrb[0].mxu0
      %v4234 = vadd.f32 %v4022, %v4233
      %v4235 = vpop.f32.mrb[0].mxu0
      %4236 = vmatprep.mubr.bf16.mxu0 0
      %4237 = vmatmul.mubr.bf16.gmra.mrb[0].mxu0 %v4134
      %v4238 = vpop.f32.mrb[0].mxu0
      %v4239 = vadd.f32 %v4027, %v4238
      %v4240 = vpop.f32.mrb[0].mxu0
      %v4241 = vpop.f32.mrb[0].mxu0
      %v4242 = vadd.f32 %v4030, %v4241
      %v4243 = vpop.f32.mrb[0].mxu0
      %4244 = vmatprep.mubr.bf16.mxu0 0
      %4245 = vmatmul.mubr.bf16.gmra.mrb[0].mxu0 %v4137
      %v4246 = vpop.f32.mrb[0].mxu0
      %v4247 = vadd.f32 %v4035, %v4246
      %v4248 = vpop.f32.mrb[0].mxu0
      %v4249 = vpop.f32.mrb[0].mxu0
      %v4250 = vadd.f32 %v4038, %v4249
      %v4251 = vpop.f32.mrb[0].mxu0
      %4252 = vmatprep.mubr.bf16.mxu0 0
      %4253 = vmatmul.mubr.bf16.gmra.mrb[0].mxu0 %v4140
      %v4254 = vpop.f32.mrb[0].mxu0
      %v4255 = vadd.f32 %v4043, %v4254
      %v4256 = vpop.f32.mrb[0].mxu0
      %v4257 = vpop.f32.mrb[0].mxu0
      %v4258 = vadd.f32 %v4046, %v4257
      %v4259 = vpop.f32.mrb[0].mxu0
      %4260 = vmatprep.mubr.bf16.mxu0 0
      %4261 = vmatmul.mubr.bf16.gmra.mrb[0].mxu0 %v4143
      %v4262 = vpop.f32.mrb[0].mxu0
      %v4263 = vadd.f32 %v4051, %v4262
      %v4264 = vpop.f32.mrb[0].mxu0
      %v4265 = vpop.f32.mrb[0].mxu0
      %v4266 = vadd.f32 %v4054, %v4265
      %v4267 = vpop.f32.mrb[0].mxu0
      %4268 = vmatprep.mubr.bf16.mxu0 0
      %4269 = vmatmul.mubr.bf16.gmra.mrb[0].mxu0 %v4146
      %v4270 = vpop.f32.mrb[0].mxu0
      %v4271 = vadd.f32 %v4059, %v4270
      %v4272 = vpop.f32.mrb[0].mxu0
      %v4273 = vpop.f32.mrb[0].mxu0
      %v4274 = vadd.f32 %v4062, %v4273
      %v4275 = vpop.f32.mrb[0].mxu0
      %4276 = vmatprep.mubr.bf16.mxu0 0
      %4277 = vmatmul.mubr.bf16.gmra.mrb[0].mxu0 %v4149
      %v4278 = vpop.f32.mrb[0].mxu0
      %v4279 = vadd.f32 %v4067, %v4278
      %v4280 = vpop.f32.mrb[0].mxu0
      %v4281 = vpop.f32.mrb[0].mxu0
      %v4282 = vadd.f32 %v4070, %v4281
      %v4283 = vpop.f32.mrb[0].mxu0
      %4284 = vmatprep.mubr.bf16.mxu0 0
      %4285 = vmatmul.mubr.bf16.gmra.mrb[0].mxu0 %v4152
      %v4286 = vpop.f32.mrb[0].mxu0
      %v4287 = vadd.f32 %v4075, %v4286
      %v4288 = vpop.f32.mrb[0].mxu0
      %v4289 = vpop.f32.mrb[0].mxu0
      %v4290 = vadd.f32 %v4078, %v4289
      %v4291 = vpop.f32.mrb[0].mxu0
      %4292 = vmatprep.mubr.bf16.mxu0 0
      %4293 = vmatmul.mubr.bf16.gmra.mrb[0].mxu0 %v4155
      %v4294 = vpop.f32.mrb[0].mxu0
      %v4295 = vadd.f32 %v4083, %v4294
      %v4296 = vpop.f32.mrb[0].mxu0
      %v4297 = vpop.f32.mrb[0].mxu0
      %v4298 = vadd.f32 %v4086, %v4297
      %v4299 = vpop.f32.mrb[0].mxu0
      %4300 = vmatprep.mubr.bf16.mxu0 0
      %4301 = vmatmul.mubr.bf16.gmra.mrb[0].mxu0 %v4158
      %v4302 = vpop.f32.mrb[0].mxu0
      %v4303 = vadd.f32 %v4091, %v4302
      %v4304 = vpop.f32.mrb[0].mxu0
      %v4305 = vpop.f32.mrb[0].mxu0
      %v4306 = vadd.f32 %v4094, %v4305
      %v4307 = vpop.f32.mrb[0].mxu0
      %4308 = vmatprep.mubr.bf16.mxu0 0
      %4309 = vmatmul.mubr.bf16.gmra.mrb[0].mxu0 %v4161
      %v4310 = vpop.f32.mrb[0].mxu0
      %v4311 = vadd.f32 %v4099, %v4310
      %v4312 = vpop.f32.mrb[0].mxu0
      %v4313 = vpop.f32.mrb[0].mxu0
      %v4314 = vadd.f32 %v4102, %v4313
      %v4315 = vpop.f32.mrb[0].mxu0
      %4316 = vmatprep.mubr.bf16.mxu0 0
      %4317 = vmatmul.mubr.bf16.gmra.mrb[0].mxu0 %v4164
      %v4318 = vpop.f32.mrb[0].mxu0
      %v4319 = vadd.f32 %v4107, %v4318
      %v4320 = vpop.f32.mrb[0].mxu0
      %v4321 = vpop.f32.mrb[0].mxu0
      %v4322 = vadd.f32 %v4110, %v4321
      %v4323 = vpop.f32.mrb[0].mxu0
      %4324 = vmatprep.mubr.bf16.mxu0 0
      %4325 = vmatmul.mubr.bf16.gmra.mrb[0].mxu0 %v4167
      %v4326 = vpop.f32.mrb[0].mxu0
      %v4327 = vadd.f32 %v4115, %v4326
      %v4328 = vpop.f32.mrb[0].mxu0
      %v4329 = vpop.f32.mrb[0].mxu0
      %v4330 = vadd.f32 %v4118, %v4329
      %v4331 = vpop.f32.mrb[0].mxu0
      %4332 = vdwg.mxu0
      %s4333 = scalar_lea.vmem %s3, 256
      %v4334 = vld [vmem:[%s4333] sm:$0xff]
      %v4335 = vld [vmem:[%s4333 + $0x8] sm:$0xff]
      %v4336 = vld [vmem:[%s4333 + $0x10] sm:$0xff]
      %v4337 = vld [vmem:[%s4333 + $0x18] sm:$0xff]
      %v4338 = vld [vmem:[%s4333 + $0x20] sm:$0xff]
      %v4339 = vld [vmem:[%s4333 + $0x28] sm:$0xff]
      %v4340 = vld [vmem:[%s4333 + $0x30] sm:$0xff]
      %v4341 = vld [vmem:[%s4333 + $0x38] sm:$0xff]
      %v4342 = vld [vmem:[%s4333 + $0x40] sm:$0xff]
      %v4343 = vld [vmem:[%s4333 + $0x48] sm:$0xff]
      %v4344 = vld [vmem:[%s4333 + $0x50] sm:$0xff]
      %v4345 = vld [vmem:[%s4333 + $0x58] sm:$0xff]
      %v4346 = vld [vmem:[%s4333 + $0x60] sm:$0xff]
      %v4347 = vld [vmem:[%s4333 + $0x68] sm:$0xff]
      %v4348 = vld [vmem:[%s4333 + $0x70] sm:$0xff]
      %v4349 = vld [vmem:[%s4333 + $0x78] sm:$0xff]
      %4350 = vrot.lane.b32.xlu0 %v519, 112
      %v4351 = vpop.permute.xlu0 %4350
      %4352 = vrot.lane.b32.xlu0 %v520, 112
      %v4353 = vpop.permute.xlu0 %4352
      %4354 = vrot.lane.b32.xlu0 %v521, 112
      %v4355 = vpop.permute.xlu0 %4354
      %4356 = vrot.lane.b32.xlu0 %v522, 112
      %v4357 = vpop.permute.xlu0 %4356
      %4358 = vrot.lane.b32.xlu0 %v559, 112
      %v4359 = vpop.permute.xlu0 %4358
      %4360 = vrot.lane.b32.xlu0 %v560, 112
      %v4361 = vpop.permute.xlu0 %4360
      %4362 = vrot.lane.b32.xlu0 %v561, 112
      %v4363 = vpop.permute.xlu0 %4362
      %4364 = vrot.lane.b32.xlu0 %v562, 112
      %v4365 = vpop.permute.xlu0 %4364
      %4366 = vrot.lane.b32.xlu0 %v563, 112
      %v4367 = vpop.permute.xlu0 %4366
      %4368 = vrot.lane.b32.xlu0 %v564, 112
      %v4369 = vpop.permute.xlu0 %4368
      %4370 = vrot.lane.b32.xlu0 %v565, 112
      %v4371 = vpop.permute.xlu0 %4370
      %4372 = vrot.lane.b32.xlu0 %v566, 112
      %v4373 = vpop.permute.xlu0 %4372
      %4374 = vrot.lane.b32.xlu0 %v567, 112
      %v4375 = vpop.permute.xlu0 %4374
      %v4377 = vsel %vm568, %v4351, 0
      %v4380 = vsel %vm568, %v4353, 0
      %v4383 = vsel %vm568, %v4355, 0
      %v4386 = vsel %vm568, %v4357, 0
      %v4389 = vsel %vm568, %v4359, 0
      %v4392 = vsel %vm568, %v4361, 0
      %v4395 = vsel %vm568, %v4363, 0
      %v4398 = vsel %vm568, %v4365, 0
      %v4401 = vsel %vm568, %v4367, 0
      %v4404 = vsel %vm568, %v4369, 0
      %v4407 = vsel %vm568, %v4371, 0
      %v4410 = vsel %vm568, %v4373, 0
      %v4413 = vsel %vm568, %v4375, 0
      %4415 = vmatprep.subr.bf16.mxu0 0
      %4416 = vmatpush1.bf16.xpose.msra.mxu0 %v4389
      %4417 = vmatprep.subr.bf16.mxu0 0
      %4418 = vmatpush1.bf16.xpose.msra.mxu0 %v4392
      %4419 = vmatprep.subr.bf16.mxu0 0
      %4420 = vmatpush1.bf16.xpose.msra.mxu0 %v4395
      %4421 = vmatprep.subr.bf16.mxu0 0
      %4422 = vmatpush1.bf16.xpose.msra.mxu0 %v4398
      %4423 = vmatprep.subr.bf16.mxu0 0
      %4424 = vmatpush1.bf16.xpose.msra.mxu0 %v4401
      %4425 = vmatprep.subr.bf16.mxu0 0
      %4426 = vmatpush1.bf16.xpose.msra.mxu0 %v4404
      %4427 = vmatprep.subr.bf16.mxu0 0
      %4428 = vmatpush1.bf16.xpose.msra.mxu0 %v4407
      %4429 = vmatprep.subr.bf16.mxu0 0
      %4430 = vmatpush1.bf16.xpose.msra.mxu0 %v4410
      %4431 = vmatprep.subr.bf16.mxu0 0
      %4432 = vmatpush1.bf16.xpose.msra.mxu0 %v4413
      %4433 = vmatprep.subr.bf16.mxu0 0
      %4434 = vmatpush1.bf16.xpose.msra.mxu0 0
      %4435 = vmatprep.subr.bf16.mxu0 0
      %4436 = vmatpush1.bf16.xpose.msra.mxu0 0
      %4437 = vmatprep.subr.bf16.mxu0 0
      %4438 = vmatpush1.bf16.xpose.msra.mxu0 0
      %4439 = vmatprep.subr.bf16.mxu0 0
      %4440 = vmatpush1.bf16.xpose.msra.mxu0 0
      %4441 = vmatprep.subr.bf16.mxu0 0
      %4442 = vmatpush1.bf16.xpose.msra.mxu0 0
      %4443 = vmatprep.subr.bf16.mxu0 0
      %4444 = vmatpush1.bf16.xpose.msra.mxu0 0
      %4445 = vmatprep.subr.bf16.mxu0 0
      %4446 = vmatpush1.bf16.xpose.msra.mxu0 0
      %4447 = vmatprep.mubr.bf16.mxu0 0
      %4448 = vmatmul.mubr.bf16.gmra.mrb[0].mxu0 %v4377
      %v4449 = vpop.f32.mrb[0].mxu0
      %v4450 = vadd.f32 %v4334, %v4449
      %v4451 = vpop.f32.mrb[0].mxu0
      %v4452 = vadd.f32 %v4335, %v4451
      %v4453 = vpop.f32.mrb[0].mxu0
      %v4454 = vadd.f32 %v4336, %v4453
      %v4455 = vpop.f32.mrb[0].mxu0
      %v4456 = vadd.f32 %v4337, %v4455
      %4457 = vmatprep.mubr.bf16.mxu0 0
      %4458 = vmatmul.mubr.bf16.gmra.mrb[0].mxu0 %v4380
      %v4459 = vpop.f32.mrb[0].mxu0
      %v4460 = vadd.f32 %v4338, %v4459
      %v4461 = vpop.f32.mrb[0].mxu0
      %v4462 = vadd.f32 %v4339, %v4461
      %v4463 = vpop.f32.mrb[0].mxu0
      %v4464 = vadd.f32 %v4340, %v4463
      %v4465 = vpop.f32.mrb[0].mxu0
      %v4466 = vadd.f32 %v4341, %v4465
      %4467 = vmatprep.mubr.bf16.mxu0 0
      %4468 = vmatmul.mubr.bf16.gmra.mrb[0].mxu0 %v4383
      %v4469 = vpop.f32.mrb[0].mxu0
      %v4470 = vadd.f32 %v4342, %v4469
      %v4471 = vpop.f32.mrb[0].mxu0
      %v4472 = vadd.f32 %v4343, %v4471
      %v4473 = vpop.f32.mrb[0].mxu0
      %v4474 = vadd.f32 %v4344, %v4473
      %v4475 = vpop.f32.mrb[0].mxu0
      %v4476 = vadd.f32 %v4345, %v4475
      %4477 = vmatprep.mubr.bf16.mxu0 0
      %4478 = vmatmul.mubr.bf16.gmra.mrb[0].mxu0 %v4386
      %v4479 = vpop.f32.mrb[0].mxu0
      %v4480 = vadd.f32 %v4346, %v4479
      %v4481 = vpop.f32.mrb[0].mxu0
      %v4482 = vadd.f32 %v4347, %v4481
      %v4483 = vpop.f32.mrb[0].mxu0
      %v4484 = vadd.f32 %v4348, %v4483
      %v4485 = vpop.f32.mrb[0].mxu0
      %v4486 = vadd.f32 %v4349, %v4485
      %4487 = vdwg.mxu0
      %4488 = vrot.lane.b32.xlu0 %v697, 112
      %v4489 = vpop.permute.xlu0 %4488
      %4490 = vrot.lane.b32.xlu0 %v698, 112
      %v4491 = vpop.permute.xlu0 %4490
      %4492 = vrot.lane.b32.xlu0 %v699, 112
      %v4493 = vpop.permute.xlu0 %4492
      %4494 = vrot.lane.b32.xlu0 %v700, 112
      %v4495 = vpop.permute.xlu0 %4494
      %4496 = vrot.lane.b32.xlu0 %v737, 112
      %v4497 = vpop.permute.xlu0 %4496
      %4498 = vrot.lane.b32.xlu0 %v738, 112
      %v4499 = vpop.permute.xlu0 %4498
      %4500 = vrot.lane.b32.xlu0 %v739, 112
      %v4501 = vpop.permute.xlu0 %4500
      %4502 = vrot.lane.b32.xlu0 %v740, 112
      %v4503 = vpop.permute.xlu0 %4502
      %4504 = vrot.lane.b32.xlu0 %v741, 112
      %v4505 = vpop.permute.xlu0 %4504
      %4506 = vrot.lane.b32.xlu0 %v742, 112
      %v4507 = vpop.permute.xlu0 %4506
      %4508 = vrot.lane.b32.xlu0 %v743, 112
      %v4509 = vpop.permute.xlu0 %4508
      %4510 = vrot.lane.b32.xlu0 %v744, 112
      %v4511 = vpop.permute.xlu0 %4510
      %4512 = vrot.lane.b32.xlu0 %v745, 112
      %v4513 = vpop.permute.xlu0 %4512
      %v4515 = vsel %vm568, %v4489, 0
      %v4518 = vsel %vm568, %v4491, 0
      %v4521 = vsel %vm568, %v4493, 0
      %v4524 = vsel %vm568, %v4495, 0
      %v4527 = vsel %vm568, %v4497, 0
      %v4530 = vsel %vm568, %v4499, 0
      %v4533 = vsel %vm568, %v4501, 0
      %v4536 = vsel %vm568, %v4503, 0
      %v4539 = vsel %vm568, %v4505, 0
      %v4542 = vsel %vm568, %v4507, 0
      %v4545 = vsel %vm568, %v4509, 0
      %v4548 = vsel %vm568, %v4511, 0
      %v4551 = vsel %vm568, %v4513, 0
      %4553 = vmatprep.subr.bf16.mxu0 0
      %4554 = vmatpush1.bf16.xpose.msra.mxu0 %v4527
      %4555 = vmatprep.subr.bf16.mxu0 0
      %4556 = vmatpush1.bf16.xpose.msra.mxu0 %v4530
      %4557 = vmatprep.subr.bf16.mxu0 0
      %4558 = vmatpush1.bf16.xpose.msra.mxu0 %v4533
      %4559 = vmatprep.subr.bf16.mxu0 0
      %4560 = vmatpush1.bf16.xpose.msra.mxu0 %v4536
      %4561 = vmatprep.subr.bf16.mxu0 0
      %4562 = vmatpush1.bf16.xpose.msra.mxu0 %v4539
      %4563 = vmatprep.subr.bf16.mxu0 0
      %4564 = vmatpush1.bf16.xpose.msra.mxu0 %v4542
      %4565 = vmatprep.subr.bf16.mxu0 0
      %4566 = vmatpush1.bf16.xpose.msra.mxu0 %v4545
      %4567 = vmatprep.subr.bf16.mxu0 0
      %4568 = vmatpush1.bf16.xpose.msra.mxu0 %v4548
      %4569 = vmatprep.subr.bf16.mxu0 0
      %4570 = vmatpush1.bf16.xpose.msra.mxu0 %v4551
      %4571 = vmatprep.subr.bf16.mxu0 0
      %4572 = vmatpush1.bf16.xpose.msra.mxu0 0
      %4573 = vmatprep.subr.bf16.mxu0 0
      %4574 = vmatpush1.bf16.xpose.msra.mxu0 0
      %4575 = vmatprep.subr.bf16.mxu0 0
      %4576 = vmatpush1.bf16.xpose.msra.mxu0 0
      %4577 = vmatprep.subr.bf16.mxu0 0
      %4578 = vmatpush1.bf16.xpose.msra.mxu0 0
      %4579 = vmatprep.subr.bf16.mxu0 0
      %4580 = vmatpush1.bf16.xpose.msra.mxu0 0
      %4581 = vmatprep.subr.bf16.mxu0 0
      %4582 = vmatpush1.bf16.xpose.msra.mxu0 0
      %4583 = vmatprep.subr.bf16.mxu0 0
      %4584 = vmatpush1.bf16.xpose.msra.mxu0 0
      %4585 = vmatprep.mubr.bf16.mxu0 0
      %4586 = vmatmul.mubr.bf16.gmra.mrb[0].mxu0 %v4515
      %v4587 = vpop.f32.mrb[0].mxu0
      %v4588 = vadd.f32 %v4334, %v4587
      %v4589 = vpop.f32.mrb[0].mxu0
      %v4590 = vadd.f32 %v4335, %v4589
      %v4591 = vpop.f32.mrb[0].mxu0
      %v4592 = vadd.f32 %v4336, %v4591
      %v4593 = vpop.f32.mrb[0].mxu0
      %v4594 = vadd.f32 %v4337, %v4593
      %4595 = vmatprep.mubr.bf16.mxu0 0
      %4596 = vmatmul.mubr.bf16.gmra.mrb[0].mxu0 %v4518
      %v4597 = vpop.f32.mrb[0].mxu0
      %v4598 = vadd.f32 %v4338, %v4597
      %v4599 = vpop.f32.mrb[0].mxu0
      %v4600 = vadd.f32 %v4339, %v4599
      %v4601 = vpop.f32.mrb[0].mxu0
      %v4602 = vadd.f32 %v4340, %v4601
      %v4603 = vpop.f32.mrb[0].mxu0
      %v4604 = vadd.f32 %v4341, %v4603
      %4605 = vmatprep.mubr.bf16.mxu0 0
      %4606 = vmatmul.mubr.bf16.gmra.mrb[0].mxu0 %v4521
      %v4607 = vpop.f32.mrb[0].mxu0
      %v4608 = vadd.f32 %v4342, %v4607
      %v4609 = vpop.f32.mrb[0].mxu0
      %v4610 = vadd.f32 %v4343, %v4609
      %v4611 = vpop.f32.mrb[0].mxu0
      %v4612 = vadd.f32 %v4344, %v4611
      %v4613 = vpop.f32.mrb[0].mxu0
      %v4614 = vadd.f32 %v4345, %v4613
      %4615 = vmatprep.mubr.bf16.mxu0 0
      %4616 = vmatmul.mubr.bf16.gmra.mrb[0].mxu0 %v4524
      %v4617 = vpop.f32.mrb[0].mxu0
      %v4618 = vadd.f32 %v4346, %v4617
      %v4619 = vpop.f32.mrb[0].mxu0
      %v4620 = vadd.f32 %v4347, %v4619
      %v4621 = vpop.f32.mrb[0].mxu0
      %v4622 = vadd.f32 %v4348, %v4621
      %v4623 = vpop.f32.mrb[0].mxu0
      %v4624 = vadd.f32 %v4349, %v4623
      %4625 = vdwg.mxu0
      %4626 = vrot.lane.b32.xlu0 %v874, 112
      %v4627 = vpop.permute.xlu0 %4626
      %4628 = vrot.lane.b32.xlu0 %v875, 112
      %v4629 = vpop.permute.xlu0 %4628
      %4630 = vrot.lane.b32.xlu0 %v876, 112
      %v4631 = vpop.permute.xlu0 %4630
      %4632 = vrot.lane.b32.xlu0 %v877, 112
      %v4633 = vpop.permute.xlu0 %4632
      %4634 = vrot.lane.b32.xlu0 %v914, 112
      %v4635 = vpop.permute.xlu0 %4634
      %4636 = vrot.lane.b32.xlu0 %v915, 112
      %v4637 = vpop.permute.xlu0 %4636
      %4638 = vrot.lane.b32.xlu0 %v916, 112
      %v4639 = vpop.permute.xlu0 %4638
      %4640 = vrot.lane.b32.xlu0 %v917, 112
      %v4641 = vpop.permute.xlu0 %4640
      %4642 = vrot.lane.b32.xlu0 %v918, 112
      %v4643 = vpop.permute.xlu0 %4642
      %4644 = vrot.lane.b32.xlu0 %v919, 112
      %v4645 = vpop.permute.xlu0 %4644
      %4646 = vrot.lane.b32.xlu0 %v920, 112
      %v4647 = vpop.permute.xlu0 %4646
      %4648 = vrot.lane.b32.xlu0 %v921, 112
      %v4649 = vpop.permute.xlu0 %4648
      %4650 = vrot.lane.b32.xlu0 %v922, 112
      %v4651 = vpop.permute.xlu0 %4650
      %v4653 = vsel %vm568, %v4627, 0
      %v4656 = vsel %vm568, %v4629, 0
      %v4659 = vsel %vm568, %v4631, 0
      %v4662 = vsel %vm568, %v4633, 0
      %v4665 = vsel %vm568, %v4635, 0
      %v4668 = vsel %vm568, %v4637, 0
      %v4671 = vsel %vm568, %v4639, 0
      %v4674 = vsel %vm568, %v4641, 0
      %v4677 = vsel %vm568, %v4643, 0
      %v4680 = vsel %vm568, %v4645, 0
      %v4683 = vsel %vm568, %v4647, 0
      %v4686 = vsel %vm568, %v4649, 0
      %v4689 = vsel %vm568, %v4651, 0
      %4691 = vmatprep.subr.bf16.mxu0 0
      %4692 = vmatpush1.bf16.xpose.msra.mxu0 %v4665
      %4693 = vmatprep.subr.bf16.mxu0 0
      %4694 = vmatpush1.bf16.xpose.msra.mxu0 %v4668
      %4695 = vmatprep.subr.bf16.mxu0 0
      %4696 = vmatpush1.bf16.xpose.msra.mxu0 %v4671
      %4697 = vmatprep.subr.bf16.mxu0 0
      %4698 = vmatpush1.bf16.xpose.msra.mxu0 %v4674
      %4699 = vmatprep.subr.bf16.mxu0 0
      %4700 = vmatpush1.bf16.xpose.msra.mxu0 %v4677
      %4701 = vmatprep.subr.bf16.mxu0 0
      %4702 = vmatpush1.bf16.xpose.msra.mxu0 %v4680
      %4703 = vmatprep.subr.bf16.mxu0 0
      %4704 = vmatpush1.bf16.xpose.msra.mxu0 %v4683
      %4705 = vmatprep.subr.bf16.mxu0 0
      %4706 = vmatpush1.bf16.xpose.msra.mxu0 %v4686
      %4707 = vmatprep.subr.bf16.mxu0 0
      %4708 = vmatpush1.bf16.xpose.msra.mxu0 %v4689
      %4709 = vmatprep.subr.bf16.mxu0 0
      %4710 = vmatpush1.bf16.xpose.msra.mxu0 0
      %4711 = vmatprep.subr.bf16.mxu0 0
      %4712 = vmatpush1.bf16.xpose.msra.mxu0 0
      %4713 = vmatprep.subr.bf16.mxu0 0
      %4714 = vmatpush1.bf16.xpose.msra.mxu0 0
      %4715 = vmatprep.subr.bf16.mxu0 0
      %4716 = vmatpush1.bf16.xpose.msra.mxu0 0
      %4717 = vmatprep.subr.bf16.mxu0 0
      %4718 = vmatpush1.bf16.xpose.msra.mxu0 0
      %4719 = vmatprep.subr.bf16.mxu0 0
      %4720 = vmatpush1.bf16.xpose.msra.mxu0 0
      %4721 = vmatprep.subr.bf16.mxu0 0
      %4722 = vmatpush1.bf16.xpose.msra.mxu0 0
      %4723 = vmatprep.mubr.bf16.mxu0 0
      %4724 = vmatmul.mubr.bf16.gmra.mrb[0].mxu0 %v4653
      %v4725 = vpop.f32.mrb[0].mxu0
      %v4726 = vadd.f32 %v4334, %v4725
      %v4727 = vpop.f32.mrb[0].mxu0
      %v4728 = vadd.f32 %v4335, %v4727
      %v4729 = vpop.f32.mrb[0].mxu0
      %v4730 = vadd.f32 %v4336, %v4729
      %v4731 = vpop.f32.mrb[0].mxu0
      %v4732 = vadd.f32 %v4337, %v4731
      %4733 = vmatprep.mubr.bf16.mxu0 0
      %4734 = vmatmul.mubr.bf16.gmra.mrb[0].mxu0 %v4656
      %v4735 = vpop.f32.mrb[0].mxu0
      %v4736 = vadd.f32 %v4338, %v4735
      %v4737 = vpop.f32.mrb[0].mxu0
      %v4738 = vadd.f32 %v4339, %v4737
      %v4739 = vpop.f32.mrb[0].mxu0
      %v4740 = vadd.f32 %v4340, %v4739
      %v4741 = vpop.f32.mrb[0].mxu0
      %v4742 = vadd.f32 %v4341, %v4741
      %4743 = vmatprep.mubr.bf16.mxu0 0
      %4744 = vmatmul.mubr.bf16.gmra.mrb[0].mxu0 %v4659
      %v4745 = vpop.f32.mrb[0].mxu0
      %v4746 = vadd.f32 %v4342, %v4745
      %v4747 = vpop.f32.mrb[0].mxu0
      %v4748 = vadd.f32 %v4343, %v4747
      %v4749 = vpop.f32.mrb[0].mxu0
      %v4750 = vadd.f32 %v4344, %v4749
      %v4751 = vpop.f32.mrb[0].mxu0
      %v4752 = vadd.f32 %v4345, %v4751
      %4753 = vmatprep.mubr.bf16.mxu0 0
      %4754 = vmatmul.mubr.bf16.gmra.mrb[0].mxu0 %v4662
      %v4755 = vpop.f32.mrb[0].mxu0
      %v4756 = vadd.f32 %v4346, %v4755
      %v4757 = vpop.f32.mrb[0].mxu0
      %v4758 = vadd.f32 %v4347, %v4757
      %v4759 = vpop.f32.mrb[0].mxu0
      %v4760 = vadd.f32 %v4348, %v4759
      %v4761 = vpop.f32.mrb[0].mxu0
      %v4762 = vadd.f32 %v4349, %v4761
      %4763 = vdwg.mxu0
      %4764 = vrot.lane.b32.xlu0 %v1051, 112
      %v4765 = vpop.permute.xlu0 %4764
      %4766 = vrot.lane.b32.xlu0 %v1052, 112
      %v4767 = vpop.permute.xlu0 %4766
      %4768 = vrot.lane.b32.xlu0 %v1053, 112
      %v4769 = vpop.permute.xlu0 %4768
      %4770 = vrot.lane.b32.xlu0 %v1054, 112
      %v4771 = vpop.permute.xlu0 %4770
      %4772 = vrot.lane.b32.xlu0 %v1091, 112
      %v4773 = vpop.permute.xlu0 %4772
      %4774 = vrot.lane.b32.xlu0 %v1092, 112
      %v4775 = vpop.permute.xlu0 %4774
      %4776 = vrot.lane.b32.xlu0 %v1093, 112
      %v4777 = vpop.permute.xlu0 %4776
      %4778 = vrot.lane.b32.xlu0 %v1094, 112
      %v4779 = vpop.permute.xlu0 %4778
      %4780 = vrot.lane.b32.xlu0 %v1095, 112
      %v4781 = vpop.permute.xlu0 %4780
      %4782 = vrot.lane.b32.xlu0 %v1096, 112
      %v4783 = vpop.permute.xlu0 %4782
      %4784 = vrot.lane.b32.xlu0 %v1097, 112
      %v4785 = vpop.permute.xlu0 %4784
      %4786 = vrot.lane.b32.xlu0 %v1098, 112
      %v4787 = vpop.permute.xlu0 %4786
      %4788 = vrot.lane.b32.xlu0 %v1099, 112
      %v4789 = vpop.permute.xlu0 %4788
      %v4791 = vsel %vm568, %v4765, 0
      %v4794 = vsel %vm568, %v4767, 0
      %v4797 = vsel %vm568, %v4769, 0
      %v4800 = vsel %vm568, %v4771, 0
      %v4803 = vsel %vm568, %v4773, 0
      %v4806 = vsel %vm568, %v4775, 0
      %v4809 = vsel %vm568, %v4777, 0
      %v4812 = vsel %vm568, %v4779, 0
      %v4815 = vsel %vm568, %v4781, 0
      %v4818 = vsel %vm568, %v4783, 0
      %v4821 = vsel %vm568, %v4785, 0
      %v4824 = vsel %vm568, %v4787, 0
      %v4827 = vsel %vm568, %v4789, 0
      %4829 = vmatprep.subr.bf16.mxu0 0
      %4830 = vmatpush1.bf16.xpose.msra.mxu0 %v4803
      %4831 = vmatprep.subr.bf16.mxu0 0
      %4832 = vmatpush1.bf16.xpose.msra.mxu0 %v4806
      %4833 = vmatprep.subr.bf16.mxu0 0
      %4834 = vmatpush1.bf16.xpose.msra.mxu0 %v4809
      %4835 = vmatprep.subr.bf16.mxu0 0
      %4836 = vmatpush1.bf16.xpose.msra.mxu0 %v4812
      %4837 = vmatprep.subr.bf16.mxu0 0
      %4838 = vmatpush1.bf16.xpose.msra.mxu0 %v4815
      %4839 = vmatprep.subr.bf16.mxu0 0
      %4840 = vmatpush1.bf16.xpose.msra.mxu0 %v4818
      %4841 = vmatprep.subr.bf16.mxu0 0
      %4842 = vmatpush1.bf16.xpose.msra.mxu0 %v4821
      %4843 = vmatprep.subr.bf16.mxu0 0
      %4844 = vmatpush1.bf16.xpose.msra.mxu0 %v4824
      %4845 = vmatprep.subr.bf16.mxu0 0
      %4846 = vmatpush1.bf16.xpose.msra.mxu0 %v4827
      %4847 = vmatprep.subr.bf16.mxu0 0
      %4848 = vmatpush1.bf16.xpose.msra.mxu0 0
      %4849 = vmatprep.subr.bf16.mxu0 0
      %4850 = vmatpush1.bf16.xpose.msra.mxu0 0
      %4851 = vmatprep.subr.bf16.mxu0 0
      %4852 = vmatpush1.bf16.xpose.msra.mxu0 0
      %4853 = vmatprep.subr.bf16.mxu0 0
      %4854 = vmatpush1.bf16.xpose.msra.mxu0 0
      %4855 = vmatprep.subr.bf16.mxu0 0
      %4856 = vmatpush1.bf16.xpose.msra.mxu0 0
      %4857 = vmatprep.subr.bf16.mxu0 0
      %4858 = vmatpush1.bf16.xpose.msra.mxu0 0
      %4859 = vmatprep.subr.bf16.mxu0 0
      %4860 = vmatpush1.bf16.xpose.msra.mxu0 0
      %4861 = vmatprep.mubr.bf16.mxu0 0
      %4862 = vmatmul.mubr.bf16.gmra.mrb[0].mxu0 %v4791
      %v4863 = vpop.f32.mrb[0].mxu0
      %v4864 = vadd.f32 %v4334, %v4863
      %v4865 = vpop.f32.mrb[0].mxu0
      %v4866 = vadd.f32 %v4335, %v4865
      %v4867 = vpop.f32.mrb[0].mxu0
      %v4868 = vadd.f32 %v4336, %v4867
      %v4869 = vpop.f32.mrb[0].mxu0
      %v4870 = vadd.f32 %v4337, %v4869
      %4871 = vmatprep.mubr.bf16.mxu0 0
      %4872 = vmatmul.mubr.bf16.gmra.mrb[0].mxu0 %v4794
      %v4873 = vpop.f32.mrb[0].mxu0
      %v4874 = vadd.f32 %v4338, %v4873
      %v4875 = vpop.f32.mrb[0].mxu0
      %v4876 = vadd.f32 %v4339, %v4875
      %v4877 = vpop.f32.mrb[0].mxu0
      %v4878 = vadd.f32 %v4340, %v4877
      %v4879 = vpop.f32.mrb[0].mxu0
      %v4880 = vadd.f32 %v4341, %v4879
      %4881 = vmatprep.mubr.bf16.mxu0 0
      %4882 = vmatmul.mubr.bf16.gmra.mrb[0].mxu0 %v4797
      %v4883 = vpop.f32.mrb[0].mxu0
      %v4884 = vadd.f32 %v4342, %v4883
      %v4885 = vpop.f32.mrb[0].mxu0
      %v4886 = vadd.f32 %v4343, %v4885
      %v4887 = vpop.f32.mrb[0].mxu0
      %v4888 = vadd.f32 %v4344, %v4887
      %v4889 = vpop.f32.mrb[0].mxu0
      %v4890 = vadd.f32 %v4345, %v4889
      %4891 = vmatprep.mubr.bf16.mxu0 0
      %4892 = vmatmul.mubr.bf16.gmra.mrb[0].mxu0 %v4800
      %v4893 = vpop.f32.mrb[0].mxu0
      %v4894 = vadd.f32 %v4346, %v4893
      %v4895 = vpop.f32.mrb[0].mxu0
      %v4896 = vadd.f32 %v4347, %v4895
      %v4897 = vpop.f32.mrb[0].mxu0
      %v4898 = vadd.f32 %v4348, %v4897
      %v4899 = vpop.f32.mrb[0].mxu0
      %v4900 = vadd.f32 %v4349, %v4899
      %4901 = vdwg.mxu0
      %v4902 = vsel %vm1212, %v4452, -inf
      %v4903 = vmax.f32 %v4450, %v4902
      %4904 = vmax.xlane.f32.xlu0 %v4903
      %v4905 = vpop.xlane.xlu0 %4904
      %v4906 = vsel %vm1212, %v4456, -inf
      %v4907 = vmax.f32 %v4454, %v4906
      %4908 = vmax.xlane.f32.xlu0 %v4907
      %v4909 = vpop.xlane.xlu0 %4908
      %v4910 = vsel %vm1212, %v4462, -inf
      %v4911 = vmax.f32 %v4460, %v4910
      %4912 = vmax.xlane.f32.xlu0 %v4911
      %v4913 = vpop.xlane.xlu0 %4912
      %v4914 = vsel %vm1212, %v4466, -inf
      %v4915 = vmax.f32 %v4464, %v4914
      %4916 = vmax.xlane.f32.xlu0 %v4915
      %v4917 = vpop.xlane.xlu0 %4916
      %v4918 = vsel %vm1212, %v4472, -inf
      %v4919 = vmax.f32 %v4470, %v4918
      %4920 = vmax.xlane.f32.xlu0 %v4919
      %v4921 = vpop.xlane.xlu0 %4920
      %v4922 = vsel %vm1212, %v4476, -inf
      %v4923 = vmax.f32 %v4474, %v4922
      %4924 = vmax.xlane.f32.xlu0 %v4923
      %v4925 = vpop.xlane.xlu0 %4924
      %v4926 = vsel %vm1212, %v4482, -inf
      %v4927 = vmax.f32 %v4480, %v4926
      %4928 = vmax.xlane.f32.xlu0 %v4927
      %v4929 = vpop.xlane.xlu0 %4928
      %v4930 = vsel %vm1212, %v4486, -inf
      %v4931 = vmax.f32 %v4484, %v4930
      %4932 = vmax.xlane.f32.xlu0 %v4931
      %v4933 = vpop.xlane.xlu0 %4932
      %v4934 = vsel %vm1212, %v4590, -inf
      %v4935 = vmax.f32 %v4588, %v4934
      %4936 = vmax.xlane.f32.xlu0 %v4935
      %v4937 = vpop.xlane.xlu0 %4936
      %v4938 = vsel %vm1212, %v4594, -inf
      %v4939 = vmax.f32 %v4592, %v4938
      %4940 = vmax.xlane.f32.xlu0 %v4939
      %v4941 = vpop.xlane.xlu0 %4940
      %v4942 = vsel %vm1212, %v4600, -inf
      %v4943 = vmax.f32 %v4598, %v4942
      %4944 = vmax.xlane.f32.xlu0 %v4943
      %v4945 = vpop.xlane.xlu0 %4944
      %v4946 = vsel %vm1212, %v4604, -inf
      %v4947 = vmax.f32 %v4602, %v4946
      %4948 = vmax.xlane.f32.xlu0 %v4947
      %v4949 = vpop.xlane.xlu0 %4948
      %v4950 = vsel %vm1212, %v4610, -inf
      %v4951 = vmax.f32 %v4608, %v4950
      %4952 = vmax.xlane.f32.xlu0 %v4951
      %v4953 = vpop.xlane.xlu0 %4952
      %v4954 = vsel %vm1212, %v4614, -inf
      %v4955 = vmax.f32 %v4612, %v4954
      %4956 = vmax.xlane.f32.xlu0 %v4955
      %v4957 = vpop.xlane.xlu0 %4956
      %v4958 = vsel %vm1212, %v4620, -inf
      %v4959 = vmax.f32 %v4618, %v4958
      %4960 = vmax.xlane.f32.xlu0 %v4959
      %v4961 = vpop.xlane.xlu0 %4960
      %v4962 = vsel %vm1212, %v4624, -inf
      %v4963 = vmax.f32 %v4622, %v4962
      %4964 = vmax.xlane.f32.xlu0 %v4963
      %v4965 = vpop.xlane.xlu0 %4964
      %v4966 = vsel %vm1212, %v4728, -inf
      %v4967 = vmax.f32 %v4726, %v4966
      %4968 = vmax.xlane.f32.xlu0 %v4967
      %v4969 = vpop.xlane.xlu0 %4968
      %v4970 = vsel %vm1212, %v4732, -inf
      %v4971 = vmax.f32 %v4730, %v4970
      %4972 = vmax.xlane.f32.xlu0 %v4971
      %v4973 = vpop.xlane.xlu0 %4972
      %v4974 = vsel %vm1212, %v4738, -inf
      %v4975 = vmax.f32 %v4736, %v4974
      %4976 = vmax.xlane.f32.xlu0 %v4975
      %v4977 = vpop.xlane.xlu0 %4976
      %v4978 = vsel %vm1212, %v4742, -inf
      %v4979 = vmax.f32 %v4740, %v4978
      %4980 = vmax.xlane.f32.xlu0 %v4979
      %v4981 = vpop.xlane.xlu0 %4980
      %v4982 = vsel %vm1212, %v4748, -inf
      %v4983 = vmax.f32 %v4746, %v4982
      %4984 = vmax.xlane.f32.xlu0 %v4983
      %v4985 = vpop.xlane.xlu0 %4984
      %v4986 = vsel %vm1212, %v4752, -inf
      %v4987 = vmax.f32 %v4750, %v4986
      %4988 = vmax.xlane.f32.xlu0 %v4987
      %v4989 = vpop.xlane.xlu0 %4988
      %v4990 = vsel %vm1212, %v4758, -inf
      %v4991 = vmax.f32 %v4756, %v4990
      %4992 = vmax.xlane.f32.xlu0 %v4991
      %v4993 = vpop.xlane.xlu0 %4992
      %v4994 = vsel %vm1212, %v4762, -inf
      %v4995 = vmax.f32 %v4760, %v4994
      %4996 = vmax.xlane.f32.xlu0 %v4995
      %v4997 = vpop.xlane.xlu0 %4996
      %v4998 = vsel %vm1212, %v4866, -inf
      %v4999 = vmax.f32 %v4864, %v4998
      %5000 = vmax.xlane.f32.xlu0 %v4999
      %v5001 = vpop.xlane.xlu0 %5000
      %v5002 = vsel %vm1212, %v4870, -inf
      %v5003 = vmax.f32 %v4868, %v5002
      %5004 = vmax.xlane.f32.xlu0 %v5003
      %v5005 = vpop.xlane.xlu0 %5004
      %v5006 = vsel %vm1212, %v4876, -inf
      %v5007 = vmax.f32 %v4874, %v5006
      %5008 = vmax.xlane.f32.xlu0 %v5007
      %v5009 = vpop.xlane.xlu0 %5008
      %v5010 = vsel %vm1212, %v4880, -inf
      %v5011 = vmax.f32 %v4878, %v5010
      %5012 = vmax.xlane.f32.xlu0 %v5011
      %v5013 = vpop.xlane.xlu0 %5012
      %v5014 = vsel %vm1212, %v4886, -inf
      %v5015 = vmax.f32 %v4884, %v5014
      %5016 = vmax.xlane.f32.xlu0 %v5015
      %v5017 = vpop.xlane.xlu0 %5016
      %v5018 = vsel %vm1212, %v4890, -inf
      %v5019 = vmax.f32 %v4888, %v5018
      %5020 = vmax.xlane.f32.xlu0 %v5019
      %v5021 = vpop.xlane.xlu0 %5020
      %v5022 = vsel %vm1212, %v4896, -inf
      %v5023 = vmax.f32 %v4894, %v5022
      %5024 = vmax.xlane.f32.xlu0 %v5023
      %v5025 = vpop.xlane.xlu0 %5024
      %v5026 = vsel %vm1212, %v4900, -inf
      %v5027 = vmax.f32 %v4898, %v5026
      %5028 = vmax.xlane.f32.xlu0 %v5027
      %v5029 = vpop.xlane.xlu0 %5028
      %v5030 = vsub.f32 %v4450, %v4905
      %v5031 = vsub.f32 %v4452, %v4905
      %v5032 = vsub.f32 %v4454, %v4909
      %v5033 = vsub.f32 %v4456, %v4909
      %v5034 = vsub.f32 %v4460, %v4913
      %v5035 = vsub.f32 %v4462, %v4913
      %v5036 = vsub.f32 %v4464, %v4917
      %v5037 = vsub.f32 %v4466, %v4917
      %v5038 = vsub.f32 %v4470, %v4921
      %v5039 = vsub.f32 %v4472, %v4921
      %v5040 = vsub.f32 %v4474, %v4925
      %v5041 = vsub.f32 %v4476, %v4925
      %v5042 = vsub.f32 %v4480, %v4929
      %v5043 = vsub.f32 %v4482, %v4929
      %v5044 = vsub.f32 %v4484, %v4933
      %v5045 = vsub.f32 %v4486, %v4933
      %v5046 = vsub.f32 %v4588, %v4937
      %v5047 = vsub.f32 %v4590, %v4937
      %v5048 = vsub.f32 %v4592, %v4941
      %v5049 = vsub.f32 %v4594, %v4941
      %v5050 = vsub.f32 %v4598, %v4945
      %v5051 = vsub.f32 %v4600, %v4945
      %v5052 = vsub.f32 %v4602, %v4949
      %v5053 = vsub.f32 %v4604, %v4949
      %v5054 = vsub.f32 %v4608, %v4953
      %v5055 = vsub.f32 %v4610, %v4953
      %v5056 = vsub.f32 %v4612, %v4957
      %v5057 = vsub.f32 %v4614, %v4957
      %v5058 = vsub.f32 %v4618, %v4961
      %v5059 = vsub.f32 %v4620, %v4961
      %v5060 = vsub.f32 %v4622, %v4965
      %v5061 = vsub.f32 %v4624, %v4965
      %v5062 = vsub.f32 %v4726, %v4969
      %v5063 = vsub.f32 %v4728, %v4969
      %v5064 = vsub.f32 %v4730, %v4973
      %v5065 = vsub.f32 %v4732, %v4973
      %v5066 = vsub.f32 %v4736, %v4977
      %v5067 = vsub.f32 %v4738, %v4977
      %v5068 = vsub.f32 %v4740, %v4981
      %v5069 = vsub.f32 %v4742, %v4981
      %v5070 = vsub.f32 %v4746, %v4985
      %v5071 = vsub.f32 %v4748, %v4985
      %v5072 = vsub.f32 %v4750, %v4989
      %v5073 = vsub.f32 %v4752, %v4989
      %v5074 = vsub.f32 %v4756, %v4993
      %v5075 = vsub.f32 %v4758, %v4993
      %v5076 = vsub.f32 %v4760, %v4997
      %v5077 = vsub.f32 %v4762, %v4997
      %v5078 = vsub.f32 %v4864, %v5001
      %v5079 = vsub.f32 %v4866, %v5001
      %v5080 = vsub.f32 %v4868, %v5005
      %v5081 = vsub.f32 %v4870, %v5005
      %v5082 = vsub.f32 %v4874, %v5009
      %v5083 = vsub.f32 %v4876, %v5009
      %v5084 = vsub.f32 %v4878, %v5013
      %v5085 = vsub.f32 %v4880, %v5013
      %v5086 = vsub.f32 %v4884, %v5017
      %v5087 = vsub.f32 %v4886, %v5017
      %v5088 = vsub.f32 %v4888, %v5021
      %v5089 = vsub.f32 %v4890, %v5021
      %v5090 = vsub.f32 %v4894, %v5025
      %v5091 = vsub.f32 %v4896, %v5025
      %v5092 = vsub.f32 %v4898, %v5029
      %v5093 = vsub.f32 %v4900, %v5029
      %v5094 = vmul.f32 %v5030, 1.442695
      %v5095 = vpow.pop %v5094
      %v5096 = vmul.f32 %v5031, 1.442695
      %v5097 = vpow.pop %v5096
      %v5098 = vmul.f32 %v5032, 1.442695
      %v5099 = vpow.pop %v5098
      %v5100 = vmul.f32 %v5033, 1.442695
      %v5101 = vpow.pop %v5100
      %v5102 = vmul.f32 %v5034, 1.442695
      %v5103 = vpow.pop %v5102
      %v5104 = vmul.f32 %v5035, 1.442695
      %v5105 = vpow.pop %v5104
      %v5106 = vmul.f32 %v5036, 1.442695
      %v5107 = vpow.pop %v5106
      %v5108 = vmul.f32 %v5037, 1.442695
      %v5109 = vpow.pop %v5108
      %v5110 = vmul.f32 %v5038, 1.442695
      %v5111 = vpow.pop %v5110
      %v5112 = vmul.f32 %v5039, 1.442695
      %v5113 = vpow.pop %v5112
      %v5114 = vmul.f32 %v5040, 1.442695
      %v5115 = vpow.pop %v5114
      %v5116 = vmul.f32 %v5041, 1.442695
      %v5117 = vpow.pop %v5116
      %v5118 = vmul.f32 %v5042, 1.442695
      %v5119 = vpow.pop %v5118
      %v5120 = vmul.f32 %v5043, 1.442695
      %v5121 = vpow.pop %v5120
      %v5122 = vmul.f32 %v5044, 1.442695
      %v5123 = vpow.pop %v5122
      %v5124 = vmul.f32 %v5045, 1.442695
      %v5125 = vpow.pop %v5124
      %v5126 = vmul.f32 %v5046, 1.442695
      %v5127 = vpow.pop %v5126
      %v5128 = vmul.f32 %v5047, 1.442695
      %v5129 = vpow.pop %v5128
      %v5130 = vmul.f32 %v5048, 1.442695
      %v5131 = vpow.pop %v5130
      %v5132 = vmul.f32 %v5049, 1.442695
      %v5133 = vpow.pop %v5132
      %v5134 = vmul.f32 %v5050, 1.442695
      %v5135 = vpow.pop %v5134
      %v5136 = vmul.f32 %v5051, 1.442695
      %v5137 = vpow.pop %v5136
      %v5138 = vmul.f32 %v5052, 1.442695
      %v5139 = vpow.pop %v5138
      %v5140 = vmul.f32 %v5053, 1.442695
      %v5141 = vpow.pop %v5140
      %v5142 = vmul.f32 %v5054, 1.442695
      %v5143 = vpow.pop %v5142
      %v5144 = vmul.f32 %v5055, 1.442695
      %v5145 = vpow.pop %v5144
      %v5146 = vmul.f32 %v5056, 1.442695
      %v5147 = vpow.pop %v5146
      %v5148 = vmul.f32 %v5057, 1.442695
      %v5149 = vpow.pop %v5148
      %v5150 = vmul.f32 %v5058, 1.442695
      %v5151 = vpow.pop %v5150
      %v5152 = vmul.f32 %v5059, 1.442695
      %v5153 = vpow.pop %v5152
      %v5154 = vmul.f32 %v5060, 1.442695
      %v5155 = vpow.pop %v5154
      %v5156 = vmul.f32 %v5061, 1.442695
      %v5157 = vpow.pop %v5156
      %v5158 = vmul.f32 %v5062, 1.442695
      %v5159 = vpow.pop %v5158
      %v5160 = vmul.f32 %v5063, 1.442695
      %v5161 = vpow.pop %v5160
      %v5162 = vmul.f32 %v5064, 1.442695
      %v5163 = vpow.pop %v5162
      %v5164 = vmul.f32 %v5065, 1.442695
      %v5165 = vpow.pop %v5164
      %v5166 = vmul.f32 %v5066, 1.442695
      %v5167 = vpow.pop %v5166
      %v5168 = vmul.f32 %v5067, 1.442695
      %v5169 = vpow.pop %v5168
      %v5170 = vmul.f32 %v5068, 1.442695
      %v5171 = vpow.pop %v5170
      %v5172 = vmul.f32 %v5069, 1.442695
      %v5173 = vpow.pop %v5172
      %v5174 = vmul.f32 %v5070, 1.442695
      %v5175 = vpow.pop %v5174
      %v5176 = vmul.f32 %v5071, 1.442695
      %v5177 = vpow.pop %v5176
      %v5178 = vmul.f32 %v5072, 1.442695
      %v5179 = vpow.pop %v5178
      %v5180 = vmul.f32 %v5073, 1.442695
      %v5181 = vpow.pop %v5180
      %v5182 = vmul.f32 %v5074, 1.442695
      %v5183 = vpow.pop %v5182
      %v5184 = vmul.f32 %v5075, 1.442695
      %v5185 = vpow.pop %v5184
      %v5186 = vmul.f32 %v5076, 1.442695
      %v5187 = vpow.pop %v5186
      %v5188 = vmul.f32 %v5077, 1.442695
      %v5189 = vpow.pop %v5188
      %v5190 = vmul.f32 %v5078, 1.442695
      %v5191 = vpow.pop %v5190
      %v5192 = vmul.f32 %v5079, 1.442695
      %v5193 = vpow.pop %v5192
      %v5194 = vmul.f32 %v5080, 1.442695
      %v5195 = vpow.pop %v5194
      %v5196 = vmul.f32 %v5081, 1.442695
      %v5197 = vpow.pop %v5196
      %v5198 = vmul.f32 %v5082, 1.442695
      %v5199 = vpow.pop %v5198
      %v5200 = vmul.f32 %v5083, 1.442695
      %v5201 = vpow.pop %v5200
      %v5202 = vmul.f32 %v5084, 1.442695
      %v5203 = vpow.pop %v5202
      %v5204 = vmul.f32 %v5085, 1.442695
      %v5205 = vpow.pop %v5204
      %v5206 = vmul.f32 %v5086, 1.442695
      %v5207 = vpow.pop %v5206
      %v5208 = vmul.f32 %v5087, 1.442695
      %v5209 = vpow.pop %v5208
      %v5210 = vmul.f32 %v5088, 1.442695
      %v5211 = vpow.pop %v5210
      %v5212 = vmul.f32 %v5089, 1.442695
      %v5213 = vpow.pop %v5212
      %v5214 = vmul.f32 %v5090, 1.442695
      %v5215 = vpow.pop %v5214
      %v5216 = vmul.f32 %v5091, 1.442695
      %v5217 = vpow.pop %v5216
      %v5218 = vmul.f32 %v5092, 1.442695
      %v5219 = vpow.pop %v5218
      %v5220 = vmul.f32 %v5093, 1.442695
      %v5221 = vpow.pop %v5220
      %v5222 = vsel %vm1212, %v5097, 0.0
      %v5223 = vadd.f32 %v5095, %v5222
      %5224 = vadd.xlane.f32.xlu0 %v5223
      %v5225 = vpop.xlane.xlu0 %5224
      %v5226 = vsel %vm1212, %v5101, 0.0
      %v5227 = vadd.f32 %v5099, %v5226
      %5228 = vadd.xlane.f32.xlu0 %v5227
      %v5229 = vpop.xlane.xlu0 %5228
      %v5230 = vsel %vm1212, %v5105, 0.0
      %v5231 = vadd.f32 %v5103, %v5230
      %5232 = vadd.xlane.f32.xlu0 %v5231
      %v5233 = vpop.xlane.xlu0 %5232
      %v5234 = vsel %vm1212, %v5109, 0.0
      %v5235 = vadd.f32 %v5107, %v5234
      %5236 = vadd.xlane.f32.xlu0 %v5235
      %v5237 = vpop.xlane.xlu0 %5236
      %v5238 = vsel %vm1212, %v5113, 0.0
      %v5239 = vadd.f32 %v5111, %v5238
      %5240 = vadd.xlane.f32.xlu0 %v5239
      %v5241 = vpop.xlane.xlu0 %5240
      %v5242 = vsel %vm1212, %v5117, 0.0
      %v5243 = vadd.f32 %v5115, %v5242
      %5244 = vadd.xlane.f32.xlu0 %v5243
      %v5245 = vpop.xlane.xlu0 %5244
      %v5246 = vsel %vm1212, %v5121, 0.0
      %v5247 = vadd.f32 %v5119, %v5246
      %5248 = vadd.xlane.f32.xlu0 %v5247
      %v5249 = vpop.xlane.xlu0 %5248
      %v5250 = vsel %vm1212, %v5125, 0.0
      %v5251 = vadd.f32 %v5123, %v5250
      %5252 = vadd.xlane.f32.xlu0 %v5251
      %v5253 = vpop.xlane.xlu0 %5252
      %v5254 = vsel %vm1212, %v5129, 0.0
      %v5255 = vadd.f32 %v5127, %v5254
      %5256 = vadd.xlane.f32.xlu0 %v5255
      %v5257 = vpop.xlane.xlu0 %5256
      %v5258 = vsel %vm1212, %v5133, 0.0
      %v5259 = vadd.f32 %v5131, %v5258
      %5260 = vadd.xlane.f32.xlu0 %v5259
      %v5261 = vpop.xlane.xlu0 %5260
      %v5262 = vsel %vm1212, %v5137, 0.0
      %v5263 = vadd.f32 %v5135, %v5262
      %5264 = vadd.xlane.f32.xlu0 %v5263
      %v5265 = vpop.xlane.xlu0 %5264
      %v5266 = vsel %vm1212, %v5141, 0.0
      %v5267 = vadd.f32 %v5139, %v5266
      %5268 = vadd.xlane.f32.xlu0 %v5267
      %v5269 = vpop.xlane.xlu0 %5268
      %v5270 = vsel %vm1212, %v5145, 0.0
      %v5271 = vadd.f32 %v5143, %v5270
      %5272 = vadd.xlane.f32.xlu0 %v5271
      %v5273 = vpop.xlane.xlu0 %5272
      %v5274 = vsel %vm1212, %v5149, 0.0
      %v5275 = vadd.f32 %v5147, %v5274
      %5276 = vadd.xlane.f32.xlu0 %v5275
      %v5277 = vpop.xlane.xlu0 %5276
      %v5278 = vsel %vm1212, %v5153, 0.0
      %v5279 = vadd.f32 %v5151, %v5278
      %5280 = vadd.xlane.f32.xlu0 %v5279
      %v5281 = vpop.xlane.xlu0 %5280
      %v5282 = vsel %vm1212, %v5157, 0.0
      %v5283 = vadd.f32 %v5155, %v5282
      %5284 = vadd.xlane.f32.xlu0 %v5283
      %v5285 = vpop.xlane.xlu0 %5284
      %v5286 = vsel %vm1212, %v5161, 0.0
      %v5287 = vadd.f32 %v5159, %v5286
      %5288 = vadd.xlane.f32.xlu0 %v5287
      %v5289 = vpop.xlane.xlu0 %5288
      %v5290 = vsel %vm1212, %v5165, 0.0
      %v5291 = vadd.f32 %v5163, %v5290
      %5292 = vadd.xlane.f32.xlu0 %v5291
      %v5293 = vpop.xlane.xlu0 %5292
      %v5294 = vsel %vm1212, %v5169, 0.0
      %v5295 = vadd.f32 %v5167, %v5294
      %5296 = vadd.xlane.f32.xlu0 %v5295
      %v5297 = vpop.xlane.xlu0 %5296
      %v5298 = vsel %vm1212, %v5173, 0.0
      %v5299 = vadd.f32 %v5171, %v5298
      %5300 = vadd.xlane.f32.xlu0 %v5299
      %v5301 = vpop.xlane.xlu0 %5300
      %v5302 = vsel %vm1212, %v5177, 0.0
      %v5303 = vadd.f32 %v5175, %v5302
      %5304 = vadd.xlane.f32.xlu0 %v5303
      %v5305 = vpop.xlane.xlu0 %5304
      %v5306 = vsel %vm1212, %v5181, 0.0
      %v5307 = vadd.f32 %v5179, %v5306
      %5308 = vadd.xlane.f32.xlu0 %v5307
      %v5309 = vpop.xlane.xlu0 %5308
      %v5310 = vsel %vm1212, %v5185, 0.0
      %v5311 = vadd.f32 %v5183, %v5310
      %5312 = vadd.xlane.f32.xlu0 %v5311
      %v5313 = vpop.xlane.xlu0 %5312
      %v5314 = vsel %vm1212, %v5189, 0.0
      %v5315 = vadd.f32 %v5187, %v5314
      %5316 = vadd.xlane.f32.xlu0 %v5315
      %v5317 = vpop.xlane.xlu0 %5316
      %v5318 = vsel %vm1212, %v5193, 0.0
      %v5319 = vadd.f32 %v5191, %v5318
      %5320 = vadd.xlane.f32.xlu0 %v5319
      %v5321 = vpop.xlane.xlu0 %5320
      %v5322 = vsel %vm1212, %v5197, 0.0
      %v5323 = vadd.f32 %v5195, %v5322
      %5324 = vadd.xlane.f32.xlu0 %v5323
      %v5325 = vpop.xlane.xlu0 %5324
      %v5326 = vsel %vm1212, %v5201, 0.0
      %v5327 = vadd.f32 %v5199, %v5326
      %5328 = vadd.xlane.f32.xlu0 %v5327
      %v5329 = vpop.xlane.xlu0 %5328
      %v5330 = vsel %vm1212, %v5205, 0.0
      %v5331 = vadd.f32 %v5203, %v5330
      %5332 = vadd.xlane.f32.xlu0 %v5331
      %v5333 = vpop.xlane.xlu0 %5332
      %v5334 = vsel %vm1212, %v5209, 0.0
      %v5335 = vadd.f32 %v5207, %v5334
      %5336 = vadd.xlane.f32.xlu0 %v5335
      %v5337 = vpop.xlane.xlu0 %5336
      %v5338 = vsel %vm1212, %v5213, 0.0
      %v5339 = vadd.f32 %v5211, %v5338
      %5340 = vadd.xlane.f32.xlu0 %v5339
      %v5341 = vpop.xlane.xlu0 %5340
      %v5342 = vsel %vm1212, %v5217, 0.0
      %v5343 = vadd.f32 %v5215, %v5342
      %5344 = vadd.xlane.f32.xlu0 %v5343
      %v5345 = vpop.xlane.xlu0 %5344
      %v5346 = vsel %vm1212, %v5221, 0.0
      %v5347 = vadd.f32 %v5219, %v5346
      %5348 = vadd.xlane.f32.xlu0 %v5347
      %v5349 = vpop.xlane.xlu0 %5348
      %v5350 = vrcp.pop %v5225
      %v5351 = vrcp.pop %v5229
      %v5352 = vrcp.pop %v5233
      %v5353 = vrcp.pop %v5237
      %v5354 = vrcp.pop %v5241
      %v5355 = vrcp.pop %v5245
      %v5356 = vrcp.pop %v5249
      %v5357 = vrcp.pop %v5253
      %v5358 = vrcp.pop %v5257
      %v5359 = vrcp.pop %v5261
      %v5360 = vrcp.pop %v5265
      %v5361 = vrcp.pop %v5269
      %v5362 = vrcp.pop %v5273
      %v5363 = vrcp.pop %v5277
      %v5364 = vrcp.pop %v5281
      %v5365 = vrcp.pop %v5285
      %v5366 = vrcp.pop %v5289
      %v5367 = vrcp.pop %v5293
      %v5368 = vrcp.pop %v5297
      %v5369 = vrcp.pop %v5301
      %v5370 = vrcp.pop %v5305
      %v5371 = vrcp.pop %v5309
      %v5372 = vrcp.pop %v5313
      %v5373 = vrcp.pop %v5317
      %v5374 = vrcp.pop %v5321
      %v5375 = vrcp.pop %v5325
      %v5376 = vrcp.pop %v5329
      %v5377 = vrcp.pop %v5333
      %v5378 = vrcp.pop %v5337
      %v5379 = vrcp.pop %v5341
      %v5380 = vrcp.pop %v5345
      %v5381 = vrcp.pop %v5349
      %v5382 = vmul.f32 %v5095, %v5350
      %v5383 = vmul.f32 %v5097, %v5350
      %v5384 = vmul.f32 %v5099, %v5351
      %v5385 = vmul.f32 %v5101, %v5351
      %v5386 = vmul.f32 %v5103, %v5352
      %v5387 = vmul.f32 %v5105, %v5352
      %v5388 = vmul.f32 %v5107, %v5353
      %v5389 = vmul.f32 %v5109, %v5353
      %v5390 = vmul.f32 %v5111, %v5354
      %v5391 = vmul.f32 %v5113, %v5354
      %v5392 = vmul.f32 %v5115, %v5355
      %v5393 = vmul.f32 %v5117, %v5355
      %v5394 = vmul.f32 %v5119, %v5356
      %v5395 = vmul.f32 %v5121, %v5356
      %v5396 = vmul.f32 %v5123, %v5357
      %v5397 = vmul.f32 %v5125, %v5357
      %v5398 = vmul.f32 %v5127, %v5358
      %v5399 = vmul.f32 %v5129, %v5358
      %v5400 = vmul.f32 %v5131, %v5359
      %v5401 = vmul.f32 %v5133, %v5359
      %v5402 = vmul.f32 %v5135, %v5360
      %v5403 = vmul.f32 %v5137, %v5360
      %v5404 = vmul.f32 %v5139, %v5361
      %v5405 = vmul.f32 %v5141, %v5361
      %v5406 = vmul.f32 %v5143, %v5362
      %v5407 = vmul.f32 %v5145, %v5362
      %v5408 = vmul.f32 %v5147, %v5363
      %v5409 = vmul.f32 %v5149, %v5363
      %v5410 = vmul.f32 %v5151, %v5364
      %v5411 = vmul.f32 %v5153, %v5364
      %v5412 = vmul.f32 %v5155, %v5365
      %v5413 = vmul.f32 %v5157, %v5365
      %v5414 = vmul.f32 %v5159, %v5366
      %v5415 = vmul.f32 %v5161, %v5366
      %v5416 = vmul.f32 %v5163, %v5367
      %v5417 = vmul.f32 %v5165, %v5367
      %v5418 = vmul.f32 %v5167, %v5368
      %v5419 = vmul.f32 %v5169, %v5368
      %v5420 = vmul.f32 %v5171, %v5369
      %v5421 = vmul.f32 %v5173, %v5369
      %v5422 = vmul.f32 %v5175, %v5370
      %v5423 = vmul.f32 %v5177, %v5370
      %v5424 = vmul.f32 %v5179, %v5371
      %v5425 = vmul.f32 %v5181, %v5371
      %v5426 = vmul.f32 %v5183, %v5372
      %v5427 = vmul.f32 %v5185, %v5372
      %v5428 = vmul.f32 %v5187, %v5373
      %v5429 = vmul.f32 %v5189, %v5373
      %v5430 = vmul.f32 %v5191, %v5374
      %v5431 = vmul.f32 %v5193, %v5374
      %v5432 = vmul.f32 %v5195, %v5375
      %v5433 = vmul.f32 %v5197, %v5375
      %v5434 = vmul.f32 %v5199, %v5376
      %v5435 = vmul.f32 %v5201, %v5376
      %v5436 = vmul.f32 %v5203, %v5377
      %v5437 = vmul.f32 %v5205, %v5377
      %v5438 = vmul.f32 %v5207, %v5378
      %v5439 = vmul.f32 %v5209, %v5378
      %v5440 = vmul.f32 %v5211, %v5379
      %v5441 = vmul.f32 %v5213, %v5379
      %v5442 = vmul.f32 %v5215, %v5380
      %v5443 = vmul.f32 %v5217, %v5380
      %v5444 = vmul.f32 %v5219, %v5381
      %v5445 = vmul.f32 %v5221, %v5381
      %v5446 = vpack.c.bf16 %v5384, %v5382
      %v5447 = vpack.c.bf16 %v5385, %v5383
      %v5448 = vpack.c.bf16 %v5388, %v5386
      %v5449 = vpack.c.bf16 %v5389, %v5387
      %v5450 = vpack.c.bf16 %v5392, %v5390
      %v5451 = vpack.c.bf16 %v5393, %v5391
      %v5452 = vpack.c.bf16 %v5396, %v5394
      %v5453 = vpack.c.bf16 %v5397, %v5395
      %v5454 = vpack.c.bf16 %v5400, %v5398
      %v5455 = vpack.c.bf16 %v5401, %v5399
      %v5456 = vpack.c.bf16 %v5404, %v5402
      %v5457 = vpack.c.bf16 %v5405, %v5403
      %v5458 = vpack.c.bf16 %v5408, %v5406
      %v5459 = vpack.c.bf16 %v5409, %v5407
      %v5460 = vpack.c.bf16 %v5412, %v5410
      %v5461 = vpack.c.bf16 %v5413, %v5411
      %v5462 = vpack.c.bf16 %v5416, %v5414
      %v5463 = vpack.c.bf16 %v5417, %v5415
      %v5464 = vpack.c.bf16 %v5420, %v5418
      %v5465 = vpack.c.bf16 %v5421, %v5419
      %v5466 = vpack.c.bf16 %v5424, %v5422
      %v5467 = vpack.c.bf16 %v5425, %v5423
      %v5468 = vpack.c.bf16 %v5428, %v5426
      %v5469 = vpack.c.bf16 %v5429, %v5427
      %v5470 = vpack.c.bf16 %v5432, %v5430
      %v5471 = vpack.c.bf16 %v5433, %v5431
      %v5472 = vpack.c.bf16 %v5436, %v5434
      %v5473 = vpack.c.bf16 %v5437, %v5435
      %v5474 = vpack.c.bf16 %v5440, %v5438
      %v5475 = vpack.c.bf16 %v5441, %v5439
      %v5476 = vpack.c.bf16 %v5444, %v5442
      %v5477 = vpack.c.bf16 %v5445, %v5443
      %5478 = vrot.lane.b32.xlu0 %v1825, 112
      %v5479 = vpop.permute.xlu0 %5478
      %5480 = vrot.lane.b32.xlu0 %v1826, 112
      %v5481 = vpop.permute.xlu0 %5480
      %5482 = vrot.lane.b32.xlu0 %v1827, 112
      %v5483 = vpop.permute.xlu0 %5482
      %5484 = vrot.lane.b32.xlu0 %v1828, 112
      %v5485 = vpop.permute.xlu0 %5484
      %5486 = vrot.lane.b32.xlu0 %v1829, 112
      %v5487 = vpop.permute.xlu0 %5486
      %5488 = vrot.lane.b32.xlu0 %v1830, 112
      %v5489 = vpop.permute.xlu0 %5488
      %5490 = vrot.lane.b32.xlu0 %v1831, 112
      %v5491 = vpop.permute.xlu0 %5490
      %5492 = vrot.lane.b32.xlu0 %v1832, 112
      %v5493 = vpop.permute.xlu0 %5492
      %5494 = vrot.lane.b32.xlu0 %v1833, 112
      %v5495 = vpop.permute.xlu0 %5494
      %v5506 = vsel %vm1212, %v5447, 0
      %v5509 = vsel %vm1212, %v5449, 0
      %v5512 = vsel %vm1212, %v5451, 0
      %v5515 = vsel %vm1212, %v5453, 0
      %5517 = vmatprep.subr.bf16.mxu0 0
      %5518 = vmatpush1.bf16.msra.mxu0 %v5479
      %5519 = vmatprep.subr.bf16.mxu0 0
      %5520 = vmatpush1.bf16.msra.mxu0 %v5481
      %5521 = vmatprep.subr.bf16.mxu0 0
      %5522 = vmatpush1.bf16.msra.mxu0 %v5483
      %5523 = vmatprep.subr.bf16.mxu0 0
      %5524 = vmatpush1.bf16.msra.mxu0 %v5485
      %5525 = vmatprep.subr.bf16.mxu0 0
      %5526 = vmatpush1.bf16.msra.mxu0 %v5487
      %5527 = vmatprep.subr.bf16.mxu0 0
      %5528 = vmatpush1.bf16.msra.mxu0 %v5489
      %5529 = vmatprep.subr.bf16.mxu0 0
      %5530 = vmatpush1.bf16.msra.mxu0 %v5491
      %5531 = vmatprep.subr.bf16.mxu0 0
      %5532 = vmatpush1.bf16.msra.mxu0 %v5493
      %5533 = vmatprep.subr.bf16.mxu0 0
      %5534 = vmatpush1.bf16.msra.mxu0 %v5495
      %5535 = vmatprep.subr.bf16.mxu0 0
      %5536 = vmatpush1.bf16.msra.mxu0 0
      %5537 = vmatprep.subr.bf16.mxu0 0
      %5538 = vmatpush1.bf16.msra.mxu0 0
      %5539 = vmatprep.subr.bf16.mxu0 0
      %5540 = vmatpush1.bf16.msra.mxu0 0
      %5541 = vmatprep.subr.bf16.mxu0 0
      %5542 = vmatpush1.bf16.msra.mxu0 0
      %5543 = vmatprep.subr.bf16.mxu0 0
      %5544 = vmatpush1.bf16.msra.mxu0 0
      %5545 = vmatprep.subr.bf16.mxu0 0
      %5546 = vmatpush1.bf16.msra.mxu0 0
      %5547 = vmatprep.subr.bf16.mxu0 0
      %5548 = vmatpush1.bf16.msra.mxu0 0
      %5549 = vmatprep.mubr.bf16.mxu0 %v5506
      %5550 = vmatmul.mubr.bf16.gmra.mrb[0].mxu0 %v5446
      %v5551 = vpop.f32.mrb[0].mxu0
      %v5552 = vadd.f32 0.0, %v5551
      %v5553 = vpop.f32.mrb[0].mxu0
      %v5554 = vpop.f32.mrb[0].mxu0
      %v5555 = vadd.f32 0.0, %v5554
      %v5556 = vpop.f32.mrb[0].mxu0
      %5557 = vmatprep.mubr.bf16.mxu0 %v5509
      %5558 = vmatmul.mubr.bf16.gmra.mrb[0].mxu0 %v5448
      %v5559 = vpop.f32.mrb[0].mxu0
      %v5560 = vadd.f32 0.0, %v5559
      %v5561 = vpop.f32.mrb[0].mxu0
      %v5562 = vpop.f32.mrb[0].mxu0
      %v5563 = vadd.f32 0.0, %v5562
      %v5564 = vpop.f32.mrb[0].mxu0
      %5565 = vmatprep.mubr.bf16.mxu0 %v5512
      %5566 = vmatmul.mubr.bf16.gmra.mrb[0].mxu0 %v5450
      %v5567 = vpop.f32.mrb[0].mxu0
      %v5568 = vadd.f32 0.0, %v5567
      %v5569 = vpop.f32.mrb[0].mxu0
      %v5570 = vpop.f32.mrb[0].mxu0
      %v5571 = vadd.f32 0.0, %v5570
      %v5572 = vpop.f32.mrb[0].mxu0
      %5573 = vmatprep.mubr.bf16.mxu0 %v5515
      %5574 = vmatmul.mubr.bf16.gmra.mrb[0].mxu0 %v5452
      %v5575 = vpop.f32.mrb[0].mxu0
      %v5576 = vadd.f32 0.0, %v5575
      %v5577 = vpop.f32.mrb[0].mxu0
      %v5578 = vpop.f32.mrb[0].mxu0
      %v5579 = vadd.f32 0.0, %v5578
      %v5580 = vpop.f32.mrb[0].mxu0
      %5581 = vdwg.mxu0
      %5582 = vrot.lane.b32.xlu0 %v1956, 112
      %v5583 = vpop.permute.xlu0 %5582
      %5584 = vrot.lane.b32.xlu0 %v1957, 112
      %v5585 = vpop.permute.xlu0 %5584
      %5586 = vrot.lane.b32.xlu0 %v1958, 112
      %v5587 = vpop.permute.xlu0 %5586
      %5588 = vrot.lane.b32.xlu0 %v1959, 112
      %v5589 = vpop.permute.xlu0 %5588
      %5590 = vrot.lane.b32.xlu0 %v1960, 112
      %v5591 = vpop.permute.xlu0 %5590
      %5592 = vrot.lane.b32.xlu0 %v1961, 112
      %v5593 = vpop.permute.xlu0 %5592
      %5594 = vrot.lane.b32.xlu0 %v1962, 112
      %v5595 = vpop.permute.xlu0 %5594
      %5596 = vrot.lane.b32.xlu0 %v1963, 112
      %v5597 = vpop.permute.xlu0 %5596
      %5598 = vrot.lane.b32.xlu0 %v1964, 112
      %v5599 = vpop.permute.xlu0 %5598
      %v5610 = vsel %vm1212, %v5455, 0
      %v5613 = vsel %vm1212, %v5457, 0
      %v5616 = vsel %vm1212, %v5459, 0
      %v5619 = vsel %vm1212, %v5461, 0
      %5621 = vmatprep.subr.bf16.mxu0 0
      %5622 = vmatpush1.bf16.msra.mxu0 %v5583
      %5623 = vmatprep.subr.bf16.mxu0 0
      %5624 = vmatpush1.bf16.msra.mxu0 %v5585
      %5625 = vmatprep.subr.bf16.mxu0 0
      %5626 = vmatpush1.bf16.msra.mxu0 %v5587
      %5627 = vmatprep.subr.bf16.mxu0 0
      %5628 = vmatpush1.bf16.msra.mxu0 %v5589
      %5629 = vmatprep.subr.bf16.mxu0 0
      %5630 = vmatpush1.bf16.msra.mxu0 %v5591
      %5631 = vmatprep.subr.bf16.mxu0 0
      %5632 = vmatpush1.bf16.msra.mxu0 %v5593
      %5633 = vmatprep.subr.bf16.mxu0 0
      %5634 = vmatpush1.bf16.msra.mxu0 %v5595
      %5635 = vmatprep.subr.bf16.mxu0 0
      %5636 = vmatpush1.bf16.msra.mxu0 %v5597
      %5637 = vmatprep.subr.bf16.mxu0 0
      %5638 = vmatpush1.bf16.msra.mxu0 %v5599
      %5639 = vmatprep.subr.bf16.mxu0 0
      %5640 = vmatpush1.bf16.msra.mxu0 0
      %5641 = vmatprep.subr.bf16.mxu0 0
      %5642 = vmatpush1.bf16.msra.mxu0 0
      %5643 = vmatprep.subr.bf16.mxu0 0
      %5644 = vmatpush1.bf16.msra.mxu0 0
      %5645 = vmatprep.subr.bf16.mxu0 0
      %5646 = vmatpush1.bf16.msra.mxu0 0
      %5647 = vmatprep.subr.bf16.mxu0 0
      %5648 = vmatpush1.bf16.msra.mxu0 0
      %5649 = vmatprep.subr.bf16.mxu0 0
      %5650 = vmatpush1.bf16.msra.mxu0 0
      %5651 = vmatprep.subr.bf16.mxu0 0
      %5652 = vmatpush1.bf16.msra.mxu0 0
      %5653 = vmatprep.mubr.bf16.mxu0 %v5610
      %5654 = vmatmul.mubr.bf16.gmra.mrb[0].mxu0 %v5454
      %v5655 = vpop.f32.mrb[0].mxu0
      %v5656 = vadd.f32 0.0, %v5655
      %v5657 = vpop.f32.mrb[0].mxu0
      %v5658 = vpop.f32.mrb[0].mxu0
      %v5659 = vadd.f32 0.0, %v5658
      %v5660 = vpop.f32.mrb[0].mxu0
      %5661 = vmatprep.mubr.bf16.mxu0 %v5613
      %5662 = vmatmul.mubr.bf16.gmra.mrb[0].mxu0 %v5456
      %v5663 = vpop.f32.mrb[0].mxu0
      %v5664 = vadd.f32 0.0, %v5663
      %v5665 = vpop.f32.mrb[0].mxu0
      %v5666 = vpop.f32.mrb[0].mxu0
      %v5667 = vadd.f32 0.0, %v5666
      %v5668 = vpop.f32.mrb[0].mxu0
      %5669 = vmatprep.mubr.bf16.mxu0 %v5616
      %5670 = vmatmul.mubr.bf16.gmra.mrb[0].mxu0 %v5458
      %v5671 = vpop.f32.mrb[0].mxu0
      %v5672 = vadd.f32 0.0, %v5671
      %v5673 = vpop.f32.mrb[0].mxu0
      %v5674 = vpop.f32.mrb[0].mxu0
      %v5675 = vadd.f32 0.0, %v5674
      %v5676 = vpop.f32.mrb[0].mxu0
      %5677 = vmatprep.mubr.bf16.mxu0 %v5619
      %5678 = vmatmul.mubr.bf16.gmra.mrb[0].mxu0 %v5460
      %v5679 = vpop.f32.mrb[0].mxu0
      %v5680 = vadd.f32 0.0, %v5679
      %v5681 = vpop.f32.mrb[0].mxu0
      %v5682 = vpop.f32.mrb[0].mxu0
      %v5683 = vadd.f32 0.0, %v5682
      %v5684 = vpop.f32.mrb[0].mxu0
      %5685 = vdwg.mxu0
      %5686 = vrot.lane.b32.xlu0 %v2087, 112
      %v5687 = vpop.permute.xlu0 %5686
      %5688 = vrot.lane.b32.xlu0 %v2088, 112
      %v5689 = vpop.permute.xlu0 %5688
      %5690 = vrot.lane.b32.xlu0 %v2089, 112
      %v5691 = vpop.permute.xlu0 %5690
      %5692 = vrot.lane.b32.xlu0 %v2090, 112
      %v5693 = vpop.permute.xlu0 %5692
      %5694 = vrot.lane.b32.xlu0 %v2091, 112
      %v5695 = vpop.permute.xlu0 %5694
      %5696 = vrot.lane.b32.xlu0 %v2092, 112
      %v5697 = vpop.permute.xlu0 %5696
      %5698 = vrot.lane.b32.xlu0 %v2093, 112
      %v5699 = vpop.permute.xlu0 %5698
      %5700 = vrot.lane.b32.xlu0 %v2094, 112
      %v5701 = vpop.permute.xlu0 %5700
      %5702 = vrot.lane.b32.xlu0 %v2095, 112
      %v5703 = vpop.permute.xlu0 %5702
      %v5714 = vsel %vm1212, %v5463, 0
      %v5717 = vsel %vm1212, %v5465, 0
      %v5720 = vsel %vm1212, %v5467, 0
      %v5723 = vsel %vm1212, %v5469, 0
      %5725 = vmatprep.subr.bf16.mxu0 0
      %5726 = vmatpush1.bf16.msra.mxu0 %v5687
      %5727 = vmatprep.subr.bf16.mxu0 0
      %5728 = vmatpush1.bf16.msra.mxu0 %v5689
      %5729 = vmatprep.subr.bf16.mxu0 0
      %5730 = vmatpush1.bf16.msra.mxu0 %v5691
      %5731 = vmatprep.subr.bf16.mxu0 0
      %5732 = vmatpush1.bf16.msra.mxu0 %v5693
      %5733 = vmatprep.subr.bf16.mxu0 0
      %5734 = vmatpush1.bf16.msra.mxu0 %v5695
      %5735 = vmatprep.subr.bf16.mxu0 0
      %5736 = vmatpush1.bf16.msra.mxu0 %v5697
      %5737 = vmatprep.subr.bf16.mxu0 0
      %5738 = vmatpush1.bf16.msra.mxu0 %v5699
      %5739 = vmatprep.subr.bf16.mxu0 0
      %5740 = vmatpush1.bf16.msra.mxu0 %v5701
      %5741 = vmatprep.subr.bf16.mxu0 0
      %5742 = vmatpush1.bf16.msra.mxu0 %v5703
      %5743 = vmatprep.subr.bf16.mxu0 0
      %5744 = vmatpush1.bf16.msra.mxu0 0
      %5745 = vmatprep.subr.bf16.mxu0 0
      %5746 = vmatpush1.bf16.msra.mxu0 0
      %5747 = vmatprep.subr.bf16.mxu0 0
      %5748 = vmatpush1.bf16.msra.mxu0 0
      %5749 = vmatprep.subr.bf16.mxu0 0
      %5750 = vmatpush1.bf16.msra.mxu0 0
      %5751 = vmatprep.subr.bf16.mxu0 0
      %5752 = vmatpush1.bf16.msra.mxu0 0
      %5753 = vmatprep.subr.bf16.mxu0 0
      %5754 = vmatpush1.bf16.msra.mxu0 0
      %5755 = vmatprep.subr.bf16.mxu0 0
      %5756 = vmatpush1.bf16.msra.mxu0 0
      %5757 = vmatprep.mubr.bf16.mxu0 %v5714
      %5758 = vmatmul.mubr.bf16.gmra.mrb[0].mxu0 %v5462
      %v5759 = vpop.f32.mrb[0].mxu0
      %v5760 = vadd.f32 0.0, %v5759
      %v5761 = vpop.f32.mrb[0].mxu0
      %v5762 = vpop.f32.mrb[0].mxu0
      %v5763 = vadd.f32 0.0, %v5762
      %v5764 = vpop.f32.mrb[0].mxu0
      %5765 = vmatprep.mubr.bf16.mxu0 %v5717
      %5766 = vmatmul.mubr.bf16.gmra.mrb[0].mxu0 %v5464
      %v5767 = vpop.f32.mrb[0].mxu0
      %v5768 = vadd.f32 0.0, %v5767
      %v5769 = vpop.f32.mrb[0].mxu0
      %v5770 = vpop.f32.mrb[0].mxu0
      %v5771 = vadd.f32 0.0, %v5770
      %v5772 = vpop.f32.mrb[0].mxu0
      %5773 = vmatprep.mubr.bf16.mxu0 %v5720
      %5774 = vmatmul.mubr.bf16.gmra.mrb[0].mxu0 %v5466
      %v5775 = vpop.f32.mrb[0].mxu0
      %v5776 = vadd.f32 0.0, %v5775
      %v5777 = vpop.f32.mrb[0].mxu0
      %v5778 = vpop.f32.mrb[0].mxu0
      %v5779 = vadd.f32 0.0, %v5778
      %v5780 = vpop.f32.mrb[0].mxu0
      %5781 = vmatprep.mubr.bf16.mxu0 %v5723
      %5782 = vmatmul.mubr.bf16.gmra.mrb[0].mxu0 %v5468
      %v5783 = vpop.f32.mrb[0].mxu0
      %v5784 = vadd.f32 0.0, %v5783
      %v5785 = vpop.f32.mrb[0].mxu0
      %v5786 = vpop.f32.mrb[0].mxu0
      %v5787 = vadd.f32 0.0, %v5786
      %v5788 = vpop.f32.mrb[0].mxu0
      %5789 = vdwg.mxu0
      %5790 = vrot.lane.b32.xlu0 %v2218, 112
      %v5791 = vpop.permute.xlu0 %5790
      %5792 = vrot.lane.b32.xlu0 %v2219, 112
      %v5793 = vpop.permute.xlu0 %5792
      %5794 = vrot.lane.b32.xlu0 %v2220, 112
      %v5795 = vpop.permute.xlu0 %5794
      %5796 = vrot.lane.b32.xlu0 %v2221, 112
      %v5797 = vpop.permute.xlu0 %5796
      %5798 = vrot.lane.b32.xlu0 %v2222, 112
      %v5799 = vpop.permute.xlu0 %5798
      %5800 = vrot.lane.b32.xlu0 %v2223, 112
      %v5801 = vpop.permute.xlu0 %5800
      %5802 = vrot.lane.b32.xlu0 %v2224, 112
      %v5803 = vpop.permute.xlu0 %5802
      %5804 = vrot.lane.b32.xlu0 %v2225, 112
      %v5805 = vpop.permute.xlu0 %5804
      %5806 = vrot.lane.b32.xlu0 %v2226, 112
      %v5807 = vpop.permute.xlu0 %5806
      %v5818 = vsel %vm1212, %v5471, 0
      %v5821 = vsel %vm1212, %v5473, 0
      %v5824 = vsel %vm1212, %v5475, 0
      %v5827 = vsel %vm1212, %v5477, 0
      %5829 = vmatprep.subr.bf16.mxu0 0
      %5830 = vmatpush1.bf16.msra.mxu0 %v5791
      %5831 = vmatprep.subr.bf16.mxu0 0
      %5832 = vmatpush1.bf16.msra.mxu0 %v5793
      %5833 = vmatprep.subr.bf16.mxu0 0
      %5834 = vmatpush1.bf16.msra.mxu0 %v5795
      %5835 = vmatprep.subr.bf16.mxu0 0
      %5836 = vmatpush1.bf16.msra.mxu0 %v5797
      %5837 = vmatprep.subr.bf16.mxu0 0
      %5838 = vmatpush1.bf16.msra.mxu0 %v5799
      %5839 = vmatprep.subr.bf16.mxu0 0
      %5840 = vmatpush1.bf16.msra.mxu0 %v5801
      %5841 = vmatprep.subr.bf16.mxu0 0
      %5842 = vmatpush1.bf16.msra.mxu0 %v5803
      %5843 = vmatprep.subr.bf16.mxu0 0
      %5844 = vmatpush1.bf16.msra.mxu0 %v5805
      %5845 = vmatprep.subr.bf16.mxu0 0
      %5846 = vmatpush1.bf16.msra.mxu0 %v5807
      %5847 = vmatprep.subr.bf16.mxu0 0
      %5848 = vmatpush1.bf16.msra.mxu0 0
      %5849 = vmatprep.subr.bf16.mxu0 0
      %5850 = vmatpush1.bf16.msra.mxu0 0
      %5851 = vmatprep.subr.bf16.mxu0 0
      %5852 = vmatpush1.bf16.msra.mxu0 0
      %5853 = vmatprep.subr.bf16.mxu0 0
      %5854 = vmatpush1.bf16.msra.mxu0 0
      %5855 = vmatprep.subr.bf16.mxu0 0
      %5856 = vmatpush1.bf16.msra.mxu0 0
      %5857 = vmatprep.subr.bf16.mxu0 0
      %5858 = vmatpush1.bf16.msra.mxu0 0
      %5859 = vmatprep.subr.bf16.mxu0 0
      %5860 = vmatpush1.bf16.msra.mxu0 0
      %5861 = vmatprep.mubr.bf16.mxu0 %v5818
      %5862 = vmatmul.mubr.bf16.gmra.mrb[0].mxu0 %v5470
      %v5863 = vpop.f32.mrb[0].mxu0
      %v5864 = vadd.f32 0.0, %v5863
      %v5865 = vpop.f32.mrb[0].mxu0
      %v5866 = vpop.f32.mrb[0].mxu0
      %v5867 = vadd.f32 0.0, %v5866
      %v5868 = vpop.f32.mrb[0].mxu0
      %5869 = vmatprep.mubr.bf16.mxu0 %v5821
      %5870 = vmatmul.mubr.bf16.gmra.mrb[0].mxu0 %v5472
      %v5871 = vpop.f32.mrb[0].mxu0
      %v5872 = vadd.f32 0.0, %v5871
      %v5873 = vpop.f32.mrb[0].mxu0
      %v5874 = vpop.f32.mrb[0].mxu0
      %v5875 = vadd.f32 0.0, %v5874
      %v5876 = vpop.f32.mrb[0].mxu0
      %5877 = vmatprep.mubr.bf16.mxu0 %v5824
      %5878 = vmatmul.mubr.bf16.gmra.mrb[0].mxu0 %v5474
      %v5879 = vpop.f32.mrb[0].mxu0
      %v5880 = vadd.f32 0.0, %v5879
      %v5881 = vpop.f32.mrb[0].mxu0
      %v5882 = vpop.f32.mrb[0].mxu0
      %v5883 = vadd.f32 0.0, %v5882
      %v5884 = vpop.f32.mrb[0].mxu0
      %5885 = vmatprep.mubr.bf16.mxu0 %v5827
      %5886 = vmatmul.mubr.bf16.gmra.mrb[0].mxu0 %v5476
      %v5887 = vpop.f32.mrb[0].mxu0
      %v5888 = vadd.f32 0.0, %v5887
      %v5889 = vpop.f32.mrb[0].mxu0
      %v5890 = vpop.f32.mrb[0].mxu0
      %v5891 = vadd.f32 0.0, %v5890
      %v5892 = vpop.f32.mrb[0].mxu0
      %5893 = vdwg.mxu0
      %v5894 = vpack.c.bf16 %v5555, %v5552
      %v5895 = vpack.c.bf16 %v5563, %v5560
      %v5896 = vpack.c.bf16 %v5571, %v5568
      %v5897 = vpack.c.bf16 %v5579, %v5576
      %v5898 = vpack.c.bf16 %v5659, %v5656
      %v5899 = vpack.c.bf16 %v5667, %v5664
      %v5900 = vpack.c.bf16 %v5675, %v5672
      %v5901 = vpack.c.bf16 %v5683, %v5680
      %v5902 = vpack.c.bf16 %v5763, %v5760
      %v5903 = vpack.c.bf16 %v5771, %v5768
      %v5904 = vpack.c.bf16 %v5779, %v5776
      %v5905 = vpack.c.bf16 %v5787, %v5784
      %v5906 = vpack.c.bf16 %v5867, %v5864
      %v5907 = vpack.c.bf16 %v5875, %v5872
      %v5908 = vpack.c.bf16 %v5883, %v5880
      %v5909 = vpack.c.bf16 %v5891, %v5888
      %v5910 = vld [vmem:[%s4 + $0x8] sm:$0xf]
      %v5912 = vsel %vm568, %v5894, 0
      %v5915 = vsel %vm568, %v5895, 0
      %v5918 = vsel %vm568, %v5896, 0
      %v5921 = vsel %vm568, %v5897, 0
      %v5924 = vsel %vm568, %v5898, 0
      %v5927 = vsel %vm568, %v5899, 0
      %v5930 = vsel %vm568, %v5900, 0
      %v5933 = vsel %vm568, %v5901, 0
      %v5936 = vsel %vm568, %v5902, 0
      %v5939 = vsel %vm568, %v5903, 0
      %v5942 = vsel %vm568, %v5904, 0
      %v5945 = vsel %vm568, %v5905, 0
      %v5948 = vsel %vm568, %v5906, 0
      %v5951 = vsel %vm568, %v5907, 0
      %v5954 = vsel %vm568, %v5908, 0
      %v5957 = vsel %vm568, %v5909, 0
      %v5960 = vsel %vm3956, %v5910, 0
      %5962 = vmatprep.subr.bf16.mxu0 0
      %5963 = vmatpush1.bf16.msra.mxu0 %v5960
      %5964 = vmatprep.subr.bf16.mxu0 0
      %5965 = vmatpush1.bf16.msra.mxu0 0
      %5966 = vmatprep.subr.bf16.mxu0 0
      %5967 = vmatpush1.bf16.msra.mxu0 0
      %5968 = vmatprep.subr.bf16.mxu0 0
      %5969 = vmatpush1.bf16.msra.mxu0 0
      %5970 = vmatprep.subr.bf16.mxu0 0
      %5971 = vmatpush1.bf16.msra.mxu0 0
      %5972 = vmatprep.subr.bf16.mxu0 0
      %5973 = vmatpush1.bf16.msra.mxu0 0
      %5974 = vmatprep.subr.bf16.mxu0 0
      %5975 = vmatpush1.bf16.msra.mxu0 0
      %5976 = vmatprep.subr.bf16.mxu0 0
      %5977 = vmatpush1.bf16.msra.mxu0 0
      %5978 = vmatprep.subr.bf16.mxu0 0
      %5979 = vmatpush1.bf16.msra.mxu0 0
      %5980 = vmatprep.subr.bf16.mxu0 0
      %5981 = vmatpush1.bf16.msra.mxu0 0
      %5982 = vmatprep.subr.bf16.mxu0 0
      %5983 = vmatpush1.bf16.msra.mxu0 0
      %5984 = vmatprep.subr.bf16.mxu0 0
      %5985 = vmatpush1.bf16.msra.mxu0 0
      %5986 = vmatprep.subr.bf16.mxu0 0
      %5987 = vmatpush1.bf16.msra.mxu0 0
      %5988 = vmatprep.subr.bf16.mxu0 0
      %5989 = vmatpush1.bf16.msra.mxu0 0
      %5990 = vmatprep.subr.bf16.mxu0 0
      %5991 = vmatpush1.bf16.msra.mxu0 0
      %5992 = vmatprep.subr.bf16.mxu0 0
      %5993 = vmatpush1.bf16.msra.mxu0 0
      %5994 = vmatprep.mubr.bf16.mxu0 0
      %5995 = vmatmul.mubr.bf16.gmra.mrb[0].mxu0 %v5912
      %v5996 = vpop.f32.mrb[0].mxu0
      %v5997 = vadd.f32 0.0, %v5996
      %v5998 = vpop.f32.mrb[0].mxu0
      %v5999 = vpop.f32.mrb[0].mxu0
      %v6000 = vadd.f32 0.0, %v5999
      %v6001 = vpop.f32.mrb[0].mxu0
      %6002 = vmatprep.mubr.bf16.mxu0 0
      %6003 = vmatmul.mubr.bf16.gmra.mrb[0].mxu0 %v5915
      %v6004 = vpop.f32.mrb[0].mxu0
      %v6005 = vadd.f32 0.0, %v6004
      %v6006 = vpop.f32.mrb[0].mxu0
      %v6007 = vpop.f32.mrb[0].mxu0
      %v6008 = vadd.f32 0.0, %v6007
      %v6009 = vpop.f32.mrb[0].mxu0
      %6010 = vmatprep.mubr.bf16.mxu0 0
      %6011 = vmatmul.mubr.bf16.gmra.mrb[0].mxu0 %v5918
      %v6012 = vpop.f32.mrb[0].mxu0
      %v6013 = vadd.f32 0.0, %v6012
      %v6014 = vpop.f32.mrb[0].mxu0
      %v6015 = vpop.f32.mrb[0].mxu0
      %v6016 = vadd.f32 0.0, %v6015
      %v6017 = vpop.f32.mrb[0].mxu0
      %6018 = vmatprep.mubr.bf16.mxu0 0
      %6019 = vmatmul.mubr.bf16.gmra.mrb[0].mxu0 %v5921
      %v6020 = vpop.f32.mrb[0].mxu0
      %v6021 = vadd.f32 0.0, %v6020
      %v6022 = vpop.f32.mrb[0].mxu0
      %v6023 = vpop.f32.mrb[0].mxu0
      %v6024 = vadd.f32 0.0, %v6023
      %v6025 = vpop.f32.mrb[0].mxu0
      %6026 = vmatprep.mubr.bf16.mxu0 0
      %6027 = vmatmul.mubr.bf16.gmra.mrb[0].mxu0 %v5924
      %v6028 = vpop.f32.mrb[0].mxu0
      %v6029 = vadd.f32 0.0, %v6028
      %v6030 = vpop.f32.mrb[0].mxu0
      %v6031 = vpop.f32.mrb[0].mxu0
      %v6032 = vadd.f32 0.0, %v6031
      %v6033 = vpop.f32.mrb[0].mxu0
      %6034 = vmatprep.mubr.bf16.mxu0 0
      %6035 = vmatmul.mubr.bf16.gmra.mrb[0].mxu0 %v5927
      %v6036 = vpop.f32.mrb[0].mxu0
      %v6037 = vadd.f32 0.0, %v6036
      %v6038 = vpop.f32.mrb[0].mxu0
      %v6039 = vpop.f32.mrb[0].mxu0
      %v6040 = vadd.f32 0.0, %v6039
      %v6041 = vpop.f32.mrb[0].mxu0
      %6042 = vmatprep.mubr.bf16.mxu0 0
      %6043 = vmatmul.mubr.bf16.gmra.mrb[0].mxu0 %v5930
      %v6044 = vpop.f32.mrb[0].mxu0
      %v6045 = vadd.f32 0.0, %v6044
      %v6046 = vpop.f32.mrb[0].mxu0
      %v6047 = vpop.f32.mrb[0].mxu0
      %v6048 = vadd.f32 0.0, %v6047
      %v6049 = vpop.f32.mrb[0].mxu0
      %6050 = vmatprep.mubr.bf16.mxu0 0
      %6051 = vmatmul.mubr.bf16.gmra.mrb[0].mxu0 %v5933
      %v6052 = vpop.f32.mrb[0].mxu0
      %v6053 = vadd.f32 0.0, %v6052
      %v6054 = vpop.f32.mrb[0].mxu0
      %v6055 = vpop.f32.mrb[0].mxu0
      %v6056 = vadd.f32 0.0, %v6055
      %v6057 = vpop.f32.mrb[0].mxu0
      %6058 = vmatprep.mubr.bf16.mxu0 0
      %6059 = vmatmul.mubr.bf16.gmra.mrb[0].mxu0 %v5936
      %v6060 = vpop.f32.mrb[0].mxu0
      %v6061 = vadd.f32 0.0, %v6060
      %v6062 = vpop.f32.mrb[0].mxu0
      %v6063 = vpop.f32.mrb[0].mxu0
      %v6064 = vadd.f32 0.0, %v6063
      %v6065 = vpop.f32.mrb[0].mxu0
      %6066 = vmatprep.mubr.bf16.mxu0 0
      %6067 = vmatmul.mubr.bf16.gmra.mrb[0].mxu0 %v5939
      %v6068 = vpop.f32.mrb[0].mxu0
      %v6069 = vadd.f32 0.0, %v6068
      %v6070 = vpop.f32.mrb[0].mxu0
      %v6071 = vpop.f32.mrb[0].mxu0
      %v6072 = vadd.f32 0.0, %v6071
      %v6073 = vpop.f32.mrb[0].mxu0
      %6074 = vmatprep.mubr.bf16.mxu0 0
      %6075 = vmatmul.mubr.bf16.gmra.mrb[0].mxu0 %v5942
      %v6076 = vpop.f32.mrb[0].mxu0
      %v6077 = vadd.f32 0.0, %v6076
      %v6078 = vpop.f32.mrb[0].mxu0
      %v6079 = vpop.f32.mrb[0].mxu0
      %v6080 = vadd.f32 0.0, %v6079
      %v6081 = vpop.f32.mrb[0].mxu0
      %6082 = vmatprep.mubr.bf16.mxu0 0
      %6083 = vmatmul.mubr.bf16.gmra.mrb[0].mxu0 %v5945
      %v6084 = vpop.f32.mrb[0].mxu0
      %v6085 = vadd.f32 0.0, %v6084
      %v6086 = vpop.f32.mrb[0].mxu0
      %v6087 = vpop.f32.mrb[0].mxu0
      %v6088 = vadd.f32 0.0, %v6087
      %v6089 = vpop.f32.mrb[0].mxu0
      %6090 = vmatprep.mubr.bf16.mxu0 0
      %6091 = vmatmul.mubr.bf16.gmra.mrb[0].mxu0 %v5948
      %v6092 = vpop.f32.mrb[0].mxu0
      %v6093 = vadd.f32 0.0, %v6092
      %v6094 = vpop.f32.mrb[0].mxu0
      %v6095 = vpop.f32.mrb[0].mxu0
      %v6096 = vadd.f32 0.0, %v6095
      %v6097 = vpop.f32.mrb[0].mxu0
      %6098 = vmatprep.mubr.bf16.mxu0 0
      %6099 = vmatmul.mubr.bf16.gmra.mrb[0].mxu0 %v5951
      %v6100 = vpop.f32.mrb[0].mxu0
      %v6101 = vadd.f32 0.0, %v6100
      %v6102 = vpop.f32.mrb[0].mxu0
      %v6103 = vpop.f32.mrb[0].mxu0
      %v6104 = vadd.f32 0.0, %v6103
      %v6105 = vpop.f32.mrb[0].mxu0
      %6106 = vmatprep.mubr.bf16.mxu0 0
      %6107 = vmatmul.mubr.bf16.gmra.mrb[0].mxu0 %v5954
      %v6108 = vpop.f32.mrb[0].mxu0
      %v6109 = vadd.f32 0.0, %v6108
      %v6110 = vpop.f32.mrb[0].mxu0
      %v6111 = vpop.f32.mrb[0].mxu0
      %v6112 = vadd.f32 0.0, %v6111
      %v6113 = vpop.f32.mrb[0].mxu0
      %6114 = vmatprep.mubr.bf16.mxu0 0
      %6115 = vmatmul.mubr.bf16.gmra.mrb[0].mxu0 %v5957
      %v6116 = vpop.f32.mrb[0].mxu0
      %v6117 = vadd.f32 0.0, %v6116
      %v6118 = vpop.f32.mrb[0].mxu0
      %v6119 = vpop.f32.mrb[0].mxu0
      %v6120 = vadd.f32 0.0, %v6119
      %v6121 = vpop.f32.mrb[0].mxu0
      %6122 = vdwg.mxu0
      %v6123 = vadd.f32 %v4207, %v5997
      %v6124 = vadd.f32 %v4210, %v6000
      %v6125 = vadd.f32 %v4215, %v6005
      %v6126 = vadd.f32 %v4218, %v6008
      %v6127 = vadd.f32 %v4223, %v6013
      %v6128 = vadd.f32 %v4226, %v6016
      %v6129 = vadd.f32 %v4231, %v6021
      %v6130 = vadd.f32 %v4234, %v6024
      %v6131 = vadd.f32 %v4239, %v6029
      %v6132 = vadd.f32 %v4242, %v6032
      %v6133 = vadd.f32 %v4247, %v6037
      %v6134 = vadd.f32 %v4250, %v6040
      %v6135 = vadd.f32 %v4255, %v6045
      %v6136 = vadd.f32 %v4258, %v6048
      %v6137 = vadd.f32 %v4263, %v6053
      %v6138 = vadd.f32 %v4266, %v6056
      %v6139 = vadd.f32 %v4271, %v6061
      %v6140 = vadd.f32 %v4274, %v6064
      %v6141 = vadd.f32 %v4279, %v6069
      %v6142 = vadd.f32 %v4282, %v6072
      %v6143 = vadd.f32 %v4287, %v6077
      %v6144 = vadd.f32 %v4290, %v6080
      %v6145 = vadd.f32 %v4295, %v6085
      %v6146 = vadd.f32 %v4298, %v6088
      %v6147 = vadd.f32 %v4303, %v6093
      %v6148 = vadd.f32 %v4306, %v6096
      %v6149 = vadd.f32 %v4311, %v6101
      %v6150 = vadd.f32 %v4314, %v6104
      %v6151 = vadd.f32 %v4319, %v6109
      %v6152 = vadd.f32 %v4322, %v6112
      %v6153 = vadd.f32 %v4327, %v6117
      %v6154 = vadd.f32 %v4330, %v6120
      %s6155 = scalar_lea.vmem %s3, 384
      %v6156 = vld [vmem:[%s6155] sm:$0xff]
      %v6157 = vld [vmem:[%s6155 + $0x8] sm:$0xff]
      %v6158 = vld [vmem:[%s6155 + $0x10] sm:$0xff]
      %v6159 = vld [vmem:[%s6155 + $0x18] sm:$0xff]
      %v6160 = vld [vmem:[%s6155 + $0x20] sm:$0xff]
      %v6161 = vld [vmem:[%s6155 + $0x28] sm:$0xff]
      %v6162 = vld [vmem:[%s6155 + $0x30] sm:$0xff]
      %v6163 = vld [vmem:[%s6155 + $0x38] sm:$0xff]
      %v6164 = vld [vmem:[%s6155 + $0x40] sm:$0xff]
      %v6165 = vld [vmem:[%s6155 + $0x48] sm:$0xff]
      %v6166 = vld [vmem:[%s6155 + $0x50] sm:$0xff]
      %v6167 = vld [vmem:[%s6155 + $0x58] sm:$0xff]
      %v6168 = vld [vmem:[%s6155 + $0x60] sm:$0xff]
      %v6169 = vld [vmem:[%s6155 + $0x68] sm:$0xff]
      %v6170 = vld [vmem:[%s6155 + $0x70] sm:$0xff]
      %v6171 = vld [vmem:[%s6155 + $0x78] sm:$0xff]
      %6172 = vrot.lane.b32.xlu0 %v519, 104
      %v6173 = vpop.permute.xlu0 %6172
      %6174 = vrot.lane.b32.xlu0 %v520, 104
      %v6175 = vpop.permute.xlu0 %6174
      %6176 = vrot.lane.b32.xlu0 %v521, 104
      %v6177 = vpop.permute.xlu0 %6176
      %6178 = vrot.lane.b32.xlu0 %v522, 104
      %v6179 = vpop.permute.xlu0 %6178
      %6180 = vrot.lane.b32.xlu0 %v559, 104
      %v6181 = vpop.permute.xlu0 %6180
      %6182 = vrot.lane.b32.xlu0 %v560, 104
      %v6183 = vpop.permute.xlu0 %6182
      %6184 = vrot.lane.b32.xlu0 %v561, 104
      %v6185 = vpop.permute.xlu0 %6184
      %6186 = vrot.lane.b32.xlu0 %v562, 104
      %v6187 = vpop.permute.xlu0 %6186
      %6188 = vrot.lane.b32.xlu0 %v563, 104
      %v6189 = vpop.permute.xlu0 %6188
      %6190 = vrot.lane.b32.xlu0 %v564, 104
      %v6191 = vpop.permute.xlu0 %6190
      %6192 = vrot.lane.b32.xlu0 %v565, 104
      %v6193 = vpop.permute.xlu0 %6192
      %6194 = vrot.lane.b32.xlu0 %v566, 104
      %v6195 = vpop.permute.xlu0 %6194
      %6196 = vrot.lane.b32.xlu0 %v567, 104
      %v6197 = vpop.permute.xlu0 %6196
      %v6199 = vsel %vm568, %v6173, 0
      %v6202 = vsel %vm568, %v6175, 0
      %v6205 = vsel %vm568, %v6177, 0
      %v6208 = vsel %vm568, %v6179, 0
      %v6211 = vsel %vm568, %v6181, 0
      %v6214 = vsel %vm568, %v6183, 0
      %v6217 = vsel %vm568, %v6185, 0
      %v6220 = vsel %vm568, %v6187, 0
      %v6223 = vsel %vm568, %v6189, 0
      %v6226 = vsel %vm568, %v6191, 0
      %v6229 = vsel %vm568, %v6193, 0
      %v6232 = vsel %vm568, %v6195, 0
      %v6235 = vsel %vm568, %v6197, 0
      %6237 = vmatprep.subr.bf16.mxu0 0
      %6238 = vmatpush1.bf16.xpose.msra.mxu0 %v6211
      %6239 = vmatprep.subr.bf16.mxu0 0
      %6240 = vmatpush1.bf16.xpose.msra.mxu0 %v6214
      %6241 = vmatprep.subr.bf16.mxu0 0
      %6242 = vmatpush1.bf16.xpose.msra.mxu0 %v6217
      %6243 = vmatprep.subr.bf16.mxu0 0
      %6244 = vmatpush1.bf16.xpose.msra.mxu0 %v6220
      %6245 = vmatprep.subr.bf16.mxu0 0
      %6246 = vmatpush1.bf16.xpose.msra.mxu0 %v6223
      %6247 = vmatprep.subr.bf16.mxu0 0
      %6248 = vmatpush1.bf16.xpose.msra.mxu0 %v6226
      %6249 = vmatprep.subr.bf16.mxu0 0
      %6250 = vmatpush1.bf16.xpose.msra.mxu0 %v6229
      %6251 = vmatprep.subr.bf16.mxu0 0
      %6252 = vmatpush1.bf16.xpose.msra.mxu0 %v6232
      %6253 = vmatprep.subr.bf16.mxu0 0
      %6254 = vmatpush1.bf16.xpose.msra.mxu0 %v6235
      %6255 = vmatprep.subr.bf16.mxu0 0
      %6256 = vmatpush1.bf16.xpose.msra.mxu0 0
      %6257 = vmatprep.subr.bf16.mxu0 0
      %6258 = vmatpush1.bf16.xpose.msra.mxu0 0
      %6259 = vmatprep.subr.bf16.mxu0 0
      %6260 = vmatpush1.bf16.xpose.msra.mxu0 0
      %6261 = vmatprep.subr.bf16.mxu0 0
      %6262 = vmatpush1.bf16.xpose.msra.mxu0 0
      %6263 = vmatprep.subr.bf16.mxu0 0
      %6264 = vmatpush1.bf16.xpose.msra.mxu0 0
      %6265 = vmatprep.subr.bf16.mxu0 0
      %6266 = vmatpush1.bf16.xpose.msra.mxu0 0
      %6267 = vmatprep.subr.bf16.mxu0 0
      %6268 = vmatpush1.bf16.xpose.msra.mxu0 0
      %6269 = vmatprep.mubr.bf16.mxu0 0
      %6270 = vmatmul.mubr.bf16.gmra.mrb[0].mxu0 %v6199
      %v6271 = vpop.f32.mrb[0].mxu0
      %v6272 = vadd.f32 %v6156, %v6271
      %v6273 = vpop.f32.mrb[0].mxu0
      %v6274 = vadd.f32 %v6157, %v6273
      %v6275 = vpop.f32.mrb[0].mxu0
      %v6276 = vadd.f32 %v6158, %v6275
      %v6277 = vpop.f32.mrb[0].mxu0
      %v6278 = vadd.f32 %v6159, %v6277
      %6279 = vmatprep.mubr.bf16.mxu0 0
      %6280 = vmatmul.mubr.bf16.gmra.mrb[0].mxu0 %v6202
      %v6281 = vpop.f32.mrb[0].mxu0
      %v6282 = vadd.f32 %v6160, %v6281
      %v6283 = vpop.f32.mrb[0].mxu0
      %v6284 = vadd.f32 %v6161, %v6283
      %v6285 = vpop.f32.mrb[0].mxu0
      %v6286 = vadd.f32 %v6162, %v6285
      %v6287 = vpop.f32.mrb[0].mxu0
      %v6288 = vadd.f32 %v6163, %v6287
      %6289 = vmatprep.mubr.bf16.mxu0 0
      %6290 = vmatmul.mubr.bf16.gmra.mrb[0].mxu0 %v6205
      %v6291 = vpop.f32.mrb[0].mxu0
      %v6292 = vadd.f32 %v6164, %v6291
      %v6293 = vpop.f32.mrb[0].mxu0
      %v6294 = vadd.f32 %v6165, %v6293
      %v6295 = vpop.f32.mrb[0].mxu0
      %v6296 = vadd.f32 %v6166, %v6295
      %v6297 = vpop.f32.mrb[0].mxu0
      %v6298 = vadd.f32 %v6167, %v6297
      %6299 = vmatprep.mubr.bf16.mxu0 0
      %6300 = vmatmul.mubr.bf16.gmra.mrb[0].mxu0 %v6208
      %v6301 = vpop.f32.mrb[0].mxu0
      %v6302 = vadd.f32 %v6168, %v6301
      %v6303 = vpop.f32.mrb[0].mxu0
      %v6304 = vadd.f32 %v6169, %v6303
      %v6305 = vpop.f32.mrb[0].mxu0
      %v6306 = vadd.f32 %v6170, %v6305
      %v6307 = vpop.f32.mrb[0].mxu0
      %v6308 = vadd.f32 %v6171, %v6307
      %6309 = vdwg.mxu0
      %6310 = vrot.lane.b32.xlu0 %v697, 104
      %v6311 = vpop.permute.xlu0 %6310
      %6312 = vrot.lane.b32.xlu0 %v698, 104
      %v6313 = vpop.permute.xlu0 %6312
      %6314 = vrot.lane.b32.xlu0 %v699, 104
      %v6315 = vpop.permute.xlu0 %6314
      %6316 = vrot.lane.b32.xlu0 %v700, 104
      %v6317 = vpop.permute.xlu0 %6316
      %6318 = vrot.lane.b32.xlu0 %v737, 104
      %v6319 = vpop.permute.xlu0 %6318
      %6320 = vrot.lane.b32.xlu0 %v738, 104
      %v6321 = vpop.permute.xlu0 %6320
      %6322 = vrot.lane.b32.xlu0 %v739, 104
      %v6323 = vpop.permute.xlu0 %6322
      %6324 = vrot.lane.b32.xlu0 %v740, 104
      %v6325 = vpop.permute.xlu0 %6324
      %6326 = vrot.lane.b32.xlu0 %v741, 104
      %v6327 = vpop.permute.xlu0 %6326
      %6328 = vrot.lane.b32.xlu0 %v742, 104
      %v6329 = vpop.permute.xlu0 %6328
      %6330 = vrot.lane.b32.xlu0 %v743, 104
      %v6331 = vpop.permute.xlu0 %6330
      %6332 = vrot.lane.b32.xlu0 %v744, 104
      %v6333 = vpop.permute.xlu0 %6332
      %6334 = vrot.lane.b32.xlu0 %v745, 104
      %v6335 = vpop.permute.xlu0 %6334
      %v6337 = vsel %vm568, %v6311, 0
      %v6340 = vsel %vm568, %v6313, 0
      %v6343 = vsel %vm568, %v6315, 0
      %v6346 = vsel %vm568, %v6317, 0
      %v6349 = vsel %vm568, %v6319, 0
      %v6352 = vsel %vm568, %v6321, 0
      %v6355 = vsel %vm568, %v6323, 0
      %v6358 = vsel %vm568, %v6325, 0
      %v6361 = vsel %vm568, %v6327, 0
      %v6364 = vsel %vm568, %v6329, 0
      %v6367 = vsel %vm568, %v6331, 0
      %v6370 = vsel %vm568, %v6333, 0
      %v6373 = vsel %vm568, %v6335, 0
      %6375 = vmatprep.subr.bf16.mxu0 0
      %6376 = vmatpush1.bf16.xpose.msra.mxu0 %v6349
      %6377 = vmatprep.subr.bf16.mxu0 0
      %6378 = vmatpush1.bf16.xpose.msra.mxu0 %v6352
      %6379 = vmatprep.subr.bf16.mxu0 0
      %6380 = vmatpush1.bf16.xpose.msra.mxu0 %v6355
      %6381 = vmatprep.subr.bf16.mxu0 0
      %6382 = vmatpush1.bf16.xpose.msra.mxu0 %v6358
      %6383 = vmatprep.subr.bf16.mxu0 0
      %6384 = vmatpush1.bf16.xpose.msra.mxu0 %v6361
      %6385 = vmatprep.subr.bf16.mxu0 0
      %6386 = vmatpush1.bf16.xpose.msra.mxu0 %v6364
      %6387 = vmatprep.subr.bf16.mxu0 0
      %6388 = vmatpush1.bf16.xpose.msra.mxu0 %v6367
      %6389 = vmatprep.subr.bf16.mxu0 0
      %6390 = vmatpush1.bf16.xpose.msra.mxu0 %v6370
      %6391 = vmatprep.subr.bf16.mxu0 0
      %6392 = vmatpush1.bf16.xpose.msra.mxu0 %v6373
      %6393 = vmatprep.subr.bf16.mxu0 0
      %6394 = vmatpush1.bf16.xpose.msra.mxu0 0
      %6395 = vmatprep.subr.bf16.mxu0 0
      %6396 = vmatpush1.bf16.xpose.msra.mxu0 0
      %6397 = vmatprep.subr.bf16.mxu0 0
      %6398 = vmatpush1.bf16.xpose.msra.mxu0 0
      %6399 = vmatprep.subr.bf16.mxu0 0
      %6400 = vmatpush1.bf16.xpose.msra.mxu0 0
      %6401 = vmatprep.subr.bf16.mxu0 0
      %6402 = vmatpush1.bf16.xpose.msra.mxu0 0
      %6403 = vmatprep.subr.bf16.mxu0 0
      %6404 = vmatpush1.bf16.xpose.msra.mxu0 0
      %6405 = vmatprep.subr.bf16.mxu0 0
      %6406 = vmatpush1.bf16.xpose.msra.mxu0 0
      %6407 = vmatprep.mubr.bf16.mxu0 0
      %6408 = vmatmul.mubr.bf16.gmra.mrb[0].mxu0 %v6337
      %v6409 = vpop.f32.mrb[0].mxu0
      %v6410 = vadd.f32 %v6156, %v6409
      %v6411 = vpop.f32.mrb[0].mxu0
      %v6412 = vadd.f32 %v6157, %v6411
      %v6413 = vpop.f32.mrb[0].mxu0
      %v6414 = vadd.f32 %v6158, %v6413
      %v6415 = vpop.f32.mrb[0].mxu0
      %v6416 = vadd.f32 %v6159, %v6415
      %6417 = vmatprep.mubr.bf16.mxu0 0
      %6418 = vmatmul.mubr.bf16.gmra.mrb[0].mxu0 %v6340
      %v6419 = vpop.f32.mrb[0].mxu0
      %v6420 = vadd.f32 %v6160, %v6419
      %v6421 = vpop.f32.mrb[0].mxu0
      %v6422 = vadd.f32 %v6161, %v6421
      %v6423 = vpop.f32.mrb[0].mxu0
      %v6424 = vadd.f32 %v6162, %v6423
      %v6425 = vpop.f32.mrb[0].mxu0
      %v6426 = vadd.f32 %v6163, %v6425
      %6427 = vmatprep.mubr.bf16.mxu0 0
      %6428 = vmatmul.mubr.bf16.gmra.mrb[0].mxu0 %v6343
      %v6429 = vpop.f32.mrb[0].mxu0
      %v6430 = vadd.f32 %v6164, %v6429
      %v6431 = vpop.f32.mrb[0].mxu0
      %v6432 = vadd.f32 %v6165, %v6431
      %v6433 = vpop.f32.mrb[0].mxu0
      %v6434 = vadd.f32 %v6166, %v6433
      %v6435 = vpop.f32.mrb[0].mxu0
      %v6436 = vadd.f32 %v6167, %v6435
      %6437 = vmatprep.mubr.bf16.mxu0 0
      %6438 = vmatmul.mubr.bf16.gmra.mrb[0].mxu0 %v6346
      %v6439 = vpop.f32.mrb[0].mxu0
      %v6440 = vadd.f32 %v6168, %v6439
      %v6441 = vpop.f32.mrb[0].mxu0
      %v6442 = vadd.f32 %v6169, %v6441
      %v6443 = vpop.f32.mrb[0].mxu0
      %v6444 = vadd.f32 %v6170, %v6443
      %v6445 = vpop.f32.mrb[0].mxu0
      %v6446 = vadd.f32 %v6171, %v6445
      %6447 = vdwg.mxu0
      %6448 = vrot.lane.b32.xlu0 %v874, 104
      %v6449 = vpop.permute.xlu0 %6448
      %6450 = vrot.lane.b32.xlu0 %v875, 104
      %v6451 = vpop.permute.xlu0 %6450
      %6452 = vrot.lane.b32.xlu0 %v876, 104
      %v6453 = vpop.permute.xlu0 %6452
      %6454 = vrot.lane.b32.xlu0 %v877, 104
      %v6455 = vpop.permute.xlu0 %6454
      %6456 = vrot.lane.b32.xlu0 %v914, 104
      %v6457 = vpop.permute.xlu0 %6456
      %6458 = vrot.lane.b32.xlu0 %v915, 104
      %v6459 = vpop.permute.xlu0 %6458
      %6460 = vrot.lane.b32.xlu0 %v916, 104
      %v6461 = vpop.permute.xlu0 %6460
      %6462 = vrot.lane.b32.xlu0 %v917, 104
      %v6463 = vpop.permute.xlu0 %6462
      %6464 = vrot.lane.b32.xlu0 %v918, 104
      %v6465 = vpop.permute.xlu0 %6464
      %6466 = vrot.lane.b32.xlu0 %v919, 104
      %v6467 = vpop.permute.xlu0 %6466
      %6468 = vrot.lane.b32.xlu0 %v920, 104
      %v6469 = vpop.permute.xlu0 %6468
      %6470 = vrot.lane.b32.xlu0 %v921, 104
      %v6471 = vpop.permute.xlu0 %6470
      %6472 = vrot.lane.b32.xlu0 %v922, 104
      %v6473 = vpop.permute.xlu0 %6472
      %v6475 = vsel %vm568, %v6449, 0
      %v6478 = vsel %vm568, %v6451, 0
      %v6481 = vsel %vm568, %v6453, 0
      %v6484 = vsel %vm568, %v6455, 0
      %v6487 = vsel %vm568, %v6457, 0
      %v6490 = vsel %vm568, %v6459, 0
      %v6493 = vsel %vm568, %v6461, 0
      %v6496 = vsel %vm568, %v6463, 0
      %v6499 = vsel %vm568, %v6465, 0
      %v6502 = vsel %vm568, %v6467, 0
      %v6505 = vsel %vm568, %v6469, 0
      %v6508 = vsel %vm568, %v6471, 0
      %v6511 = vsel %vm568, %v6473, 0
      %6513 = vmatprep.subr.bf16.mxu0 0
      %6514 = vmatpush1.bf16.xpose.msra.mxu0 %v6487
      %6515 = vmatprep.subr.bf16.mxu0 0
      %6516 = vmatpush1.bf16.xpose.msra.mxu0 %v6490
      %6517 = vmatprep.subr.bf16.mxu0 0
      %6518 = vmatpush1.bf16.xpose.msra.mxu0 %v6493
      %6519 = vmatprep.subr.bf16.mxu0 0
      %6520 = vmatpush1.bf16.xpose.msra.mxu0 %v6496
      %6521 = vmatprep.subr.bf16.mxu0 0
      %6522 = vmatpush1.bf16.xpose.msra.mxu0 %v6499
      %6523 = vmatprep.subr.bf16.mxu0 0
      %6524 = vmatpush1.bf16.xpose.msra.mxu0 %v6502
      %6525 = vmatprep.subr.bf16.mxu0 0
      %6526 = vmatpush1.bf16.xpose.msra.mxu0 %v6505
      %6527 = vmatprep.subr.bf16.mxu0 0
      %6528 = vmatpush1.bf16.xpose.msra.mxu0 %v6508
      %6529 = vmatprep.subr.bf16.mxu0 0
      %6530 = vmatpush1.bf16.xpose.msra.mxu0 %v6511
      %6531 = vmatprep.subr.bf16.mxu0 0
      %6532 = vmatpush1.bf16.xpose.msra.mxu0 0
      %6533 = vmatprep.subr.bf16.mxu0 0
      %6534 = vmatpush1.bf16.xpose.msra.mxu0 0
      %6535 = vmatprep.subr.bf16.mxu0 0
      %6536 = vmatpush1.bf16.xpose.msra.mxu0 0
      %6537 = vmatprep.subr.bf16.mxu0 0
      %6538 = vmatpush1.bf16.xpose.msra.mxu0 0
      %6539 = vmatprep.subr.bf16.mxu0 0
      %6540 = vmatpush1.bf16.xpose.msra.mxu0 0
      %6541 = vmatprep.subr.bf16.mxu0 0
      %6542 = vmatpush1.bf16.xpose.msra.mxu0 0
      %6543 = vmatprep.subr.bf16.mxu0 0
      %6544 = vmatpush1.bf16.xpose.msra.mxu0 0
      %6545 = vmatprep.mubr.bf16.mxu0 0
      %6546 = vmatmul.mubr.bf16.gmra.mrb[0].mxu0 %v6475
      %v6547 = vpop.f32.mrb[0].mxu0
      %v6548 = vadd.f32 %v6156, %v6547
      %v6549 = vpop.f32.mrb[0].mxu0
      %v6550 = vadd.f32 %v6157, %v6549
      %v6551 = vpop.f32.mrb[0].mxu0
      %v6552 = vadd.f32 %v6158, %v6551
      %v6553 = vpop.f32.mrb[0].mxu0
      %v6554 = vadd.f32 %v6159, %v6553
      %6555 = vmatprep.mubr.bf16.mxu0 0
      %6556 = vmatmul.mubr.bf16.gmra.mrb[0].mxu0 %v6478
      %v6557 = vpop.f32.mrb[0].mxu0
      %v6558 = vadd.f32 %v6160, %v6557
      %v6559 = vpop.f32.mrb[0].mxu0
      %v6560 = vadd.f32 %v6161, %v6559
      %v6561 = vpop.f32.mrb[0].mxu0
      %v6562 = vadd.f32 %v6162, %v6561
      %v6563 = vpop.f32.mrb[0].mxu0
      %v6564 = vadd.f32 %v6163, %v6563
      %6565 = vmatprep.mubr.bf16.mxu0 0
      %6566 = vmatmul.mubr.bf16.gmra.mrb[0].mxu0 %v6481
      %v6567 = vpop.f32.mrb[0].mxu0
      %v6568 = vadd.f32 %v6164, %v6567
      %v6569 = vpop.f32.mrb[0].mxu0
      %v6570 = vadd.f32 %v6165, %v6569
      %v6571 = vpop.f32.mrb[0].mxu0
      %v6572 = vadd.f32 %v6166, %v6571
      %v6573 = vpop.f32.mrb[0].mxu0
      %v6574 = vadd.f32 %v6167, %v6573
      %6575 = vmatprep.mubr.bf16.mxu0 0
      %6576 = vmatmul.mubr.bf16.gmra.mrb[0].mxu0 %v6484
      %v6577 = vpop.f32.mrb[0].mxu0
      %v6578 = vadd.f32 %v6168, %v6577
      %v6579 = vpop.f32.mrb[0].mxu0
      %v6580 = vadd.f32 %v6169, %v6579
      %v6581 = vpop.f32.mrb[0].mxu0
      %v6582 = vadd.f32 %v6170, %v6581
      %v6583 = vpop.f32.mrb[0].mxu0
      %v6584 = vadd.f32 %v6171, %v6583
      %6585 = vdwg.mxu0
      %6586 = vrot.lane.b32.xlu0 %v1051, 104
      %v6587 = vpop.permute.xlu0 %6586
      %6588 = vrot.lane.b32.xlu0 %v1052, 104
      %v6589 = vpop.permute.xlu0 %6588
      %6590 = vrot.lane.b32.xlu0 %v1053, 104
      %v6591 = vpop.permute.xlu0 %6590
      %6592 = vrot.lane.b32.xlu0 %v1054, 104
      %v6593 = vpop.permute.xlu0 %6592
      %6594 = vrot.lane.b32.xlu0 %v1091, 104
      %v6595 = vpop.permute.xlu0 %6594
      %6596 = vrot.lane.b32.xlu0 %v1092, 104
      %v6597 = vpop.permute.xlu0 %6596
      %6598 = vrot.lane.b32.xlu0 %v1093, 104
      %v6599 = vpop.permute.xlu0 %6598
      %6600 = vrot.lane.b32.xlu0 %v1094, 104
      %v6601 = vpop.permute.xlu0 %6600
      %6602 = vrot.lane.b32.xlu0 %v1095, 104
      %v6603 = vpop.permute.xlu0 %6602
      %6604 = vrot.lane.b32.xlu0 %v1096, 104
      %v6605 = vpop.permute.xlu0 %6604
      %6606 = vrot.lane.b32.xlu0 %v1097, 104
      %v6607 = vpop.permute.xlu0 %6606
      %6608 = vrot.lane.b32.xlu0 %v1098, 104
      %v6609 = vpop.permute.xlu0 %6608
      %6610 = vrot.lane.b32.xlu0 %v1099, 104
      %v6611 = vpop.permute.xlu0 %6610
      %v6613 = vsel %vm568, %v6587, 0
      %v6616 = vsel %vm568, %v6589, 0
      %v6619 = vsel %vm568, %v6591, 0
      %v6622 = vsel %vm568, %v6593, 0
      %v6625 = vsel %vm568, %v6595, 0
      %v6628 = vsel %vm568, %v6597, 0
      %v6631 = vsel %vm568, %v6599, 0
      %v6634 = vsel %vm568, %v6601, 0
      %v6637 = vsel %vm568, %v6603, 0
      %v6640 = vsel %vm568, %v6605, 0
      %v6643 = vsel %vm568, %v6607, 0
      %v6646 = vsel %vm568, %v6609, 0
      %v6649 = vsel %vm568, %v6611, 0
      %6651 = vmatprep.subr.bf16.mxu0 0
      %6652 = vmatpush1.bf16.xpose.msra.mxu0 %v6625
      %6653 = vmatprep.subr.bf16.mxu0 0
      %6654 = vmatpush1.bf16.xpose.msra.mxu0 %v6628
      %6655 = vmatprep.subr.bf16.mxu0 0
      %6656 = vmatpush1.bf16.xpose.msra.mxu0 %v6631
      %6657 = vmatprep.subr.bf16.mxu0 0
      %6658 = vmatpush1.bf16.xpose.msra.mxu0 %v6634
      %6659 = vmatprep.subr.bf16.mxu0 0
      %6660 = vmatpush1.bf16.xpose.msra.mxu0 %v6637
      %6661 = vmatprep.subr.bf16.mxu0 0
      %6662 = vmatpush1.bf16.xpose.msra.mxu0 %v6640
      %6663 = vmatprep.subr.bf16.mxu0 0
      %6664 = vmatpush1.bf16.xpose.msra.mxu0 %v6643
      %6665 = vmatprep.subr.bf16.mxu0 0
      %6666 = vmatpush1.bf16.xpose.msra.mxu0 %v6646
      %6667 = vmatprep.subr.bf16.mxu0 0
      %6668 = vmatpush1.bf16.xpose.msra.mxu0 %v6649
      %6669 = vmatprep.subr.bf16.mxu0 0
      %6670 = vmatpush1.bf16.xpose.msra.mxu0 0
      %6671 = vmatprep.subr.bf16.mxu0 0
      %6672 = vmatpush1.bf16.xpose.msra.mxu0 0
      %6673 = vmatprep.subr.bf16.mxu0 0
      %6674 = vmatpush1.bf16.xpose.msra.mxu0 0
      %6675 = vmatprep.subr.bf16.mxu0 0
      %6676 = vmatpush1.bf16.xpose.msra.mxu0 0
      %6677 = vmatprep.subr.bf16.mxu0 0
      %6678 = vmatpush1.bf16.xpose.msra.mxu0 0
      %6679 = vmatprep.subr.bf16.mxu0 0
      %6680 = vmatpush1.bf16.xpose.msra.mxu0 0
      %6681 = vmatprep.subr.bf16.mxu0 0
      %6682 = vmatpush1.bf16.xpose.msra.mxu0 0
      %6683 = vmatprep.mubr.bf16.mxu0 0
      %6684 = vmatmul.mubr.bf16.gmra.mrb[0].mxu0 %v6613
      %v6685 = vpop.f32.mrb[0].mxu0
      %v6686 = vadd.f32 %v6156, %v6685
      %v6687 = vpop.f32.mrb[0].mxu0
      %v6688 = vadd.f32 %v6157, %v6687
      %v6689 = vpop.f32.mrb[0].mxu0
      %v6690 = vadd.f32 %v6158, %v6689
      %v6691 = vpop.f32.mrb[0].mxu0
      %v6692 = vadd.f32 %v6159, %v6691
      %6693 = vmatprep.mubr.bf16.mxu0 0
      %6694 = vmatmul.mubr.bf16.gmra.mrb[0].mxu0 %v6616
      %v6695 = vpop.f32.mrb[0].mxu0
      %v6696 = vadd.f32 %v6160, %v6695
      %v6697 = vpop.f32.mrb[0].mxu0
      %v6698 = vadd.f32 %v6161, %v6697
      %v6699 = vpop.f32.mrb[0].mxu0
      %v6700 = vadd.f32 %v6162, %v6699
      %v6701 = vpop.f32.mrb[0].mxu0
      %v6702 = vadd.f32 %v6163, %v6701
      %6703 = vmatprep.mubr.bf16.mxu0 0
      %6704 = vmatmul.mubr.bf16.gmra.mrb[0].mxu0 %v6619
      %v6705 = vpop.f32.mrb[0].mxu0
      %v6706 = vadd.f32 %v6164, %v6705
      %v6707 = vpop.f32.mrb[0].mxu0
      %v6708 = vadd.f32 %v6165, %v6707
      %v6709 = vpop.f32.mrb[0].mxu0
      %v6710 = vadd.f32 %v6166, %v6709
      %v6711 = vpop.f32.mrb[0].mxu0
      %v6712 = vadd.f32 %v6167, %v6711
      %6713 = vmatprep.mubr.bf16.mxu0 0
      %6714 = vmatmul.mubr.bf16.gmra.mrb[0].mxu0 %v6622
      %v6715 = vpop.f32.mrb[0].mxu0
      %v6716 = vadd.f32 %v6168, %v6715
      %v6717 = vpop.f32.mrb[0].mxu0
      %v6718 = vadd.f32 %v6169, %v6717
      %v6719 = vpop.f32.mrb[0].mxu0
      %v6720 = vadd.f32 %v6170, %v6719
      %v6721 = vpop.f32.mrb[0].mxu0
      %v6722 = vadd.f32 %v6171, %v6721
      %6723 = vdwg.mxu0
      %v6724 = vsel %vm1212, %v6274, -inf
      %v6725 = vmax.f32 %v6272, %v6724
      %6726 = vmax.xlane.f32.xlu0 %v6725
      %v6727 = vpop.xlane.xlu0 %6726
      %v6728 = vsel %vm1212, %v6278, -inf
      %v6729 = vmax.f32 %v6276, %v6728
      %6730 = vmax.xlane.f32.xlu0 %v6729
      %v6731 = vpop.xlane.xlu0 %6730
      %v6732 = vsel %vm1212, %v6284, -inf
      %v6733 = vmax.f32 %v6282, %v6732
      %6734 = vmax.xlane.f32.xlu0 %v6733
      %v6735 = vpop.xlane.xlu0 %6734
      %v6736 = vsel %vm1212, %v6288, -inf
      %v6737 = vmax.f32 %v6286, %v6736
      %6738 = vmax.xlane.f32.xlu0 %v6737
      %v6739 = vpop.xlane.xlu0 %6738
      %v6740 = vsel %vm1212, %v6294, -inf
      %v6741 = vmax.f32 %v6292, %v6740
      %6742 = vmax.xlane.f32.xlu0 %v6741
      %v6743 = vpop.xlane.xlu0 %6742
      %v6744 = vsel %vm1212, %v6298, -inf
      %v6745 = vmax.f32 %v6296, %v6744
      %6746 = vmax.xlane.f32.xlu0 %v6745
      %v6747 = vpop.xlane.xlu0 %6746
      %v6748 = vsel %vm1212, %v6304, -inf
      %v6749 = vmax.f32 %v6302, %v6748
      %6750 = vmax.xlane.f32.xlu0 %v6749
      %v6751 = vpop.xlane.xlu0 %6750
      %v6752 = vsel %vm1212, %v6308, -inf
      %v6753 = vmax.f32 %v6306, %v6752
      %6754 = vmax.xlane.f32.xlu0 %v6753
      %v6755 = vpop.xlane.xlu0 %6754
      %v6756 = vsel %vm1212, %v6412, -inf
      %v6757 = vmax.f32 %v6410, %v6756
      %6758 = vmax.xlane.f32.xlu0 %v6757
      %v6759 = vpop.xlane.xlu0 %6758
      %v6760 = vsel %vm1212, %v6416, -inf
      %v6761 = vmax.f32 %v6414, %v6760
      %6762 = vmax.xlane.f32.xlu0 %v6761
      %v6763 = vpop.xlane.xlu0 %6762
      %v6764 = vsel %vm1212, %v6422, -inf
      %v6765 = vmax.f32 %v6420, %v6764
      %6766 = vmax.xlane.f32.xlu0 %v6765
      %v6767 = vpop.xlane.xlu0 %6766
      %v6768 = vsel %vm1212, %v6426, -inf
      %v6769 = vmax.f32 %v6424, %v6768
      %6770 = vmax.xlane.f32.xlu0 %v6769
      %v6771 = vpop.xlane.xlu0 %6770
      %v6772 = vsel %vm1212, %v6432, -inf
      %v6773 = vmax.f32 %v6430, %v6772
      %6774 = vmax.xlane.f32.xlu0 %v6773
      %v6775 = vpop.xlane.xlu0 %6774
      %v6776 = vsel %vm1212, %v6436, -inf
      %v6777 = vmax.f32 %v6434, %v6776
      %6778 = vmax.xlane.f32.xlu0 %v6777
      %v6779 = vpop.xlane.xlu0 %6778
      %v6780 = vsel %vm1212, %v6442, -inf
      %v6781 = vmax.f32 %v6440, %v6780
      %6782 = vmax.xlane.f32.xlu0 %v6781
      %v6783 = vpop.xlane.xlu0 %6782
      %v6784 = vsel %vm1212, %v6446, -inf
      %v6785 = vmax.f32 %v6444, %v6784
      %6786 = vmax.xlane.f32.xlu0 %v6785
      %v6787 = vpop.xlane.xlu0 %6786
      %v6788 = vsel %vm1212, %v6550, -inf
      %v6789 = vmax.f32 %v6548, %v6788
      %6790 = vmax.xlane.f32.xlu0 %v6789
      %v6791 = vpop.xlane.xlu0 %6790
      %v6792 = vsel %vm1212, %v6554, -inf
      %v6793 = vmax.f32 %v6552, %v6792
      %6794 = vmax.xlane.f32.xlu0 %v6793
      %v6795 = vpop.xlane.xlu0 %6794
      %v6796 = vsel %vm1212, %v6560, -inf
      %v6797 = vmax.f32 %v6558, %v6796
      %6798 = vmax.xlane.f32.xlu0 %v6797
      %v6799 = vpop.xlane.xlu0 %6798
      %v6800 = vsel %vm1212, %v6564, -inf
      %v6801 = vmax.f32 %v6562, %v6800
      %6802 = vmax.xlane.f32.xlu0 %v6801
      %v6803 = vpop.xlane.xlu0 %6802
      %v6804 = vsel %vm1212, %v6570, -inf
      %v6805 = vmax.f32 %v6568, %v6804
      %6806 = vmax.xlane.f32.xlu0 %v6805
      %v6807 = vpop.xlane.xlu0 %6806
      %v6808 = vsel %vm1212, %v6574, -inf
      %v6809 = vmax.f32 %v6572, %v6808
      %6810 = vmax.xlane.f32.xlu0 %v6809
      %v6811 = vpop.xlane.xlu0 %6810
      %v6812 = vsel %vm1212, %v6580, -inf
      %v6813 = vmax.f32 %v6578, %v6812
      %6814 = vmax.xlane.f32.xlu0 %v6813
      %v6815 = vpop.xlane.xlu0 %6814
      %v6816 = vsel %vm1212, %v6584, -inf
      %v6817 = vmax.f32 %v6582, %v6816
      %6818 = vmax.xlane.f32.xlu0 %v6817
      %v6819 = vpop.xlane.xlu0 %6818
      %v6820 = vsel %vm1212, %v6688, -inf
      %v6821 = vmax.f32 %v6686, %v6820
      %6822 = vmax.xlane.f32.xlu0 %v6821
      %v6823 = vpop.xlane.xlu0 %6822
      %v6824 = vsel %vm1212, %v6692, -inf
      %v6825 = vmax.f32 %v6690, %v6824
      %6826 = vmax.xlane.f32.xlu0 %v6825
      %v6827 = vpop.xlane.xlu0 %6826
      %v6828 = vsel %vm1212, %v6698, -inf
      %v6829 = vmax.f32 %v6696, %v6828
      %6830 = vmax.xlane.f32.xlu0 %v6829
      %v6831 = vpop.xlane.xlu0 %6830
      %v6832 = vsel %vm1212, %v6702, -inf
      %v6833 = vmax.f32 %v6700, %v6832
      %6834 = vmax.xlane.f32.xlu0 %v6833
      %v6835 = vpop.xlane.xlu0 %6834
      %v6836 = vsel %vm1212, %v6708, -inf
      %v6837 = vmax.f32 %v6706, %v6836
      %6838 = vmax.xlane.f32.xlu0 %v6837
      %v6839 = vpop.xlane.xlu0 %6838
      %v6840 = vsel %vm1212, %v6712, -inf
      %v6841 = vmax.f32 %v6710, %v6840
      %6842 = vmax.xlane.f32.xlu0 %v6841
      %v6843 = vpop.xlane.xlu0 %6842
      %v6844 = vsel %vm1212, %v6718, -inf
      %v6845 = vmax.f32 %v6716, %v6844
      %6846 = vmax.xlane.f32.xlu0 %v6845
      %v6847 = vpop.xlane.xlu0 %6846
      %v6848 = vsel %vm1212, %v6722, -inf
      %v6849 = vmax.f32 %v6720, %v6848
      %6850 = vmax.xlane.f32.xlu0 %v6849
      %v6851 = vpop.xlane.xlu0 %6850
      %v6852 = vsub.f32 %v6272, %v6727
      %v6853 = vsub.f32 %v6274, %v6727
      %v6854 = vsub.f32 %v6276, %v6731
      %v6855 = vsub.f32 %v6278, %v6731
      %v6856 = vsub.f32 %v6282, %v6735
      %v6857 = vsub.f32 %v6284, %v6735
      %v6858 = vsub.f32 %v6286, %v6739
      %v6859 = vsub.f32 %v6288, %v6739
      %v6860 = vsub.f32 %v6292, %v6743
      %v6861 = vsub.f32 %v6294, %v6743
      %v6862 = vsub.f32 %v6296, %v6747
      %v6863 = vsub.f32 %v6298, %v6747
      %v6864 = vsub.f32 %v6302, %v6751
      %v6865 = vsub.f32 %v6304, %v6751
      %v6866 = vsub.f32 %v6306, %v6755
      %v6867 = vsub.f32 %v6308, %v6755
      %v6868 = vsub.f32 %v6410, %v6759
      %v6869 = vsub.f32 %v6412, %v6759
      %v6870 = vsub.f32 %v6414, %v6763
      %v6871 = vsub.f32 %v6416, %v6763
      %v6872 = vsub.f32 %v6420, %v6767
      %v6873 = vsub.f32 %v6422, %v6767
      %v6874 = vsub.f32 %v6424, %v6771
      %v6875 = vsub.f32 %v6426, %v6771
      %v6876 = vsub.f32 %v6430, %v6775
      %v6877 = vsub.f32 %v6432, %v6775
      %v6878 = vsub.f32 %v6434, %v6779
      %v6879 = vsub.f32 %v6436, %v6779
      %v6880 = vsub.f32 %v6440, %v6783
      %v6881 = vsub.f32 %v6442, %v6783
      %v6882 = vsub.f32 %v6444, %v6787
      %v6883 = vsub.f32 %v6446, %v6787
      %v6884 = vsub.f32 %v6548, %v6791
      %v6885 = vsub.f32 %v6550, %v6791
      %v6886 = vsub.f32 %v6552, %v6795
      %v6887 = vsub.f32 %v6554, %v6795
      %v6888 = vsub.f32 %v6558, %v6799
      %v6889 = vsub.f32 %v6560, %v6799
      %v6890 = vsub.f32 %v6562, %v6803
      %v6891 = vsub.f32 %v6564, %v6803
      %v6892 = vsub.f32 %v6568, %v6807
      %v6893 = vsub.f32 %v6570, %v6807
      %v6894 = vsub.f32 %v6572, %v6811
      %v6895 = vsub.f32 %v6574, %v6811
      %v6896 = vsub.f32 %v6578, %v6815
      %v6897 = vsub.f32 %v6580, %v6815
      %v6898 = vsub.f32 %v6582, %v6819
      %v6899 = vsub.f32 %v6584, %v6819
      %v6900 = vsub.f32 %v6686, %v6823
      %v6901 = vsub.f32 %v6688, %v6823
      %v6902 = vsub.f32 %v6690, %v6827
      %v6903 = vsub.f32 %v6692, %v6827
      %v6904 = vsub.f32 %v6696, %v6831
      %v6905 = vsub.f32 %v6698, %v6831
      %v6906 = vsub.f32 %v6700, %v6835
      %v6907 = vsub.f32 %v6702, %v6835
      %v6908 = vsub.f32 %v6706, %v6839
      %v6909 = vsub.f32 %v6708, %v6839
      %v6910 = vsub.f32 %v6710, %v6843
      %v6911 = vsub.f32 %v6712, %v6843
      %v6912 = vsub.f32 %v6716, %v6847
      %v6913 = vsub.f32 %v6718, %v6847
      %v6914 = vsub.f32 %v6720, %v6851
      %v6915 = vsub.f32 %v6722, %v6851
      %v6916 = vmul.f32 %v6852, 1.442695
      %v6917 = vpow.pop %v6916
      %v6918 = vmul.f32 %v6853, 1.442695
      %v6919 = vpow.pop %v6918
      %v6920 = vmul.f32 %v6854, 1.442695
      %v6921 = vpow.pop %v6920
      %v6922 = vmul.f32 %v6855, 1.442695
      %v6923 = vpow.pop %v6922
      %v6924 = vmul.f32 %v6856, 1.442695
      %v6925 = vpow.pop %v6924
      %v6926 = vmul.f32 %v6857, 1.442695
      %v6927 = vpow.pop %v6926
      %v6928 = vmul.f32 %v6858, 1.442695
      %v6929 = vpow.pop %v6928
      %v6930 = vmul.f32 %v6859, 1.442695
      %v6931 = vpow.pop %v6930
      %v6932 = vmul.f32 %v6860, 1.442695
      %v6933 = vpow.pop %v6932
      %v6934 = vmul.f32 %v6861, 1.442695
      %v6935 = vpow.pop %v6934
      %v6936 = vmul.f32 %v6862, 1.442695
      %v6937 = vpow.pop %v6936
      %v6938 = vmul.f32 %v6863, 1.442695
      %v6939 = vpow.pop %v6938
      %v6940 = vmul.f32 %v6864, 1.442695
      %v6941 = vpow.pop %v6940
      %v6942 = vmul.f32 %v6865, 1.442695
      %v6943 = vpow.pop %v6942
      %v6944 = vmul.f32 %v6866, 1.442695
      %v6945 = vpow.pop %v6944
      %v6946 = vmul.f32 %v6867, 1.442695
      %v6947 = vpow.pop %v6946
      %v6948 = vmul.f32 %v6868, 1.442695
      %v6949 = vpow.pop %v6948
      %v6950 = vmul.f32 %v6869, 1.442695
      %v6951 = vpow.pop %v6950
      %v6952 = vmul.f32 %v6870, 1.442695
      %v6953 = vpow.pop %v6952
      %v6954 = vmul.f32 %v6871, 1.442695
      %v6955 = vpow.pop %v6954
      %v6956 = vmul.f32 %v6872, 1.442695
      %v6957 = vpow.pop %v6956
      %v6958 = vmul.f32 %v6873, 1.442695
      %v6959 = vpow.pop %v6958
      %v6960 = vmul.f32 %v6874, 1.442695
      %v6961 = vpow.pop %v6960
      %v6962 = vmul.f32 %v6875, 1.442695
      %v6963 = vpow.pop %v6962
      %v6964 = vmul.f32 %v6876, 1.442695
      %v6965 = vpow.pop %v6964
      %v6966 = vmul.f32 %v6877, 1.442695
      %v6967 = vpow.pop %v6966
      %v6968 = vmul.f32 %v6878, 1.442695
      %v6969 = vpow.pop %v6968
      %v6970 = vmul.f32 %v6879, 1.442695
      %v6971 = vpow.pop %v6970
      %v6972 = vmul.f32 %v6880, 1.442695
      %v6973 = vpow.pop %v6972
      %v6974 = vmul.f32 %v6881, 1.442695
      %v6975 = vpow.pop %v6974
      %v6976 = vmul.f32 %v6882, 1.442695
      %v6977 = vpow.pop %v6976
      %v6978 = vmul.f32 %v6883, 1.442695
      %v6979 = vpow.pop %v6978
      %v6980 = vmul.f32 %v6884, 1.442695
      %v6981 = vpow.pop %v6980
      %v6982 = vmul.f32 %v6885, 1.442695
      %v6983 = vpow.pop %v6982
      %v6984 = vmul.f32 %v6886, 1.442695
      %v6985 = vpow.pop %v6984
      %v6986 = vmul.f32 %v6887, 1.442695
      %v6987 = vpow.pop %v6986
      %v6988 = vmul.f32 %v6888, 1.442695
      %v6989 = vpow.pop %v6988
      %v6990 = vmul.f32 %v6889, 1.442695
      %v6991 = vpow.pop %v6990
      %v6992 = vmul.f32 %v6890, 1.442695
      %v6993 = vpow.pop %v6992
      %v6994 = vmul.f32 %v6891, 1.442695
      %v6995 = vpow.pop %v6994
      %v6996 = vmul.f32 %v6892, 1.442695
      %v6997 = vpow.pop %v6996
      %v6998 = vmul.f32 %v6893, 1.442695
      %v6999 = vpow.pop %v6998
      %v7000 = vmul.f32 %v6894, 1.442695
      %v7001 = vpow.pop %v7000
      %v7002 = vmul.f32 %v6895, 1.442695
      %v7003 = vpow.pop %v7002
      %v7004 = vmul.f32 %v6896, 1.442695
      %v7005 = vpow.pop %v7004
      %v7006 = vmul.f32 %v6897, 1.442695
      %v7007 = vpow.pop %v7006
      %v7008 = vmul.f32 %v6898, 1.442695
      %v7009 = vpow.pop %v7008
      %v7010 = vmul.f32 %v6899, 1.442695
      %v7011 = vpow.pop %v7010
      %v7012 = vmul.f32 %v6900, 1.442695
      %v7013 = vpow.pop %v7012
      %v7014 = vmul.f32 %v6901, 1.442695
      %v7015 = vpow.pop %v7014
      %v7016 = vmul.f32 %v6902, 1.442695
      %v7017 = vpow.pop %v7016
      %v7018 = vmul.f32 %v6903, 1.442695
      %v7019 = vpow.pop %v7018
      %v7020 = vmul.f32 %v6904, 1.442695
      %v7021 = vpow.pop %v7020
      %v7022 = vmul.f32 %v6905, 1.442695
      %v7023 = vpow.pop %v7022
      %v7024 = vmul.f32 %v6906, 1.442695
      %v7025 = vpow.pop %v7024
      %v7026 = vmul.f32 %v6907, 1.442695
      %v7027 = vpow.pop %v7026
      %v7028 = vmul.f32 %v6908, 1.442695
      %v7029 = vpow.pop %v7028
      %v7030 = vmul.f32 %v6909, 1.442695
      %v7031 = vpow.pop %v7030
      %v7032 = vmul.f32 %v6910, 1.442695
      %v7033 = vpow.pop %v7032
      %v7034 = vmul.f32 %v6911, 1.442695
      %v7035 = vpow.pop %v7034
      %v7036 = vmul.f32 %v6912, 1.442695
      %v7037 = vpow.pop %v7036
      %v7038 = vmul.f32 %v6913, 1.442695
      %v7039 = vpow.pop %v7038
      %v7040 = vmul.f32 %v6914, 1.442695
      %v7041 = vpow.pop %v7040
      %v7042 = vmul.f32 %v6915, 1.442695
      %v7043 = vpow.pop %v7042
      %v7044 = vsel %vm1212, %v6919, 0.0
      %v7045 = vadd.f32 %v6917, %v7044
      %7046 = vadd.xlane.f32.xlu0 %v7045
      %v7047 = vpop.xlane.xlu0 %7046
      %v7048 = vsel %vm1212, %v6923, 0.0
      %v7049 = vadd.f32 %v6921, %v7048
      %7050 = vadd.xlane.f32.xlu0 %v7049
      %v7051 = vpop.xlane.xlu0 %7050
      %v7052 = vsel %vm1212, %v6927, 0.0
      %v7053 = vadd.f32 %v6925, %v7052
      %7054 = vadd.xlane.f32.xlu0 %v7053
      %v7055 = vpop.xlane.xlu0 %7054
      %v7056 = vsel %vm1212, %v6931, 0.0
      %v7057 = vadd.f32 %v6929, %v7056
      %7058 = vadd.xlane.f32.xlu0 %v7057
      %v7059 = vpop.xlane.xlu0 %7058
      %v7060 = vsel %vm1212, %v6935, 0.0
      %v7061 = vadd.f32 %v6933, %v7060
      %7062 = vadd.xlane.f32.xlu0 %v7061
      %v7063 = vpop.xlane.xlu0 %7062
      %v7064 = vsel %vm1212, %v6939, 0.0
      %v7065 = vadd.f32 %v6937, %v7064
      %7066 = vadd.xlane.f32.xlu0 %v7065
      %v7067 = vpop.xlane.xlu0 %7066
      %v7068 = vsel %vm1212, %v6943, 0.0
      %v7069 = vadd.f32 %v6941, %v7068
      %7070 = vadd.xlane.f32.xlu0 %v7069
      %v7071 = vpop.xlane.xlu0 %7070
      %v7072 = vsel %vm1212, %v6947, 0.0
      %v7073 = vadd.f32 %v6945, %v7072
      %7074 = vadd.xlane.f32.xlu0 %v7073
      %v7075 = vpop.xlane.xlu0 %7074
      %v7076 = vsel %vm1212, %v6951, 0.0
      %v7077 = vadd.f32 %v6949, %v7076
      %7078 = vadd.xlane.f32.xlu0 %v7077
      %v7079 = vpop.xlane.xlu0 %7078
      %v7080 = vsel %vm1212, %v6955, 0.0
      %v7081 = vadd.f32 %v6953, %v7080
      %7082 = vadd.xlane.f32.xlu0 %v7081
      %v7083 = vpop.xlane.xlu0 %7082
      %v7084 = vsel %vm1212, %v6959, 0.0
      %v7085 = vadd.f32 %v6957, %v7084
      %7086 = vadd.xlane.f32.xlu0 %v7085
      %v7087 = vpop.xlane.xlu0 %7086
      %v7088 = vsel %vm1212, %v6963, 0.0
      %v7089 = vadd.f32 %v6961, %v7088
      %7090 = vadd.xlane.f32.xlu0 %v7089
      %v7091 = vpop.xlane.xlu0 %7090
      %v7092 = vsel %vm1212, %v6967, 0.0
      %v7093 = vadd.f32 %v6965, %v7092
      %7094 = vadd.xlane.f32.xlu0 %v7093
      %v7095 = vpop.xlane.xlu0 %7094
      %v7096 = vsel %vm1212, %v6971, 0.0
      %v7097 = vadd.f32 %v6969, %v7096
      %7098 = vadd.xlane.f32.xlu0 %v7097
      %v7099 = vpop.xlane.xlu0 %7098
      %v7100 = vsel %vm1212, %v6975, 0.0
      %v7101 = vadd.f32 %v6973, %v7100
      %7102 = vadd.xlane.f32.xlu0 %v7101
      %v7103 = vpop.xlane.xlu0 %7102
      %v7104 = vsel %vm1212, %v6979, 0.0
      %v7105 = vadd.f32 %v6977, %v7104
      %7106 = vadd.xlane.f32.xlu0 %v7105
      %v7107 = vpop.xlane.xlu0 %7106
      %v7108 = vsel %vm1212, %v6983, 0.0
      %v7109 = vadd.f32 %v6981, %v7108
      %7110 = vadd.xlane.f32.xlu0 %v7109
      %v7111 = vpop.xlane.xlu0 %7110
      %v7112 = vsel %vm1212, %v6987, 0.0
      %v7113 = vadd.f32 %v6985, %v7112
      %7114 = vadd.xlane.f32.xlu0 %v7113
      %v7115 = vpop.xlane.xlu0 %7114
      %v7116 = vsel %vm1212, %v6991, 0.0
      %v7117 = vadd.f32 %v6989, %v7116
      %7118 = vadd.xlane.f32.xlu0 %v7117
      %v7119 = vpop.xlane.xlu0 %7118
      %v7120 = vsel %vm1212, %v6995, 0.0
      %v7121 = vadd.f32 %v6993, %v7120
      %7122 = vadd.xlane.f32.xlu0 %v7121
      %v7123 = vpop.xlane.xlu0 %7122
      %v7124 = vsel %vm1212, %v6999, 0.0
      %v7125 = vadd.f32 %v6997, %v7124
      %7126 = vadd.xlane.f32.xlu0 %v7125
      %v7127 = vpop.xlane.xlu0 %7126
      %v7128 = vsel %vm1212, %v7003, 0.0
      %v7129 = vadd.f32 %v7001, %v7128
      %7130 = vadd.xlane.f32.xlu0 %v7129
      %v7131 = vpop.xlane.xlu0 %7130
      %v7132 = vsel %vm1212, %v7007, 0.0
      %v7133 = vadd.f32 %v7005, %v7132
      %7134 = vadd.xlane.f32.xlu0 %v7133
      %v7135 = vpop.xlane.xlu0 %7134
      %v7136 = vsel %vm1212, %v7011, 0.0
      %v7137 = vadd.f32 %v7009, %v7136
      %7138 = vadd.xlane.f32.xlu0 %v7137
      %v7139 = vpop.xlane.xlu0 %7138
      %v7140 = vsel %vm1212, %v7015, 0.0
      %v7141 = vadd.f32 %v7013, %v7140
      %7142 = vadd.xlane.f32.xlu0 %v7141
      %v7143 = vpop.xlane.xlu0 %7142
      %v7144 = vsel %vm1212, %v7019, 0.0
      %v7145 = vadd.f32 %v7017, %v7144
      %7146 = vadd.xlane.f32.xlu0 %v7145
      %v7147 = vpop.xlane.xlu0 %7146
      %v7148 = vsel %vm1212, %v7023, 0.0
      %v7149 = vadd.f32 %v7021, %v7148
      %7150 = vadd.xlane.f32.xlu0 %v7149
      %v7151 = vpop.xlane.xlu0 %7150
      %v7152 = vsel %vm1212, %v7027, 0.0
      %v7153 = vadd.f32 %v7025, %v7152
      %7154 = vadd.xlane.f32.xlu0 %v7153
      %v7155 = vpop.xlane.xlu0 %7154
      %v7156 = vsel %vm1212, %v7031, 0.0
      %v7157 = vadd.f32 %v7029, %v7156
      %7158 = vadd.xlane.f32.xlu0 %v7157
      %v7159 = vpop.xlane.xlu0 %7158
      %v7160 = vsel %vm1212, %v7035, 0.0
      %v7161 = vadd.f32 %v7033, %v7160
      %7162 = vadd.xlane.f32.xlu0 %v7161
      %v7163 = vpop.xlane.xlu0 %7162
      %v7164 = vsel %vm1212, %v7039, 0.0
      %v7165 = vadd.f32 %v7037, %v7164
      %7166 = vadd.xlane.f32.xlu0 %v7165
      %v7167 = vpop.xlane.xlu0 %7166
      %v7168 = vsel %vm1212, %v7043, 0.0
      %v7169 = vadd.f32 %v7041, %v7168
      %7170 = vadd.xlane.f32.xlu0 %v7169
      %v7171 = vpop.xlane.xlu0 %7170
      %v7172 = vrcp.pop %v7047
      %v7173 = vrcp.pop %v7051
      %v7174 = vrcp.pop %v7055
      %v7175 = vrcp.pop %v7059
      %v7176 = vrcp.pop %v7063
      %v7177 = vrcp.pop %v7067
      %v7178 = vrcp.pop %v7071
      %v7179 = vrcp.pop %v7075
      %v7180 = vrcp.pop %v7079
      %v7181 = vrcp.pop %v7083
      %v7182 = vrcp.pop %v7087
      %v7183 = vrcp.pop %v7091
      %v7184 = vrcp.pop %v7095
      %v7185 = vrcp.pop %v7099
      %v7186 = vrcp.pop %v7103
      %v7187 = vrcp.pop %v7107
      %v7188 = vrcp.pop %v7111
      %v7189 = vrcp.pop %v7115
      %v7190 = vrcp.pop %v7119
      %v7191 = vrcp.pop %v7123
      %v7192 = vrcp.pop %v7127
      %v7193 = vrcp.pop %v7131
      %v7194 = vrcp.pop %v7135
      %v7195 = vrcp.pop %v7139
      %v7196 = vrcp.pop %v7143
      %v7197 = vrcp.pop %v7147
      %v7198 = vrcp.pop %v7151
      %v7199 = vrcp.pop %v7155
      %v7200 = vrcp.pop %v7159
      %v7201 = vrcp.pop %v7163
      %v7202 = vrcp.pop %v7167
      %v7203 = vrcp.pop %v7171
      %v7204 = vmul.f32 %v6917, %v7172
      %v7205 = vmul.f32 %v6919, %v7172
      %v7206 = vmul.f32 %v6921, %v7173
      %v7207 = vmul.f32 %v6923, %v7173
      %v7208 = vmul.f32 %v6925, %v7174
      %v7209 = vmul.f32 %v6927, %v7174
      %v7210 = vmul.f32 %v6929, %v7175
      %v7211 = vmul.f32 %v6931, %v7175
      %v7212 = vmul.f32 %v6933, %v7176
      %v7213 = vmul.f32 %v6935, %v7176
      %v7214 = vmul.f32 %v6937, %v7177
      %v7215 = vmul.f32 %v6939, %v7177
      %v7216 = vmul.f32 %v6941, %v7178
      %v7217 = vmul.f32 %v6943, %v7178
      %v7218 = vmul.f32 %v6945, %v7179
      %v7219 = vmul.f32 %v6947, %v7179
      %v7220 = vmul.f32 %v6949, %v7180
      %v7221 = vmul.f32 %v6951, %v7180
      %v7222 = vmul.f32 %v6953, %v7181
      %v7223 = vmul.f32 %v6955, %v7181
      %v7224 = vmul.f32 %v6957, %v7182
      %v7225 = vmul.f32 %v6959, %v7182
      %v7226 = vmul.f32 %v6961, %v7183
      %v7227 = vmul.f32 %v6963, %v7183
      %v7228 = vmul.f32 %v6965, %v7184
      %v7229 = vmul.f32 %v6967, %v7184
      %v7230 = vmul.f32 %v6969, %v7185
      %v7231 = vmul.f32 %v6971, %v7185
      %v7232 = vmul.f32 %v6973, %v7186
      %v7233 = vmul.f32 %v6975, %v7186
      %v7234 = vmul.f32 %v6977, %v7187
      %v7235 = vmul.f32 %v6979, %v7187
      %v7236 = vmul.f32 %v6981, %v7188
      %v7237 = vmul.f32 %v6983, %v7188
      %v7238 = vmul.f32 %v6985, %v7189
      %v7239 = vmul.f32 %v6987, %v7189
      %v7240 = vmul.f32 %v6989, %v7190
      %v7241 = vmul.f32 %v6991, %v7190
      %v7242 = vmul.f32 %v6993, %v7191
      %v7243 = vmul.f32 %v6995, %v7191
      %v7244 = vmul.f32 %v6997, %v7192
      %v7245 = vmul.f32 %v6999, %v7192
      %v7246 = vmul.f32 %v7001, %v7193
      %v7247 = vmul.f32 %v7003, %v7193
      %v7248 = vmul.f32 %v7005, %v7194
      %v7249 = vmul.f32 %v7007, %v7194
      %v7250 = vmul.f32 %v7009, %v7195
      %v7251 = vmul.f32 %v7011, %v7195
      %v7252 = vmul.f32 %v7013, %v7196
      %v7253 = vmul.f32 %v7015, %v7196
      %v7254 = vmul.f32 %v7017, %v7197
      %v7255 = vmul.f32 %v7019, %v7197
      %v7256 = vmul.f32 %v7021, %v7198
      %v7257 = vmul.f32 %v7023, %v7198
      %v7258 = vmul.f32 %v7025, %v7199
      %v7259 = vmul.f32 %v7027, %v7199
      %v7260 = vmul.f32 %v7029, %v7200
      %v7261 = vmul.f32 %v7031, %v7200
      %v7262 = vmul.f32 %v7033, %v7201
      %v7263 = vmul.f32 %v7035, %v7201
      %v7264 = vmul.f32 %v7037, %v7202
      %v7265 = vmul.f32 %v7039, %v7202
      %v7266 = vmul.f32 %v7041, %v7203
      %v7267 = vmul.f32 %v7043, %v7203
      %v7268 = vpack.c.bf16 %v7206, %v7204
      %v7269 = vpack.c.bf16 %v7207, %v7205
      %v7270 = vpack.c.bf16 %v7210, %v7208
      %v7271 = vpack.c.bf16 %v7211, %v7209
      %v7272 = vpack.c.bf16 %v7214, %v7212
      %v7273 = vpack.c.bf16 %v7215, %v7213
      %v7274 = vpack.c.bf16 %v7218, %v7216
      %v7275 = vpack.c.bf16 %v7219, %v7217
      %v7276 = vpack.c.bf16 %v7222, %v7220
      %v7277 = vpack.c.bf16 %v7223, %v7221
      %v7278 = vpack.c.bf16 %v7226, %v7224
      %v7279 = vpack.c.bf16 %v7227, %v7225
      %v7280 = vpack.c.bf16 %v7230, %v7228
      %v7281 = vpack.c.bf16 %v7231, %v7229
      %v7282 = vpack.c.bf16 %v7234, %v7232
      %v7283 = vpack.c.bf16 %v7235, %v7233
      %v7284 = vpack.c.bf16 %v7238, %v7236
      %v7285 = vpack.c.bf16 %v7239, %v7237
      %v7286 = vpack.c.bf16 %v7242, %v7240
      %v7287 = vpack.c.bf16 %v7243, %v7241
      %v7288 = vpack.c.bf16 %v7246, %v7244
      %v7289 = vpack.c.bf16 %v7247, %v7245
      %v7290 = vpack.c.bf16 %v7250, %v7248
      %v7291 = vpack.c.bf16 %v7251, %v7249
      %v7292 = vpack.c.bf16 %v7254, %v7252
      %v7293 = vpack.c.bf16 %v7255, %v7253
      %v7294 = vpack.c.bf16 %v7258, %v7256
      %v7295 = vpack.c.bf16 %v7259, %v7257
      %v7296 = vpack.c.bf16 %v7262, %v7260
      %v7297 = vpack.c.bf16 %v7263, %v7261
      %v7298 = vpack.c.bf16 %v7266, %v7264
      %v7299 = vpack.c.bf16 %v7267, %v7265
      %7300 = vrot.lane.b32.xlu0 %v1825, 104
      %v7301 = vpop.permute.xlu0 %7300
      %7302 = vrot.lane.b32.xlu0 %v1826, 104
      %v7303 = vpop.permute.xlu0 %7302
      %7304 = vrot.lane.b32.xlu0 %v1827, 104
      %v7305 = vpop.permute.xlu0 %7304
      %7306 = vrot.lane.b32.xlu0 %v1828, 104
      %v7307 = vpop.permute.xlu0 %7306
      %7308 = vrot.lane.b32.xlu0 %v1829, 104
      %v7309 = vpop.permute.xlu0 %7308
      %7310 = vrot.lane.b32.xlu0 %v1830, 104
      %v7311 = vpop.permute.xlu0 %7310
      %7312 = vrot.lane.b32.xlu0 %v1831, 104
      %v7313 = vpop.permute.xlu0 %7312
      %7314 = vrot.lane.b32.xlu0 %v1832, 104
      %v7315 = vpop.permute.xlu0 %7314
      %7316 = vrot.lane.b32.xlu0 %v1833, 104
      %v7317 = vpop.permute.xlu0 %7316
      %v7328 = vsel %vm1212, %v7269, 0
      %v7331 = vsel %vm1212, %v7271, 0
      %v7334 = vsel %vm1212, %v7273, 0
      %v7337 = vsel %vm1212, %v7275, 0
      %7339 = vmatprep.subr.bf16.mxu0 0
      %7340 = vmatpush1.bf16.msra.mxu0 %v7301
      %7341 = vmatprep.subr.bf16.mxu0 0
      %7342 = vmatpush1.bf16.msra.mxu0 %v7303
      %7343 = vmatprep.subr.bf16.mxu0 0
      %7344 = vmatpush1.bf16.msra.mxu0 %v7305
      %7345 = vmatprep.subr.bf16.mxu0 0
      %7346 = vmatpush1.bf16.msra.mxu0 %v7307
      %7347 = vmatprep.subr.bf16.mxu0 0
      %7348 = vmatpush1.bf16.msra.mxu0 %v7309
      %7349 = vmatprep.subr.bf16.mxu0 0
      %7350 = vmatpush1.bf16.msra.mxu0 %v7311
      %7351 = vmatprep.subr.bf16.mxu0 0
      %7352 = vmatpush1.bf16.msra.mxu0 %v7313
      %7353 = vmatprep.subr.bf16.mxu0 0
      %7354 = vmatpush1.bf16.msra.mxu0 %v7315
      %7355 = vmatprep.subr.bf16.mxu0 0
      %7356 = vmatpush1.bf16.msra.mxu0 %v7317
      %7357 = vmatprep.subr.bf16.mxu0 0
      %7358 = vmatpush1.bf16.msra.mxu0 0
      %7359 = vmatprep.subr.bf16.mxu0 0
      %7360 = vmatpush1.bf16.msra.mxu0 0
      %7361 = vmatprep.subr.bf16.mxu0 0
      %7362 = vmatpush1.bf16.msra.mxu0 0
      %7363 = vmatprep.subr.bf16.mxu0 0
      %7364 = vmatpush1.bf16.msra.mxu0 0
      %7365 = vmatprep.subr.bf16.mxu0 0
      %7366 = vmatpush1.bf16.msra.mxu0 0
      %7367 = vmatprep.subr.bf16.mxu0 0
      %7368 = vmatpush1.bf16.msra.mxu0 0
      %7369 = vmatprep.subr.bf16.mxu0 0
      %7370 = vmatpush1.bf16.msra.mxu0 0
      %7371 = vmatprep.mubr.bf16.mxu0 %v7328
      %7372 = vmatmul.mubr.bf16.gmra.mrb[0].mxu0 %v7268
      %v7373 = vpop.f32.mrb[0].mxu0
      %v7374 = vadd.f32 0.0, %v7373
      %v7375 = vpop.f32.mrb[0].mxu0
      %v7376 = vpop.f32.mrb[0].mxu0
      %v7377 = vadd.f32 0.0, %v7376
      %v7378 = vpop.f32.mrb[0].mxu0
      %7379 = vmatprep.mubr.bf16.mxu0 %v7331
      %7380 = vmatmul.mubr.bf16.gmra.mrb[0].mxu0 %v7270
      %v7381 = vpop.f32.mrb[0].mxu0
      %v7382 = vadd.f32 0.0, %v7381
      %v7383 = vpop.f32.mrb[0].mxu0
      %v7384 = vpop.f32.mrb[0].mxu0
      %v7385 = vadd.f32 0.0, %v7384
      %v7386 = vpop.f32.mrb[0].mxu0
      %7387 = vmatprep.mubr.bf16.mxu0 %v7334
      %7388 = vmatmul.mubr.bf16.gmra.mrb[0].mxu0 %v7272
      %v7389 = vpop.f32.mrb[0].mxu0
      %v7390 = vadd.f32 0.0, %v7389
      %v7391 = vpop.f32.mrb[0].mxu0
      %v7392 = vpop.f32.mrb[0].mxu0
      %v7393 = vadd.f32 0.0, %v7392
      %v7394 = vpop.f32.mrb[0].mxu0
      %7395 = vmatprep.mubr.bf16.mxu0 %v7337
      %7396 = vmatmul.mubr.bf16.gmra.mrb[0].mxu0 %v7274
      %v7397 = vpop.f32.mrb[0].mxu0
      %v7398 = vadd.f32 0.0, %v7397
      %v7399 = vpop.f32.mrb[0].mxu0
      %v7400 = vpop.f32.mrb[0].mxu0
      %v7401 = vadd.f32 0.0, %v7400
      %v7402 = vpop.f32.mrb[0].mxu0
      %7403 = vdwg.mxu0
      %7404 = vrot.lane.b32.xlu0 %v1956, 104
      %v7405 = vpop.permute.xlu0 %7404
      %7406 = vrot.lane.b32.xlu0 %v1957, 104
      %v7407 = vpop.permute.xlu0 %7406
      %7408 = vrot.lane.b32.xlu0 %v1958, 104
      %v7409 = vpop.permute.xlu0 %7408
      %7410 = vrot.lane.b32.xlu0 %v1959, 104
      %v7411 = vpop.permute.xlu0 %7410
      %7412 = vrot.lane.b32.xlu0 %v1960, 104
      %v7413 = vpop.permute.xlu0 %7412
      %7414 = vrot.lane.b32.xlu0 %v1961, 104
      %v7415 = vpop.permute.xlu0 %7414
      %7416 = vrot.lane.b32.xlu0 %v1962, 104
      %v7417 = vpop.permute.xlu0 %7416
      %7418 = vrot.lane.b32.xlu0 %v1963, 104
      %v7419 = vpop.permute.xlu0 %7418
      %7420 = vrot.lane.b32.xlu0 %v1964, 104
      %v7421 = vpop.permute.xlu0 %7420
      %v7432 = vsel %vm1212, %v7277, 0
      %v7435 = vsel %vm1212, %v7279, 0
      %v7438 = vsel %vm1212, %v7281, 0
      %v7441 = vsel %vm1212, %v7283, 0
      %7443 = vmatprep.subr.bf16.mxu0 0
      %7444 = vmatpush1.bf16.msra.mxu0 %v7405
      %7445 = vmatprep.subr.bf16.mxu0 0
      %7446 = vmatpush1.bf16.msra.mxu0 %v7407
      %7447 = vmatprep.subr.bf16.mxu0 0
      %7448 = vmatpush1.bf16.msra.mxu0 %v7409
      %7449 = vmatprep.subr.bf16.mxu0 0
      %7450 = vmatpush1.bf16.msra.mxu0 %v7411
      %7451 = vmatprep.subr.bf16.mxu0 0
      %7452 = vmatpush1.bf16.msra.mxu0 %v7413
      %7453 = vmatprep.subr.bf16.mxu0 0
      %7454 = vmatpush1.bf16.msra.mxu0 %v7415
      %7455 = vmatprep.subr.bf16.mxu0 0
      %7456 = vmatpush1.bf16.msra.mxu0 %v7417
      %7457 = vmatprep.subr.bf16.mxu0 0
      %7458 = vmatpush1.bf16.msra.mxu0 %v7419
      %7459 = vmatprep.subr.bf16.mxu0 0
      %7460 = vmatpush1.bf16.msra.mxu0 %v7421
      %7461 = vmatprep.subr.bf16.mxu0 0
      %7462 = vmatpush1.bf16.msra.mxu0 0
      %7463 = vmatprep.subr.bf16.mxu0 0
      %7464 = vmatpush1.bf16.msra.mxu0 0
      %7465 = vmatprep.subr.bf16.mxu0 0
      %7466 = vmatpush1.bf16.msra.mxu0 0
      %7467 = vmatprep.subr.bf16.mxu0 0
      %7468 = vmatpush1.bf16.msra.mxu0 0
      %7469 = vmatprep.subr.bf16.mxu0 0
      %7470 = vmatpush1.bf16.msra.mxu0 0
      %7471 = vmatprep.subr.bf16.mxu0 0
      %7472 = vmatpush1.bf16.msra.mxu0 0
      %7473 = vmatprep.subr.bf16.mxu0 0
      %7474 = vmatpush1.bf16.msra.mxu0 0
      %7475 = vmatprep.mubr.bf16.mxu0 %v7432
      %7476 = vmatmul.mubr.bf16.gmra.mrb[0].mxu0 %v7276
      %v7477 = vpop.f32.mrb[0].mxu0
      %v7478 = vadd.f32 0.0, %v7477
      %v7479 = vpop.f32.mrb[0].mxu0
      %v7480 = vpop.f32.mrb[0].mxu0
      %v7481 = vadd.f32 0.0, %v7480
      %v7482 = vpop.f32.mrb[0].mxu0
      %7483 = vmatprep.mubr.bf16.mxu0 %v7435
      %7484 = vmatmul.mubr.bf16.gmra.mrb[0].mxu0 %v7278
      %v7485 = vpop.f32.mrb[0].mxu0
      %v7486 = vadd.f32 0.0, %v7485
      %v7487 = vpop.f32.mrb[0].mxu0
      %v7488 = vpop.f32.mrb[0].mxu0
      %v7489 = vadd.f32 0.0, %v7488
      %v7490 = vpop.f32.mrb[0].mxu0
      %7491 = vmatprep.mubr.bf16.mxu0 %v7438
      %7492 = vmatmul.mubr.bf16.gmra.mrb[0].mxu0 %v7280
      %v7493 = vpop.f32.mrb[0].mxu0
      %v7494 = vadd.f32 0.0, %v7493
      %v7495 = vpop.f32.mrb[0].mxu0
      %v7496 = vpop.f32.mrb[0].mxu0
      %v7497 = vadd.f32 0.0, %v7496
      %v7498 = vpop.f32.mrb[0].mxu0
      %7499 = vmatprep.mubr.bf16.mxu0 %v7441
      %7500 = vmatmul.mubr.bf16.gmra.mrb[0].mxu0 %v7282
      %v7501 = vpop.f32.mrb[0].mxu0
      %v7502 = vadd.f32 0.0, %v7501
      %v7503 = vpop.f32.mrb[0].mxu0
      %v7504 = vpop.f32.mrb[0].mxu0
      %v7505 = vadd.f32 0.0, %v7504
      %v7506 = vpop.f32.mrb[0].mxu0
      %7507 = vdwg.mxu0
      %7508 = vrot.lane.b32.xlu0 %v2087, 104
      %v7509 = vpop.permute.xlu0 %7508
      %7510 = vrot.lane.b32.xlu0 %v2088, 104
      %v7511 = vpop.permute.xlu0 %7510
      %7512 = vrot.lane.b32.xlu0 %v2089, 104
      %v7513 = vpop.permute.xlu0 %7512
      %7514 = vrot.lane.b32.xlu0 %v2090, 104
      %v7515 = vpop.permute.xlu0 %7514
      %7516 = vrot.lane.b32.xlu0 %v2091, 104
      %v7517 = vpop.permute.xlu0 %7516
      %7518 = vrot.lane.b32.xlu0 %v2092, 104
      %v7519 = vpop.permute.xlu0 %7518
      %7520 = vrot.lane.b32.xlu0 %v2093, 104
      %v7521 = vpop.permute.xlu0 %7520
      %7522 = vrot.lane.b32.xlu0 %v2094, 104
      %v7523 = vpop.permute.xlu0 %7522
      %7524 = vrot.lane.b32.xlu0 %v2095, 104
      %v7525 = vpop.permute.xlu0 %7524
      %v7536 = vsel %vm1212, %v7285, 0
      %v7539 = vsel %vm1212, %v7287, 0
      %v7542 = vsel %vm1212, %v7289, 0
      %v7545 = vsel %vm1212, %v7291, 0
      %7547 = vmatprep.subr.bf16.mxu0 0
      %7548 = vmatpush1.bf16.msra.mxu0 %v7509
      %7549 = vmatprep.subr.bf16.mxu0 0
      %7550 = vmatpush1.bf16.msra.mxu0 %v7511
      %7551 = vmatprep.subr.bf16.mxu0 0
      %7552 = vmatpush1.bf16.msra.mxu0 %v7513
      %7553 = vmatprep.subr.bf16.mxu0 0
      %7554 = vmatpush1.bf16.msra.mxu0 %v7515
      %7555 = vmatprep.subr.bf16.mxu0 0
      %7556 = vmatpush1.bf16.msra.mxu0 %v7517
      %7557 = vmatprep.subr.bf16.mxu0 0
      %7558 = vmatpush1.bf16.msra.mxu0 %v7519
      %7559 = vmatprep.subr.bf16.mxu0 0
      %7560 = vmatpush1.bf16.msra.mxu0 %v7521
      %7561 = vmatprep.subr.bf16.mxu0 0
      %7562 = vmatpush1.bf16.msra.mxu0 %v7523
      %7563 = vmatprep.subr.bf16.mxu0 0
      %7564 = vmatpush1.bf16.msra.mxu0 %v7525
      %7565 = vmatprep.subr.bf16.mxu0 0
      %7566 = vmatpush1.bf16.msra.mxu0 0
      %7567 = vmatprep.subr.bf16.mxu0 0
      %7568 = vmatpush1.bf16.msra.mxu0 0
      %7569 = vmatprep.subr.bf16.mxu0 0
      %7570 = vmatpush1.bf16.msra.mxu0 0
      %7571 = vmatprep.subr.bf16.mxu0 0
      %7572 = vmatpush1.bf16.msra.mxu0 0
      %7573 = vmatprep.subr.bf16.mxu0 0
      %7574 = vmatpush1.bf16.msra.mxu0 0
      %7575 = vmatprep.subr.bf16.mxu0 0
      %7576 = vmatpush1.bf16.msra.mxu0 0
      %7577 = vmatprep.subr.bf16.mxu0 0
      %7578 = vmatpush1.bf16.msra.mxu0 0
      %7579 = vmatprep.mubr.bf16.mxu0 %v7536
      %7580 = vmatmul.mubr.bf16.gmra.mrb[0].mxu0 %v7284
      %v7581 = vpop.f32.mrb[0].mxu0
      %v7582 = vadd.f32 0.0, %v7581
      %v7583 = vpop.f32.mrb[0].mxu0
      %v7584 = vpop.f32.mrb[0].mxu0
      %v7585 = vadd.f32 0.0, %v7584
      %v7586 = vpop.f32.mrb[0].mxu0
      %7587 = vmatprep.mubr.bf16.mxu0 %v7539
      %7588 = vmatmul.mubr.bf16.gmra.mrb[0].mxu0 %v7286
      %v7589 = vpop.f32.mrb[0].mxu0
      %v7590 = vadd.f32 0.0, %v7589
      %v7591 = vpop.f32.mrb[0].mxu0
      %v7592 = vpop.f32.mrb[0].mxu0
      %v7593 = vadd.f32 0.0, %v7592
      %v7594 = vpop.f32.mrb[0].mxu0
      %7595 = vmatprep.mubr.bf16.mxu0 %v7542
      %7596 = vmatmul.mubr.bf16.gmra.mrb[0].mxu0 %v7288
      %v7597 = vpop.f32.mrb[0].mxu0
      %v7598 = vadd.f32 0.0, %v7597
      %v7599 = vpop.f32.mrb[0].mxu0
      %v7600 = vpop.f32.mrb[0].mxu0
      %v7601 = vadd.f32 0.0, %v7600
      %v7602 = vpop.f32.mrb[0].mxu0
      %7603 = vmatprep.mubr.bf16.mxu0 %v7545
      %7604 = vmatmul.mubr.bf16.gmra.mrb[0].mxu0 %v7290
      %v7605 = vpop.f32.mrb[0].mxu0
      %v7606 = vadd.f32 0.0, %v7605
      %v7607 = vpop.f32.mrb[0].mxu0
      %v7608 = vpop.f32.mrb[0].mxu0
      %v7609 = vadd.f32 0.0, %v7608
      %v7610 = vpop.f32.mrb[0].mxu0
      %7611 = vdwg.mxu0
      %7612 = vrot.lane.b32.xlu0 %v2218, 104
      %v7613 = vpop.permute.xlu0 %7612
      %7614 = vrot.lane.b32.xlu0 %v2219, 104
      %v7615 = vpop.permute.xlu0 %7614
      %7616 = vrot.lane.b32.xlu0 %v2220, 104
      %v7617 = vpop.permute.xlu0 %7616
      %7618 = vrot.lane.b32.xlu0 %v2221, 104
      %v7619 = vpop.permute.xlu0 %7618
      %7620 = vrot.lane.b32.xlu0 %v2222, 104
      %v7621 = vpop.permute.xlu0 %7620
      %7622 = vrot.lane.b32.xlu0 %v2223, 104
      %v7623 = vpop.permute.xlu0 %7622
      %7624 = vrot.lane.b32.xlu0 %v2224, 104
      %v7625 = vpop.permute.xlu0 %7624
      %7626 = vrot.lane.b32.xlu0 %v2225, 104
      %v7627 = vpop.permute.xlu0 %7626
      %7628 = vrot.lane.b32.xlu0 %v2226, 104
      %v7629 = vpop.permute.xlu0 %7628
      %v7640 = vsel %vm1212, %v7293, 0
      %v7643 = vsel %vm1212, %v7295, 0
      %v7646 = vsel %vm1212, %v7297, 0
      %v7649 = vsel %vm1212, %v7299, 0
      %7651 = vmatprep.subr.bf16.mxu0 0
      %7652 = vmatpush1.bf16.msra.mxu0 %v7613
      %7653 = vmatprep.subr.bf16.mxu0 0
      %7654 = vmatpush1.bf16.msra.mxu0 %v7615
      %7655 = vmatprep.subr.bf16.mxu0 0
      %7656 = vmatpush1.bf16.msra.mxu0 %v7617
      %7657 = vmatprep.subr.bf16.mxu0 0
      %7658 = vmatpush1.bf16.msra.mxu0 %v7619
      %7659 = vmatprep.subr.bf16.mxu0 0
      %7660 = vmatpush1.bf16.msra.mxu0 %v7621
      %7661 = vmatprep.subr.bf16.mxu0 0
      %7662 = vmatpush1.bf16.msra.mxu0 %v7623
      %7663 = vmatprep.subr.bf16.mxu0 0
      %7664 = vmatpush1.bf16.msra.mxu0 %v7625
      %7665 = vmatprep.subr.bf16.mxu0 0
      %7666 = vmatpush1.bf16.msra.mxu0 %v7627
      %7667 = vmatprep.subr.bf16.mxu0 0
      %7668 = vmatpush1.bf16.msra.mxu0 %v7629
      %7669 = vmatprep.subr.bf16.mxu0 0
      %7670 = vmatpush1.bf16.msra.mxu0 0
      %7671 = vmatprep.subr.bf16.mxu0 0
      %7672 = vmatpush1.bf16.msra.mxu0 0
      %7673 = vmatprep.subr.bf16.mxu0 0
      %7674 = vmatpush1.bf16.msra.mxu0 0
      %7675 = vmatprep.subr.bf16.mxu0 0
      %7676 = vmatpush1.bf16.msra.mxu0 0
      %7677 = vmatprep.subr.bf16.mxu0 0
      %7678 = vmatpush1.bf16.msra.mxu0 0
      %7679 = vmatprep.subr.bf16.mxu0 0
      %7680 = vmatpush1.bf16.msra.mxu0 0
      %7681 = vmatprep.subr.bf16.mxu0 0
      %7682 = vmatpush1.bf16.msra.mxu0 0
      %7683 = vmatprep.mubr.bf16.mxu0 %v7640
      %7684 = vmatmul.mubr.bf16.gmra.mrb[0].mxu0 %v7292
      %v7685 = vpop.f32.mrb[0].mxu0
      %v7686 = vadd.f32 0.0, %v7685
      %v7687 = vpop.f32.mrb[0].mxu0
      %v7688 = vpop.f32.mrb[0].mxu0
      %v7689 = vadd.f32 0.0, %v7688
      %v7690 = vpop.f32.mrb[0].mxu0
      %7691 = vmatprep.mubr.bf16.mxu0 %v7643
      %7692 = vmatmul.mubr.bf16.gmra.mrb[0].mxu0 %v7294
      %v7693 = vpop.f32.mrb[0].mxu0
      %v7694 = vadd.f32 0.0, %v7693
      %v7695 = vpop.f32.mrb[0].mxu0
      %v7696 = vpop.f32.mrb[0].mxu0
      %v7697 = vadd.f32 0.0, %v7696
      %v7698 = vpop.f32.mrb[0].mxu0
      %7699 = vmatprep.mubr.bf16.mxu0 %v7646
      %7700 = vmatmul.mubr.bf16.gmra.mrb[0].mxu0 %v7296
      %v7701 = vpop.f32.mrb[0].mxu0
      %v7702 = vadd.f32 0.0, %v7701
      %v7703 = vpop.f32.mrb[0].mxu0
      %v7704 = vpop.f32.mrb[0].mxu0
      %v7705 = vadd.f32 0.0, %v7704
      %v7706 = vpop.f32.mrb[0].mxu0
      %7707 = vmatprep.mubr.bf16.mxu0 %v7649
      %7708 = vmatmul.mubr.bf16.gmra.mrb[0].mxu0 %v7298
      %v7709 = vpop.f32.mrb[0].mxu0
      %v7710 = vadd.f32 0.0, %v7709
      %v7711 = vpop.f32.mrb[0].mxu0
      %v7712 = vpop.f32.mrb[0].mxu0
      %v7713 = vadd.f32 0.0, %v7712
      %v7714 = vpop.f32.mrb[0].mxu0
      %7715 = vdwg.mxu0
      %v7716 = vpack.c.bf16 %v7377, %v7374
      %v7717 = vpack.c.bf16 %v7385, %v7382
      %v7718 = vpack.c.bf16 %v7393, %v7390
      %v7719 = vpack.c.bf16 %v7401, %v7398
      %v7720 = vpack.c.bf16 %v7481, %v7478
      %v7721 = vpack.c.bf16 %v7489, %v7486
      %v7722 = vpack.c.bf16 %v7497, %v7494
      %v7723 = vpack.c.bf16 %v7505, %v7502
      %v7724 = vpack.c.bf16 %v7585, %v7582
      %v7725 = vpack.c.bf16 %v7593, %v7590
      %v7726 = vpack.c.bf16 %v7601, %v7598
      %v7727 = vpack.c.bf16 %v7609, %v7606
      %v7728 = vpack.c.bf16 %v7689, %v7686
      %v7729 = vpack.c.bf16 %v7697, %v7694
      %v7730 = vpack.c.bf16 %v7705, %v7702
      %v7731 = vpack.c.bf16 %v7713, %v7710
      %v7732 = vld [vmem:[%s4 + $0xc] sm:$0xf]
      %v7734 = vsel %vm568, %v7716, 0
      %v7737 = vsel %vm568, %v7717, 0
      %v7740 = vsel %vm568, %v7718, 0
      %v7743 = vsel %vm568, %v7719, 0
      %v7746 = vsel %vm568, %v7720, 0
      %v7749 = vsel %vm568, %v7721, 0
      %v7752 = vsel %vm568, %v7722, 0
      %v7755 = vsel %vm568, %v7723, 0
      %v7758 = vsel %vm568, %v7724, 0
      %v7761 = vsel %vm568, %v7725, 0
      %v7764 = vsel %vm568, %v7726, 0
      %v7767 = vsel %vm568, %v7727, 0
      %v7770 = vsel %vm568, %v7728, 0
      %v7773 = vsel %vm568, %v7729, 0
      %v7776 = vsel %vm568, %v7730, 0
      %v7779 = vsel %vm568, %v7731, 0
      %v7782 = vsel %vm3956, %v7732, 0
      %7784 = vmatprep.subr.bf16.mxu0 0
      %7785 = vmatpush1.bf16.msra.mxu0 %v7782
      %7786 = vmatprep.subr.bf16.mxu0 0
      %7787 = vmatpush1.bf16.msra.mxu0 0
      %7788 = vmatprep.subr.bf16.mxu0 0
      %7789 = vmatpush1.bf16.msra.mxu0 0
      %7790 = vmatprep.subr.bf16.mxu0 0
      %7791 = vmatpush1.bf16.msra.mxu0 0
      %7792 = vmatprep.subr.bf16.mxu0 0
      %7793 = vmatpush1.bf16.msra.mxu0 0
      %7794 = vmatprep.subr.bf16.mxu0 0
      %7795 = vmatpush1.bf16.msra.mxu0 0
      %7796 = vmatprep.subr.bf16.mxu0 0
      %7797 = vmatpush1.bf16.msra.mxu0 0
      %7798 = vmatprep.subr.bf16.mxu0 0
      %7799 = vmatpush1.bf16.msra.mxu0 0
      %7800 = vmatprep.subr.bf16.mxu0 0
      %7801 = vmatpush1.bf16.msra.mxu0 0
      %7802 = vmatprep.subr.bf16.mxu0 0
      %7803 = vmatpush1.bf16.msra.mxu0 0
      %7804 = vmatprep.subr.bf16.mxu0 0
      %7805 = vmatpush1.bf16.msra.mxu0 0
      %7806 = vmatprep.subr.bf16.mxu0 0
      %7807 = vmatpush1.bf16.msra.mxu0 0
      %7808 = vmatprep.subr.bf16.mxu0 0
      %7809 = vmatpush1.bf16.msra.mxu0 0
      %7810 = vmatprep.subr.bf16.mxu0 0
      %7811 = vmatpush1.bf16.msra.mxu0 0
      %7812 = vmatprep.subr.bf16.mxu0 0
      %7813 = vmatpush1.bf16.msra.mxu0 0
      %7814 = vmatprep.subr.bf16.mxu0 0
      %7815 = vmatpush1.bf16.msra.mxu0 0
      %7816 = vmatprep.mubr.bf16.mxu0 0
      %7817 = vmatmul.mubr.bf16.gmra.mrb[0].mxu0 %v7734
      %v7818 = vpop.f32.mrb[0].mxu0
      %v7819 = vadd.f32 0.0, %v7818
      %v7820 = vpop.f32.mrb[0].mxu0
      %v7821 = vpop.f32.mrb[0].mxu0
      %v7822 = vadd.f32 0.0, %v7821
      %v7823 = vpop.f32.mrb[0].mxu0
      %7824 = vmatprep.mubr.bf16.mxu0 0
      %7825 = vmatmul.mubr.bf16.gmra.mrb[0].mxu0 %v7737
      %v7826 = vpop.f32.mrb[0].mxu0
      %v7827 = vadd.f32 0.0, %v7826
      %v7828 = vpop.f32.mrb[0].mxu0
      %v7829 = vpop.f32.mrb[0].mxu0
      %v7830 = vadd.f32 0.0, %v7829
      %v7831 = vpop.f32.mrb[0].mxu0
      %7832 = vmatprep.mubr.bf16.mxu0 0
      %7833 = vmatmul.mubr.bf16.gmra.mrb[0].mxu0 %v7740
      %v7834 = vpop.f32.mrb[0].mxu0
      %v7835 = vadd.f32 0.0, %v7834
      %v7836 = vpop.f32.mrb[0].mxu0
      %v7837 = vpop.f32.mrb[0].mxu0
      %v7838 = vadd.f32 0.0, %v7837
      %v7839 = vpop.f32.mrb[0].mxu0
      %7840 = vmatprep.mubr.bf16.mxu0 0
      %7841 = vmatmul.mubr.bf16.gmra.mrb[0].mxu0 %v7743
      %v7842 = vpop.f32.mrb[0].mxu0
      %v7843 = vadd.f32 0.0, %v7842
      %v7844 = vpop.f32.mrb[0].mxu0
      %v7845 = vpop.f32.mrb[0].mxu0
      %v7846 = vadd.f32 0.0, %v7845
      %v7847 = vpop.f32.mrb[0].mxu0
      %7848 = vmatprep.mubr.bf16.mxu0 0
      %7849 = vmatmul.mubr.bf16.gmra.mrb[0].mxu0 %v7746
      %v7850 = vpop.f32.mrb[0].mxu0
      %v7851 = vadd.f32 0.0, %v7850
      %v7852 = vpop.f32.mrb[0].mxu0
      %v7853 = vpop.f32.mrb[0].mxu0
      %v7854 = vadd.f32 0.0, %v7853
      %v7855 = vpop.f32.mrb[0].mxu0
      %7856 = vmatprep.mubr.bf16.mxu0 0
      %7857 = vmatmul.mubr.bf16.gmra.mrb[0].mxu0 %v7749
      %v7858 = vpop.f32.mrb[0].mxu0
      %v7859 = vadd.f32 0.0, %v7858
      %v7860 = vpop.f32.mrb[0].mxu0
      %v7861 = vpop.f32.mrb[0].mxu0
      %v7862 = vadd.f32 0.0, %v7861
      %v7863 = vpop.f32.mrb[0].mxu0
      %7864 = vmatprep.mubr.bf16.mxu0 0
      %7865 = vmatmul.mubr.bf16.gmra.mrb[0].mxu0 %v7752
      %v7866 = vpop.f32.mrb[0].mxu0
      %v7867 = vadd.f32 0.0, %v7866
      %v7868 = vpop.f32.mrb[0].mxu0
      %v7869 = vpop.f32.mrb[0].mxu0
      %v7870 = vadd.f32 0.0, %v7869
      %v7871 = vpop.f32.mrb[0].mxu0
      %7872 = vmatprep.mubr.bf16.mxu0 0
      %7873 = vmatmul.mubr.bf16.gmra.mrb[0].mxu0 %v7755
      %v7874 = vpop.f32.mrb[0].mxu0
      %v7875 = vadd.f32 0.0, %v7874
      %v7876 = vpop.f32.mrb[0].mxu0
      %v7877 = vpop.f32.mrb[0].mxu0
      %v7878 = vadd.f32 0.0, %v7877
      %v7879 = vpop.f32.mrb[0].mxu0
      %7880 = vmatprep.mubr.bf16.mxu0 0
      %7881 = vmatmul.mubr.bf16.gmra.mrb[0].mxu0 %v7758
      %v7882 = vpop.f32.mrb[0].mxu0
      %v7883 = vadd.f32 0.0, %v7882
      %v7884 = vpop.f32.mrb[0].mxu0
      %v7885 = vpop.f32.mrb[0].mxu0
      %v7886 = vadd.f32 0.0, %v7885
      %v7887 = vpop.f32.mrb[0].mxu0
      %7888 = vmatprep.mubr.bf16.mxu0 0
      %7889 = vmatmul.mubr.bf16.gmra.mrb[0].mxu0 %v7761
      %v7890 = vpop.f32.mrb[0].mxu0
      %v7891 = vadd.f32 0.0, %v7890
      %v7892 = vpop.f32.mrb[0].mxu0
      %v7893 = vpop.f32.mrb[0].mxu0
      %v7894 = vadd.f32 0.0, %v7893
      %v7895 = vpop.f32.mrb[0].mxu0
      %7896 = vmatprep.mubr.bf16.mxu0 0
      %7897 = vmatmul.mubr.bf16.gmra.mrb[0].mxu0 %v7764
      %v7898 = vpop.f32.mrb[0].mxu0
      %v7899 = vadd.f32 0.0, %v7898
      %v7900 = vpop.f32.mrb[0].mxu0
      %v7901 = vpop.f32.mrb[0].mxu0
      %v7902 = vadd.f32 0.0, %v7901
      %v7903 = vpop.f32.mrb[0].mxu0
      %7904 = vmatprep.mubr.bf16.mxu0 0
      %7905 = vmatmul.mubr.bf16.gmra.mrb[0].mxu0 %v7767
      %v7906 = vpop.f32.mrb[0].mxu0
      %v7907 = vadd.f32 0.0, %v7906
      %v7908 = vpop.f32.mrb[0].mxu0
      %v7909 = vpop.f32.mrb[0].mxu0
      %v7910 = vadd.f32 0.0, %v7909
      %v7911 = vpop.f32.mrb[0].mxu0
      %7912 = vmatprep.mubr.bf16.mxu0 0
      %7913 = vmatmul.mubr.bf16.gmra.mrb[0].mxu0 %v7770
      %v7914 = vpop.f32.mrb[0].mxu0
      %v7915 = vadd.f32 0.0, %v7914
      %v7916 = vpop.f32.mrb[0].mxu0
      %v7917 = vpop.f32.mrb[0].mxu0
      %v7918 = vadd.f32 0.0, %v7917
      %v7919 = vpop.f32.mrb[0].mxu0
      %7920 = vmatprep.mubr.bf16.mxu0 0
      %7921 = vmatmul.mubr.bf16.gmra.mrb[0].mxu0 %v7773
      %v7922 = vpop.f32.mrb[0].mxu0
      %v7923 = vadd.f32 0.0, %v7922
      %v7924 = vpop.f32.mrb[0].mxu0
      %v7925 = vpop.f32.mrb[0].mxu0
      %v7926 = vadd.f32 0.0, %v7925
      %v7927 = vpop.f32.mrb[0].mxu0
      %7928 = vmatprep.mubr.bf16.mxu0 0
      %7929 = vmatmul.mubr.bf16.gmra.mrb[0].mxu0 %v7776
      %v7930 = vpop.f32.mrb[0].mxu0
      %v7931 = vadd.f32 0.0, %v7930
      %v7932 = vpop.f32.mrb[0].mxu0
      %v7933 = vpop.f32.mrb[0].mxu0
      %v7934 = vadd.f32 0.0, %v7933
      %v7935 = vpop.f32.mrb[0].mxu0
      %7936 = vmatprep.mubr.bf16.mxu0 0
      %7937 = vmatmul.mubr.bf16.gmra.mrb[0].mxu0 %v7779
      %v7938 = vpop.f32.mrb[0].mxu0
      %v7939 = vadd.f32 0.0, %v7938
      %v7940 = vpop.f32.mrb[0].mxu0
      %v7941 = vpop.f32.mrb[0].mxu0
      %v7942 = vadd.f32 0.0, %v7941
      %v7943 = vpop.f32.mrb[0].mxu0
      %7944 = vdwg.mxu0
      %v7945 = vadd.f32 %v6123, %v7819
      %v7946 = vadd.f32 %v6124, %v7822
      %v7947 = vadd.f32 %v6125, %v7827
      %v7948 = vadd.f32 %v6126, %v7830
      %v7949 = vadd.f32 %v6127, %v7835
      %v7950 = vadd.f32 %v6128, %v7838
      %v7951 = vadd.f32 %v6129, %v7843
      %v7952 = vadd.f32 %v6130, %v7846
      %v7953 = vadd.f32 %v6131, %v7851
      %v7954 = vadd.f32 %v6132, %v7854
      %v7955 = vadd.f32 %v6133, %v7859
      %v7956 = vadd.f32 %v6134, %v7862
      %v7957 = vadd.f32 %v6135, %v7867
      %v7958 = vadd.f32 %v6136, %v7870
      %v7959 = vadd.f32 %v6137, %v7875
      %v7960 = vadd.f32 %v6138, %v7878
      %v7961 = vadd.f32 %v6139, %v7883
      %v7962 = vadd.f32 %v6140, %v7886
      %v7963 = vadd.f32 %v6141, %v7891
      %v7964 = vadd.f32 %v6142, %v7894
      %v7965 = vadd.f32 %v6143, %v7899
      %v7966 = vadd.f32 %v6144, %v7902
      %v7967 = vadd.f32 %v6145, %v7907
      %v7968 = vadd.f32 %v6146, %v7910
      %v7969 = vadd.f32 %v6147, %v7915
      %v7970 = vadd.f32 %v6148, %v7918
      %v7971 = vadd.f32 %v6149, %v7923
      %v7972 = vadd.f32 %v6150, %v7926
      %v7973 = vadd.f32 %v6151, %v7931
      %v7974 = vadd.f32 %v6152, %v7934
      %v7975 = vadd.f32 %v6153, %v7939
      %v7976 = vadd.f32 %v6154, %v7942
      %v7977 = vld [vmem:[%s5] sm:$0x1]
      %v7979 = vlaneseq
      %v7980 = vshrl.u32 %v7979, 7
      %v7981 = vsub.s32 0, %v7980
      %v7982 = vrot.slane %v7977, %v7981
      %v7984 = vadd.f32 %v7945, %v7982
      %v7985 = vadd.f32 %v7946, %v7982
      %v7986 = vadd.f32 %v7947, %v7982
      %v7987 = vadd.f32 %v7948, %v7982
      %v7988 = vadd.f32 %v7949, %v7982
      %v7989 = vadd.f32 %v7950, %v7982
      %v7990 = vadd.f32 %v7951, %v7982
      %v7991 = vadd.f32 %v7952, %v7982
      %v7992 = vadd.f32 %v7953, %v7982
      %v7993 = vadd.f32 %v7954, %v7982
      %v7994 = vadd.f32 %v7955, %v7982
      %v7995 = vadd.f32 %v7956, %v7982
      %v7996 = vadd.f32 %v7957, %v7982
      %v7997 = vadd.f32 %v7958, %v7982
      %v7998 = vadd.f32 %v7959, %v7982
      %v7999 = vadd.f32 %v7960, %v7982
      %v8000 = vadd.f32 %v7961, %v7982
      %v8001 = vadd.f32 %v7962, %v7982
      %v8002 = vadd.f32 %v7963, %v7982
      %v8003 = vadd.f32 %v7964, %v7982
      %v8004 = vadd.f32 %v7965, %v7982
      %v8005 = vadd.f32 %v7966, %v7982
      %v8006 = vadd.f32 %v7967, %v7982
      %v8007 = vadd.f32 %v7968, %v7982
      %v8008 = vadd.f32 %v7969, %v7982
      %v8009 = vadd.f32 %v7970, %v7982
      %v8010 = vadd.f32 %v7971, %v7982
      %v8011 = vadd.f32 %v7972, %v7982
      %v8012 = vadd.f32 %v7973, %v7982
      %v8013 = vadd.f32 %v7974, %v7982
      %v8014 = vadd.f32 %v7975, %v7982
      %v8015 = vadd.f32 %v7976, %v7982
      %vm8016 = vcmask 261120
      %8017 = vst.msk [vmem:[%s308] sm:$0xff] %vm8016, %v7984
      %8018 = vst.msk [vmem:[%s308 + $0x8] sm:$0xff] %vm8016, %v7985
      %8019 = vst.msk [vmem:[%s308 + $0x10] sm:$0xff] %vm8016, %v7986
      %8020 = vst.msk [vmem:[%s308 + $0x18] sm:$0xff] %vm8016, %v7987
      %8021 = vst.msk [vmem:[%s308 + $0x20] sm:$0xff] %vm8016, %v7988
      %8022 = vst.msk [vmem:[%s308 + $0x28] sm:$0xff] %vm8016, %v7989
      %8023 = vst.msk [vmem:[%s308 + $0x30] sm:$0xff] %vm8016, %v7990
      %8024 = vst.msk [vmem:[%s308 + $0x38] sm:$0xff] %vm8016, %v7991
      %8025 = vst.msk [vmem:[%s308 + $0x40] sm:$0xff] %vm8016, %v7992
      %8026 = vst.msk [vmem:[%s308 + $0x48] sm:$0xff] %vm8016, %v7993
      %8027 = vst.msk [vmem:[%s308 + $0x50] sm:$0xff] %vm8016, %v7994
      %8028 = vst.msk [vmem:[%s308 + $0x58] sm:$0xff] %vm8016, %v7995
      %8029 = vst.msk [vmem:[%s308 + $0x60] sm:$0xff] %vm8016, %v7996
      %8030 = vst.msk [vmem:[%s308 + $0x68] sm:$0xff] %vm8016, %v7997
      %8031 = vst.msk [vmem:[%s308 + $0x70] sm:$0xff] %vm8016, %v7998
      %8032 = vst.msk [vmem:[%s308 + $0x78] sm:$0xff] %vm8016, %v7999
      %8033 = vst.msk [vmem:[%s308 + $0x80] sm:$0xff] %vm8016, %v8000
      %8034 = vst.msk [vmem:[%s308 + $0x88] sm:$0xff] %vm8016, %v8001
      %8035 = vst.msk [vmem:[%s308 + $0x90] sm:$0xff] %vm8016, %v8002
      %8036 = vst.msk [vmem:[%s308 + $0x98] sm:$0xff] %vm8016, %v8003
      %8037 = vst.msk [vmem:[%s308 + $0xa0] sm:$0xff] %vm8016, %v8004
      %8038 = vst.msk [vmem:[%s308 + $0xa8] sm:$0xff] %vm8016, %v8005
      %8039 = vst.msk [vmem:[%s308 + $0xb0] sm:$0xff] %vm8016, %v8006
      %8040 = vst.msk [vmem:[%s308 + $0xb8] sm:$0xff] %vm8016, %v8007
      %8041 = vst.msk [vmem:[%s308 + $0xc0] sm:$0xff] %vm8016, %v8008
      %8042 = vst.msk [vmem:[%s308 + $0xc8] sm:$0xff] %vm8016, %v8009
      %8043 = vst.msk [vmem:[%s308 + $0xd0] sm:$0xff] %vm8016, %v8010
      %8044 = vst.msk [vmem:[%s308 + $0xd8] sm:$0xff] %vm8016, %v8011
      %8045 = vst.msk [vmem:[%s308 + $0xe0] sm:$0xff] %vm8016, %v8012
      %8046 = vst.msk [vmem:[%s308 + $0xe8] sm:$0xff] %vm8016, %v8013
      %8047 = vst.msk [vmem:[%s308 + $0xf0] sm:$0xff] %vm8016, %v8014
      %8048 = vst.msk [vmem:[%s308 + $0xf8] sm:$0xff] %vm8016, %v8015
      %s8049 = smul.u32 4, %s17
      %p8050 = scmp.lt.s32.totalorder %s8049, 7
      %s8051 = scalar_select %p8050, %s8049, 7
      %s8052 = smul.addr %s8051, 8
      %s8053 = smul.addr %s8052, 8
      %s8054 = scalar_lea.vmem %s6, %s8053
      // Predicated region
      $region45: #{tpu_custom_call.1} parent=43 // pred_check
        %p8055 = pneg %p176
      $region46: #{tpu_custom_call.1} parent=43 // pred_check_branch
        %8057 = sbr.rel (%p8055) target = $region48
      $region47: #{tpu_custom_call.1} parent=43 // pred_region
        %s8058 = smul.u32 4, %s17
      $region48: #{tpu_custom_call.1} parent=43 // pred_fallthru
        _
    $region44: #{tpu_custom_call.1} parent=5 // pred_fallthru
      _
    %p8059 = scmp.le.s32.totalorder 2, %s12
    // Predicated region
    $region49: #{tpu_custom_call.1} parent=5 // pred_check
      %p8060 = pneg %p8059
    $region50: #{tpu_custom_call.1} parent=5 // pred_check_branch
      %8062 = sbr.rel (%p8060) target = $region52
    $region51: #{tpu_custom_call.1} parent=5 // pred_region
      %s8063 = ssub.s32 %s12, 2
      // Predicated region
      $region53: #{tpu_custom_call.1} parent=51 // pred_check
        %p8064 = pneg %p182
      $region54: #{tpu_custom_call.1} parent=51 // pred_check_branch
        %8066 = sbr.rel (%p8064) target = $region56
      $region55: #{tpu_custom_call.1} parent=51 // pred_region
        %s8067 = smul.u32 4, %s18
        %p8068 = scmp.lt.s32.totalorder %s8067, 7
        %s8069 = scalar_select %p8068, %s8067, 7
        %s8070 = smul.addr %s8069, 8
        %s8071 = smul.addr %s8070, 8
        %s8072 = scalar_lea.vmem %s6, %s8071
      $region56: #{tpu_custom_call.1} parent=51 // pred_fallthru
        _
    $region52: #{tpu_custom_call.1} parent=5 // pred_fallthru
      _
  $region6: #{tpu_custom_call.1} parent=0 // loop_footer
    %s16 = sadd.s32 1, %s12
  $region7: #{tpu_custom_call.1} parent=0 // loop_footer_branch
    %11 = sbr.rel target = $region3
  $region8: #{tpu_custom_call.1} parent=0 // loop_exit
    _

</llo_original>
